<compile_context>
chip_gen: v6e
topology: v6e:2x2x1
jax: 0.10.0
libtpu: 0.0.40
codegen_flags: <defaults>
</compile_context>

<pallas_src>
import jax
import jax.numpy as jnp
from jax import lax
from jax.experimental import pallas as pl
from jax.experimental.pallas import tpu as pltpu

F32 = jnp.float32
BF16 = jnp.bfloat16
BN_EPS = 1e-5

PRIMITIVES = [
    'none', 'max_pool_3x3', 'avg_pool_3x3', 'skip_connect',
    'sep_conv_3x3', 'sep_conv_5x5', 'dil_conv_3x3', 'dil_conv_5x5',
]


# ----------------------------------------------------------------------------
# VMEM budget (chip-aware, conservative fallback)
# ----------------------------------------------------------------------------
def _vmem_limit():
    try:
        info = pltpu.get_tpu_info()
        cap = getattr(info, "vmem_capacity_bytes", None)
        if cap:
            return int(min(cap * 3 // 4, 100 * 1024 * 1024))
    except Exception:
        pass
    return 48 * 1024 * 1024          # safe on v7x (64 MiB physical per TC)


VMEM_LIMIT = _vmem_limit()

_VMEM = pl.BlockSpec(memory_space=pltpu.MemorySpace.VMEM)
_SMEM = pl.BlockSpec(memory_space=pltpu.MemorySpace.SMEM)
_CP_PLAIN = pltpu.CompilerParams(vmem_limit_bytes=VMEM_LIMIT)
_CP_PAR = pltpu.CompilerParams(dimension_semantics=("parallel",),
                               vmem_limit_bytes=VMEM_LIMIT)
_CP_ARB = pltpu.CompilerParams(dimension_semantics=("arbitrary",),
                               vmem_limit_bytes=VMEM_LIMIT)


# ----------------------------------------------------------------------------
# Deterministic parameter init
# ----------------------------------------------------------------------------
_BASE_KEY = jax.random.PRNGKey(0)
_COUNTER = [0]


def _next_key():
    _COUNTER[0] += 1
    return jax.random.fold_in(_BASE_KEY, _COUNTER[0])


def _conv_init(c_out, c_in, k):
    fan_in = c_in * k * k
    return ((2.0 / fan_in) ** 0.5) * jax.random.normal(_next_key(), (c_out, c_in, k, k), dtype=F32)


def _dwconv_init(c, k):
    fan_in = k * k
    return ((2.0 / fan_in) ** 0.5) * jax.random.normal(_next_key(), (c, 1, k, k), dtype=F32)


# ----------------------------------------------------------------------------
# Tiling helpers
# ----------------------------------------------------------------------------
def _round_up(x, m):
    return ((x + m - 1) // m) * m


def _lane_tile(m):
    """Largest lane tile from {2048..128} that divides m; m itself if not 128-aligned."""
    for t in (2048, 1024, 512, 256, 128):
        if m % t == 0:
            return t
    return m


def _pad_lanes(a, mp):
    m = a.shape[-1]
    if m == mp:
        return a
    cfg = [(0, 0)] * (a.ndim - 1) + [(0, mp - m)]
    return jnp.pad(a, cfg)


# ----------------------------------------------------------------------------
# Kernels
# ----------------------------------------------------------------------------
def _make_mm_bn_kernel(apply_relu):
    """(ReLU ->) W @ patches, lane-dense output, fused per-channel sum/sumsq accumulators."""
    def kernel(w_ref, p_ref, y_ref, s_ref, ss_ref):
        p = p_ref[...]
        if apply_relu:
            p = jnp.maximum(p, 0.0)
        y = jnp.dot(w_ref[...], p.astype(BF16), preferred_element_type=jnp.float32)
        y_ref[...] = y

        @pl.when(pl.program_id(0) == 0)
        def _init():
            s_ref[...] = jnp.zeros_like(s_ref)
            ss_ref[...] = jnp.zeros_like(ss_ref)

        s_ref[...] += jnp.sum(y, axis=1, keepdims=True)
        ss_ref[...] += jnp.sum(y * y, axis=1, keepdims=True)
    return kernel


def _make_dwpw_bn_kernel(kk, apply_relu):
    """Fused (ReLU ->) depthwise kxk conv (f32 MAC) -> 1x1 pointwise conv (bf16 MXU) + BN stats."""
    def kernel(p_ref, dw_ref, pw_ref, y_ref, s_ref, ss_ref):
        def tap(i):
            t = p_ref[i].astype(jnp.float32)
            return jnp.maximum(t, 0.0) if apply_relu else t

        acc = tap(0) * dw_ref[0]
        for i in range(1, kk):
            acc = acc + tap(i) * dw_ref[i]
        y = jnp.dot(pw_ref[...], acc.astype(BF16), preferred_element_type=jnp.float32)
        y_ref[...] = y

        @pl.when(pl.program_id(0) == 0)
        def _init():
            s_ref[...] = jnp.zeros_like(s_ref)
            ss_ref[...] = jnp.zeros_like(ss_ref)

        s_ref[...] += jnp.sum(y, axis=1, keepdims=True)
        ss_ref[...] += jnp.sum(y * y, axis=1, keepdims=True)
    return kernel


def _make_bn_apply_kernel(inv_count):
    """Normalize a (C, tm) tile with mean/var recovered from the per-channel sum/sumsq."""
    def kernel(s_ref, ss_ref, y_ref, o_ref):
        mean = s_ref[...] * inv_count
        var = jnp.maximum(ss_ref[...] * inv_count - mean * mean, 0.0)
        o_ref[...] = (y_ref[...] - mean) * lax.rsqrt(var + BN_EPS)
    return kernel


def _make_maxpool_kernel(kk):
    def kernel(p_ref, y_ref):
        acc = p_ref[0]
        for i in range(1, kk):
            acc = jnp.maximum(acc, p_ref[i])
        y_ref[...] = acc.astype(jnp.float32)
    return kernel


def _make_maxpool_bn_kernel(kk):
    def kernel(p_ref, y_ref, s_ref, ss_ref):
        acc = p_ref[0]
        for i in range(1, kk):
            acc = jnp.maximum(acc, p_ref[i])
        y = acc.astype(jnp.float32)
        y_ref[...] = y

        @pl.when(pl.program_id(0) == 0)
        def _init():
            s_ref[...] = jnp.zeros_like(s_ref)
            ss_ref[...] = jnp.zeros_like(ss_ref)

        s_ref[...] += jnp.sum(y, axis=1, keepdims=True)
        ss_ref[...] += jnp.sum(y * y, axis=1, keepdims=True)
    return kernel


def _make_avgpool_bn_kernel(kk):
    def kernel(p_ref, inv_ref, y_ref, s_ref, ss_ref):
        acc = p_ref[0].astype(jnp.float32)
        for i in range(1, kk):
            acc = acc + p_ref[i].astype(jnp.float32)
        y = acc * inv_ref[...]
        y_ref[...] = y

        @pl.when(pl.program_id(0) == 0)
        def _init():
            s_ref[...] = jnp.zeros_like(s_ref)
            ss_ref[...] = jnp.zeros_like(ss_ref)

        s_ref[...] += jnp.sum(y, axis=1, keepdims=True)
        ss_ref[...] += jnp.sum(y * y, axis=1, keepdims=True)
    return kernel


def _make_wsum_kernel(n):
    """n separate VMEM refs + scalar weights in SMEM -> weighted sum, gridded over M."""
    def kernel(*refs):
        w_ref = refs[n]
        o_ref = refs[n + 1]
        acc = refs[0][...] * w_ref[0, 0]
        for i in range(1, n):
            acc = acc + refs[i][...] * w_ref[i, 0]
        o_ref[...] = acc
    return kernel


def _gap_linear_kernel(x_ref, avg_ref, w_ref, b_ref, o_ref):
    # Global average pool as a matmul against a block-averaging matrix, then classifier.
    gap = jnp.dot(x_ref[...], avg_ref[...], preferred_element_type=jnp.float32)   # (C, N)
    o_ref[...] = jnp.dot(w_ref[...], gap, preferred_element_type=jnp.float32) + b_ref[...]


# ----------------------------------------------------------------------------
# Gridded pallas_call wrappers
# ----------------------------------------------------------------------------
def _conv_stats(wm, patches, apply_relu):
    """wm: (c_out, K) f32; patches: (K, Mp) f32/bf16, Mp % 128 == 0.
    Returns y_pad (c_out, Mp) f32 and per-channel sum / sumsq (c_out, 1)."""
    c_out, kdim = wm.shape
    mp = patches.shape[1]
    tm = _lane_tile(mp)
    return pl.pallas_call(
        _make_mm_bn_kernel(apply_relu),
        out_shape=(jax.ShapeDtypeStruct((c_out, mp), F32),
                   jax.ShapeDtypeStruct((c_out, 1), F32),
                   jax.ShapeDtypeStruct((c_out, 1), F32)),
        grid_spec=pltpu.PrefetchScalarGridSpec(
            num_scalar_prefetch=0,
            grid=(mp // tm,),
            in_specs=[pl.BlockSpec((c_out, kdim), lambda i: (0, 0)),
                      pl.BlockSpec((kdim, tm), lambda i: (0, i))],
            out_specs=[pl.BlockSpec((c_out, tm), lambda i: (0, i)),
                       pl.BlockSpec((c_out, 1), lambda i: (0, 0)),
                       pl.BlockSpec((c_out, 1), lambda i: (0, 0))]),
        compiler_params=_CP_ARB,
    )(wm.astype(BF16), patches)


def _bn_apply(y_pad, s, ss, count):
    """Training-mode BN (gamma=1, beta=0) applied tile-by-tile from accumulated stats."""
    c, mp = y_pad.shape
    tm = _lane_tile(mp)
    return pl.pallas_call(
        _make_bn_apply_kernel(1.0 / float(count)),
        out_shape=jax.ShapeDtypeStruct((c, mp), F32),
        grid_spec=pltpu.PrefetchScalarGridSpec(
            num_scalar_prefetch=0,
            grid=(mp // tm,),
            in_specs=[pl.BlockSpec((c, 1), lambda i: (0, 0)),
                      pl.BlockSpec((c, 1), lambda i: (0, 0)),
                      pl.BlockSpec((c, tm), lambda i: (0, i))],
            out_specs=pl.BlockSpec((c, tm), lambda i: (0, i))),
        compiler_params=_CP_PAR,
    )(s, ss, y_pad)


# ----------------------------------------------------------------------------
# Glue: channel-major patch extraction + op wrappers
# ----------------------------------------------------------------------------
def _extract_patches_cm(x, k, stride, padding, dilation=1, pad_value=0.0):
    """x: (C, N, H, W) -> list of k*k slabs, each (C, N*Ho*Wo)."""
    c, n, h, w = x.shape
    ho = (h + 2 * padding - dilation * (k - 1) - 1) // stride + 1
    wo = (w + 2 * padding - dilation * (k - 1) - 1) // stride + 1
    xp = jnp.pad(x, ((0, 0), (0, 0), (padding, padding), (padding, padding)),
                 constant_values=pad_value)
    slabs = []
    for dy in range(k):
        for dx in range(k):
            y0 = dy * dilation
            x0 = dx * dilation
            s = lax.slice(xp, (0, 0, y0, x0),
                          (c, n, y0 + (ho - 1) * stride + 1, x0 + (wo - 1) * stride + 1),
                          (1, 1, stride, stride))
            slabs.append(s.reshape(c, n * ho * wo))
    return slabs, ho, wo


def conv_bn_cm(x, w, stride=1, padding=0, dilation=1, apply_relu=False):
    """(ReLU ->) Conv2d (no bias) -> BN, channel-major.  x: (C_in,N,H,W) -> (C_out,N,Ho,Wo)."""
    c_out, c_in, kh, kw = w.shape
    _, n, h, wd = x.shape
    if kh == 1 and kw == 1 and stride == 1 and padding == 0 and dilation == 1:
        patches = x.reshape(c_in, n * h * wd)                 # f32, cast to bf16 in-kernel
        ho, wo = h, wd
    else:
        slabs, ho, wo = _extract_patches_cm(x.astype(BF16), kh, stride, padding, dilation)
        patches = jnp.stack(slabs, axis=1).reshape(c_in * kh * kw, n * ho * wo)
    m = n * ho * wo
    mp = _round_up(m, 128)
    patches = _pad_lanes(patches, mp)
    wm = w.reshape(c_out, c_in * kh * kw)
    y_pad, s, ss = _conv_stats(wm, patches, apply_relu)
    y = _bn_apply(y_pad, s, ss, m)
    if mp != m:
        y = y[:, :m]
    return y.reshape(c_out, n, ho, wo)


def dwconv_pwconv_bn_cm(x, dw_w, pw_w, stride, padding, dilation, apply_relu=True):
    """Fused (ReLU ->) depthwise conv -> 1x1 pointwise conv -> BN, channel-major."""
    c, n, _, _ = x.shape
    k = dw_w.shape[2]
    kk = k * k
    slabs, ho, wo = _extract_patches_cm(x.astype(BF16), k, stride, padding, dilation)
    m = n * ho * wo
    mp = _round_up(m, 128)
    p = _pad_lanes(jnp.stack(slabs, axis=0), mp)               # (kk, c, Mp) bf16
    wk = dw_w.reshape(c, kk).T.reshape(kk, c, 1)               # f32
    c_out = pw_w.shape[0]
    pwm = pw_w.reshape(c_out, c).astype(BF16)
    tm = _lane_tile(mp)
    y_pad, s, ss = pl.pallas_call(
        _make_dwpw_bn_kernel(kk, apply_relu),
        out_shape=(jax.ShapeDtypeStruct((c_out, mp), F32),
                   jax.ShapeDtypeStruct((c_out, 1), F32),
                   jax.ShapeDtypeStruct((c_out, 1), F32)),
        grid_spec=pltpu.PrefetchScalarGridSpec(
            num_scalar_prefetch=0,
            grid=(mp // tm,),
            in_specs=[pl.BlockSpec((kk, c, tm), lambda i: (0, 0, i)),
                      pl.BlockSpec((kk, c, 1), lambda i: (0, 0, 0)),
                      pl.BlockSpec((c_out, c), lambda i: (0, 0))],
            out_specs=[pl.BlockSpec((c_out, tm), lambda i: (0, i)),
                       pl.BlockSpec((c_out, 1), lambda i: (0, 0)),
                       pl.BlockSpec((c_out, 1), lambda i: (0, 0))]),
        compiler_params=_CP_ARB,
    )(p, wk, pwm)
    y = _bn_apply(y_pad, s, ss, m)
    if mp != m:
        y = y[:, :m]
    return y.reshape(c_out, n, ho, wo)


def max_pool_cm(x, k, stride, padding, fuse_bn=False):
    c, n, _, _ = x.shape
    slabs, ho, wo = _extract_patches_cm(x.astype(BF16), k, stride, padding,
                                        pad_value=-jnp.inf)
    m = n * ho * wo
    mp = _round_up(m, 128)
    p = _pad_lanes(jnp.stack(slabs, axis=0), mp)     # padded columns are 0 -> stats-safe
    tm = _lane_tile(mp)
    kk = k * k
    if fuse_bn:
        y_pad, s, ss = pl.pallas_call(
            _make_maxpool_bn_kernel(kk),
            out_shape=(jax.ShapeDtypeStruct((c, mp), F32),
                       jax.ShapeDtypeStruct((c, 1), F32),
                       jax.ShapeDtypeStruct((c, 1), F32)),
            grid_spec=pltpu.PrefetchScalarGridSpec(
                num_scalar_prefetch=0,
                grid=(mp // tm,),
                in_specs=[pl.BlockSpec((kk, c, tm), lambda i: (0, 0, i))],
                out_specs=[pl.BlockSpec((c, tm), lambda i: (0, i)),
                           pl.BlockSpec((c, 1), lambda i: (0, 0)),
                           pl.BlockSpec((c, 1), lambda i: (0, 0))]),
            compiler_params=_CP_ARB,
        )(p)
        y = _bn_apply(y_pad, s, ss, m)
    else:
        y = pl.pallas_call(
            _make_maxpool_kernel(kk),
            out_shape=jax.ShapeDtypeStruct((c, mp), F32),
            grid_spec=pltpu.PrefetchScalarGridSpec(
                num_scalar_prefetch=0,
                grid=(mp // tm,),
                in_specs=[pl.BlockSpec((kk, c, tm), lambda i: (0, 0, i))],
                out_specs=pl.BlockSpec((c, tm), lambda i: (0, i))),
            compiler_params=_CP_PAR,
        )(p)
    if mp != m:
        y = y[:, :m]
    return y.reshape(c, n, ho, wo)


def avg_pool3x3_bn_cm(x, stride):
    # AvgPool2d(3, stride, padding=1, count_include_pad=False) + fused BN stats.
    c, n, h, w = x.shape
    k, padding = 3, 1
    slabs, ho, wo = _extract_patches_cm(x.astype(BF16), k, stride, padding, pad_value=0.0)
    m = n * ho * wo
    mp = _round_up(m, 128)
    p = _pad_lanes(jnp.stack(slabs, axis=0), mp)
    ones = jnp.ones((1, 1, h, w), F32)
    cnt_slabs, _, _ = _extract_patches_cm(ones, k, stride, padding, pad_value=0.0)
    cnt = cnt_slabs[0]
    for s in cnt_slabs[1:]:
        cnt = cnt + s                                                   # (1, ho*wo)
    inv = 1.0 / cnt
    inv_full = _pad_lanes(
        jnp.tile(inv.reshape(1, 1, ho * wo), (1, n, 1)).reshape(1, n * ho * wo), mp)
    tm = _lane_tile(mp)
    kk = k * k
    y_pad, s, ss = pl.pallas_call(
        _make_avgpool_bn_kernel(kk),
        out_shape=(jax.ShapeDtypeStruct((c, mp), F32),
                   jax.ShapeDtypeStruct((c, 1), F32),
                   jax.ShapeDtypeStruct((c, 1), F32)),
        grid_spec=pltpu.PrefetchScalarGridSpec(
            num_scalar_prefetch=0,
            grid=(mp // tm,),
            in_specs=[pl.BlockSpec((kk, c, tm), lambda i: (0, 0, i)),
                      pl.BlockSpec((1, tm), lambda i: (0, i))],
            out_specs=[pl.BlockSpec((c, tm), lambda i: (0, i)),
                       pl.BlockSpec((c, 1), lambda i: (0, 0)),
                       pl.BlockSpec((c, 1), lambda i: (0, 0))]),
        compiler_params=_CP_ARB,
    )(p, inv_full)
    y = _bn_apply(y_pad, s, ss, m)
    if mp != m:
        y = y[:, :m]
    return y.reshape(c, n, ho, wo)


def pallas_weighted_sum(xs, weights):
    """xs: list of (C, N, H, W) f32; weights: (n,) f32 -> weighted sum, gridded over M."""
    n = len(xs)
    shp = xs[0].shape
    c = shp[0]
    m = shp[1] * shp[2] * shp[3]
    tm = _lane_tile(m)          # whole-M single block only when M is tiny (< 128)
    y = pl.pallas_call(
        _make_wsum_kernel(n),
        out_shape=jax.ShapeDtypeStruct((c, m), F32),
        grid_spec=pltpu.PrefetchScalarGridSpec(
            num_scalar_prefetch=0,
            grid=(m // tm,),
            in_specs=[pl.BlockSpec((c, tm), lambda i: (0, i))] * n + [_SMEM],
            out_specs=pl.BlockSpec((c, tm), lambda i: (0, i))),
        compiler_params=_CP_PAR,
    )(*[x.reshape(c, m) for x in xs],
      weights.astype(F32).reshape(n, 1))
    return y.reshape(shp)


def gap_linear_cm(x, clf_w, clf_b):
    """x: (C, N, H, W) -> logits (N, num_classes); fused AdaptiveAvgPool2d(1) + Linear."""
    c, n, h, w = x.shape
    hw = h * w
    avg = jnp.repeat(jnp.eye(n, dtype=F32), hw, axis=0) / float(hw)     # (N*HW, N)
    num_classes = clf_w.shape[0]
    y = pl.pallas_call(_gap_linear_kernel,
                       out_shape=jax.ShapeDtypeStruct((num_classes, n), F32),
                       in_specs=[_VMEM] * 4, out_specs=_VMEM,
                       compiler_params=_CP_PLAIN)(
        x.reshape(c, n * hw), avg, clf_w.astype(F32), clf_b.reshape(num_classes, 1))
    return y.T


def channel_shuffle_cm(x, groups):
    # TODO(synk): fold this permutation into the consumers' index_maps instead of a copy.
    c, n, h, w = x.shape
    cpg = c // groups
    x = x.reshape(groups, cpg, n, h, w)
    x = jnp.transpose(x, (1, 0, 2, 3, 4))
    return x.reshape(c, n, h, w)


# ----------------------------------------------------------------------------
# DARTS operations (ReLUConvBN / FactorizedReduce / SepConv / DilConv / pools)
# ----------------------------------------------------------------------------
def make_relu_conv_bn(c_in, c_out, kernel, stride, padding):
    w = _conv_init(c_out, c_in, kernel)

    def fwd(x):
        return conv_bn_cm(x, w, stride=stride, padding=padding, apply_relu=True)
    return fwd


def make_factorized_reduce(c_in, c_out):
    # Packed into ONE matmul: block-diagonal weight, both strided patch sets stacked on K.
    assert c_out % 2 == 0
    c2 = c_out // 2
    w1 = _conv_init(c2, c_in, 1).reshape(c2, c_in)
    w2 = _conv_init(c2, c_in, 1).reshape(c2, c_in)
    z = jnp.zeros((c2, c_in), F32)
    w_blk = jnp.concatenate([jnp.concatenate([w1, z], axis=1),
                             jnp.concatenate([z, w2], axis=1)], axis=0)   # (c_out, 2*c_in)

    def fwd(x):
        c, n, h, wd = x.shape
        ho, wo = h // 2, wd // 2
        m = n * ho * wo
        mp = _round_up(m, 128)
        p1 = lax.slice(x, (0, 0, 0, 0), (c, n, 2 * ho, 2 * wo), (1, 1, 2, 2)).reshape(c, m)
        p2 = lax.slice(x, (0, 0, 1, 1), (c, n, 2 * ho, 2 * wo), (1, 1, 2, 2)).reshape(c, m)
        patches = _pad_lanes(jnp.concatenate([p1, p2], axis=0), mp)       # (2c, Mp) f32
        y_pad, s, ss = _conv_stats(w_blk, patches, apply_relu=True)
        y = _bn_apply(y_pad, s, ss, m)
        if mp != m:
            y = y[:, :m]
        return y.reshape(c_out, n, ho, wo)
    return fwd


def make_sep_conv(c_in, c_out, kernel, stride, padding):
    dw1 = _dwconv_init(c_in, kernel)
    pw1 = _conv_init(c_in, c_in, 1)
    dw2 = _dwconv_init(c_in, kernel)
    pw2 = _conv_init(c_out, c_in, 1)

    def fwd(x):
        x = dwconv_pwconv_bn_cm(x, dw1, pw1, stride, padding, 1, apply_relu=True)
        x = dwconv_pwconv_bn_cm(x, dw2, pw2, 1, padding, 1, apply_relu=True)
        return x
    return fwd


def make_dil_conv(c_in, c_out, kernel, stride, padding, dilation):
    dw = _dwconv_init(c_in, kernel)
    pw = _conv_init(c_out, c_in, 1)

    def fwd(x):
        return dwconv_pwconv_bn_cm(x, dw, pw, stride, padding, dilation, apply_relu=True)
    return fwd


def make_op(primitive, c, stride):
    if primitive == 'none':
        return None                                    # dropped from the weighted sum
    if primitive == 'max_pool_3x3':
        return lambda x: max_pool_cm(x, 3, stride, 1, fuse_bn=True)
    if primitive == 'avg_pool_3x3':
        return lambda x: avg_pool3x3_bn_cm(x, stride)
    if primitive == 'skip_connect':
        return (lambda x: x) if stride == 1 else make_factorized_reduce(c, c)
    if primitive == 'sep_conv_3x3':
        return make_sep_conv(c, c, 3, stride, 1)
    if primitive == 'sep_conv_5x5':
        return make_sep_conv(c, c, 5, stride, 2)
    if primitive == 'dil_conv_3x3':
        return make_dil_conv(c, c, 3, stride, 2, 2)
    if primitive == 'dil_conv_5x5':
        return make_dil_conv(c, c, 5, stride, 4, 2)
    raise ValueError(primitive)


# ----------------------------------------------------------------------------
# MixedOp / Cell / Network  (activations are channel-major (C, N, H, W))
# ----------------------------------------------------------------------------
def make_mixed_op(C, stride, k=4):
    assert PRIMITIVES[0] == 'none'
    # 'none' contributes exactly zero -> skip it (bit-identical, one less HBM round trip)
    ops = [make_op(p, C // k, stride) for p in PRIMITIVES[1:]]

    def fwd(x, weights_alpha):
        dim_2 = x.shape[0]                       # channel axis
        xtemp = x[:dim_2 // k]
        skip = x[dim_2 // k:]
        op_outs = [op(xtemp) for op in ops]
        mixed = pallas_weighted_sum(op_outs, weights_alpha[1:])
        if mixed.shape[2] != x.shape[2]:         # spatial H axis
            skip = max_pool_cm(skip, 2, 2, 0, fuse_bn=False)
        ans = jnp.concatenate([mixed, skip], axis=0)
        return channel_shuffle_cm(ans, k)
    return fwd


def make_cell(steps, multiplier, c_pp, c_p, c, reduction, reduction_prev, k):
    pre0 = make_factorized_reduce(c_pp, c) if reduction_prev else make_relu_conv_bn(c_pp, c, 1, 1, 0)
    pre1 = make_relu_conv_bn(c_p, c, 1, 1, 0)
    ops = []
    for i in range(steps):
        for j in range(2 + i):
            stride = 2 if reduction and j < 2 else 1
            ops.append(make_mixed_op(c, stride, k))

    def fwd(s0, s1, wa, wb):
        s0 = pre0(s0)
        s1 = pre1(s1)
        states = [s0, s1]
        offset = 0
        for _ in range(steps):
            terms = [ops[offset + j](h, wa[offset + j]) for j, h in enumerate(states)]
            s = pallas_weighted_sum(terms, wb[offset:offset + len(states)])
            offset += len(states)
            states.append(s)
        return jnp.concatenate(states[-multiplier:], axis=0)
    return fwd


def make_network(C, num_classes, layers, steps=4, multiplier=4, stem_multiplier=3, k=4):
    c_stem = stem_multiplier * C
    stem_w = _conv_init(c_stem, 3, 3)

    c_pp, c_p, c_curr = c_stem, c_stem, C
    cells = []
    reduction_prev = False
    for i in range(layers):
        if i in [layers // 3, 2 * layers // 3]:
            c_curr *= 2
            reduction = True
        else:
            reduction = False
        cell_fwd = make_cell(steps, multiplier, c_pp, c_p, c_curr, reduction, reduction_prev, k)
        cells.append((cell_fwd, reduction))
        reduction_prev = reduction
        c_pp, c_p = c_p, multiplier * c_curr

    clf_w = ((1.0 / c_p) ** 0.5) * jax.random.normal(_next_key(), (num_classes, c_p), dtype=F32)
    clf_b = jnp.zeros((num_classes,), F32)

    n_edges = sum(1 for i in range(steps) for _ in range(2 + i))
    num_ops = len(PRIMITIVES)
    alphas_normal = 1e-3 * jax.random.normal(jax.random.fold_in(_BASE_KEY, 9001), (n_edges, num_ops), F32)
    alphas_reduce = 1e-3 * jax.random.normal(jax.random.fold_in(_BASE_KEY, 9002), (n_edges, num_ops), F32)
    betas_normal = 1e-3 * jax.random.normal(jax.random.fold_in(_BASE_KEY, 9003), (n_edges,), F32)
    betas_reduce = 1e-3 * jax.random.normal(jax.random.fold_in(_BASE_KEY, 9004), (n_edges,), F32)

    # arch-parameter softmaxes are tiny parameter preprocessing -> plain JAX glue
    def forward_search(reduction):
        alphas = alphas_reduce if reduction else alphas_normal
        betas = betas_reduce if reduction else betas_normal
        wa = jax.nn.softmax(alphas, axis=-1)
        n, start = 3, 2
        wb = jax.nn.softmax(betas[0:2], axis=-1)
        for _ in range(steps - 1):
            end = start + n
            wb = jnp.concatenate([wb, jax.nn.softmax(betas[start:end], axis=-1)], axis=0)
            start = end
            n += 1
        return wa, wb

    def forward(x):
        # x: NCHW -> channel-major (C, N, H, W) once at entry
        x_cm = jnp.transpose(x, (1, 0, 2, 3))
        # stem: Conv3x3 + BN (gamma=1, beta=0, training-mode stats) with fused BN stats
        s0 = s1 = conv_bn_cm(x_cm, stem_w, stride=1, padding=1, apply_relu=False)
        for cell_fwd, reduction in cells:
            wa, wb = forward_search(reduction)
            s0, s1 = s1, cell_fwd(s0, s1, wa, wb)
        return gap_linear_cm(s1, clf_w, clf_b)   # fused AdaptiveAvgPool2d(1) + Linear
    return forward


# ----------------------------------------------------------------------------
if __name__ == "__main__":
    # Small but structurally complete config:
    #   C=8, 2 layers (both reduction cells), steps=2, multiplier=2, k=4, 10 classes.
    net = make_network(C=8, num_classes=10, layers=2, steps=2, multiplier=2,
                       stem_multiplier=3, k=4)
    x = jax.random.normal(jax.random.PRNGKey(0), (2, 3, 16, 16), dtype=F32)  # NCHW
    logits = jax.jit(net)(x)
    logits = jax.block_until_ready(logits)
    assert logits.shape == (2, 10), logits.shape
    assert bool(jnp.all(jnp.isfinite(logits)))
    print("KERNEL_OK")
</pallas_src>

<mosaic_0001>
module attributes {stable_mosaic.version = 11 : i64} {
  func.func @kernel(%arg0: i32, %arg1: memref<24x27xbf16, #tpu.memory_space<vmem>>, %arg2: memref<27x512xbf16, #tpu.memory_space<vmem>>, %arg3: memref<24x512xf32, #tpu.memory_space<vmem>>, %arg4: memref<24x1xf32, #tpu.memory_space<vmem>>, %arg5: memref<24x1xf32, #tpu.memory_space<vmem>>) attributes {dimension_semantics = [#tpu.dimension_semantics<arbitrary>], iteration_bounds = array<i64: 1>, scalar_prefetch = 0 : i64, scratch_operands = 0 : i64, tpu.core_type = #tpu.core_type<tc>, window_params = [{pipeline_mode = #tpu.pipeline_mode<synchronous>, transform_indices = @transform_0, window_bounds = array<i64: 24, 27>}, {transform_indices = @transform_1, window_bounds = array<i64: 27, 512>}, {transform_indices = @transform_2, window_bounds = array<i64: 24, 512>}, {pipeline_mode = #tpu.pipeline_mode<synchronous>, transform_indices = @transform_3, window_bounds = array<i64: 24, 1>}, {pipeline_mode = #tpu.pipeline_mode<synchronous>, transform_indices = @transform_4, window_bounds = array<i64: 24, 1>}]} {
    %c0 = arith.constant 0 : index
    %c0_0 = arith.constant 0 : index
    %0 = vector.load %arg2[%c0, %c0_0] : memref<27x512xbf16, #tpu.memory_space<vmem>>, vector<27x512xbf16>
    %c0_1 = arith.constant 0 : index
    %c0_2 = arith.constant 0 : index
    %1 = vector.load %arg1[%c0_1, %c0_2] : memref<24x27xbf16, #tpu.memory_space<vmem>>, vector<24x27xbf16>
    %cst = arith.constant dense<0.000000e+00> : vector<24x512xf32>
    %2 = tpu.matmul %1, %0, %cst {dimension_numbers = #tpu.dot_dimension_numbers<[1], [0], [0], [1], [0, 0, 1, 1], [], []>} : vector<24x27xbf16>, vector<27x512xbf16>, vector<24x512xf32> -> vector<24x512xf32>
    %c0_3 = arith.constant 0 : index
    %c0_4 = arith.constant 0 : index
    %3 = vector.load %arg3[%c0_3, %c0_4] : memref<24x512xf32, #tpu.memory_space<vmem>>, vector<24x512xf32>
    tpu.vector_store %arg3[%c0_3, %c0_4], %2 {strides = array<i32>} : memref<24x512xf32, #tpu.memory_space<vmem>>, vector<24x512xf32>,
    %c0_i32 = arith.constant 0 : i32
    %4 = arith.cmpi eq, %arg0, %c0_i32 : i32
    %5 = arith.extui %4 : i1 to i32
    %c0_i32_5 = arith.constant 0 : i32
    %6 = arith.cmpi ne, %5, %c0_i32_5 : i32
    scf.if %6 {
      %cst_16 = arith.constant 0.000000e+00 : f32
      %18 = vector.broadcast %cst_16 : f32 to vector<24x1xf32>
      %c0_17 = arith.constant 0 : index
      %c0_18 = arith.constant 0 : index
      %19 = vector.load %arg4[%c0_17, %c0_18] : memref<24x1xf32, #tpu.memory_space<vmem>>, vector<24x1xf32>
      tpu.vector_store %arg4[%c0_17, %c0_18], %18 {strides = array<i32>} : memref<24x1xf32, #tpu.memory_space<vmem>>, vector<24x1xf32>,
      %cst_19 = arith.constant 0.000000e+00 : f32
      %20 = vector.broadcast %cst_19 : f32 to vector<24x1xf32>
      %c0_20 = arith.constant 0 : index
      %c0_21 = arith.constant 0 : index
      %21 = vector.load %arg5[%c0_20, %c0_21] : memref<24x1xf32, #tpu.memory_space<vmem>>, vector<24x1xf32>
      tpu.vector_store %arg5[%c0_20, %c0_21], %20 {strides = array<i32>} : memref<24x1xf32, #tpu.memory_space<vmem>>, vector<24x1xf32>,
    } else {
    }
    %c0_6 = arith.constant 0 : index
    %c0_7 = arith.constant 0 : index
    %7 = vector.load %arg4[%c0_6, %c0_7] : memref<24x1xf32, #tpu.memory_space<vmem>>, vector<24x1xf32>
    %cst_8 = arith.constant dense<0.000000e+00> : vector<24xf32>
    %8 = vector.multi_reduction <add>, %2, %cst_8 [1] : vector<24x512xf32> to vector<24xf32>
    %9 = vector.shape_cast %8 : vector<24xf32> to vector<24x1xf32>
    %10 = arith.addf %7, %9 : vector<24x1xf32>
    %c0_9 = arith.constant 0 : index
    %c0_10 = arith.constant 0 : index
    %11 = vector.load %arg4[%c0_9, %c0_10] : memref<24x1xf32, #tpu.memory_space<vmem>>, vector<24x1xf32>
    tpu.vector_store %arg4[%c0_9, %c0_10], %10 {strides = array<i32>} : memref<24x1xf32, #tpu.memory_space<vmem>>, vector<24x1xf32>,
    %c0_11 = arith.constant 0 : index
    %c0_12 = arith.constant 0 : index
    %12 = vector.load %arg5[%c0_11, %c0_12] : memref<24x1xf32, #tpu.memory_space<vmem>>, vector<24x1xf32>
    %13 = arith.mulf %2, %2 : vector<24x512xf32>
    %cst_13 = arith.constant dense<0.000000e+00> : vector<24xf32>
    %14 = vector.multi_reduction <add>, %13, %cst_13 [1] : vector<24x512xf32> to vector<24xf32>
    %15 = vector.shape_cast %14 : vector<24xf32> to vector<24x1xf32>
    %16 = arith.addf %12, %15 : vector<24x1xf32>
    %c0_14 = arith.constant 0 : index
    %c0_15 = arith.constant 0 : index
    %17 = vector.load %arg5[%c0_14, %c0_15] : memref<24x1xf32, #tpu.memory_space<vmem>>, vector<24x1xf32>
    tpu.vector_store %arg5[%c0_14, %c0_15], %16 {strides = array<i32>} : memref<24x1xf32, #tpu.memory_space<vmem>>, vector<24x1xf32>,
    return
  }
  func.func @transform_0(%arg0: i32) -> (i32, i32) {
    %c0_i32 = arith.constant 0 : i32
    %c0_i32_0 = arith.constant 0 : i32
    %c0_i32_1 = arith.constant 0 : i32
    return %c0_i32, %c0_i32_0 : i32, i32
  }
  func.func @transform_1(%arg0: i32) -> (i32, i32) {
    %c0_i32 = arith.constant 0 : i32
    %c0_i32_0 = arith.constant 0 : i32
    return %c0_i32, %arg0 : i32, i32
  }
  func.func @transform_2(%arg0: i32) -> (i32, i32) {
    %c0_i32 = arith.constant 0 : i32
    %c0_i32_0 = arith.constant 0 : i32
    return %c0_i32, %arg0 : i32, i32
  }
  func.func @transform_3(%arg0: i32) -> (i32, i32) {
    %c0_i32 = arith.constant 0 : i32
    %c0_i32_0 = arith.constant 0 : i32
    %c0_i32_1 = arith.constant 0 : i32
    return %c0_i32, %c0_i32_0 : i32, i32
  }
  func.func @transform_4(%arg0: i32) -> (i32, i32) {
    %c0_i32 = arith.constant 0 : i32
    %c0_i32_0 = arith.constant 0 : i32
    %c0_i32_1 = arith.constant 0 : i32
    return %c0_i32, %c0_i32_0 : i32, i32
  }
}

module attributes {stable_mosaic.version = 11 : i64} {
  func.func @kernel(%arg0: i32, %arg1: memref<24x1xf32, #tpu.memory_space<vmem>>, %arg2: memref<24x1xf32, #tpu.memory_space<vmem>>, %arg3: memref<24x512xf32, #tpu.memory_space<vmem>>, %arg4: memref<24x512xf32, #tpu.memory_space<vmem>>) attributes {dimension_semantics = [#tpu.dimension_semantics<parallel>], iteration_bounds = array<i64: 1>, scalar_prefetch = 0 : i64, scratch_operands = 0 : i64, tpu.core_type = #tpu.core_type<tc>, window_params = [{pipeline_mode = #tpu.pipeline_mode<synchronous>, transform_indices = @transform_0, window_bounds = array<i64: 24, 1>}, {pipeline_mode = #tpu.pipeline_mode<synchronous>, transform_indices = @transform_1, window_bounds = array<i64: 24, 1>}, {transform_indices = @transform_2, window_bounds = array<i64: 24, 512>}, {transform_indices = @transform_3, window_bounds = array<i64: 24, 512>}]} {
    %c0 = arith.constant 0 : index
    %c0_0 = arith.constant 0 : index
    %0 = vector.load %arg1[%c0, %c0_0] : memref<24x1xf32, #tpu.memory_space<vmem>>, vector<24x1xf32>
    %cst = arith.constant 0.001953125 : f32
    %1 = vector.broadcast %cst : f32 to vector<24x1xf32>
    %2 = arith.mulf %0, %1 : vector<24x1xf32>
    %c0_1 = arith.constant 0 : index
    %c0_2 = arith.constant 0 : index
    %3 = vector.load %arg2[%c0_1, %c0_2] : memref<24x1xf32, #tpu.memory_space<vmem>>, vector<24x1xf32>
    %cst_3 = arith.constant 0.001953125 : f32
    %4 = vector.broadcast %cst_3 : f32 to vector<24x1xf32>
    %5 = arith.mulf %3, %4 : vector<24x1xf32>
    %6 = arith.mulf %2, %2 : vector<24x1xf32>
    %7 = arith.subf %5, %6 : vector<24x1xf32>
    %cst_4 = arith.constant 0.000000e+00 : f32
    %8 = vector.broadcast %cst_4 : f32 to vector<24x1xf32>
    %9 = arith.maximumf %7, %8 : vector<24x1xf32>
    %c0_5 = arith.constant 0 : index
    %c0_6 = arith.constant 0 : index
    %10 = vector.load %arg3[%c0_5, %c0_6] : memref<24x512xf32, #tpu.memory_space<vmem>>, vector<24x512xf32>
    %11 = vector.broadcast %2 : vector<24x1xf32> to vector<24x512xf32>
    %12 = arith.subf %10, %11 : vector<24x512xf32>
    %cst_7 = arith.constant 9.99999974E-6 : f32
    %13 = vector.broadcast %cst_7 : f32 to vector<24x1xf32>
    %14 = arith.addf %9, %13 : vector<24x1xf32>
    %15 = math.rsqrt %14 : vector<24x1xf32>
    %16 = vector.broadcast %15 : vector<24x1xf32> to vector<24x512xf32>
    %17 = arith.mulf %12, %16 : vector<24x512xf32>
    %c0_8 = arith.constant 0 : index
    %c0_9 = arith.constant 0 : index
    %18 = vector.load %arg4[%c0_8, %c0_9] : memref<24x512xf32, #tpu.memory_space<vmem>>, vector<24x512xf32>
    tpu.vector_store %arg4[%c0_8, %c0_9], %17 {strides = array<i32>} : memref<24x512xf32, #tpu.memory_space<vmem>>, vector<24x512xf32>,
    return
  }
  func.func @transform_0(%arg0: i32) -> (i32, i32) {
    %c0_i32 = arith.constant 0 : i32
    %c0_i32_0 = arith.constant 0 : i32
    %c0_i32_1 = arith.constant 0 : i32
    return %c0_i32, %c0_i32_0 : i32, i32
  }
  func.func @transform_1(%arg0: i32) -> (i32, i32) {
    %c0_i32 = arith.constant 0 : i32
    %c0_i32_0 = arith.constant 0 : i32
    %c0_i32_1 = arith.constant 0 : i32
    return %c0_i32, %c0_i32_0 : i32, i32
  }
  func.func @transform_2(%arg0: i32) -> (i32, i32) {
    %c0_i32 = arith.constant 0 : i32
    %c0_i32_0 = arith.constant 0 : i32
    return %c0_i32, %arg0 : i32, i32
  }
  func.func @transform_3(%arg0: i32) -> (i32, i32) {
    %c0_i32 = arith.constant 0 : i32
    %c0_i32_0 = arith.constant 0 : i32
    return %c0_i32, %arg0 : i32, i32
  }
}

module attributes {stable_mosaic.version = 11 : i64} {
  func.func @kernel(%arg0: i32, %arg1: memref<16x1xf32, #tpu.memory_space<vmem>>, %arg2: memref<16x1xf32, #tpu.memory_space<vmem>>, %arg3: memref<16x512xf32, #tpu.memory_space<vmem>>, %arg4: memref<16x512xf32, #tpu.memory_space<vmem>>) attributes {dimension_semantics = [#tpu.dimension_semantics<parallel>], iteration_bounds = array<i64: 1>, scalar_prefetch = 0 : i64, scratch_operands = 0 : i64, tpu.core_type = #tpu.core_type<tc>, window_params = [{pipeline_mode = #tpu.pipeline_mode<synchronous>, transform_indices = @transform_0, window_bounds = array<i64: 16, 1>}, {pipeline_mode = #tpu.pipeline_mode<synchronous>, transform_indices = @transform_1, window_bounds = array<i64: 16, 1>}, {transform_indices = @transform_2, window_bounds = array<i64: 16, 512>}, {transform_indices = @transform_3, window_bounds = array<i64: 16, 512>}]} {
    %c0 = arith.constant 0 : index
    %c0_0 = arith.constant 0 : index
    %0 = vector.load %arg1[%c0, %c0_0] : memref<16x1xf32, #tpu.memory_space<vmem>>, vector<16x1xf32>
    %cst = arith.constant 0.001953125 : f32
    %1 = vector.broadcast %cst : f32 to vector<16x1xf32>
    %2 = arith.mulf %0, %1 : vector<16x1xf32>
    %c0_1 = arith.constant 0 : index
    %c0_2 = arith.constant 0 : index
    %3 = vector.load %arg2[%c0_1, %c0_2] : memref<16x1xf32, #tpu.memory_space<vmem>>, vector<16x1xf32>
    %cst_3 = arith.constant 0.001953125 : f32
    %4 = vector.broadcast %cst_3 : f32 to vector<16x1xf32>
    %5 = arith.mulf %3, %4 : vector<16x1xf32>
    %6 = arith.mulf %2, %2 : vector<16x1xf32>
    %7 = arith.subf %5, %6 : vector<16x1xf32>
    %cst_4 = arith.constant 0.000000e+00 : f32
    %8 = vector.broadcast %cst_4 : f32 to vector<16x1xf32>
    %9 = arith.maximumf %7, %8 : vector<16x1xf32>
    %c0_5 = arith.constant 0 : index
    %c0_6 = arith.constant 0 : index
    %10 = vector.load %arg3[%c0_5, %c0_6] : memref<16x512xf32, #tpu.memory_space<vmem>>, vector<16x512xf32>
    %11 = vector.broadcast %2 : vector<16x1xf32> to vector<16x512xf32>
    %12 = arith.subf %10, %11 : vector<16x512xf32>
    %cst_7 = arith.constant 9.99999974E-6 : f32
    %13 = vector.broadcast %cst_7 : f32 to vector<16x1xf32>
    %14 = arith.addf %9, %13 : vector<16x1xf32>
    %15 = math.rsqrt %14 : vector<16x1xf32>
    %16 = vector.broadcast %15 : vector<16x1xf32> to vector<16x512xf32>
    %17 = arith.mulf %12, %16 : vector<16x512xf32>
    %c0_8 = arith.constant 0 : index
    %c0_9 = arith.constant 0 : index
    %18 = vector.load %arg4[%c0_8, %c0_9] : memref<16x512xf32, #tpu.memory_space<vmem>>, vector<16x512xf32>
    tpu.vector_store %arg4[%c0_8, %c0_9], %17 {strides = array<i32>} : memref<16x512xf32, #tpu.memory_space<vmem>>, vector<16x512xf32>,
    return
  }
  func.func @transform_0(%arg0: i32) -> (i32, i32) {
    %c0_i32 = arith.constant 0 : i32
    %c0_i32_0 = arith.constant 0 : i32
    %c0_i32_1 = arith.constant 0 : i32
    return %c0_i32, %c0_i32_0 : i32, i32
  }
  func.func @transform_1(%arg0: i32) -> (i32, i32) {
    %c0_i32 = arith.constant 0 : i32
    %c0_i32_0 = arith.constant 0 : i32
    %c0_i32_1 = arith.constant 0 : i32
    return %c0_i32, %c0_i32_0 : i32, i32
  }
  func.func @transform_2(%arg0: i32) -> (i32, i32) {
    %c0_i32 = arith.constant 0 : i32
    %c0_i32_0 = arith.constant 0 : i32
    return %c0_i32, %arg0 : i32, i32
  }
  func.func @transform_3(%arg0: i32) -> (i32, i32) {
    %c0_i32 = arith.constant 0 : i32
    %c0_i32_0 = arith.constant 0 : i32
    return %c0_i32, %arg0 : i32, i32
  }
}

module attributes {stable_mosaic.version = 11 : i64} {
  func.func @kernel(%arg0: i32, %arg1: memref<16x24xbf16, #tpu.memory_space<vmem>>, %arg2: memref<24x512xf32, #tpu.memory_space<vmem>>, %arg3: memref<16x512xf32, #tpu.memory_space<vmem>>, %arg4: memref<16x1xf32, #tpu.memory_space<vmem>>, %arg5: memref<16x1xf32, #tpu.memory_space<vmem>>) attributes {dimension_semantics = [#tpu.dimension_semantics<arbitrary>], iteration_bounds = array<i64: 1>, scalar_prefetch = 0 : i64, scratch_operands = 0 : i64, tpu.core_type = #tpu.core_type<tc>, window_params = [{pipeline_mode = #tpu.pipeline_mode<synchronous>, transform_indices = @transform_0, window_bounds = array<i64: 16, 24>}, {transform_indices = @transform_1, window_bounds = array<i64: 24, 512>}, {transform_indices = @transform_2, window_bounds = array<i64: 16, 512>}, {pipeline_mode = #tpu.pipeline_mode<synchronous>, transform_indices = @transform_3, window_bounds = array<i64: 16, 1>}, {pipeline_mode = #tpu.pipeline_mode<synchronous>, transform_indices = @transform_4, window_bounds = array<i64: 16, 1>}]} {
    %c0 = arith.constant 0 : index
    %c0_0 = arith.constant 0 : index
    %0 = vector.load %arg2[%c0, %c0_0] : memref<24x512xf32, #tpu.memory_space<vmem>>, vector<24x512xf32>
    %cst = arith.constant 0.000000e+00 : f32
    %1 = vector.broadcast %cst : f32 to vector<24x512xf32>
    %2 = arith.maximumf %0, %1 : vector<24x512xf32>
    %c0_1 = arith.constant 0 : index
    %c0_2 = arith.constant 0 : index
    %3 = vector.load %arg1[%c0_1, %c0_2] : memref<16x24xbf16, #tpu.memory_space<vmem>>, vector<16x24xbf16>
    %4 = arith.truncf %2 : vector<24x512xf32> to vector<24x512xbf16>
    %cst_3 = arith.constant dense<0.000000e+00> : vector<16x512xf32>
    %5 = tpu.matmul %3, %4, %cst_3 {dimension_numbers = #tpu.dot_dimension_numbers<[1], [0], [0], [1], [0, 0, 1, 1], [], []>} : vector<16x24xbf16>, vector<24x512xbf16>, vector<16x512xf32> -> vector<16x512xf32>
    %c0_4 = arith.constant 0 : index
    %c0_5 = arith.constant 0 : index
    %6 = vector.load %arg3[%c0_4, %c0_5] : memref<16x512xf32, #tpu.memory_space<vmem>>, vector<16x512xf32>
    tpu.vector_store %arg3[%c0_4, %c0_5], %5 {strides = array<i32>} : memref<16x512xf32, #tpu.memory_space<vmem>>, vector<16x512xf32>,
    %c0_i32 = arith.constant 0 : i32
    %7 = arith.cmpi eq, %arg0, %c0_i32 : i32
    %8 = arith.extui %7 : i1 to i32
    %c0_i32_6 = arith.constant 0 : i32
    %9 = arith.cmpi ne, %8, %c0_i32_6 : i32
    scf.if %9 {
      %cst_17 = arith.constant 0.000000e+00 : f32
      %21 = vector.broadcast %cst_17 : f32 to vector<16x1xf32>
      %c0_18 = arith.constant 0 : index
      %c0_19 = arith.constant 0 : index
      %22 = vector.load %arg4[%c0_18, %c0_19] : memref<16x1xf32, #tpu.memory_space<vmem>>, vector<16x1xf32>
      tpu.vector_store %arg4[%c0_18, %c0_19], %21 {strides = array<i32>} : memref<16x1xf32, #tpu.memory_space<vmem>>, vector<16x1xf32>,
      %cst_20 = arith.constant 0.000000e+00 : f32
      %23 = vector.broadcast %cst_20 : f32 to vector<16x1xf32>
      %c0_21 = arith.constant 0 : index
      %c0_22 = arith.constant 0 : index
      %24 = vector.load %arg5[%c0_21, %c0_22] : memref<16x1xf32, #tpu.memory_space<vmem>>, vector<16x1xf32>
      tpu.vector_store %arg5[%c0_21, %c0_22], %23 {strides = array<i32>} : memref<16x1xf32, #tpu.memory_space<vmem>>, vector<16x1xf32>,
    } else {
    }
    %c0_7 = arith.constant 0 : index
    %c0_8 = arith.constant 0 : index
    %10 = vector.load %arg4[%c0_7, %c0_8] : memref<16x1xf32, #tpu.memory_space<vmem>>, vector<16x1xf32>
    %cst_9 = arith.constant dense<0.000000e+00> : vector<16xf32>
    %11 = vector.multi_reduction <add>, %5, %cst_9 [1] : vector<16x512xf32> to vector<16xf32>
    %12 = vector.shape_cast %11 : vector<16xf32> to vector<16x1xf32>
    %13 = arith.addf %10, %12 : vector<16x1xf32>
    %c0_10 = arith.constant 0 : index
    %c0_11 = arith.constant 0 : index
    %14 = vector.load %arg4[%c0_10, %c0_11] : memref<16x1xf32, #tpu.memory_space<vmem>>, vector<16x1xf32>
    tpu.vector_store %arg4[%c0_10, %c0_11], %13 {strides = array<i32>} : memref<16x1xf32, #tpu.memory_space<vmem>>, vector<16x1xf32>,
    %c0_12 = arith.constant 0 : index
    %c0_13 = arith.constant 0 : index
    %15 = vector.load %arg5[%c0_12, %c0_13] : memref<16x1xf32, #tpu.memory_space<vmem>>, vector<16x1xf32>
    %16 = arith.mulf %5, %5 : vector<16x512xf32>
    %cst_14 = arith.constant dense<0.000000e+00> : vector<16xf32>
    %17 = vector.multi_reduction <add>, %16, %cst_14 [1] : vector<16x512xf32> to vector<16xf32>
    %18 = vector.shape_cast %17 : vector<16xf32> to vector<16x1xf32>
    %19 = arith.addf %15, %18 : vector<16x1xf32>
    %c0_15 = arith.constant 0 : index
    %c0_16 = arith.constant 0 : index
    %20 = vector.load %arg5[%c0_15, %c0_16] : memref<16x1xf32, #tpu.memory_space<vmem>>, vector<16x1xf32>
    tpu.vector_store %arg5[%c0_15, %c0_16], %19 {strides = array<i32>} : memref<16x1xf32, #tpu.memory_space<vmem>>, vector<16x1xf32>,
    return
  }
  func.func @transform_0(%arg0: i32) -> (i32, i32) {
    %c0_i32 = arith.constant 0 : i32
    %c0_i32_0 = arith.constant 0 : i32
    %c0_i32_1 = arith.constant 0 : i32
    return %c0_i32, %c0_i32_0 : i32, i32
  }
  func.func @transform_1(%arg0: i32) -> (i32, i32) {
    %c0_i32 = arith.constant 0 : i32
    %c0_i32_0 = arith.constant 0 : i32
    return %c0_i32, %arg0 : i32, i32
  }
  func.func @transform_2(%arg0: i32) -> (i32, i32) {
    %c0_i32 = arith.constant 0 : i32
    %c0_i32_0 = arith.constant 0 : i32
    return %c0_i32, %arg0 : i32, i32
  }
  func.func @transform_3(%arg0: i32) -> (i32, i32) {
    %c0_i32 = arith.constant 0 : i32
    %c0_i32_0 = arith.constant 0 : i32
    %c0_i32_1 = arith.constant 0 : i32
    return %c0_i32, %c0_i32_0 : i32, i32
  }
  func.func @transform_4(%arg0: i32) -> (i32, i32) {
    %c0_i32 = arith.constant 0 : i32
    %c0_i32_0 = arith.constant 0 : i32
    %c0_i32_1 = arith.constant 0 : i32
    return %c0_i32, %c0_i32_0 : i32, i32
  }
}

module attributes {stable_mosaic.version = 11 : i64} {
  func.func @kernel(%arg0: i32, %arg1: memref<4x12x128xbf16, #tpu.memory_space<vmem>>, %arg2: memref<12x128xf32, #tpu.memory_space<vmem>>) attributes {dimension_semantics = [#tpu.dimension_semantics<parallel>], iteration_bounds = array<i64: 1>, scalar_prefetch = 0 : i64, scratch_operands = 0 : i64, tpu.core_type = #tpu.core_type<tc>, window_params = [{transform_indices = @transform_0, window_bounds = array<i64: 4, 12, 128>}, {transform_indices = @transform_1, window_bounds = array<i64: 12, 128>}]} {
    %c0 = arith.constant 0 : index
    %c0_0 = arith.constant 0 : index
    %c0_1 = arith.constant 0 : index
    %0 = vector.load %arg1[%c0, %c0_0, %c0_1] : memref<4x12x128xbf16, #tpu.memory_space<vmem>>, vector<1x12x128xbf16>
    %1 = vector.shape_cast %0 : vector<1x12x128xbf16> to vector<12x128xbf16>
    %c1 = arith.constant 1 : index
    %c0_2 = arith.constant 0 : index
    %c0_3 = arith.constant 0 : index
    %2 = vector.load %arg1[%c1, %c0_2, %c0_3] : memref<4x12x128xbf16, #tpu.memory_space<vmem>>, vector<1x12x128xbf16>
    %3 = vector.shape_cast %2 : vector<1x12x128xbf16> to vector<12x128xbf16>
    %4 = arith.maximumf %1, %3 : vector<12x128xbf16>
    %c2 = arith.constant 2 : index
    %c0_4 = arith.constant 0 : index
    %c0_5 = arith.constant 0 : index
    %5 = vector.load %arg1[%c2, %c0_4, %c0_5] : memref<4x12x128xbf16, #tpu.memory_space<vmem>>, vector<1x12x128xbf16>
    %6 = vector.shape_cast %5 : vector<1x12x128xbf16> to vector<12x128xbf16>
    %7 = arith.maximumf %4, %6 : vector<12x128xbf16>
    %c3 = arith.constant 3 : index
    %c0_6 = arith.constant 0 : index
    %c0_7 = arith.constant 0 : index
    %8 = vector.load %arg1[%c3, %c0_6, %c0_7] : memref<4x12x128xbf16, #tpu.memory_space<vmem>>, vector<1x12x128xbf16>
    %9 = vector.shape_cast %8 : vector<1x12x128xbf16> to vector<12x128xbf16>
    %10 = arith.maximumf %7, %9 : vector<12x128xbf16>
    %11 = arith.extf %10 : vector<12x128xbf16> to vector<12x128xf32>
    %c0_8 = arith.constant 0 : index
    %c0_9 = arith.constant 0 : index
    %12 = vector.load %arg2[%c0_8, %c0_9] : memref<12x128xf32, #tpu.memory_space<vmem>>, vector<12x128xf32>
    tpu.vector_store %arg2[%c0_8, %c0_9], %11 {strides = array<i32>} : memref<12x128xf32, #tpu.memory_space<vmem>>, vector<12x128xf32>,
    return
  }
  func.func @transform_0(%arg0: i32) -> (i32, i32, i32) {
    %c0_i32 = arith.constant 0 : i32
    %c0_i32_0 = arith.constant 0 : i32
    %c0_i32_1 = arith.constant 0 : i32
    return %c0_i32, %c0_i32_0, %arg0 : i32, i32, i32
  }
  func.func @transform_1(%arg0: i32) -> (i32, i32) {
    %c0_i32 = arith.constant 0 : i32
    %c0_i32_0 = arith.constant 0 : i32
    return %c0_i32, %arg0 : i32, i32
  }
}

module attributes {stable_mosaic.version = 11 : i64} {
  func.func @kernel(%arg0: i32, %arg1: memref<9x4x128xbf16, #tpu.memory_space<vmem>>, %arg2: memref<4x128xf32, #tpu.memory_space<vmem>>, %arg3: memref<4x1xf32, #tpu.memory_space<vmem>>, %arg4: memref<4x1xf32, #tpu.memory_space<vmem>>) attributes {dimension_semantics = [#tpu.dimension_semantics<arbitrary>], iteration_bounds = array<i64: 1>, scalar_prefetch = 0 : i64, scratch_operands = 0 : i64, tpu.core_type = #tpu.core_type<tc>, window_params = [{transform_indices = @transform_0, window_bounds = array<i64: 9, 4, 128>}, {transform_indices = @transform_1, window_bounds = array<i64: 4, 128>}, {pipeline_mode = #tpu.pipeline_mode<synchronous>, transform_indices = @transform_2, window_bounds = array<i64: 4, 1>}, {pipeline_mode = #tpu.pipeline_mode<synchronous>, transform_indices = @transform_3, window_bounds = array<i64: 4, 1>}]} {
    %c0 = arith.constant 0 : index
    %c0_0 = arith.constant 0 : index
    %c0_1 = arith.constant 0 : index
    %0 = vector.load %arg1[%c0, %c0_0, %c0_1] : memref<9x4x128xbf16, #tpu.memory_space<vmem>>, vector<1x4x128xbf16>
    %1 = vector.shape_cast %0 : vector<1x4x128xbf16> to vector<4x128xbf16>
    %c1 = arith.constant 1 : index
    %c0_2 = arith.constant 0 : index
    %c0_3 = arith.constant 0 : index
    %2 = vector.load %arg1[%c1, %c0_2, %c0_3] : memref<9x4x128xbf16, #tpu.memory_space<vmem>>, vector<1x4x128xbf16>
    %3 = vector.shape_cast %2 : vector<1x4x128xbf16> to vector<4x128xbf16>
    %4 = arith.maximumf %1, %3 : vector<4x128xbf16>
    %c2 = arith.constant 2 : index
    %c0_4 = arith.constant 0 : index
    %c0_5 = arith.constant 0 : index
    %5 = vector.load %arg1[%c2, %c0_4, %c0_5] : memref<9x4x128xbf16, #tpu.memory_space<vmem>>, vector<1x4x128xbf16>
    %6 = vector.shape_cast %5 : vector<1x4x128xbf16> to vector<4x128xbf16>
    %7 = arith.maximumf %4, %6 : vector<4x128xbf16>
    %c3 = arith.constant 3 : index
    %c0_6 = arith.constant 0 : index
    %c0_7 = arith.constant 0 : index
    %8 = vector.load %arg1[%c3, %c0_6, %c0_7] : memref<9x4x128xbf16, #tpu.memory_space<vmem>>, vector<1x4x128xbf16>
    %9 = vector.shape_cast %8 : vector<1x4x128xbf16> to vector<4x128xbf16>
    %10 = arith.maximumf %7, %9 : vector<4x128xbf16>
    %c4 = arith.constant 4 : index
    %c0_8 = arith.constant 0 : index
    %c0_9 = arith.constant 0 : index
    %11 = vector.load %arg1[%c4, %c0_8, %c0_9] : memref<9x4x128xbf16, #tpu.memory_space<vmem>>, vector<1x4x128xbf16>
    %12 = vector.shape_cast %11 : vector<1x4x128xbf16> to vector<4x128xbf16>
    %13 = arith.maximumf %10, %12 : vector<4x128xbf16>
    %c5 = arith.constant 5 : index
    %c0_10 = arith.constant 0 : index
    %c0_11 = arith.constant 0 : index
    %14 = vector.load %arg1[%c5, %c0_10, %c0_11] : memref<9x4x128xbf16, #tpu.memory_space<vmem>>, vector<1x4x128xbf16>
    %15 = vector.shape_cast %14 : vector<1x4x128xbf16> to vector<4x128xbf16>
    %16 = arith.maximumf %13, %15 : vector<4x128xbf16>
    %c6 = arith.constant 6 : index
    %c0_12 = arith.constant 0 : index
    %c0_13 = arith.constant 0 : index
    %17 = vector.load %arg1[%c6, %c0_12, %c0_13] : memref<9x4x128xbf16, #tpu.memory_space<vmem>>, vector<1x4x128xbf16>
    %18 = vector.shape_cast %17 : vector<1x4x128xbf16> to vector<4x128xbf16>
    %19 = arith.maximumf %16, %18 : vector<4x128xbf16>
    %c7 = arith.constant 7 : index
    %c0_14 = arith.constant 0 : index
    %c0_15 = arith.constant 0 : index
    %20 = vector.load %arg1[%c7, %c0_14, %c0_15] : memref<9x4x128xbf16, #tpu.memory_space<vmem>>, vector<1x4x128xbf16>
    %21 = vector.shape_cast %20 : vector<1x4x128xbf16> to vector<4x128xbf16>
    %22 = arith.maximumf %19, %21 : vector<4x128xbf16>
    %c8 = arith.constant 8 : index
    %c0_16 = arith.constant 0 : index
    %c0_17 = arith.constant 0 : index
    %23 = vector.load %arg1[%c8, %c0_16, %c0_17] : memref<9x4x128xbf16, #tpu.memory_space<vmem>>, vector<1x4x128xbf16>
    %24 = vector.shape_cast %23 : vector<1x4x128xbf16> to vector<4x128xbf16>
    %25 = arith.maximumf %22, %24 : vector<4x128xbf16>
    %26 = arith.extf %25 : vector<4x128xbf16> to vector<4x128xf32>
    %c0_18 = arith.constant 0 : index
    %c0_19 = arith.constant 0 : index
    %27 = vector.load %arg2[%c0_18, %c0_19] : memref<4x128xf32, #tpu.memory_space<vmem>>, vector<4x128xf32>
    tpu.vector_store %arg2[%c0_18, %c0_19], %26 {strides = array<i32>} : memref<4x128xf32, #tpu.memory_space<vmem>>, vector<4x128xf32>,
    %c0_i32 = arith.constant 0 : i32
    %28 = arith.cmpi eq, %arg0, %c0_i32 : i32
    %29 = arith.extui %28 : i1 to i32
    %c0_i32_20 = arith.constant 0 : i32
    %30 = arith.cmpi ne, %29, %c0_i32_20 : i32
    scf.if %30 {
      %cst_30 = arith.constant 0.000000e+00 : f32
      %42 = vector.broadcast %cst_30 : f32 to vector<4x1xf32>
      %c0_31 = arith.constant 0 : index
      %c0_32 = arith.constant 0 : index
      %43 = vector.load %arg3[%c0_31, %c0_32] : memref<4x1xf32, #tpu.memory_space<vmem>>, vector<4x1xf32>
      tpu.vector_store %arg3[%c0_31, %c0_32], %42 {strides = array<i32>} : memref<4x1xf32, #tpu.memory_space<vmem>>, vector<4x1xf32>,
      %cst_33 = arith.constant 0.000000e+00 : f32
      %44 = vector.broadcast %cst_33 : f32 to vector<4x1xf32>
      %c0_34 = arith.constant 0 : index
      %c0_35 = arith.constant 0 : index
      %45 = vector.load %arg4[%c0_34, %c0_35] : memref<4x1xf32, #tpu.memory_space<vmem>>, vector<4x1xf32>
      tpu.vector_store %arg4[%c0_34, %c0_35], %44 {strides = array<i32>} : memref<4x1xf32, #tpu.memory_space<vmem>>, vector<4x1xf32>,
    } else {
    }
    %c0_21 = arith.constant 0 : index
    %c0_22 = arith.constant 0 : index
    %31 = vector.load %arg3[%c0_21, %c0_22] : memref<4x1xf32, #tpu.memory_space<vmem>>, vector<4x1xf32>
    %cst = arith.constant dense<0.000000e+00> : vector<4xf32>
    %32 = vector.multi_reduction <add>, %26, %cst [1] : vector<4x128xf32> to vector<4xf32>
    %33 = vector.shape_cast %32 : vector<4xf32> to vector<4x1xf32>
    %34 = arith.addf %31, %33 : vector<4x1xf32>
    %c0_23 = arith.constant 0 : index
    %c0_24 = arith.constant 0 : index
    %35 = vector.load %arg3[%c0_23, %c0_24] : memref<4x1xf32, #tpu.memory_space<vmem>>, vector<4x1xf32>
    tpu.vector_store %arg3[%c0_23, %c0_24], %34 {strides = array<i32>} : memref<4x1xf32, #tpu.memory_space<vmem>>, vector<4x1xf32>,
    %c0_25 = arith.constant 0 : index
    %c0_26 = arith.constant 0 : index
    %36 = vector.load %arg4[%c0_25, %c0_26] : memref<4x1xf32, #tpu.memory_space<vmem>>, vector<4x1xf32>
    %37 = arith.mulf %26, %26 : vector<4x128xf32>
    %cst_27 = arith.constant dense<0.000000e+00> : vector<4xf32>
    %38 = vector.multi_reduction <add>, %37, %cst_27 [1] : vector<4x128xf32> to vector<4xf32>
    %39 = vector.shape_cast %38 : vector<4xf32> to vector<4x1xf32>
    %40 = arith.addf %36, %39 : vector<4x1xf32>
    %c0_28 = arith.constant 0 : index
    %c0_29 = arith.constant 0 : index
    %41 = vector.load %arg4[%c0_28, %c0_29] : memref<4x1xf32, #tpu.memory_space<vmem>>, vector<4x1xf32>
    tpu.vector_store %arg4[%c0_28, %c0_29], %40 {strides = array<i32>} : memref<4x1xf32, #tpu.memory_space<vmem>>, vector<4x1xf32>,
    return
  }
  func.func @transform_0(%arg0: i32) -> (i32, i32, i32) {
    %c0_i32 = arith.constant 0 : i32
    %c0_i32_0 = arith.constant 0 : i32
    %c0_i32_1 = arith.constant 0 : i32
    return %c0_i32, %c0_i32_0, %arg0 : i32, i32, i32
  }
  func.func @transform_1(%arg0: i32) -> (i32, i32) {
    %c0_i32 = arith.constant 0 : i32
    %c0_i32_0 = arith.constant 0 : i32
    return %c0_i32, %arg0 : i32, i32
  }
  func.func @transform_2(%arg0: i32) -> (i32, i32) {
    %c0_i32 = arith.constant 0 : i32
    %c0_i32_0 = arith.constant 0 : i32
    %c0_i32_1 = arith.constant 0 : i32
    return %c0_i32, %c0_i32_0 : i32, i32
  }
  func.func @transform_3(%arg0: i32) -> (i32, i32) {
    %c0_i32 = arith.constant 0 : i32
    %c0_i32_0 = arith.constant 0 : i32
    %c0_i32_1 = arith.constant 0 : i32
    return %c0_i32, %c0_i32_0 : i32, i32
  }
}

module attributes {stable_mosaic.version = 11 : i64} {
  func.func @kernel(%arg0: i32, %arg1: memref<4x1xf32, #tpu.memory_space<vmem>>, %arg2: memref<4x1xf32, #tpu.memory_space<vmem>>, %arg3: memref<4x128xf32, #tpu.memory_space<vmem>>, %arg4: memref<4x128xf32, #tpu.memory_space<vmem>>) attributes {dimension_semantics = [#tpu.dimension_semantics<parallel>], iteration_bounds = array<i64: 1>, scalar_prefetch = 0 : i64, scratch_operands = 0 : i64, tpu.core_type = #tpu.core_type<tc>, window_params = [{pipeline_mode = #tpu.pipeline_mode<synchronous>, transform_indices = @transform_0, window_bounds = array<i64: 4, 1>}, {pipeline_mode = #tpu.pipeline_mode<synchronous>, transform_indices = @transform_1, window_bounds = array<i64: 4, 1>}, {transform_indices = @transform_2, window_bounds = array<i64: 4, 128>}, {transform_indices = @transform_3, window_bounds = array<i64: 4, 128>}]} {
    %c0 = arith.constant 0 : index
    %c0_0 = arith.constant 0 : index
    %0 = vector.load %arg1[%c0, %c0_0] : memref<4x1xf32, #tpu.memory_space<vmem>>, vector<4x1xf32>
    %cst = arith.constant 7.812500e-03 : f32
    %1 = vector.broadcast %cst : f32 to vector<4x1xf32>
    %2 = arith.mulf %0, %1 : vector<4x1xf32>
    %c0_1 = arith.constant 0 : index
    %c0_2 = arith.constant 0 : index
    %3 = vector.load %arg2[%c0_1, %c0_2] : memref<4x1xf32, #tpu.memory_space<vmem>>, vector<4x1xf32>
    %cst_3 = arith.constant 7.812500e-03 : f32
    %4 = vector.broadcast %cst_3 : f32 to vector<4x1xf32>
    %5 = arith.mulf %3, %4 : vector<4x1xf32>
    %6 = arith.mulf %2, %2 : vector<4x1xf32>
    %7 = arith.subf %5, %6 : vector<4x1xf32>
    %cst_4 = arith.constant 0.000000e+00 : f32
    %8 = vector.broadcast %cst_4 : f32 to vector<4x1xf32>
    %9 = arith.maximumf %7, %8 : vector<4x1xf32>
    %c0_5 = arith.constant 0 : index
    %c0_6 = arith.constant 0 : index
    %10 = vector.load %arg3[%c0_5, %c0_6] : memref<4x128xf32, #tpu.memory_space<vmem>>, vector<4x128xf32>
    %11 = vector.broadcast %2 : vector<4x1xf32> to vector<4x128xf32>
    %12 = arith.subf %10, %11 : vector<4x128xf32>
    %cst_7 = arith.constant 9.99999974E-6 : f32
    %13 = vector.broadcast %cst_7 : f32 to vector<4x1xf32>
    %14 = arith.addf %9, %13 : vector<4x1xf32>
    %15 = math.rsqrt %14 : vector<4x1xf32>
    %16 = vector.broadcast %15 : vector<4x1xf32> to vector<4x128xf32>
    %17 = arith.mulf %12, %16 : vector<4x128xf32>
    %c0_8 = arith.constant 0 : index
    %c0_9 = arith.constant 0 : index
    %18 = vector.load %arg4[%c0_8, %c0_9] : memref<4x128xf32, #tpu.memory_space<vmem>>, vector<4x128xf32>
    tpu.vector_store %arg4[%c0_8, %c0_9], %17 {strides = array<i32>} : memref<4x128xf32, #tpu.memory_space<vmem>>, vector<4x128xf32>,
    return
  }
  func.func @transform_0(%arg0: i32) -> (i32, i32) {
    %c0_i32 = arith.constant 0 : i32
    %c0_i32_0 = arith.constant 0 : i32
    %c0_i32_1 = arith.constant 0 : i32
    return %c0_i32, %c0_i32_0 : i32, i32
  }
  func.func @transform_1(%arg0: i32) -> (i32, i32) {
    %c0_i32 = arith.constant 0 : i32
    %c0_i32_0 = arith.constant 0 : i32
    %c0_i32_1 = arith.constant 0 : i32
    return %c0_i32, %c0_i32_0 : i32, i32
  }
  func.func @transform_2(%arg0: i32) -> (i32, i32) {
    %c0_i32 = arith.constant 0 : i32
    %c0_i32_0 = arith.constant 0 : i32
    return %c0_i32, %arg0 : i32, i32
  }
  func.func @transform_3(%arg0: i32) -> (i32, i32) {
    %c0_i32 = arith.constant 0 : i32
    %c0_i32_0 = arith.constant 0 : i32
    return %c0_i32, %arg0 : i32, i32
  }
}

module attributes {stable_mosaic.version = 11 : i64} {
  func.func @kernel(%arg0: i32, %arg1: memref<9x4x128xbf16, #tpu.memory_space<vmem>>, %arg2: memref<1x128xf32, #tpu.memory_space<vmem>>, %arg3: memref<4x128xf32, #tpu.memory_space<vmem>>, %arg4: memref<4x1xf32, #tpu.memory_space<vmem>>, %arg5: memref<4x1xf32, #tpu.memory_space<vmem>>) attributes {dimension_semantics = [#tpu.dimension_semantics<arbitrary>], iteration_bounds = array<i64: 1>, scalar_prefetch = 0 : i64, scratch_operands = 0 : i64, tpu.core_type = #tpu.core_type<tc>, window_params = [{transform_indices = @transform_0, window_bounds = array<i64: 9, 4, 128>}, {transform_indices = @transform_1, window_bounds = array<i64: 1, 128>}, {transform_indices = @transform_2, window_bounds = array<i64: 4, 128>}, {pipeline_mode = #tpu.pipeline_mode<synchronous>, transform_indices = @transform_3, window_bounds = array<i64: 4, 1>}, {pipeline_mode = #tpu.pipeline_mode<synchronous>, transform_indices = @transform_4, window_bounds = array<i64: 4, 1>}]} {
    %c0 = arith.constant 0 : index
    %c0_0 = arith.constant 0 : index
    %c0_1 = arith.constant 0 : index
    %0 = vector.load %arg1[%c0, %c0_0, %c0_1] : memref<9x4x128xbf16, #tpu.memory_space<vmem>>, vector<1x4x128xbf16>
    %1 = vector.shape_cast %0 : vector<1x4x128xbf16> to vector<4x128xbf16>
    %2 = arith.extf %1 : vector<4x128xbf16> to vector<4x128xf32>
    %c1 = arith.constant 1 : index
    %c0_2 = arith.constant 0 : index
    %c0_3 = arith.constant 0 : index
    %3 = vector.load %arg1[%c1, %c0_2, %c0_3] : memref<9x4x128xbf16, #tpu.memory_space<vmem>>, vector<1x4x128xbf16>
    %4 = vector.shape_cast %3 : vector<1x4x128xbf16> to vector<4x128xbf16>
    %5 = arith.extf %4 : vector<4x128xbf16> to vector<4x128xf32>
    %6 = arith.addf %2, %5 : vector<4x128xf32>
    %c2 = arith.constant 2 : index
    %c0_4 = arith.constant 0 : index
    %c0_5 = arith.constant 0 : index
    %7 = vector.load %arg1[%c2, %c0_4, %c0_5] : memref<9x4x128xbf16, #tpu.memory_space<vmem>>, vector<1x4x128xbf16>
    %8 = vector.shape_cast %7 : vector<1x4x128xbf16> to vector<4x128xbf16>
    %9 = arith.extf %8 : vector<4x128xbf16> to vector<4x128xf32>
    %10 = arith.addf %6, %9 : vector<4x128xf32>
    %c3 = arith.constant 3 : index
    %c0_6 = arith.constant 0 : index
    %c0_7 = arith.constant 0 : index
    %11 = vector.load %arg1[%c3, %c0_6, %c0_7] : memref<9x4x128xbf16, #tpu.memory_space<vmem>>, vector<1x4x128xbf16>
    %12 = vector.shape_cast %11 : vector<1x4x128xbf16> to vector<4x128xbf16>
    %13 = arith.extf %12 : vector<4x128xbf16> to vector<4x128xf32>
    %14 = arith.addf %10, %13 : vector<4x128xf32>
    %c4 = arith.constant 4 : index
    %c0_8 = arith.constant 0 : index
    %c0_9 = arith.constant 0 : index
    %15 = vector.load %arg1[%c4, %c0_8, %c0_9] : memref<9x4x128xbf16, #tpu.memory_space<vmem>>, vector<1x4x128xbf16>
    %16 = vector.shape_cast %15 : vector<1x4x128xbf16> to vector<4x128xbf16>
    %17 = arith.extf %16 : vector<4x128xbf16> to vector<4x128xf32>
    %18 = arith.addf %14, %17 : vector<4x128xf32>
    %c5 = arith.constant 5 : index
    %c0_10 = arith.constant 0 : index
    %c0_11 = arith.constant 0 : index
    %19 = vector.load %arg1[%c5, %c0_10, %c0_11] : memref<9x4x128xbf16, #tpu.memory_space<vmem>>, vector<1x4x128xbf16>
    %20 = vector.shape_cast %19 : vector<1x4x128xbf16> to vector<4x128xbf16>
    %21 = arith.extf %20 : vector<4x128xbf16> to vector<4x128xf32>
    %22 = arith.addf %18, %21 : vector<4x128xf32>
    %c6 = arith.constant 6 : index
    %c0_12 = arith.constant 0 : index
    %c0_13 = arith.constant 0 : index
    %23 = vector.load %arg1[%c6, %c0_12, %c0_13] : memref<9x4x128xbf16, #tpu.memory_space<vmem>>, vector<1x4x128xbf16>
    %24 = vector.shape_cast %23 : vector<1x4x128xbf16> to vector<4x128xbf16>
    %25 = arith.extf %24 : vector<4x128xbf16> to vector<4x128xf32>
    %26 = arith.addf %22, %25 : vector<4x128xf32>
    %c7 = arith.constant 7 : index
    %c0_14 = arith.constant 0 : index
    %c0_15 = arith.constant 0 : index
    %27 = vector.load %arg1[%c7, %c0_14, %c0_15] : memref<9x4x128xbf16, #tpu.memory_space<vmem>>, vector<1x4x128xbf16>
    %28 = vector.shape_cast %27 : vector<1x4x128xbf16> to vector<4x128xbf16>
    %29 = arith.extf %28 : vector<4x128xbf16> to vector<4x128xf32>
    %30 = arith.addf %26, %29 : vector<4x128xf32>
    %c8 = arith.constant 8 : index
    %c0_16 = arith.constant 0 : index
    %c0_17 = arith.constant 0 : index
    %31 = vector.load %arg1[%c8, %c0_16, %c0_17] : memref<9x4x128xbf16, #tpu.memory_space<vmem>>, vector<1x4x128xbf16>
    %32 = vector.shape_cast %31 : vector<1x4x128xbf16> to vector<4x128xbf16>
    %33 = arith.extf %32 : vector<4x128xbf16> to vector<4x128xf32>
    %34 = arith.addf %30, %33 : vector<4x128xf32>
    %c0_18 = arith.constant 0 : index
    %c0_19 = arith.constant 0 : index
    %35 = vector.load %arg2[%c0_18, %c0_19] : memref<1x128xf32, #tpu.memory_space<vmem>>, vector<1x128xf32>
    %36 = vector.broadcast %35 : vector<1x128xf32> to vector<4x128xf32>
    %37 = arith.mulf %34, %36 : vector<4x128xf32>
    %c0_20 = arith.constant 0 : index
    %c0_21 = arith.constant 0 : index
    %38 = vector.load %arg3[%c0_20, %c0_21] : memref<4x128xf32, #tpu.memory_space<vmem>>, vector<4x128xf32>
    tpu.vector_store %arg3[%c0_20, %c0_21], %37 {strides = array<i32>} : memref<4x128xf32, #tpu.memory_space<vmem>>, vector<4x128xf32>,
    %c0_i32 = arith.constant 0 : i32
    %39 = arith.cmpi eq, %arg0, %c0_i32 : i32
    %40 = arith.extui %39 : i1 to i32
    %c0_i32_22 = arith.constant 0 : i32
    %41 = arith.cmpi ne, %40, %c0_i32_22 : i32
    scf.if %41 {
      %cst_32 = arith.constant 0.000000e+00 : f32
      %53 = vector.broadcast %cst_32 : f32 to vector<4x1xf32>
      %c0_33 = arith.constant 0 : index
      %c0_34 = arith.constant 0 : index
      %54 = vector.load %arg4[%c0_33, %c0_34] : memref<4x1xf32, #tpu.memory_space<vmem>>, vector<4x1xf32>
      tpu.vector_store %arg4[%c0_33, %c0_34], %53 {strides = array<i32>} : memref<4x1xf32, #tpu.memory_space<vmem>>, vector<4x1xf32>,
      %cst_35 = arith.constant 0.000000e+00 : f32
      %55 = vector.broadcast %cst_35 : f32 to vector<4x1xf32>
      %c0_36 = arith.constant 0 : index
      %c0_37 = arith.constant 0 : index
      %56 = vector.load %arg5[%c0_36, %c0_37] : memref<4x1xf32, #tpu.memory_space<vmem>>, vector<4x1xf32>
      tpu.vector_store %arg5[%c0_36, %c0_37], %55 {strides = array<i32>} : memref<4x1xf32, #tpu.memory_space<vmem>>, vector<4x1xf32>,
    } else {
    }
    %c0_23 = arith.constant 0 : index
    %c0_24 = arith.constant 0 : index
    %42 = vector.load %arg4[%c0_23, %c0_24] : memref<4x1xf32, #tpu.memory_space<vmem>>, vector<4x1xf32>
    %cst = arith.constant dense<0.000000e+00> : vector<4xf32>
    %43 = vector.multi_reduction <add>, %37, %cst [1] : vector<4x128xf32> to vector<4xf32>
    %44 = vector.shape_cast %43 : vector<4xf32> to vector<4x1xf32>
    %45 = arith.addf %42, %44 : vector<4x1xf32>
    %c0_25 = arith.constant 0 : index
    %c0_26 = arith.constant 0 : index
    %46 = vector.load %arg4[%c0_25, %c0_26] : memref<4x1xf32, #tpu.memory_space<vmem>>, vector<4x1xf32>
    tpu.vector_store %arg4[%c0_25, %c0_26], %45 {strides = array<i32>} : memref<4x1xf32, #tpu.memory_space<vmem>>, vector<4x1xf32>,
    %c0_27 = arith.constant 0 : index
    %c0_28 = arith.constant 0 : index
    %47 = vector.load %arg5[%c0_27, %c0_28] : memref<4x1xf32, #tpu.memory_space<vmem>>, vector<4x1xf32>
    %48 = arith.mulf %37, %37 : vector<4x128xf32>
    %cst_29 = arith.constant dense<0.000000e+00> : vector<4xf32>
    %49 = vector.multi_reduction <add>, %48, %cst_29 [1] : vector<4x128xf32> to vector<4xf32>
    %50 = vector.shape_cast %49 : vector<4xf32> to vector<4x1xf32>
    %51 = arith.addf %47, %50 : vector<4x1xf32>
    %c0_30 = arith.constant 0 : index
    %c0_31 = arith.constant 0 : index
    %52 = vector.load %arg5[%c0_30, %c0_31] : memref<4x1xf32, #tpu.memory_space<vmem>>, vector<4x1xf32>
    tpu.vector_store %arg5[%c0_30, %c0_31], %51 {strides = array<i32>} : memref<4x1xf32, #tpu.memory_space<vmem>>, vector<4x1xf32>,
    return
  }
  func.func @transform_0(%arg0: i32) -> (i32, i32, i32) {
    %c0_i32 = arith.constant 0 : i32
    %c0_i32_0 = arith.constant 0 : i32
    %c0_i32_1 = arith.constant 0 : i32
    return %c0_i32, %c0_i32_0, %arg0 : i32, i32, i32
  }
  func.func @transform_1(%arg0: i32) -> (i32, i32) {
    %c0_i32 = arith.constant 0 : i32
    %c0_i32_0 = arith.constant 0 : i32
    return %c0_i32, %arg0 : i32, i32
  }
  func.func @transform_2(%arg0: i32) -> (i32, i32) {
    %c0_i32 = arith.constant 0 : i32
    %c0_i32_0 = arith.constant 0 : i32
    return %c0_i32, %arg0 : i32, i32
  }
  func.func @transform_3(%arg0: i32) -> (i32, i32) {
    %c0_i32 = arith.constant 0 : i32
    %c0_i32_0 = arith.constant 0 : i32
    %c0_i32_1 = arith.constant 0 : i32
    return %c0_i32, %c0_i32_0 : i32, i32
  }
  func.func @transform_4(%arg0: i32) -> (i32, i32) {
    %c0_i32 = arith.constant 0 : i32
    %c0_i32_0 = arith.constant 0 : i32
    %c0_i32_1 = arith.constant 0 : i32
    return %c0_i32, %c0_i32_0 : i32, i32
  }
}

module attributes {stable_mosaic.version = 11 : i64} {
  func.func @kernel(%arg0: i32, %arg1: memref<9x4x128xbf16, #tpu.memory_space<vmem>>, %arg2: memref<9x4x1xf32, #tpu.memory_space<vmem>>, %arg3: memref<4x4xbf16, #tpu.memory_space<vmem>>, %arg4: memref<4x128xf32, #tpu.memory_space<vmem>>, %arg5: memref<4x1xf32, #tpu.memory_space<vmem>>, %arg6: memref<4x1xf32, #tpu.memory_space<vmem>>) attributes {dimension_semantics = [#tpu.dimension_semantics<arbitrary>], iteration_bounds = array<i64: 1>, scalar_prefetch = 0 : i64, scratch_operands = 0 : i64, tpu.core_type = #tpu.core_type<tc>, window_params = [{transform_indices = @transform_0, window_bounds = array<i64: 9, 4, 128>}, {pipeline_mode = #tpu.pipeline_mode<synchronous>, transform_indices = @transform_1, window_bounds = array<i64: 9, 4, 1>}, {pipeline_mode = #tpu.pipeline_mode<synchronous>, transform_indices = @transform_2, window_bounds = array<i64: 4, 4>}, {transform_indices = @transform_3, window_bounds = array<i64: 4, 128>}, {pipeline_mode = #tpu.pipeline_mode<synchronous>, transform_indices = @transform_4, window_bounds = array<i64: 4, 1>}, {pipeline_mode = #tpu.pipeline_mode<synchronous>, transform_indices = @transform_5, window_bounds = array<i64: 4, 1>}]} {
    %c0 = arith.constant 0 : index
    %c0_0 = arith.constant 0 : index
    %c0_1 = arith.constant 0 : index
    %0 = vector.load %arg1[%c0, %c0_0, %c0_1] : memref<9x4x128xbf16, #tpu.memory_space<vmem>>, vector<1x4x128xbf16>
    %1 = vector.shape_cast %0 : vector<1x4x128xbf16> to vector<4x128xbf16>
    %2 = arith.extf %1 : vector<4x128xbf16> to vector<4x128xf32>
    %cst = arith.constant 0.000000e+00 : f32
    %3 = vector.broadcast %cst : f32 to vector<4x128xf32>
    %4 = arith.maximumf %2, %3 : vector<4x128xf32>
    %c0_2 = arith.constant 0 : index
    %c0_3 = arith.constant 0 : index
    %c0_4 = arith.constant 0 : index
    %5 = vector.load %arg2[%c0_2, %c0_3, %c0_4] : memref<9x4x1xf32, #tpu.memory_space<vmem>>, vector<1x4x1xf32>
    %6 = vector.shape_cast %5 : vector<1x4x1xf32> to vector<4x1xf32>
    %7 = vector.broadcast %6 : vector<4x1xf32> to vector<4x128xf32>
    %8 = arith.mulf %4, %7 : vector<4x128xf32>
    %c1 = arith.constant 1 : index
    %c0_5 = arith.constant 0 : index
    %c0_6 = arith.constant 0 : index
    %9 = vector.load %arg1[%c1, %c0_5, %c0_6] : memref<9x4x128xbf16, #tpu.memory_space<vmem>>, vector<1x4x128xbf16>
    %10 = vector.shape_cast %9 : vector<1x4x128xbf16> to vector<4x128xbf16>
    %11 = arith.extf %10 : vector<4x128xbf16> to vector<4x128xf32>
    %cst_7 = arith.constant 0.000000e+00 : f32
    %12 = vector.broadcast %cst_7 : f32 to vector<4x128xf32>
    %13 = arith.maximumf %11, %12 : vector<4x128xf32>
    %c1_8 = arith.constant 1 : index
    %c0_9 = arith.constant 0 : index
    %c0_10 = arith.constant 0 : index
    %14 = vector.load %arg2[%c1_8, %c0_9, %c0_10] : memref<9x4x1xf32, #tpu.memory_space<vmem>>, vector<1x4x1xf32>
    %15 = vector.shape_cast %14 : vector<1x4x1xf32> to vector<4x1xf32>
    %16 = vector.broadcast %15 : vector<4x1xf32> to vector<4x128xf32>
    %17 = arith.mulf %13, %16 : vector<4x128xf32>
    %18 = arith.addf %8, %17 : vector<4x128xf32>
    %c2 = arith.constant 2 : index
    %c0_11 = arith.constant 0 : index
    %c0_12 = arith.constant 0 : index
    %19 = vector.load %arg1[%c2, %c0_11, %c0_12] : memref<9x4x128xbf16, #tpu.memory_space<vmem>>, vector<1x4x128xbf16>
    %20 = vector.shape_cast %19 : vector<1x4x128xbf16> to vector<4x128xbf16>
    %21 = arith.extf %20 : vector<4x128xbf16> to vector<4x128xf32>
    %cst_13 = arith.constant 0.000000e+00 : f32
    %22 = vector.broadcast %cst_13 : f32 to vector<4x128xf32>
    %23 = arith.maximumf %21, %22 : vector<4x128xf32>
    %c2_14 = arith.constant 2 : index
    %c0_15 = arith.constant 0 : index
    %c0_16 = arith.constant 0 : index
    %24 = vector.load %arg2[%c2_14, %c0_15, %c0_16] : memref<9x4x1xf32, #tpu.memory_space<vmem>>, vector<1x4x1xf32>
    %25 = vector.shape_cast %24 : vector<1x4x1xf32> to vector<4x1xf32>
    %26 = vector.broadcast %25 : vector<4x1xf32> to vector<4x128xf32>
    %27 = arith.mulf %23, %26 : vector<4x128xf32>
    %28 = arith.addf %18, %27 : vector<4x128xf32>
    %c3 = arith.constant 3 : index
    %c0_17 = arith.constant 0 : index
    %c0_18 = arith.constant 0 : index
    %29 = vector.load %arg1[%c3, %c0_17, %c0_18] : memref<9x4x128xbf16, #tpu.memory_space<vmem>>, vector<1x4x128xbf16>
    %30 = vector.shape_cast %29 : vector<1x4x128xbf16> to vector<4x128xbf16>
    %31 = arith.extf %30 : vector<4x128xbf16> to vector<4x128xf32>
    %cst_19 = arith.constant 0.000000e+00 : f32
    %32 = vector.broadcast %cst_19 : f32 to vector<4x128xf32>
    %33 = arith.maximumf %31, %32 : vector<4x128xf32>
    %c3_20 = arith.constant 3 : index
    %c0_21 = arith.constant 0 : index
    %c0_22 = arith.constant 0 : index
    %34 = vector.load %arg2[%c3_20, %c0_21, %c0_22] : memref<9x4x1xf32, #tpu.memory_space<vmem>>, vector<1x4x1xf32>
    %35 = vector.shape_cast %34 : vector<1x4x1xf32> to vector<4x1xf32>
    %36 = vector.broadcast %35 : vector<4x1xf32> to vector<4x128xf32>
    %37 = arith.mulf %33, %36 : vector<4x128xf32>
    %38 = arith.addf %28, %37 : vector<4x128xf32>
    %c4 = arith.constant 4 : index
    %c0_23 = arith.constant 0 : index
    %c0_24 = arith.constant 0 : index
    %39 = vector.load %arg1[%c4, %c0_23, %c0_24] : memref<9x4x128xbf16, #tpu.memory_space<vmem>>, vector<1x4x128xbf16>
    %40 = vector.shape_cast %39 : vector<1x4x128xbf16> to vector<4x128xbf16>
    %41 = arith.extf %40 : vector<4x128xbf16> to vector<4x128xf32>
    %cst_25 = arith.constant 0.000000e+00 : f32
    %42 = vector.broadcast %cst_25 : f32 to vector<4x128xf32>
    %43 = arith.maximumf %41, %42 : vector<4x128xf32>
    %c4_26 = arith.constant 4 : index
    %c0_27 = arith.constant 0 : index
    %c0_28 = arith.constant 0 : index
    %44 = vector.load %arg2[%c4_26, %c0_27, %c0_28] : memref<9x4x1xf32, #tpu.memory_space<vmem>>, vector<1x4x1xf32>
    %45 = vector.shape_cast %44 : vector<1x4x1xf32> to vector<4x1xf32>
    %46 = vector.broadcast %45 : vector<4x1xf32> to vector<4x128xf32>
    %47 = arith.mulf %43, %46 : vector<4x128xf32>
    %48 = arith.addf %38, %47 : vector<4x128xf32>
    %c5 = arith.constant 5 : index
    %c0_29 = arith.constant 0 : index
    %c0_30 = arith.constant 0 : index
    %49 = vector.load %arg1[%c5, %c0_29, %c0_30] : memref<9x4x128xbf16, #tpu.memory_space<vmem>>, vector<1x4x128xbf16>
    %50 = vector.shape_cast %49 : vector<1x4x128xbf16> to vector<4x128xbf16>
    %51 = arith.extf %50 : vector<4x128xbf16> to vector<4x128xf32>
    %cst_31 = arith.constant 0.000000e+00 : f32
    %52 = vector.broadcast %cst_31 : f32 to vector<4x128xf32>
    %53 = arith.maximumf %51, %52 : vector<4x128xf32>
    %c5_32 = arith.constant 5 : index
    %c0_33 = arith.constant 0 : index
    %c0_34 = arith.constant 0 : index
    %54 = vector.load %arg2[%c5_32, %c0_33, %c0_34] : memref<9x4x1xf32, #tpu.memory_space<vmem>>, vector<1x4x1xf32>
    %55 = vector.shape_cast %54 : vector<1x4x1xf32> to vector<4x1xf32>
    %56 = vector.broadcast %55 : vector<4x1xf32> to vector<4x128xf32>
    %57 = arith.mulf %53, %56 : vector<4x128xf32>
    %58 = arith.addf %48, %57 : vector<4x128xf32>
    %c6 = arith.constant 6 : index
    %c0_35 = arith.constant 0 : index
    %c0_36 = arith.constant 0 : index
    %59 = vector.load %arg1[%c6, %c0_35, %c0_36] : memref<9x4x128xbf16, #tpu.memory_space<vmem>>, vector<1x4x128xbf16>
    %60 = vector.shape_cast %59 : vector<1x4x128xbf16> to vector<4x128xbf16>
    %61 = arith.extf %60 : vector<4x128xbf16> to vector<4x128xf32>
    %cst_37 = arith.constant 0.000000e+00 : f32
    %62 = vector.broadcast %cst_37 : f32 to vector<4x128xf32>
    %63 = arith.maximumf %61, %62 : vector<4x128xf32>
    %c6_38 = arith.constant 6 : index
    %c0_39 = arith.constant 0 : index
    %c0_40 = arith.constant 0 : index
    %64 = vector.load %arg2[%c6_38, %c0_39, %c0_40] : memref<9x4x1xf32, #tpu.memory_space<vmem>>, vector<1x4x1xf32>
    %65 = vector.shape_cast %64 : vector<1x4x1xf32> to vector<4x1xf32>
    %66 = vector.broadcast %65 : vector<4x1xf32> to vector<4x128xf32>
    %67 = arith.mulf %63, %66 : vector<4x128xf32>
    %68 = arith.addf %58, %67 : vector<4x128xf32>
    %c7 = arith.constant 7 : index
    %c0_41 = arith.constant 0 : index
    %c0_42 = arith.constant 0 : index
    %69 = vector.load %arg1[%c7, %c0_41, %c0_42] : memref<9x4x128xbf16, #tpu.memory_space<vmem>>, vector<1x4x128xbf16>
    %70 = vector.shape_cast %69 : vector<1x4x128xbf16> to vector<4x128xbf16>
    %71 = arith.extf %70 : vector<4x128xbf16> to vector<4x128xf32>
    %cst_43 = arith.constant 0.000000e+00 : f32
    %72 = vector.broadcast %cst_43 : f32 to vector<4x128xf32>
    %73 = arith.maximumf %71, %72 : vector<4x128xf32>
    %c7_44 = arith.constant 7 : index
    %c0_45 = arith.constant 0 : index
    %c0_46 = arith.constant 0 : index
    %74 = vector.load %arg2[%c7_44, %c0_45, %c0_46] : memref<9x4x1xf32, #tpu.memory_space<vmem>>, vector<1x4x1xf32>
    %75 = vector.shape_cast %74 : vector<1x4x1xf32> to vector<4x1xf32>
    %76 = vector.broadcast %75 : vector<4x1xf32> to vector<4x128xf32>
    %77 = arith.mulf %73, %76 : vector<4x128xf32>
    %78 = arith.addf %68, %77 : vector<4x128xf32>
    %c8 = arith.constant 8 : index
    %c0_47 = arith.constant 0 : index
    %c0_48 = arith.constant 0 : index
    %79 = vector.load %arg1[%c8, %c0_47, %c0_48] : memref<9x4x128xbf16, #tpu.memory_space<vmem>>, vector<1x4x128xbf16>
    %80 = vector.shape_cast %79 : vector<1x4x128xbf16> to vector<4x128xbf16>
    %81 = arith.extf %80 : vector<4x128xbf16> to vector<4x128xf32>
    %cst_49 = arith.constant 0.000000e+00 : f32
    %82 = vector.broadcast %cst_49 : f32 to vector<4x128xf32>
    %83 = arith.maximumf %81, %82 : vector<4x128xf32>
    %c8_50 = arith.constant 8 : index
    %c0_51 = arith.constant 0 : index
    %c0_52 = arith.constant 0 : index
    %84 = vector.load %arg2[%c8_50, %c0_51, %c0_52] : memref<9x4x1xf32, #tpu.memory_space<vmem>>, vector<1x4x1xf32>
    %85 = vector.shape_cast %84 : vector<1x4x1xf32> to vector<4x1xf32>
    %86 = vector.broadcast %85 : vector<4x1xf32> to vector<4x128xf32>
    %87 = arith.mulf %83, %86 : vector<4x128xf32>
    %88 = arith.addf %78, %87 : vector<4x128xf32>
    %c0_53 = arith.constant 0 : index
    %c0_54 = arith.constant 0 : index
    %89 = vector.load %arg3[%c0_53, %c0_54] : memref<4x4xbf16, #tpu.memory_space<vmem>>, vector<4x4xbf16>
    %90 = arith.truncf %88 : vector<4x128xf32> to vector<4x128xbf16>
    %cst_55 = arith.constant dense<0.000000e+00> : vector<4x128xf32>
    %91 = tpu.matmul %89, %90, %cst_55 {dimension_numbers = #tpu.dot_dimension_numbers<[1], [0], [0], [1], [0, 0, 1, 1], [], []>} : vector<4x4xbf16>, vector<4x128xbf16>, vector<4x128xf32> -> vector<4x128xf32>
    %c0_56 = arith.constant 0 : index
    %c0_57 = arith.constant 0 : index
    %92 = vector.load %arg4[%c0_56, %c0_57] : memref<4x128xf32, #tpu.memory_space<vmem>>, vector<4x128xf32>
    tpu.vector_store %arg4[%c0_56, %c0_57], %91 {strides = array<i32>} : memref<4x128xf32, #tpu.memory_space<vmem>>, vector<4x128xf32>,
    %c0_i32 = arith.constant 0 : i32
    %93 = arith.cmpi eq, %arg0, %c0_i32 : i32
    %94 = arith.extui %93 : i1 to i32
    %c0_i32_58 = arith.constant 0 : i32
    %95 = arith.cmpi ne, %94, %c0_i32_58 : i32
    scf.if %95 {
      %cst_69 = arith.constant 0.000000e+00 : f32
      %107 = vector.broadcast %cst_69 : f32 to vector<4x1xf32>
      %c0_70 = arith.constant 0 : index
      %c0_71 = arith.constant 0 : index
      %108 = vector.load %arg5[%c0_70, %c0_71] : memref<4x1xf32, #tpu.memory_space<vmem>>, vector<4x1xf32>
      tpu.vector_store %arg5[%c0_70, %c0_71], %107 {strides = array<i32>} : memref<4x1xf32, #tpu.memory_space<vmem>>, vector<4x1xf32>,
      %cst_72 = arith.constant 0.000000e+00 : f32
      %109 = vector.broadcast %cst_72 : f32 to vector<4x1xf32>
      %c0_73 = arith.constant 0 : index
      %c0_74 = arith.constant 0 : index
      %110 = vector.load %arg6[%c0_73, %c0_74] : memref<4x1xf32, #tpu.memory_space<vmem>>, vector<4x1xf32>
      tpu.vector_store %arg6[%c0_73, %c0_74], %109 {strides = array<i32>} : memref<4x1xf32, #tpu.memory_space<vmem>>, vector<4x1xf32>,
    } else {
    }
    %c0_59 = arith.constant 0 : index
    %c0_60 = arith.constant 0 : index
    %96 = vector.load %arg5[%c0_59, %c0_60] : memref<4x1xf32, #tpu.memory_space<vmem>>, vector<4x1xf32>
    %cst_61 = arith.constant dense<0.000000e+00> : vector<4xf32>
    %97 = vector.multi_reduction <add>, %91, %cst_61 [1] : vector<4x128xf32> to vector<4xf32>
    %98 = vector.shape_cast %97 : vector<4xf32> to vector<4x1xf32>
    %99 = arith.addf %96, %98 : vector<4x1xf32>
    %c0_62 = arith.constant 0 : index
    %c0_63 = arith.constant 0 : index
    %100 = vector.load %arg5[%c0_62, %c0_63] : memref<4x1xf32, #tpu.memory_space<vmem>>, vector<4x1xf32>
    tpu.vector_store %arg5[%c0_62, %c0_63], %99 {strides = array<i32>} : memref<4x1xf32, #tpu.memory_space<vmem>>, vector<4x1xf32>,
    %c0_64 = arith.constant 0 : index
    %c0_65 = arith.constant 0 : index
    %101 = vector.load %arg6[%c0_64, %c0_65] : memref<4x1xf32, #tpu.memory_space<vmem>>, vector<4x1xf32>
    %102 = arith.mulf %91, %91 : vector<4x128xf32>
    %cst_66 = arith.constant dense<0.000000e+00> : vector<4xf32>
    %103 = vector.multi_reduction <add>, %102, %cst_66 [1] : vector<4x128xf32> to vector<4xf32>
    %104 = vector.shape_cast %103 : vector<4xf32> to vector<4x1xf32>
    %105 = arith.addf %101, %104 : vector<4x1xf32>
    %c0_67 = arith.constant 0 : index
    %c0_68 = arith.constant 0 : index
    %106 = vector.load %arg6[%c0_67, %c0_68] : memref<4x1xf32, #tpu.memory_space<vmem>>, vector<4x1xf32>
    tpu.vector_store %arg6[%c0_67, %c0_68], %105 {strides = array<i32>} : memref<4x1xf32, #tpu.memory_space<vmem>>, vector<4x1xf32>,
    return
  }
  func.func @transform_0(%arg0: i32) -> (i32, i32, i32) {
    %c0_i32 = arith.constant 0 : i32
    %c0_i32_0 = arith.constant 0 : i32
    %c0_i32_1 = arith.constant 0 : i32
    return %c0_i32, %c0_i32_0, %arg0 : i32, i32, i32
  }
  func.func @transform_1(%arg0: i32) -> (i32, i32, i32) {
    %c0_i32 = arith.constant 0 : i32
    %c0_i32_0 = arith.constant 0 : i32
    %c0_i32_1 = arith.constant 0 : i32
    %c0_i32_2 = arith.constant 0 : i32
    return %c0_i32, %c0_i32_0, %c0_i32_1 : i32, i32, i32
  }
  func.func @transform_2(%arg0: i32) -> (i32, i32) {
    %c0_i32 = arith.constant 0 : i32
    %c0_i32_0 = arith.constant 0 : i32
    %c0_i32_1 = arith.constant 0 : i32
    return %c0_i32, %c0_i32_0 : i32, i32
  }
  func.func @transform_3(%arg0: i32) -> (i32, i32) {
    %c0_i32 = arith.constant 0 : i32
    %c0_i32_0 = arith.constant 0 : i32
    return %c0_i32, %arg0 : i32, i32
  }
  func.func @transform_4(%arg0: i32) -> (i32, i32) {
    %c0_i32 = arith.constant 0 : i32
    %c0_i32_0 = arith.constant 0 : i32
    %c0_i32_1 = arith.constant 0 : i32
    return %c0_i32, %c0_i32_0 : i32, i32
  }
  func.func @transform_5(%arg0: i32) -> (i32, i32) {
    %c0_i32 = arith.constant 0 : i32
    %c0_i32_0 = arith.constant 0 : i32
    %c0_i32_1 = arith.constant 0 : i32
    return %c0_i32, %c0_i32_0 : i32, i32
  }
}

module attributes {stable_mosaic.version = 11 : i64} {
  func.func @kernel(%arg0: i32, %arg1: memref<4x8xbf16, #tpu.memory_space<vmem>>, %arg2: memref<8x128xf32, #tpu.memory_space<vmem>>, %arg3: memref<4x128xf32, #tpu.memory_space<vmem>>, %arg4: memref<4x1xf32, #tpu.memory_space<vmem>>, %arg5: memref<4x1xf32, #tpu.memory_space<vmem>>) attributes {dimension_semantics = [#tpu.dimension_semantics<arbitrary>], iteration_bounds = array<i64: 1>, scalar_prefetch = 0 : i64, scratch_operands = 0 : i64, tpu.core_type = #tpu.core_type<tc>, window_params = [{pipeline_mode = #tpu.pipeline_mode<synchronous>, transform_indices = @transform_0, window_bounds = array<i64: 4, 8>}, {transform_indices = @transform_1, window_bounds = array<i64: 8, 128>}, {transform_indices = @transform_2, window_bounds = array<i64: 4, 128>}, {pipeline_mode = #tpu.pipeline_mode<synchronous>, transform_indices = @transform_3, window_bounds = array<i64: 4, 1>}, {pipeline_mode = #tpu.pipeline_mode<synchronous>, transform_indices = @transform_4, window_bounds = array<i64: 4, 1>}]} {
    %c0 = arith.constant 0 : index
    %c0_0 = arith.constant 0 : index
    %0 = vector.load %arg2[%c0, %c0_0] : memref<8x128xf32, #tpu.memory_space<vmem>>, vector<8x128xf32>
    %cst = arith.constant 0.000000e+00 : f32
    %1 = vector.broadcast %cst : f32 to vector<8x128xf32>
    %2 = arith.maximumf %0, %1 : vector<8x128xf32>
    %c0_1 = arith.constant 0 : index
    %c0_2 = arith.constant 0 : index
    %3 = vector.load %arg1[%c0_1, %c0_2] : memref<4x8xbf16, #tpu.memory_space<vmem>>, vector<4x8xbf16>
    %4 = arith.truncf %2 : vector<8x128xf32> to vector<8x128xbf16>
    %cst_3 = arith.constant dense<0.000000e+00> : vector<4x128xf32>
    %5 = tpu.matmul %3, %4, %cst_3 {dimension_numbers = #tpu.dot_dimension_numbers<[1], [0], [0], [1], [0, 0, 1, 1], [], []>} : vector<4x8xbf16>, vector<8x128xbf16>, vector<4x128xf32> -> vector<4x128xf32>
    %c0_4 = arith.constant 0 : index
    %c0_5 = arith.constant 0 : index
    %6 = vector.load %arg3[%c0_4, %c0_5] : memref<4x128xf32, #tpu.memory_space<vmem>>, vector<4x128xf32>
    tpu.vector_store %arg3[%c0_4, %c0_5], %5 {strides = array<i32>} : memref<4x128xf32, #tpu.memory_space<vmem>>, vector<4x128xf32>,
    %c0_i32 = arith.constant 0 : i32
    %7 = arith.cmpi eq, %arg0, %c0_i32 : i32
    %8 = arith.extui %7 : i1 to i32
    %c0_i32_6 = arith.constant 0 : i32
    %9 = arith.cmpi ne, %8, %c0_i32_6 : i32
    scf.if %9 {
      %cst_17 = arith.constant 0.000000e+00 : f32
      %21 = vector.broadcast %cst_17 : f32 to vector<4x1xf32>
      %c0_18 = arith.constant 0 : index
      %c0_19 = arith.constant 0 : index
      %22 = vector.load %arg4[%c0_18, %c0_19] : memref<4x1xf32, #tpu.memory_space<vmem>>, vector<4x1xf32>
      tpu.vector_store %arg4[%c0_18, %c0_19], %21 {strides = array<i32>} : memref<4x1xf32, #tpu.memory_space<vmem>>, vector<4x1xf32>,
      %cst_20 = arith.constant 0.000000e+00 : f32
      %23 = vector.broadcast %cst_20 : f32 to vector<4x1xf32>
      %c0_21 = arith.constant 0 : index
      %c0_22 = arith.constant 0 : index
      %24 = vector.load %arg5[%c0_21, %c0_22] : memref<4x1xf32, #tpu.memory_space<vmem>>, vector<4x1xf32>
      tpu.vector_store %arg5[%c0_21, %c0_22], %23 {strides = array<i32>} : memref<4x1xf32, #tpu.memory_space<vmem>>, vector<4x1xf32>,
    } else {
    }
    %c0_7 = arith.constant 0 : index
    %c0_8 = arith.constant 0 : index
    %10 = vector.load %arg4[%c0_7, %c0_8] : memref<4x1xf32, #tpu.memory_space<vmem>>, vector<4x1xf32>
    %cst_9 = arith.constant dense<0.000000e+00> : vector<4xf32>
    %11 = vector.multi_reduction <add>, %5, %cst_9 [1] : vector<4x128xf32> to vector<4xf32>
    %12 = vector.shape_cast %11 : vector<4xf32> to vector<4x1xf32>
    %13 = arith.addf %10, %12 : vector<4x1xf32>
    %c0_10 = arith.constant 0 : index
    %c0_11 = arith.constant 0 : index
    %14 = vector.load %arg4[%c0_10, %c0_11] : memref<4x1xf32, #tpu.memory_space<vmem>>, vector<4x1xf32>
    tpu.vector_store %arg4[%c0_10, %c0_11], %13 {strides = array<i32>} : memref<4x1xf32, #tpu.memory_space<vmem>>, vector<4x1xf32>,
    %c0_12 = arith.constant 0 : index
    %c0_13 = arith.constant 0 : index
    %15 = vector.load %arg5[%c0_12, %c0_13] : memref<4x1xf32, #tpu.memory_space<vmem>>, vector<4x1xf32>
    %16 = arith.mulf %5, %5 : vector<4x128xf32>
    %cst_14 = arith.constant dense<0.000000e+00> : vector<4xf32>
    %17 = vector.multi_reduction <add>, %16, %cst_14 [1] : vector<4x128xf32> to vector<4xf32>
    %18 = vector.shape_cast %17 : vector<4xf32> to vector<4x1xf32>
    %19 = arith.addf %15, %18 : vector<4x1xf32>
    %c0_15 = arith.constant 0 : index
    %c0_16 = arith.constant 0 : index
    %20 = vector.load %arg5[%c0_15, %c0_16] : memref<4x1xf32, #tpu.memory_space<vmem>>, vector<4x1xf32>
    tpu.vector_store %arg5[%c0_15, %c0_16], %19 {strides = array<i32>} : memref<4x1xf32, #tpu.memory_space<vmem>>, vector<4x1xf32>,
    return
  }
  func.func @transform_0(%arg0: i32) -> (i32, i32) {
    %c0_i32 = arith.constant 0 : i32
    %c0_i32_0 = arith.constant 0 : i32
    %c0_i32_1 = arith.constant 0 : i32
    return %c0_i32, %c0_i32_0 : i32, i32
  }
  func.func @transform_1(%arg0: i32) -> (i32, i32) {
    %c0_i32 = arith.constant 0 : i32
    %c0_i32_0 = arith.constant 0 : i32
    return %c0_i32, %arg0 : i32, i32
  }
  func.func @transform_2(%arg0: i32) -> (i32, i32) {
    %c0_i32 = arith.constant 0 : i32
    %c0_i32_0 = arith.constant 0 : i32
    return %c0_i32, %arg0 : i32, i32
  }
  func.func @transform_3(%arg0: i32) -> (i32, i32) {
    %c0_i32 = arith.constant 0 : i32
    %c0_i32_0 = arith.constant 0 : i32
    %c0_i32_1 = arith.constant 0 : i32
    return %c0_i32, %c0_i32_0 : i32, i32
  }
  func.func @transform_4(%arg0: i32) -> (i32, i32) {
    %c0_i32 = arith.constant 0 : i32
    %c0_i32_0 = arith.constant 0 : i32
    %c0_i32_1 = arith.constant 0 : i32
    return %c0_i32, %c0_i32_0 : i32, i32
  }
}

module attributes {stable_mosaic.version = 11 : i64} {
  func.func @kernel(%arg0: i32, %arg1: memref<25x4x128xbf16, #tpu.memory_space<vmem>>, %arg2: memref<25x4x1xf32, #tpu.memory_space<vmem>>, %arg3: memref<4x4xbf16, #tpu.memory_space<vmem>>, %arg4: memref<4x128xf32, #tpu.memory_space<vmem>>, %arg5: memref<4x1xf32, #tpu.memory_space<vmem>>, %arg6: memref<4x1xf32, #tpu.memory_space<vmem>>) attributes {dimension_semantics = [#tpu.dimension_semantics<arbitrary>], iteration_bounds = array<i64: 1>, scalar_prefetch = 0 : i64, scratch_operands = 0 : i64, tpu.core_type = #tpu.core_type<tc>, window_params = [{transform_indices = @transform_0, window_bounds = array<i64: 25, 4, 128>}, {pipeline_mode = #tpu.pipeline_mode<synchronous>, transform_indices = @transform_1, window_bounds = array<i64: 25, 4, 1>}, {pipeline_mode = #tpu.pipeline_mode<synchronous>, transform_indices = @transform_2, window_bounds = array<i64: 4, 4>}, {transform_indices = @transform_3, window_bounds = array<i64: 4, 128>}, {pipeline_mode = #tpu.pipeline_mode<synchronous>, transform_indices = @transform_4, window_bounds = array<i64: 4, 1>}, {pipeline_mode = #tpu.pipeline_mode<synchronous>, transform_indices = @transform_5, window_bounds = array<i64: 4, 1>}]} {
    %c0 = arith.constant 0 : index
    %c0_0 = arith.constant 0 : index
    %c0_1 = arith.constant 0 : index
    %0 = vector.load %arg1[%c0, %c0_0, %c0_1] : memref<25x4x128xbf16, #tpu.memory_space<vmem>>, vector<1x4x128xbf16>
    %1 = vector.shape_cast %0 : vector<1x4x128xbf16> to vector<4x128xbf16>
    %2 = arith.extf %1 : vector<4x128xbf16> to vector<4x128xf32>
    %cst = arith.constant 0.000000e+00 : f32
    %3 = vector.broadcast %cst : f32 to vector<4x128xf32>
    %4 = arith.maximumf %2, %3 : vector<4x128xf32>
    %c0_2 = arith.constant 0 : index
    %c0_3 = arith.constant 0 : index
    %c0_4 = arith.constant 0 : index
    %5 = vector.load %arg2[%c0_2, %c0_3, %c0_4] : memref<25x4x1xf32, #tpu.memory_space<vmem>>, vector<1x4x1xf32>
    %6 = vector.shape_cast %5 : vector<1x4x1xf32> to vector<4x1xf32>
    %7 = vector.broadcast %6 : vector<4x1xf32> to vector<4x128xf32>
    %8 = arith.mulf %4, %7 : vector<4x128xf32>
    %c1 = arith.constant 1 : index
    %c0_5 = arith.constant 0 : index
    %c0_6 = arith.constant 0 : index
    %9 = vector.load %arg1[%c1, %c0_5, %c0_6] : memref<25x4x128xbf16, #tpu.memory_space<vmem>>, vector<1x4x128xbf16>
    %10 = vector.shape_cast %9 : vector<1x4x128xbf16> to vector<4x128xbf16>
    %11 = arith.extf %10 : vector<4x128xbf16> to vector<4x128xf32>
    %cst_7 = arith.constant 0.000000e+00 : f32
    %12 = vector.broadcast %cst_7 : f32 to vector<4x128xf32>
    %13 = arith.maximumf %11, %12 : vector<4x128xf32>
    %c1_8 = arith.constant 1 : index
    %c0_9 = arith.constant 0 : index
    %c0_10 = arith.constant 0 : index
    %14 = vector.load %arg2[%c1_8, %c0_9, %c0_10] : memref<25x4x1xf32, #tpu.memory_space<vmem>>, vector<1x4x1xf32>
    %15 = vector.shape_cast %14 : vector<1x4x1xf32> to vector<4x1xf32>
    %16 = vector.broadcast %15 : vector<4x1xf32> to vector<4x128xf32>
    %17 = arith.mulf %13, %16 : vector<4x128xf32>
    %18 = arith.addf %8, %17 : vector<4x128xf32>
    %c2 = arith.constant 2 : index
    %c0_11 = arith.constant 0 : index
    %c0_12 = arith.constant 0 : index
    %19 = vector.load %arg1[%c2, %c0_11, %c0_12] : memref<25x4x128xbf16, #tpu.memory_space<vmem>>, vector<1x4x128xbf16>
    %20 = vector.shape_cast %19 : vector<1x4x128xbf16> to vector<4x128xbf16>
    %21 = arith.extf %20 : vector<4x128xbf16> to vector<4x128xf32>
    %cst_13 = arith.constant 0.000000e+00 : f32
    %22 = vector.broadcast %cst_13 : f32 to vector<4x128xf32>
    %23 = arith.maximumf %21, %22 : vector<4x128xf32>
    %c2_14 = arith.constant 2 : index
    %c0_15 = arith.constant 0 : index
    %c0_16 = arith.constant 0 : index
    %24 = vector.load %arg2[%c2_14, %c0_15, %c0_16] : memref<25x4x1xf32, #tpu.memory_space<vmem>>, vector<1x4x1xf32>
    %25 = vector.shape_cast %24 : vector<1x4x1xf32> to vector<4x1xf32>
    %26 = vector.broadcast %25 : vector<4x1xf32> to vector<4x128xf32>
    %27 = arith.mulf %23, %26 : vector<4x128xf32>
    %28 = arith.addf %18, %27 : vector<4x128xf32>
    %c3 = arith.constant 3 : index
    %c0_17 = arith.constant 0 : index
    %c0_18 = arith.constant 0 : index
    %29 = vector.load %arg1[%c3, %c0_17, %c0_18] : memref<25x4x128xbf16, #tpu.memory_space<vmem>>, vector<1x4x128xbf16>
    %30 = vector.shape_cast %29 : vector<1x4x128xbf16> to vector<4x128xbf16>
    %31 = arith.extf %30 : vector<4x128xbf16> to vector<4x128xf32>
    %cst_19 = arith.constant 0.000000e+00 : f32
    %32 = vector.broadcast %cst_19 : f32 to vector<4x128xf32>
    %33 = arith.maximumf %31, %32 : vector<4x128xf32>
    %c3_20 = arith.constant 3 : index
    %c0_21 = arith.constant 0 : index
    %c0_22 = arith.constant 0 : index
    %34 = vector.load %arg2[%c3_20, %c0_21, %c0_22] : memref<25x4x1xf32, #tpu.memory_space<vmem>>, vector<1x4x1xf32>
    %35 = vector.shape_cast %34 : vector<1x4x1xf32> to vector<4x1xf32>
    %36 = vector.broadcast %35 : vector<4x1xf32> to vector<4x128xf32>
    %37 = arith.mulf %33, %36 : vector<4x128xf32>
    %38 = arith.addf %28, %37 : vector<4x128xf32>
    %c4 = arith.constant 4 : index
    %c0_23 = arith.constant 0 : index
    %c0_24 = arith.constant 0 : index
    %39 = vector.load %arg1[%c4, %c0_23, %c0_24] : memref<25x4x128xbf16, #tpu.memory_space<vmem>>, vector<1x4x128xbf16>
    %40 = vector.shape_cast %39 : vector<1x4x128xbf16> to vector<4x128xbf16>
    %41 = arith.extf %40 : vector<4x128xbf16> to vector<4x128xf32>
    %cst_25 = arith.constant 0.000000e+00 : f32
    %42 = vector.broadcast %cst_25 : f32 to vector<4x128xf32>
    %43 = arith.maximumf %41, %42 : vector<4x128xf32>
    %c4_26 = arith.constant 4 : index
    %c0_27 = arith.constant 0 : index
    %c0_28 = arith.constant 0 : index
    %44 = vector.load %arg2[%c4_26, %c0_27, %c0_28] : memref<25x4x1xf32, #tpu.memory_space<vmem>>, vector<1x4x1xf32>
    %45 = vector.shape_cast %44 : vector<1x4x1xf32> to vector<4x1xf32>
    %46 = vector.broadcast %45 : vector<4x1xf32> to vector<4x128xf32>
    %47 = arith.mulf %43, %46 : vector<4x128xf32>
    %48 = arith.addf %38, %47 : vector<4x128xf32>
    %c5 = arith.constant 5 : index
    %c0_29 = arith.constant 0 : index
    %c0_30 = arith.constant 0 : index
    %49 = vector.load %arg1[%c5, %c0_29, %c0_30] : memref<25x4x128xbf16, #tpu.memory_space<vmem>>, vector<1x4x128xbf16>
    %50 = vector.shape_cast %49 : vector<1x4x128xbf16> to vector<4x128xbf16>
    %51 = arith.extf %50 : vector<4x128xbf16> to vector<4x128xf32>
    %cst_31 = arith.constant 0.000000e+00 : f32
    %52 = vector.broadcast %cst_31 : f32 to vector<4x128xf32>
    %53 = arith.maximumf %51, %52 : vector<4x128xf32>
    %c5_32 = arith.constant 5 : index
    %c0_33 = arith.constant 0 : index
    %c0_34 = arith.constant 0 : index
    %54 = vector.load %arg2[%c5_32, %c0_33, %c0_34] : memref<25x4x1xf32, #tpu.memory_space<vmem>>, vector<1x4x1xf32>
    %55 = vector.shape_cast %54 : vector<1x4x1xf32> to vector<4x1xf32>
    %56 = vector.broadcast %55 : vector<4x1xf32> to vector<4x128xf32>
    %57 = arith.mulf %53, %56 : vector<4x128xf32>
    %58 = arith.addf %48, %57 : vector<4x128xf32>
    %c6 = arith.constant 6 : index
    %c0_35 = arith.constant 0 : index
    %c0_36 = arith.constant 0 : index
    %59 = vector.load %arg1[%c6, %c0_35, %c0_36] : memref<25x4x128xbf16, #tpu.memory_space<vmem>>, vector<1x4x128xbf16>
    %60 = vector.shape_cast %59 : vector<1x4x128xbf16> to vector<4x128xbf16>
    %61 = arith.extf %60 : vector<4x128xbf16> to vector<4x128xf32>
    %cst_37 = arith.constant 0.000000e+00 : f32
    %62 = vector.broadcast %cst_37 : f32 to vector<4x128xf32>
    %63 = arith.maximumf %61, %62 : vector<4x128xf32>
    %c6_38 = arith.constant 6 : index
    %c0_39 = arith.constant 0 : index
    %c0_40 = arith.constant 0 : index
    %64 = vector.load %arg2[%c6_38, %c0_39, %c0_40] : memref<25x4x1xf32, #tpu.memory_space<vmem>>, vector<1x4x1xf32>
    %65 = vector.shape_cast %64 : vector<1x4x1xf32> to vector<4x1xf32>
    %66 = vector.broadcast %65 : vector<4x1xf32> to vector<4x128xf32>
    %67 = arith.mulf %63, %66 : vector<4x128xf32>
    %68 = arith.addf %58, %67 : vector<4x128xf32>
    %c7 = arith.constant 7 : index
    %c0_41 = arith.constant 0 : index
    %c0_42 = arith.constant 0 : index
    %69 = vector.load %arg1[%c7, %c0_41, %c0_42] : memref<25x4x128xbf16, #tpu.memory_space<vmem>>, vector<1x4x128xbf16>
    %70 = vector.shape_cast %69 : vector<1x4x128xbf16> to vector<4x128xbf16>
    %71 = arith.extf %70 : vector<4x128xbf16> to vector<4x128xf32>
    %cst_43 = arith.constant 0.000000e+00 : f32
    %72 = vector.broadcast %cst_43 : f32 to vector<4x128xf32>
    %73 = arith.maximumf %71, %72 : vector<4x128xf32>
    %c7_44 = arith.constant 7 : index
    %c0_45 = arith.constant 0 : index
    %c0_46 = arith.constant 0 : index
    %74 = vector.load %arg2[%c7_44, %c0_45, %c0_46] : memref<25x4x1xf32, #tpu.memory_space<vmem>>, vector<1x4x1xf32>
    %75 = vector.shape_cast %74 : vector<1x4x1xf32> to vector<4x1xf32>
    %76 = vector.broadcast %75 : vector<4x1xf32> to vector<4x128xf32>
    %77 = arith.mulf %73, %76 : vector<4x128xf32>
    %78 = arith.addf %68, %77 : vector<4x128xf32>
    %c8 = arith.constant 8 : index
    %c0_47 = arith.constant 0 : index
    %c0_48 = arith.constant 0 : index
    %79 = vector.load %arg1[%c8, %c0_47, %c0_48] : memref<25x4x128xbf16, #tpu.memory_space<vmem>>, vector<1x4x128xbf16>
    %80 = vector.shape_cast %79 : vector<1x4x128xbf16> to vector<4x128xbf16>
    %81 = arith.extf %80 : vector<4x128xbf16> to vector<4x128xf32>
    %cst_49 = arith.constant 0.000000e+00 : f32
    %82 = vector.broadcast %cst_49 : f32 to vector<4x128xf32>
    %83 = arith.maximumf %81, %82 : vector<4x128xf32>
    %c8_50 = arith.constant 8 : index
    %c0_51 = arith.constant 0 : index
    %c0_52 = arith.constant 0 : index
    %84 = vector.load %arg2[%c8_50, %c0_51, %c0_52] : memref<25x4x1xf32, #tpu.memory_space<vmem>>, vector<1x4x1xf32>
    %85 = vector.shape_cast %84 : vector<1x4x1xf32> to vector<4x1xf32>
    %86 = vector.broadcast %85 : vector<4x1xf32> to vector<4x128xf32>
    %87 = arith.mulf %83, %86 : vector<4x128xf32>
    %88 = arith.addf %78, %87 : vector<4x128xf32>
    %c9 = arith.constant 9 : index
    %c0_53 = arith.constant 0 : index
    %c0_54 = arith.constant 0 : index
    %89 = vector.load %arg1[%c9, %c0_53, %c0_54] : memref<25x4x128xbf16, #tpu.memory_space<vmem>>, vector<1x4x128xbf16>
    %90 = vector.shape_cast %89 : vector<1x4x128xbf16> to vector<4x128xbf16>
    %91 = arith.extf %90 : vector<4x128xbf16> to vector<4x128xf32>
    %cst_55 = arith.constant 0.000000e+00 : f32
    %92 = vector.broadcast %cst_55 : f32 to vector<4x128xf32>
    %93 = arith.maximumf %91, %92 : vector<4x128xf32>
    %c9_56 = arith.constant 9 : index
    %c0_57 = arith.constant 0 : index
    %c0_58 = arith.constant 0 : index
    %94 = vector.load %arg2[%c9_56, %c0_57, %c0_58] : memref<25x4x1xf32, #tpu.memory_space<vmem>>, vector<1x4x1xf32>
    %95 = vector.shape_cast %94 : vector<1x4x1xf32> to vector<4x1xf32>
    %96 = vector.broadcast %95 : vector<4x1xf32> to vector<4x128xf32>
    %97 = arith.mulf %93, %96 : vector<4x128xf32>
    %98 = arith.addf %88, %97 : vector<4x128xf32>
    %c10 = arith.constant 10 : index
    %c0_59 = arith.constant 0 : index
    %c0_60 = arith.constant 0 : index
    %99 = vector.load %arg1[%c10, %c0_59, %c0_60] : memref<25x4x128xbf16, #tpu.memory_space<vmem>>, vector<1x4x128xbf16>
    %100 = vector.shape_cast %99 : vector<1x4x128xbf16> to vector<4x128xbf16>
    %101 = arith.extf %100 : vector<4x128xbf16> to vector<4x128xf32>
    %cst_61 = arith.constant 0.000000e+00 : f32
    %102 = vector.broadcast %cst_61 : f32 to vector<4x128xf32>
    %103 = arith.maximumf %101, %102 : vector<4x128xf32>
    %c10_62 = arith.constant 10 : index
    %c0_63 = arith.constant 0 : index
    %c0_64 = arith.constant 0 : index
    %104 = vector.load %arg2[%c10_62, %c0_63, %c0_64] : memref<25x4x1xf32, #tpu.memory_space<vmem>>, vector<1x4x1xf32>
    %105 = vector.shape_cast %104 : vector<1x4x1xf32> to vector<4x1xf32>
    %106 = vector.broadcast %105 : vector<4x1xf32> to vector<4x128xf32>
    %107 = arith.mulf %103, %106 : vector<4x128xf32>
    %108 = arith.addf %98, %107 : vector<4x128xf32>
    %c11 = arith.constant 11 : index
    %c0_65 = arith.constant 0 : index
    %c0_66 = arith.constant 0 : index
    %109 = vector.load %arg1[%c11, %c0_65, %c0_66] : memref<25x4x128xbf16, #tpu.memory_space<vmem>>, vector<1x4x128xbf16>
    %110 = vector.shape_cast %109 : vector<1x4x128xbf16> to vector<4x128xbf16>
    %111 = arith.extf %110 : vector<4x128xbf16> to vector<4x128xf32>
    %cst_67 = arith.constant 0.000000e+00 : f32
    %112 = vector.broadcast %cst_67 : f32 to vector<4x128xf32>
    %113 = arith.maximumf %111, %112 : vector<4x128xf32>
    %c11_68 = arith.constant 11 : index
    %c0_69 = arith.constant 0 : index
    %c0_70 = arith.constant 0 : index
    %114 = vector.load %arg2[%c11_68, %c0_69, %c0_70] : memref<25x4x1xf32, #tpu.memory_space<vmem>>, vector<1x4x1xf32>
    %115 = vector.shape_cast %114 : vector<1x4x1xf32> to vector<4x1xf32>
    %116 = vector.broadcast %115 : vector<4x1xf32> to vector<4x128xf32>
    %117 = arith.mulf %113, %116 : vector<4x128xf32>
    %118 = arith.addf %108, %117 : vector<4x128xf32>
    %c12 = arith.constant 12 : index
    %c0_71 = arith.constant 0 : index
    %c0_72 = arith.constant 0 : index
    %119 = vector.load %arg1[%c12, %c0_71, %c0_72] : memref<25x4x128xbf16, #tpu.memory_space<vmem>>, vector<1x4x128xbf16>
    %120 = vector.shape_cast %119 : vector<1x4x128xbf16> to vector<4x128xbf16>
    %121 = arith.extf %120 : vector<4x128xbf16> to vector<4x128xf32>
    %cst_73 = arith.constant 0.000000e+00 : f32
    %122 = vector.broadcast %cst_73 : f32 to vector<4x128xf32>
    %123 = arith.maximumf %121, %122 : vector<4x128xf32>
    %c12_74 = arith.constant 12 : index
    %c0_75 = arith.constant 0 : index
    %c0_76 = arith.constant 0 : index
    %124 = vector.load %arg2[%c12_74, %c0_75, %c0_76] : memref<25x4x1xf32, #tpu.memory_space<vmem>>, vector<1x4x1xf32>
    %125 = vector.shape_cast %124 : vector<1x4x1xf32> to vector<4x1xf32>
    %126 = vector.broadcast %125 : vector<4x1xf32> to vector<4x128xf32>
    %127 = arith.mulf %123, %126 : vector<4x128xf32>
    %128 = arith.addf %118, %127 : vector<4x128xf32>
    %c13 = arith.constant 13 : index
    %c0_77 = arith.constant 0 : index
    %c0_78 = arith.constant 0 : index
    %129 = vector.load %arg1[%c13, %c0_77, %c0_78] : memref<25x4x128xbf16, #tpu.memory_space<vmem>>, vector<1x4x128xbf16>
    %130 = vector.shape_cast %129 : vector<1x4x128xbf16> to vector<4x128xbf16>
    %131 = arith.extf %130 : vector<4x128xbf16> to vector<4x128xf32>
    %cst_79 = arith.constant 0.000000e+00 : f32
    %132 = vector.broadcast %cst_79 : f32 to vector<4x128xf32>
    %133 = arith.maximumf %131, %132 : vector<4x128xf32>
    %c13_80 = arith.constant 13 : index
    %c0_81 = arith.constant 0 : index
    %c0_82 = arith.constant 0 : index
    %134 = vector.load %arg2[%c13_80, %c0_81, %c0_82] : memref<25x4x1xf32, #tpu.memory_space<vmem>>, vector<1x4x1xf32>
    %135 = vector.shape_cast %134 : vector<1x4x1xf32> to vector<4x1xf32>
    %136 = vector.broadcast %135 : vector<4x1xf32> to vector<4x128xf32>
    %137 = arith.mulf %133, %136 : vector<4x128xf32>
    %138 = arith.addf %128, %137 : vector<4x128xf32>
    %c14 = arith.constant 14 : index
    %c0_83 = arith.constant 0 : index
    %c0_84 = arith.constant 0 : index
    %139 = vector.load %arg1[%c14, %c0_83, %c0_84] : memref<25x4x128xbf16, #tpu.memory_space<vmem>>, vector<1x4x128xbf16>
    %140 = vector.shape_cast %139 : vector<1x4x128xbf16> to vector<4x128xbf16>
    %141 = arith.extf %140 : vector<4x128xbf16> to vector<4x128xf32>
    %cst_85 = arith.constant 0.000000e+00 : f32
    %142 = vector.broadcast %cst_85 : f32 to vector<4x128xf32>
    %143 = arith.maximumf %141, %142 : vector<4x128xf32>
    %c14_86 = arith.constant 14 : index
    %c0_87 = arith.constant 0 : index
    %c0_88 = arith.constant 0 : index
    %144 = vector.load %arg2[%c14_86, %c0_87, %c0_88] : memref<25x4x1xf32, #tpu.memory_space<vmem>>, vector<1x4x1xf32>
    %145 = vector.shape_cast %144 : vector<1x4x1xf32> to vector<4x1xf32>
    %146 = vector.broadcast %145 : vector<4x1xf32> to vector<4x128xf32>
    %147 = arith.mulf %143, %146 : vector<4x128xf32>
    %148 = arith.addf %138, %147 : vector<4x128xf32>
    %c15 = arith.constant 15 : index
    %c0_89 = arith.constant 0 : index
    %c0_90 = arith.constant 0 : index
    %149 = vector.load %arg1[%c15, %c0_89, %c0_90] : memref<25x4x128xbf16, #tpu.memory_space<vmem>>, vector<1x4x128xbf16>
    %150 = vector.shape_cast %149 : vector<1x4x128xbf16> to vector<4x128xbf16>
    %151 = arith.extf %150 : vector<4x128xbf16> to vector<4x128xf32>
    %cst_91 = arith.constant 0.000000e+00 : f32
    %152 = vector.broadcast %cst_91 : f32 to vector<4x128xf32>
    %153 = arith.maximumf %151, %152 : vector<4x128xf32>
    %c15_92 = arith.constant 15 : index
    %c0_93 = arith.constant 0 : index
    %c0_94 = arith.constant 0 : index
    %154 = vector.load %arg2[%c15_92, %c0_93, %c0_94] : memref<25x4x1xf32, #tpu.memory_space<vmem>>, vector<1x4x1xf32>
    %155 = vector.shape_cast %154 : vector<1x4x1xf32> to vector<4x1xf32>
    %156 = vector.broadcast %155 : vector<4x1xf32> to vector<4x128xf32>
    %157 = arith.mulf %153, %156 : vector<4x128xf32>
    %158 = arith.addf %148, %157 : vector<4x128xf32>
    %c16 = arith.constant 16 : index
    %c0_95 = arith.constant 0 : index
    %c0_96 = arith.constant 0 : index
    %159 = vector.load %arg1[%c16, %c0_95, %c0_96] : memref<25x4x128xbf16, #tpu.memory_space<vmem>>, vector<1x4x128xbf16>
    %160 = vector.shape_cast %159 : vector<1x4x128xbf16> to vector<4x128xbf16>
    %161 = arith.extf %160 : vector<4x128xbf16> to vector<4x128xf32>
    %cst_97 = arith.constant 0.000000e+00 : f32
    %162 = vector.broadcast %cst_97 : f32 to vector<4x128xf32>
    %163 = arith.maximumf %161, %162 : vector<4x128xf32>
    %c16_98 = arith.constant 16 : index
    %c0_99 = arith.constant 0 : index
    %c0_100 = arith.constant 0 : index
    %164 = vector.load %arg2[%c16_98, %c0_99, %c0_100] : memref<25x4x1xf32, #tpu.memory_space<vmem>>, vector<1x4x1xf32>
    %165 = vector.shape_cast %164 : vector<1x4x1xf32> to vector<4x1xf32>
    %166 = vector.broadcast %165 : vector<4x1xf32> to vector<4x128xf32>
    %167 = arith.mulf %163, %166 : vector<4x128xf32>
    %168 = arith.addf %158, %167 : vector<4x128xf32>
    %c17 = arith.constant 17 : index
    %c0_101 = arith.constant 0 : index
    %c0_102 = arith.constant 0 : index
    %169 = vector.load %arg1[%c17, %c0_101, %c0_102] : memref<25x4x128xbf16, #tpu.memory_space<vmem>>, vector<1x4x128xbf16>
    %170 = vector.shape_cast %169 : vector<1x4x128xbf16> to vector<4x128xbf16>
    %171 = arith.extf %170 : vector<4x128xbf16> to vector<4x128xf32>
    %cst_103 = arith.constant 0.000000e+00 : f32
    %172 = vector.broadcast %cst_103 : f32 to vector<4x128xf32>
    %173 = arith.maximumf %171, %172 : vector<4x128xf32>
    %c17_104 = arith.constant 17 : index
    %c0_105 = arith.constant 0 : index
    %c0_106 = arith.constant 0 : index
    %174 = vector.load %arg2[%c17_104, %c0_105, %c0_106] : memref<25x4x1xf32, #tpu.memory_space<vmem>>, vector<1x4x1xf32>
    %175 = vector.shape_cast %174 : vector<1x4x1xf32> to vector<4x1xf32>
    %176 = vector.broadcast %175 : vector<4x1xf32> to vector<4x128xf32>
    %177 = arith.mulf %173, %176 : vector<4x128xf32>
    %178 = arith.addf %168, %177 : vector<4x128xf32>
    %c18 = arith.constant 18 : index
    %c0_107 = arith.constant 0 : index
    %c0_108 = arith.constant 0 : index
    %179 = vector.load %arg1[%c18, %c0_107, %c0_108] : memref<25x4x128xbf16, #tpu.memory_space<vmem>>, vector<1x4x128xbf16>
    %180 = vector.shape_cast %179 : vector<1x4x128xbf16> to vector<4x128xbf16>
    %181 = arith.extf %180 : vector<4x128xbf16> to vector<4x128xf32>
    %cst_109 = arith.constant 0.000000e+00 : f32
    %182 = vector.broadcast %cst_109 : f32 to vector<4x128xf32>
    %183 = arith.maximumf %181, %182 : vector<4x128xf32>
    %c18_110 = arith.constant 18 : index
    %c0_111 = arith.constant 0 : index
    %c0_112 = arith.constant 0 : index
    %184 = vector.load %arg2[%c18_110, %c0_111, %c0_112] : memref<25x4x1xf32, #tpu.memory_space<vmem>>, vector<1x4x1xf32>
    %185 = vector.shape_cast %184 : vector<1x4x1xf32> to vector<4x1xf32>
    %186 = vector.broadcast %185 : vector<4x1xf32> to vector<4x128xf32>
    %187 = arith.mulf %183, %186 : vector<4x128xf32>
    %188 = arith.addf %178, %187 : vector<4x128xf32>
    %c19 = arith.constant 19 : index
    %c0_113 = arith.constant 0 : index
    %c0_114 = arith.constant 0 : index
    %189 = vector.load %arg1[%c19, %c0_113, %c0_114] : memref<25x4x128xbf16, #tpu.memory_space<vmem>>, vector<1x4x128xbf16>
    %190 = vector.shape_cast %189 : vector<1x4x128xbf16> to vector<4x128xbf16>
    %191 = arith.extf %190 : vector<4x128xbf16> to vector<4x128xf32>
    %cst_115 = arith.constant 0.000000e+00 : f32
    %192 = vector.broadcast %cst_115 : f32 to vector<4x128xf32>
    %193 = arith.maximumf %191, %192 : vector<4x128xf32>
    %c19_116 = arith.constant 19 : index
    %c0_117 = arith.constant 0 : index
    %c0_118 = arith.constant 0 : index
    %194 = vector.load %arg2[%c19_116, %c0_117, %c0_118] : memref<25x4x1xf32, #tpu.memory_space<vmem>>, vector<1x4x1xf32>
    %195 = vector.shape_cast %194 : vector<1x4x1xf32> to vector<4x1xf32>
    %196 = vector.broadcast %195 : vector<4x1xf32> to vector<4x128xf32>
    %197 = arith.mulf %193, %196 : vector<4x128xf32>
    %198 = arith.addf %188, %197 : vector<4x128xf32>
    %c20 = arith.constant 20 : index
    %c0_119 = arith.constant 0 : index
    %c0_120 = arith.constant 0 : index
    %199 = vector.load %arg1[%c20, %c0_119, %c0_120] : memref<25x4x128xbf16, #tpu.memory_space<vmem>>, vector<1x4x128xbf16>
    %200 = vector.shape_cast %199 : vector<1x4x128xbf16> to vector<4x128xbf16>
    %201 = arith.extf %200 : vector<4x128xbf16> to vector<4x128xf32>
    %cst_121 = arith.constant 0.000000e+00 : f32
    %202 = vector.broadcast %cst_121 : f32 to vector<4x128xf32>
    %203 = arith.maximumf %201, %202 : vector<4x128xf32>
    %c20_122 = arith.constant 20 : index
    %c0_123 = arith.constant 0 : index
    %c0_124 = arith.constant 0 : index
    %204 = vector.load %arg2[%c20_122, %c0_123, %c0_124] : memref<25x4x1xf32, #tpu.memory_space<vmem>>, vector<1x4x1xf32>
    %205 = vector.shape_cast %204 : vector<1x4x1xf32> to vector<4x1xf32>
    %206 = vector.broadcast %205 : vector<4x1xf32> to vector<4x128xf32>
    %207 = arith.mulf %203, %206 : vector<4x128xf32>
    %208 = arith.addf %198, %207 : vector<4x128xf32>
    %c21 = arith.constant 21 : index
    %c0_125 = arith.constant 0 : index
    %c0_126 = arith.constant 0 : index
    %209 = vector.load %arg1[%c21, %c0_125, %c0_126] : memref<25x4x128xbf16, #tpu.memory_space<vmem>>, vector<1x4x128xbf16>
    %210 = vector.shape_cast %209 : vector<1x4x128xbf16> to vector<4x128xbf16>
    %211 = arith.extf %210 : vector<4x128xbf16> to vector<4x128xf32>
    %cst_127 = arith.constant 0.000000e+00 : f32
    %212 = vector.broadcast %cst_127 : f32 to vector<4x128xf32>
    %213 = arith.maximumf %211, %212 : vector<4x128xf32>
    %c21_128 = arith.constant 21 : index
    %c0_129 = arith.constant 0 : index
    %c0_130 = arith.constant 0 : index
    %214 = vector.load %arg2[%c21_128, %c0_129, %c0_130] : memref<25x4x1xf32, #tpu.memory_space<vmem>>, vector<1x4x1xf32>
    %215 = vector.shape_cast %214 : vector<1x4x1xf32> to vector<4x1xf32>
    %216 = vector.broadcast %215 : vector<4x1xf32> to vector<4x128xf32>
    %217 = arith.mulf %213, %216 : vector<4x128xf32>
    %218 = arith.addf %208, %217 : vector<4x128xf32>
    %c22 = arith.constant 22 : index
    %c0_131 = arith.constant 0 : index
    %c0_132 = arith.constant 0 : index
    %219 = vector.load %arg1[%c22, %c0_131, %c0_132] : memref<25x4x128xbf16, #tpu.memory_space<vmem>>, vector<1x4x128xbf16>
    %220 = vector.shape_cast %219 : vector<1x4x128xbf16> to vector<4x128xbf16>
    %221 = arith.extf %220 : vector<4x128xbf16> to vector<4x128xf32>
    %cst_133 = arith.constant 0.000000e+00 : f32
    %222 = vector.broadcast %cst_133 : f32 to vector<4x128xf32>
    %223 = arith.maximumf %221, %222 : vector<4x128xf32>
    %c22_134 = arith.constant 22 : index
    %c0_135 = arith.constant 0 : index
    %c0_136 = arith.constant 0 : index
    %224 = vector.load %arg2[%c22_134, %c0_135, %c0_136] : memref<25x4x1xf32, #tpu.memory_space<vmem>>, vector<1x4x1xf32>
    %225 = vector.shape_cast %224 : vector<1x4x1xf32> to vector<4x1xf32>
    %226 = vector.broadcast %225 : vector<4x1xf32> to vector<4x128xf32>
    %227 = arith.mulf %223, %226 : vector<4x128xf32>
    %228 = arith.addf %218, %227 : vector<4x128xf32>
    %c23 = arith.constant 23 : index
    %c0_137 = arith.constant 0 : index
    %c0_138 = arith.constant 0 : index
    %229 = vector.load %arg1[%c23, %c0_137, %c0_138] : memref<25x4x128xbf16, #tpu.memory_space<vmem>>, vector<1x4x128xbf16>
    %230 = vector.shape_cast %229 : vector<1x4x128xbf16> to vector<4x128xbf16>
    %231 = arith.extf %230 : vector<4x128xbf16> to vector<4x128xf32>
    %cst_139 = arith.constant 0.000000e+00 : f32
    %232 = vector.broadcast %cst_139 : f32 to vector<4x128xf32>
    %233 = arith.maximumf %231, %232 : vector<4x128xf32>
    %c23_140 = arith.constant 23 : index
    %c0_141 = arith.constant 0 : index
    %c0_142 = arith.constant 0 : index
    %234 = vector.load %arg2[%c23_140, %c0_141, %c0_142] : memref<25x4x1xf32, #tpu.memory_space<vmem>>, vector<1x4x1xf32>
    %235 = vector.shape_cast %234 : vector<1x4x1xf32> to vector<4x1xf32>
    %236 = vector.broadcast %235 : vector<4x1xf32> to vector<4x128xf32>
    %237 = arith.mulf %233, %236 : vector<4x128xf32>
    %238 = arith.addf %228, %237 : vector<4x128xf32>
    %c24 = arith.constant 24 : index
    %c0_143 = arith.constant 0 : index
    %c0_144 = arith.constant 0 : index
    %239 = vector.load %arg1[%c24, %c0_143, %c0_144] : memref<25x4x128xbf16, #tpu.memory_space<vmem>>, vector<1x4x128xbf16>
    %240 = vector.shape_cast %239 : vector<1x4x128xbf16> to vector<4x128xbf16>
    %241 = arith.extf %240 : vector<4x128xbf16> to vector<4x128xf32>
    %cst_145 = arith.constant 0.000000e+00 : f32
    %242 = vector.broadcast %cst_145 : f32 to vector<4x128xf32>
    %243 = arith.maximumf %241, %242 : vector<4x128xf32>
    %c24_146 = arith.constant 24 : index
    %c0_147 = arith.constant 0 : index
    %c0_148 = arith.constant 0 : index
    %244 = vector.load %arg2[%c24_146, %c0_147, %c0_148] : memref<25x4x1xf32, #tpu.memory_space<vmem>>, vector<1x4x1xf32>
    %245 = vector.shape_cast %244 : vector<1x4x1xf32> to vector<4x1xf32>
    %246 = vector.broadcast %245 : vector<4x1xf32> to vector<4x128xf32>
    %247 = arith.mulf %243, %246 : vector<4x128xf32>
    %248 = arith.addf %238, %247 : vector<4x128xf32>
    %c0_149 = arith.constant 0 : index
    %c0_150 = arith.constant 0 : index
    %249 = vector.load %arg3[%c0_149, %c0_150] : memref<4x4xbf16, #tpu.memory_space<vmem>>, vector<4x4xbf16>
    %250 = arith.truncf %248 : vector<4x128xf32> to vector<4x128xbf16>
    %cst_151 = arith.constant dense<0.000000e+00> : vector<4x128xf32>
    %251 = tpu.matmul %249, %250, %cst_151 {dimension_numbers = #tpu.dot_dimension_numbers<[1], [0], [0], [1], [0, 0, 1, 1], [], []>} : vector<4x4xbf16>, vector<4x128xbf16>, vector<4x128xf32> -> vector<4x128xf32>
    %c0_152 = arith.constant 0 : index
    %c0_153 = arith.constant 0 : index
    %252 = vector.load %arg4[%c0_152, %c0_153] : memref<4x128xf32, #tpu.memory_space<vmem>>, vector<4x128xf32>
    tpu.vector_store %arg4[%c0_152, %c0_153], %251 {strides = array<i32>} : memref<4x128xf32, #tpu.memory_space<vmem>>, vector<4x128xf32>,
    %c0_i32 = arith.constant 0 : i32
    %253 = arith.cmpi eq, %arg0, %c0_i32 : i32
    %254 = arith.extui %253 : i1 to i32
    %c0_i32_154 = arith.constant 0 : i32
    %255 = arith.cmpi ne, %254, %c0_i32_154 : i32
    scf.if %255 {
      %cst_165 = arith.constant 0.000000e+00 : f32
      %267 = vector.broadcast %cst_165 : f32 to vector<4x1xf32>
      %c0_166 = arith.constant 0 : index
      %c0_167 = arith.constant 0 : index
      %268 = vector.load %arg5[%c0_166, %c0_167] : memref<4x1xf32, #tpu.memory_space<vmem>>, vector<4x1xf32>
      tpu.vector_store %arg5[%c0_166, %c0_167], %267 {strides = array<i32>} : memref<4x1xf32, #tpu.memory_space<vmem>>, vector<4x1xf32>,
      %cst_168 = arith.constant 0.000000e+00 : f32
      %269 = vector.broadcast %cst_168 : f32 to vector<4x1xf32>
      %c0_169 = arith.constant 0 : index
      %c0_170 = arith.constant 0 : index
      %270 = vector.load %arg6[%c0_169, %c0_170] : memref<4x1xf32, #tpu.memory_space<vmem>>, vector<4x1xf32>
      tpu.vector_store %arg6[%c0_169, %c0_170], %269 {strides = array<i32>} : memref<4x1xf32, #tpu.memory_space<vmem>>, vector<4x1xf32>,
    } else {
    }
    %c0_155 = arith.constant 0 : index
    %c0_156 = arith.constant 0 : index
    %256 = vector.load %arg5[%c0_155, %c0_156] : memref<4x1xf32, #tpu.memory_space<vmem>>, vector<4x1xf32>
    %cst_157 = arith.constant dense<0.000000e+00> : vector<4xf32>
    %257 = vector.multi_reduction <add>, %251, %cst_157 [1] : vector<4x128xf32> to vector<4xf32>
    %258 = vector.shape_cast %257 : vector<4xf32> to vector<4x1xf32>
    %259 = arith.addf %256, %258 : vector<4x1xf32>
    %c0_158 = arith.constant 0 : index
    %c0_159 = arith.constant 0 : index
    %260 = vector.load %arg5[%c0_158, %c0_159] : memref<4x1xf32, #tpu.memory_space<vmem>>, vector<4x1xf32>
    tpu.vector_store %arg5[%c0_158, %c0_159], %259 {strides = array<i32>} : memref<4x1xf32, #tpu.memory_space<vmem>>, vector<4x1xf32>,
    %c0_160 = arith.constant 0 : index
    %c0_161 = arith.constant 0 : index
    %261 = vector.load %arg6[%c0_160, %c0_161] : memref<4x1xf32, #tpu.memory_space<vmem>>, vector<4x1xf32>
    %262 = arith.mulf %251, %251 : vector<4x128xf32>
    %cst_162 = arith.constant dense<0.000000e+00> : vector<4xf32>
    %263 = vector.multi_reduction <add>, %262, %cst_162 [1] : vector<4x128xf32> to vector<4xf32>
    %264 = vector.shape_cast %263 : vector<4xf32> to vector<4x1xf32>
    %265 = arith.addf %261, %264 : vector<4x1xf32>
    %c0_163 = arith.constant 0 : index
    %c0_164 = arith.constant 0 : index
    %266 = vector.load %arg6[%c0_163, %c0_164] : memref<4x1xf32, #tpu.memory_space<vmem>>, vector<4x1xf32>
    tpu.vector_store %arg6[%c0_163, %c0_164], %265 {strides = array<i32>} : memref<4x1xf32, #tpu.memory_space<vmem>>, vector<4x1xf32>,
    return
  }
  func.func @transform_0(%arg0: i32) -> (i32, i32, i32) {
    %c0_i32 = arith.constant 0 : i32
    %c0_i32_0 = arith.constant 0 : i32
    %c0_i32_1 = arith.constant 0 : i32
    return %c0_i32, %c0_i32_0, %arg0 : i32, i32, i32
  }
  func.func @transform_1(%arg0: i32) -> (i32, i32, i32) {
    %c0_i32 = arith.constant 0 : i32
    %c0_i32_0 = arith.constant 0 : i32
    %c0_i32_1 = arith.constant 0 : i32
    %c0_i32_2 = arith.constant 0 : i32
    return %c0_i32, %c0_i32_0, %c0_i32_1 : i32, i32, i32
  }
  func.func @transform_2(%arg0: i32) -> (i32, i32) {
    %c0_i32 = arith.constant 0 : i32
    %c0_i32_0 = arith.constant 0 : i32
    %c0_i32_1 = arith.constant 0 : i32
    return %c0_i32, %c0_i32_0 : i32, i32
  }
  func.func @transform_3(%arg0: i32) -> (i32, i32) {
    %c0_i32 = arith.constant 0 : i32
    %c0_i32_0 = arith.constant 0 : i32
    return %c0_i32, %arg0 : i32, i32
  }
  func.func @transform_4(%arg0: i32) -> (i32, i32) {
    %c0_i32 = arith.constant 0 : i32
    %c0_i32_0 = arith.constant 0 : i32
    %c0_i32_1 = arith.constant 0 : i32
    return %c0_i32, %c0_i32_0 : i32, i32
  }
  func.func @transform_5(%arg0: i32) -> (i32, i32) {
    %c0_i32 = arith.constant 0 : i32
    %c0_i32_0 = arith.constant 0 : i32
    %c0_i32_1 = arith.constant 0 : i32
    return %c0_i32, %c0_i32_0 : i32, i32
  }
}

module attributes {stable_mosaic.version = 11 : i64} {
  func.func @kernel(%arg0: i32, %arg1: memref<4x128xf32, #tpu.memory_space<vmem>>, %arg2: memref<4x128xf32, #tpu.memory_space<vmem>>, %arg3: memref<4x128xf32, #tpu.memory_space<vmem>>, %arg4: memref<4x128xf32, #tpu.memory_space<vmem>>, %arg5: memref<4x128xf32, #tpu.memory_space<vmem>>, %arg6: memref<4x128xf32, #tpu.memory_space<vmem>>, %arg7: memref<4x128xf32, #tpu.memory_space<vmem>>, %arg8: memref<7x1xf32, #tpu.memory_space<smem>>, %arg9: memref<4x128xf32, #tpu.memory_space<vmem>>) attributes {dimension_semantics = [#tpu.dimension_semantics<parallel>], iteration_bounds = array<i64: 1>, scalar_prefetch = 0 : i64, scratch_operands = 0 : i64, tpu.core_type = #tpu.core_type<tc>, window_params = [{transform_indices = @transform_0, window_bounds = array<i64: 4, 128>}, {transform_indices = @transform_1, window_bounds = array<i64: 4, 128>}, {transform_indices = @transform_2, window_bounds = array<i64: 4, 128>}, {transform_indices = @transform_3, window_bounds = array<i64: 4, 128>}, {transform_indices = @transform_4, window_bounds = array<i64: 4, 128>}, {transform_indices = @transform_5, window_bounds = array<i64: 4, 128>}, {transform_indices = @transform_6, window_bounds = array<i64: 4, 128>}, {transform_indices = @transform_7, window_bounds = array<i64: 7, 1>}, {transform_indices = @transform_8, window_bounds = array<i64: 4, 128>}]} {
    %c0 = arith.constant 0 : index
    %c0_0 = arith.constant 0 : index
    %0 = vector.load %arg1[%c0, %c0_0] : memref<4x128xf32, #tpu.memory_space<vmem>>, vector<4x128xf32>
    %c0_1 = arith.constant 0 : index
    %c0_2 = arith.constant 0 : index
    %1 = memref.load %arg8[%c0_1, %c0_2] : memref<7x1xf32, #tpu.memory_space<smem>>
    %2 = vector.broadcast %1 : f32 to vector<4x128xf32>
    %3 = arith.mulf %0, %2 : vector<4x128xf32>
    %c0_3 = arith.constant 0 : index
    %c0_4 = arith.constant 0 : index
    %4 = vector.load %arg2[%c0_3, %c0_4] : memref<4x128xf32, #tpu.memory_space<vmem>>, vector<4x128xf32>
    %c1 = arith.constant 1 : index
    %c0_5 = arith.constant 0 : index
    %5 = memref.load %arg8[%c1, %c0_5] : memref<7x1xf32, #tpu.memory_space<smem>>
    %6 = vector.broadcast %5 : f32 to vector<4x128xf32>
    %7 = arith.mulf %4, %6 : vector<4x128xf32>
    %8 = arith.addf %3, %7 : vector<4x128xf32>
    %c0_6 = arith.constant 0 : index
    %c0_7 = arith.constant 0 : index
    %9 = vector.load %arg3[%c0_6, %c0_7] : memref<4x128xf32, #tpu.memory_space<vmem>>, vector<4x128xf32>
    %c2 = arith.constant 2 : index
    %c0_8 = arith.constant 0 : index
    %10 = memref.load %arg8[%c2, %c0_8] : memref<7x1xf32, #tpu.memory_space<smem>>
    %11 = vector.broadcast %10 : f32 to vector<4x128xf32>
    %12 = arith.mulf %9, %11 : vector<4x128xf32>
    %13 = arith.addf %8, %12 : vector<4x128xf32>
    %c0_9 = arith.constant 0 : index
    %c0_10 = arith.constant 0 : index
    %14 = vector.load %arg4[%c0_9, %c0_10] : memref<4x128xf32, #tpu.memory_space<vmem>>, vector<4x128xf32>
    %c3 = arith.constant 3 : index
    %c0_11 = arith.constant 0 : index
    %15 = memref.load %arg8[%c3, %c0_11] : memref<7x1xf32, #tpu.memory_space<smem>>
    %16 = vector.broadcast %15 : f32 to vector<4x128xf32>
    %17 = arith.mulf %14, %16 : vector<4x128xf32>
    %18 = arith.addf %13, %17 : vector<4x128xf32>
    %c0_12 = arith.constant 0 : index
    %c0_13 = arith.constant 0 : index
    %19 = vector.load %arg5[%c0_12, %c0_13] : memref<4x128xf32, #tpu.memory_space<vmem>>, vector<4x128xf32>
    %c4 = arith.constant 4 : index
    %c0_14 = arith.constant 0 : index
    %20 = memref.load %arg8[%c4, %c0_14] : memref<7x1xf32, #tpu.memory_space<smem>>
    %21 = vector.broadcast %20 : f32 to vector<4x128xf32>
    %22 = arith.mulf %19, %21 : vector<4x128xf32>
    %23 = arith.addf %18, %22 : vector<4x128xf32>
    %c0_15 = arith.constant 0 : index
    %c0_16 = arith.constant 0 : index
    %24 = vector.load %arg6[%c0_15, %c0_16] : memref<4x128xf32, #tpu.memory_space<vmem>>, vector<4x128xf32>
    %c5 = arith.constant 5 : index
    %c0_17 = arith.constant 0 : index
    %25 = memref.load %arg8[%c5, %c0_17] : memref<7x1xf32, #tpu.memory_space<smem>>
    %26 = vector.broadcast %25 : f32 to vector<4x128xf32>
    %27 = arith.mulf %24, %26 : vector<4x128xf32>
    %28 = arith.addf %23, %27 : vector<4x128xf32>
    %c0_18 = arith.constant 0 : index
    %c0_19 = arith.constant 0 : index
    %29 = vector.load %arg7[%c0_18, %c0_19] : memref<4x128xf32, #tpu.memory_space<vmem>>, vector<4x128xf32>
    %c6 = arith.constant 6 : index
    %c0_20 = arith.constant 0 : index
    %30 = memref.load %arg8[%c6, %c0_20] : memref<7x1xf32, #tpu.memory_space<smem>>
    %31 = vector.broadcast %30 : f32 to vector<4x128xf32>
    %32 = arith.mulf %29, %31 : vector<4x128xf32>
    %33 = arith.addf %28, %32 : vector<4x128xf32>
    %c0_21 = arith.constant 0 : index
    %c0_22 = arith.constant 0 : index
    %34 = vector.load %arg9[%c0_21, %c0_22] : memref<4x128xf32, #tpu.memory_space<vmem>>, vector<4x128xf32>
    tpu.vector_store %arg9[%c0_21, %c0_22], %33 {strides = array<i32>} : memref<4x128xf32, #tpu.memory_space<vmem>>, vector<4x128xf32>,
    return
  }
  func.func @transform_0(%arg0: i32) -> (i32, i32) {
    %c0_i32 = arith.constant 0 : i32
    %c0_i32_0 = arith.constant 0 : i32
    return %c0_i32, %arg0 : i32, i32
  }
  func.func @transform_1(%arg0: i32) -> (i32, i32) {
    %c0_i32 = arith.constant 0 : i32
    %c0_i32_0 = arith.constant 0 : i32
    return %c0_i32, %arg0 : i32, i32
  }
  func.func @transform_2(%arg0: i32) -> (i32, i32) {
    %c0_i32 = arith.constant 0 : i32
    %c0_i32_0 = arith.constant 0 : i32
    return %c0_i32, %arg0 : i32, i32
  }
  func.func @transform_3(%arg0: i32) -> (i32, i32) {
    %c0_i32 = arith.constant 0 : i32
    %c0_i32_0 = arith.constant 0 : i32
    return %c0_i32, %arg0 : i32, i32
  }
  func.func @transform_4(%arg0: i32) -> (i32, i32) {
    %c0_i32 = arith.constant 0 : i32
    %c0_i32_0 = arith.constant 0 : i32
    return %c0_i32, %arg0 : i32, i32
  }
  func.func @transform_5(%arg0: i32) -> (i32, i32) {
    %c0_i32 = arith.constant 0 : i32
    %c0_i32_0 = arith.constant 0 : i32
    return %c0_i32, %arg0 : i32, i32
  }
  func.func @transform_6(%arg0: i32) -> (i32, i32) {
    %c0_i32 = arith.constant 0 : i32
    %c0_i32_0 = arith.constant 0 : i32
    return %c0_i32, %arg0 : i32, i32
  }
  func.func @transform_7(%arg0: i32) -> (i32, i32) {
    %c0_i32 = arith.constant 0 : i32
    %c0_i32_0 = arith.constant 0 : i32
    %c0_i32_1 = arith.constant 0 : i32
    return %c0_i32, %c0_i32_0 : i32, i32
  }
  func.func @transform_8(%arg0: i32) -> (i32, i32) {
    %c0_i32 = arith.constant 0 : i32
    %c0_i32_0 = arith.constant 0 : i32
    return %c0_i32, %arg0 : i32, i32
  }
}

module attributes {stable_mosaic.version = 11 : i64} {
  func.func @kernel(%arg0: i32, %arg1: memref<16x128xf32, #tpu.memory_space<vmem>>, %arg2: memref<16x128xf32, #tpu.memory_space<vmem>>, %arg3: memref<2x1xf32, #tpu.memory_space<smem>>, %arg4: memref<16x128xf32, #tpu.memory_space<vmem>>) attributes {dimension_semantics = [#tpu.dimension_semantics<parallel>], iteration_bounds = array<i64: 1>, scalar_prefetch = 0 : i64, scratch_operands = 0 : i64, tpu.core_type = #tpu.core_type<tc>, window_params = [{transform_indices = @transform_0, window_bounds = array<i64: 16, 128>}, {transform_indices = @transform_1, window_bounds = array<i64: 16, 128>}, {transform_indices = @transform_2, window_bounds = array<i64: 2, 1>}, {transform_indices = @transform_3, window_bounds = array<i64: 16, 128>}]} {
    %c0 = arith.constant 0 : index
    %c0_0 = arith.constant 0 : index
    %0 = vector.load %arg1[%c0, %c0_0] : memref<16x128xf32, #tpu.memory_space<vmem>>, vector<16x128xf32>
    %c0_1 = arith.constant 0 : index
    %c0_2 = arith.constant 0 : index
    %1 = memref.load %arg3[%c0_1, %c0_2] : memref<2x1xf32, #tpu.memory_space<smem>>
    %2 = vector.broadcast %1 : f32 to vector<16x128xf32>
    %3 = arith.mulf %0, %2 : vector<16x128xf32>
    %c0_3 = arith.constant 0 : index
    %c0_4 = arith.constant 0 : index
    %4 = vector.load %arg2[%c0_3, %c0_4] : memref<16x128xf32, #tpu.memory_space<vmem>>, vector<16x128xf32>
    %c1 = arith.constant 1 : index
    %c0_5 = arith.constant 0 : index
    %5 = memref.load %arg3[%c1, %c0_5] : memref<2x1xf32, #tpu.memory_space<smem>>
    %6 = vector.broadcast %5 : f32 to vector<16x128xf32>
    %7 = arith.mulf %4, %6 : vector<16x128xf32>
    %8 = arith.addf %3, %7 : vector<16x128xf32>
    %c0_6 = arith.constant 0 : index
    %c0_7 = arith.constant 0 : index
    %9 = vector.load %arg4[%c0_6, %c0_7] : memref<16x128xf32, #tpu.memory_space<vmem>>, vector<16x128xf32>
    tpu.vector_store %arg4[%c0_6, %c0_7], %8 {strides = array<i32>} : memref<16x128xf32, #tpu.memory_space<vmem>>, vector<16x128xf32>,
    return
  }
  func.func @transform_0(%arg0: i32) -> (i32, i32) {
    %c0_i32 = arith.constant 0 : i32
    %c0_i32_0 = arith.constant 0 : i32
    return %c0_i32, %arg0 : i32, i32
  }
  func.func @transform_1(%arg0: i32) -> (i32, i32) {
    %c0_i32 = arith.constant 0 : i32
    %c0_i32_0 = arith.constant 0 : i32
    return %c0_i32, %arg0 : i32, i32
  }
  func.func @transform_2(%arg0: i32) -> (i32, i32) {
    %c0_i32 = arith.constant 0 : i32
    %c0_i32_0 = arith.constant 0 : i32
    %c0_i32_1 = arith.constant 0 : i32
    return %c0_i32, %c0_i32_0 : i32, i32
  }
  func.func @transform_3(%arg0: i32) -> (i32, i32) {
    %c0_i32 = arith.constant 0 : i32
    %c0_i32_0 = arith.constant 0 : i32
    return %c0_i32, %arg0 : i32, i32
  }
}

module attributes {stable_mosaic.version = 11 : i64} {
  func.func @kernel(%arg0: i32, %arg1: memref<32x32xbf16, #tpu.memory_space<vmem>>, %arg2: memref<32x128xf32, #tpu.memory_space<vmem>>, %arg3: memref<32x128xf32, #tpu.memory_space<vmem>>, %arg4: memref<32x1xf32, #tpu.memory_space<vmem>>, %arg5: memref<32x1xf32, #tpu.memory_space<vmem>>) attributes {dimension_semantics = [#tpu.dimension_semantics<arbitrary>], iteration_bounds = array<i64: 1>, scalar_prefetch = 0 : i64, scratch_operands = 0 : i64, tpu.core_type = #tpu.core_type<tc>, window_params = [{pipeline_mode = #tpu.pipeline_mode<synchronous>, transform_indices = @transform_0, window_bounds = array<i64: 32, 32>}, {transform_indices = @transform_1, window_bounds = array<i64: 32, 128>}, {transform_indices = @transform_2, window_bounds = array<i64: 32, 128>}, {pipeline_mode = #tpu.pipeline_mode<synchronous>, transform_indices = @transform_3, window_bounds = array<i64: 32, 1>}, {pipeline_mode = #tpu.pipeline_mode<synchronous>, transform_indices = @transform_4, window_bounds = array<i64: 32, 1>}]} {
    %c0 = arith.constant 0 : index
    %c0_0 = arith.constant 0 : index
    %0 = vector.load %arg2[%c0, %c0_0] : memref<32x128xf32, #tpu.memory_space<vmem>>, vector<32x128xf32>
    %cst = arith.constant 0.000000e+00 : f32
    %1 = vector.broadcast %cst : f32 to vector<32x128xf32>
    %2 = arith.maximumf %0, %1 : vector<32x128xf32>
    %c0_1 = arith.constant 0 : index
    %c0_2 = arith.constant 0 : index
    %3 = vector.load %arg1[%c0_1, %c0_2] : memref<32x32xbf16, #tpu.memory_space<vmem>>, vector<32x32xbf16>
    %4 = arith.truncf %2 : vector<32x128xf32> to vector<32x128xbf16>
    %cst_3 = arith.constant dense<0.000000e+00> : vector<32x128xf32>
    %5 = tpu.matmul %3, %4, %cst_3 {dimension_numbers = #tpu.dot_dimension_numbers<[1], [0], [0], [1], [0, 0, 1, 1], [], []>} : vector<32x32xbf16>, vector<32x128xbf16>, vector<32x128xf32> -> vector<32x128xf32>
    %c0_4 = arith.constant 0 : index
    %c0_5 = arith.constant 0 : index
    %6 = vector.load %arg3[%c0_4, %c0_5] : memref<32x128xf32, #tpu.memory_space<vmem>>, vector<32x128xf32>
    tpu.vector_store %arg3[%c0_4, %c0_5], %5 {strides = array<i32>} : memref<32x128xf32, #tpu.memory_space<vmem>>, vector<32x128xf32>,
    %c0_i32 = arith.constant 0 : i32
    %7 = arith.cmpi eq, %arg0, %c0_i32 : i32
    %8 = arith.extui %7 : i1 to i32
    %c0_i32_6 = arith.constant 0 : i32
    %9 = arith.cmpi ne, %8, %c0_i32_6 : i32
    scf.if %9 {
      %cst_17 = arith.constant 0.000000e+00 : f32
      %21 = vector.broadcast %cst_17 : f32 to vector<32x1xf32>
      %c0_18 = arith.constant 0 : index
      %c0_19 = arith.constant 0 : index
      %22 = vector.load %arg4[%c0_18, %c0_19] : memref<32x1xf32, #tpu.memory_space<vmem>>, vector<32x1xf32>
      tpu.vector_store %arg4[%c0_18, %c0_19], %21 {strides = array<i32>} : memref<32x1xf32, #tpu.memory_space<vmem>>, vector<32x1xf32>,
      %cst_20 = arith.constant 0.000000e+00 : f32
      %23 = vector.broadcast %cst_20 : f32 to vector<32x1xf32>
      %c0_21 = arith.constant 0 : index
      %c0_22 = arith.constant 0 : index
      %24 = vector.load %arg5[%c0_21, %c0_22] : memref<32x1xf32, #tpu.memory_space<vmem>>, vector<32x1xf32>
      tpu.vector_store %arg5[%c0_21, %c0_22], %23 {strides = array<i32>} : memref<32x1xf32, #tpu.memory_space<vmem>>, vector<32x1xf32>,
    } else {
    }
    %c0_7 = arith.constant 0 : index
    %c0_8 = arith.constant 0 : index
    %10 = vector.load %arg4[%c0_7, %c0_8] : memref<32x1xf32, #tpu.memory_space<vmem>>, vector<32x1xf32>
    %cst_9 = arith.constant dense<0.000000e+00> : vector<32xf32>
    %11 = vector.multi_reduction <add>, %5, %cst_9 [1] : vector<32x128xf32> to vector<32xf32>
    %12 = vector.shape_cast %11 : vector<32xf32> to vector<32x1xf32>
    %13 = arith.addf %10, %12 : vector<32x1xf32>
    %c0_10 = arith.constant 0 : index
    %c0_11 = arith.constant 0 : index
    %14 = vector.load %arg4[%c0_10, %c0_11] : memref<32x1xf32, #tpu.memory_space<vmem>>, vector<32x1xf32>
    tpu.vector_store %arg4[%c0_10, %c0_11], %13 {strides = array<i32>} : memref<32x1xf32, #tpu.memory_space<vmem>>, vector<32x1xf32>,
    %c0_12 = arith.constant 0 : index
    %c0_13 = arith.constant 0 : index
    %15 = vector.load %arg5[%c0_12, %c0_13] : memref<32x1xf32, #tpu.memory_space<vmem>>, vector<32x1xf32>
    %16 = arith.mulf %5, %5 : vector<32x128xf32>
    %cst_14 = arith.constant dense<0.000000e+00> : vector<32xf32>
    %17 = vector.multi_reduction <add>, %16, %cst_14 [1] : vector<32x128xf32> to vector<32xf32>
    %18 = vector.shape_cast %17 : vector<32xf32> to vector<32x1xf32>
    %19 = arith.addf %15, %18 : vector<32x1xf32>
    %c0_15 = arith.constant 0 : index
    %c0_16 = arith.constant 0 : index
    %20 = vector.load %arg5[%c0_15, %c0_16] : memref<32x1xf32, #tpu.memory_space<vmem>>, vector<32x1xf32>
    tpu.vector_store %arg5[%c0_15, %c0_16], %19 {strides = array<i32>} : memref<32x1xf32, #tpu.memory_space<vmem>>, vector<32x1xf32>,
    return
  }
  func.func @transform_0(%arg0: i32) -> (i32, i32) {
    %c0_i32 = arith.constant 0 : i32
    %c0_i32_0 = arith.constant 0 : i32
    %c0_i32_1 = arith.constant 0 : i32
    return %c0_i32, %c0_i32_0 : i32, i32
  }
  func.func @transform_1(%arg0: i32) -> (i32, i32) {
    %c0_i32 = arith.constant 0 : i32
    %c0_i32_0 = arith.constant 0 : i32
    return %c0_i32, %arg0 : i32, i32
  }
  func.func @transform_2(%arg0: i32) -> (i32, i32) {
    %c0_i32 = arith.constant 0 : i32
    %c0_i32_0 = arith.constant 0 : i32
    return %c0_i32, %arg0 : i32, i32
  }
  func.func @transform_3(%arg0: i32) -> (i32, i32) {
    %c0_i32 = arith.constant 0 : i32
    %c0_i32_0 = arith.constant 0 : i32
    %c0_i32_1 = arith.constant 0 : i32
    return %c0_i32, %c0_i32_0 : i32, i32
  }
  func.func @transform_4(%arg0: i32) -> (i32, i32) {
    %c0_i32 = arith.constant 0 : i32
    %c0_i32_0 = arith.constant 0 : i32
    %c0_i32_1 = arith.constant 0 : i32
    return %c0_i32, %c0_i32_0 : i32, i32
  }
}

module attributes {stable_mosaic.version = 11 : i64} {
  func.func @kernel(%arg0: i32, %arg1: memref<32x1xf32, #tpu.memory_space<vmem>>, %arg2: memref<32x1xf32, #tpu.memory_space<vmem>>, %arg3: memref<32x128xf32, #tpu.memory_space<vmem>>, %arg4: memref<32x128xf32, #tpu.memory_space<vmem>>) attributes {dimension_semantics = [#tpu.dimension_semantics<parallel>], iteration_bounds = array<i64: 1>, scalar_prefetch = 0 : i64, scratch_operands = 0 : i64, tpu.core_type = #tpu.core_type<tc>, window_params = [{pipeline_mode = #tpu.pipeline_mode<synchronous>, transform_indices = @transform_0, window_bounds = array<i64: 32, 1>}, {pipeline_mode = #tpu.pipeline_mode<synchronous>, transform_indices = @transform_1, window_bounds = array<i64: 32, 1>}, {transform_indices = @transform_2, window_bounds = array<i64: 32, 128>}, {transform_indices = @transform_3, window_bounds = array<i64: 32, 128>}]} {
    %c0 = arith.constant 0 : index
    %c0_0 = arith.constant 0 : index
    %0 = vector.load %arg1[%c0, %c0_0] : memref<32x1xf32, #tpu.memory_space<vmem>>, vector<32x1xf32>
    %cst = arith.constant 7.812500e-03 : f32
    %1 = vector.broadcast %cst : f32 to vector<32x1xf32>
    %2 = arith.mulf %0, %1 : vector<32x1xf32>
    %c0_1 = arith.constant 0 : index
    %c0_2 = arith.constant 0 : index
    %3 = vector.load %arg2[%c0_1, %c0_2] : memref<32x1xf32, #tpu.memory_space<vmem>>, vector<32x1xf32>
    %cst_3 = arith.constant 7.812500e-03 : f32
    %4 = vector.broadcast %cst_3 : f32 to vector<32x1xf32>
    %5 = arith.mulf %3, %4 : vector<32x1xf32>
    %6 = arith.mulf %2, %2 : vector<32x1xf32>
    %7 = arith.subf %5, %6 : vector<32x1xf32>
    %cst_4 = arith.constant 0.000000e+00 : f32
    %8 = vector.broadcast %cst_4 : f32 to vector<32x1xf32>
    %9 = arith.maximumf %7, %8 : vector<32x1xf32>
    %c0_5 = arith.constant 0 : index
    %c0_6 = arith.constant 0 : index
    %10 = vector.load %arg3[%c0_5, %c0_6] : memref<32x128xf32, #tpu.memory_space<vmem>>, vector<32x128xf32>
    %11 = vector.broadcast %2 : vector<32x1xf32> to vector<32x128xf32>
    %12 = arith.subf %10, %11 : vector<32x128xf32>
    %cst_7 = arith.constant 9.99999974E-6 : f32
    %13 = vector.broadcast %cst_7 : f32 to vector<32x1xf32>
    %14 = arith.addf %9, %13 : vector<32x1xf32>
    %15 = math.rsqrt %14 : vector<32x1xf32>
    %16 = vector.broadcast %15 : vector<32x1xf32> to vector<32x128xf32>
    %17 = arith.mulf %12, %16 : vector<32x128xf32>
    %c0_8 = arith.constant 0 : index
    %c0_9 = arith.constant 0 : index
    %18 = vector.load %arg4[%c0_8, %c0_9] : memref<32x128xf32, #tpu.memory_space<vmem>>, vector<32x128xf32>
    tpu.vector_store %arg4[%c0_8, %c0_9], %17 {strides = array<i32>} : memref<32x128xf32, #tpu.memory_space<vmem>>, vector<32x128xf32>,
    return
  }
  func.func @transform_0(%arg0: i32) -> (i32, i32) {
    %c0_i32 = arith.constant 0 : i32
    %c0_i32_0 = arith.constant 0 : i32
    %c0_i32_1 = arith.constant 0 : i32
    return %c0_i32, %c0_i32_0 : i32, i32
  }
  func.func @transform_1(%arg0: i32) -> (i32, i32) {
    %c0_i32 = arith.constant 0 : i32
    %c0_i32_0 = arith.constant 0 : i32
    %c0_i32_1 = arith.constant 0 : i32
    return %c0_i32, %c0_i32_0 : i32, i32
  }
  func.func @transform_2(%arg0: i32) -> (i32, i32) {
    %c0_i32 = arith.constant 0 : i32
    %c0_i32_0 = arith.constant 0 : i32
    return %c0_i32, %arg0 : i32, i32
  }
  func.func @transform_3(%arg0: i32) -> (i32, i32) {
    %c0_i32 = arith.constant 0 : i32
    %c0_i32_0 = arith.constant 0 : i32
    return %c0_i32, %arg0 : i32, i32
  }
}

module attributes {stable_mosaic.version = 11 : i64} {
  func.func @kernel(%arg0: i32, %arg1: memref<16x128xf32, #tpu.memory_space<vmem>>, %arg2: memref<16x128xf32, #tpu.memory_space<vmem>>, %arg3: memref<16x128xf32, #tpu.memory_space<vmem>>, %arg4: memref<3x1xf32, #tpu.memory_space<smem>>, %arg5: memref<16x128xf32, #tpu.memory_space<vmem>>) attributes {dimension_semantics = [#tpu.dimension_semantics<parallel>], iteration_bounds = array<i64: 1>, scalar_prefetch = 0 : i64, scratch_operands = 0 : i64, tpu.core_type = #tpu.core_type<tc>, window_params = [{transform_indices = @transform_0, window_bounds = array<i64: 16, 128>}, {transform_indices = @transform_1, window_bounds = array<i64: 16, 128>}, {transform_indices = @transform_2, window_bounds = array<i64: 16, 128>}, {transform_indices = @transform_3, window_bounds = array<i64: 3, 1>}, {transform_indices = @transform_4, window_bounds = array<i64: 16, 128>}]} {
    %c0 = arith.constant 0 : index
    %c0_0 = arith.constant 0 : index
    %0 = vector.load %arg1[%c0, %c0_0] : memref<16x128xf32, #tpu.memory_space<vmem>>, vector<16x128xf32>
    %c0_1 = arith.constant 0 : index
    %c0_2 = arith.constant 0 : index
    %1 = memref.load %arg4[%c0_1, %c0_2] : memref<3x1xf32, #tpu.memory_space<smem>>
    %2 = vector.broadcast %1 : f32 to vector<16x128xf32>
    %3 = arith.mulf %0, %2 : vector<16x128xf32>
    %c0_3 = arith.constant 0 : index
    %c0_4 = arith.constant 0 : index
    %4 = vector.load %arg2[%c0_3, %c0_4] : memref<16x128xf32, #tpu.memory_space<vmem>>, vector<16x128xf32>
    %c1 = arith.constant 1 : index
    %c0_5 = arith.constant 0 : index
    %5 = memref.load %arg4[%c1, %c0_5] : memref<3x1xf32, #tpu.memory_space<smem>>
    %6 = vector.broadcast %5 : f32 to vector<16x128xf32>
    %7 = arith.mulf %4, %6 : vector<16x128xf32>
    %8 = arith.addf %3, %7 : vector<16x128xf32>
    %c0_6 = arith.constant 0 : index
    %c0_7 = arith.constant 0 : index
    %9 = vector.load %arg3[%c0_6, %c0_7] : memref<16x128xf32, #tpu.memory_space<vmem>>, vector<16x128xf32>
    %c2 = arith.constant 2 : index
    %c0_8 = arith.constant 0 : index
    %10 = memref.load %arg4[%c2, %c0_8] : memref<3x1xf32, #tpu.memory_space<smem>>
    %11 = vector.broadcast %10 : f32 to vector<16x128xf32>
    %12 = arith.mulf %9, %11 : vector<16x128xf32>
    %13 = arith.addf %8, %12 : vector<16x128xf32>
    %c0_9 = arith.constant 0 : index
    %c0_10 = arith.constant 0 : index
    %14 = vector.load %arg5[%c0_9, %c0_10] : memref<16x128xf32, #tpu.memory_space<vmem>>, vector<16x128xf32>
    tpu.vector_store %arg5[%c0_9, %c0_10], %13 {strides = array<i32>} : memref<16x128xf32, #tpu.memory_space<vmem>>, vector<16x128xf32>,
    return
  }
  func.func @transform_0(%arg0: i32) -> (i32, i32) {
    %c0_i32 = arith.constant 0 : i32
    %c0_i32_0 = arith.constant 0 : i32
    return %c0_i32, %arg0 : i32, i32
  }
  func.func @transform_1(%arg0: i32) -> (i32, i32) {
    %c0_i32 = arith.constant 0 : i32
    %c0_i32_0 = arith.constant 0 : i32
    return %c0_i32, %arg0 : i32, i32
  }
  func.func @transform_2(%arg0: i32) -> (i32, i32) {
    %c0_i32 = arith.constant 0 : i32
    %c0_i32_0 = arith.constant 0 : i32
    return %c0_i32, %arg0 : i32, i32
  }
  func.func @transform_3(%arg0: i32) -> (i32, i32) {
    %c0_i32 = arith.constant 0 : i32
    %c0_i32_0 = arith.constant 0 : i32
    %c0_i32_1 = arith.constant 0 : i32
    return %c0_i32, %c0_i32_0 : i32, i32
  }
  func.func @transform_4(%arg0: i32) -> (i32, i32) {
    %c0_i32 = arith.constant 0 : i32
    %c0_i32_0 = arith.constant 0 : i32
    return %c0_i32, %arg0 : i32, i32
  }
}

module attributes {stable_mosaic.version = 11 : i64} {
  func.func @kernel(%arg0: i32, %arg1: memref<32x48xbf16, #tpu.memory_space<vmem>>, %arg2: memref<48x128xf32, #tpu.memory_space<vmem>>, %arg3: memref<32x128xf32, #tpu.memory_space<vmem>>, %arg4: memref<32x1xf32, #tpu.memory_space<vmem>>, %arg5: memref<32x1xf32, #tpu.memory_space<vmem>>) attributes {dimension_semantics = [#tpu.dimension_semantics<arbitrary>], iteration_bounds = array<i64: 1>, scalar_prefetch = 0 : i64, scratch_operands = 0 : i64, tpu.core_type = #tpu.core_type<tc>, window_params = [{pipeline_mode = #tpu.pipeline_mode<synchronous>, transform_indices = @transform_0, window_bounds = array<i64: 32, 48>}, {transform_indices = @transform_1, window_bounds = array<i64: 48, 128>}, {transform_indices = @transform_2, window_bounds = array<i64: 32, 128>}, {pipeline_mode = #tpu.pipeline_mode<synchronous>, transform_indices = @transform_3, window_bounds = array<i64: 32, 1>}, {pipeline_mode = #tpu.pipeline_mode<synchronous>, transform_indices = @transform_4, window_bounds = array<i64: 32, 1>}]} {
    %c0 = arith.constant 0 : index
    %c0_0 = arith.constant 0 : index
    %0 = vector.load %arg2[%c0, %c0_0] : memref<48x128xf32, #tpu.memory_space<vmem>>, vector<48x128xf32>
    %cst = arith.constant 0.000000e+00 : f32
    %1 = vector.broadcast %cst : f32 to vector<48x128xf32>
    %2 = arith.maximumf %0, %1 : vector<48x128xf32>
    %c0_1 = arith.constant 0 : index
    %c0_2 = arith.constant 0 : index
    %3 = vector.load %arg1[%c0_1, %c0_2] : memref<32x48xbf16, #tpu.memory_space<vmem>>, vector<32x48xbf16>
    %4 = arith.truncf %2 : vector<48x128xf32> to vector<48x128xbf16>
    %cst_3 = arith.constant dense<0.000000e+00> : vector<32x128xf32>
    %5 = tpu.matmul %3, %4, %cst_3 {dimension_numbers = #tpu.dot_dimension_numbers<[1], [0], [0], [1], [0, 0, 1, 1], [], []>} : vector<32x48xbf16>, vector<48x128xbf16>, vector<32x128xf32> -> vector<32x128xf32>
    %c0_4 = arith.constant 0 : index
    %c0_5 = arith.constant 0 : index
    %6 = vector.load %arg3[%c0_4, %c0_5] : memref<32x128xf32, #tpu.memory_space<vmem>>, vector<32x128xf32>
    tpu.vector_store %arg3[%c0_4, %c0_5], %5 {strides = array<i32>} : memref<32x128xf32, #tpu.memory_space<vmem>>, vector<32x128xf32>,
    %c0_i32 = arith.constant 0 : i32
    %7 = arith.cmpi eq, %arg0, %c0_i32 : i32
    %8 = arith.extui %7 : i1 to i32
    %c0_i32_6 = arith.constant 0 : i32
    %9 = arith.cmpi ne, %8, %c0_i32_6 : i32
    scf.if %9 {
      %cst_17 = arith.constant 0.000000e+00 : f32
      %21 = vector.broadcast %cst_17 : f32 to vector<32x1xf32>
      %c0_18 = arith.constant 0 : index
      %c0_19 = arith.constant 0 : index
      %22 = vector.load %arg4[%c0_18, %c0_19] : memref<32x1xf32, #tpu.memory_space<vmem>>, vector<32x1xf32>
      tpu.vector_store %arg4[%c0_18, %c0_19], %21 {strides = array<i32>} : memref<32x1xf32, #tpu.memory_space<vmem>>, vector<32x1xf32>,
      %cst_20 = arith.constant 0.000000e+00 : f32
      %23 = vector.broadcast %cst_20 : f32 to vector<32x1xf32>
      %c0_21 = arith.constant 0 : index
      %c0_22 = arith.constant 0 : index
      %24 = vector.load %arg5[%c0_21, %c0_22] : memref<32x1xf32, #tpu.memory_space<vmem>>, vector<32x1xf32>
      tpu.vector_store %arg5[%c0_21, %c0_22], %23 {strides = array<i32>} : memref<32x1xf32, #tpu.memory_space<vmem>>, vector<32x1xf32>,
    } else {
    }
    %c0_7 = arith.constant 0 : index
    %c0_8 = arith.constant 0 : index
    %10 = vector.load %arg4[%c0_7, %c0_8] : memref<32x1xf32, #tpu.memory_space<vmem>>, vector<32x1xf32>
    %cst_9 = arith.constant dense<0.000000e+00> : vector<32xf32>
    %11 = vector.multi_reduction <add>, %5, %cst_9 [1] : vector<32x128xf32> to vector<32xf32>
    %12 = vector.shape_cast %11 : vector<32xf32> to vector<32x1xf32>
    %13 = arith.addf %10, %12 : vector<32x1xf32>
    %c0_10 = arith.constant 0 : index
    %c0_11 = arith.constant 0 : index
    %14 = vector.load %arg4[%c0_10, %c0_11] : memref<32x1xf32, #tpu.memory_space<vmem>>, vector<32x1xf32>
    tpu.vector_store %arg4[%c0_10, %c0_11], %13 {strides = array<i32>} : memref<32x1xf32, #tpu.memory_space<vmem>>, vector<32x1xf32>,
    %c0_12 = arith.constant 0 : index
    %c0_13 = arith.constant 0 : index
    %15 = vector.load %arg5[%c0_12, %c0_13] : memref<32x1xf32, #tpu.memory_space<vmem>>, vector<32x1xf32>
    %16 = arith.mulf %5, %5 : vector<32x128xf32>
    %cst_14 = arith.constant dense<0.000000e+00> : vector<32xf32>
    %17 = vector.multi_reduction <add>, %16, %cst_14 [1] : vector<32x128xf32> to vector<32xf32>
    %18 = vector.shape_cast %17 : vector<32xf32> to vector<32x1xf32>
    %19 = arith.addf %15, %18 : vector<32x1xf32>
    %c0_15 = arith.constant 0 : index
    %c0_16 = arith.constant 0 : index
    %20 = vector.load %arg5[%c0_15, %c0_16] : memref<32x1xf32, #tpu.memory_space<vmem>>, vector<32x1xf32>
    tpu.vector_store %arg5[%c0_15, %c0_16], %19 {strides = array<i32>} : memref<32x1xf32, #tpu.memory_space<vmem>>, vector<32x1xf32>,
    return
  }
  func.func @transform_0(%arg0: i32) -> (i32, i32) {
    %c0_i32 = arith.constant 0 : i32
    %c0_i32_0 = arith.constant 0 : i32
    %c0_i32_1 = arith.constant 0 : i32
    return %c0_i32, %c0_i32_0 : i32, i32
  }
  func.func @transform_1(%arg0: i32) -> (i32, i32) {
    %c0_i32 = arith.constant 0 : i32
    %c0_i32_0 = arith.constant 0 : i32
    return %c0_i32, %arg0 : i32, i32
  }
  func.func @transform_2(%arg0: i32) -> (i32, i32) {
    %c0_i32 = arith.constant 0 : i32
    %c0_i32_0 = arith.constant 0 : i32
    return %c0_i32, %arg0 : i32, i32
  }
  func.func @transform_3(%arg0: i32) -> (i32, i32) {
    %c0_i32 = arith.constant 0 : i32
    %c0_i32_0 = arith.constant 0 : i32
    %c0_i32_1 = arith.constant 0 : i32
    return %c0_i32, %c0_i32_0 : i32, i32
  }
  func.func @transform_4(%arg0: i32) -> (i32, i32) {
    %c0_i32 = arith.constant 0 : i32
    %c0_i32_0 = arith.constant 0 : i32
    %c0_i32_1 = arith.constant 0 : i32
    return %c0_i32, %c0_i32_0 : i32, i32
  }
}

module attributes {stable_mosaic.version = 11 : i64} {
  func.func @kernel(%arg0: i32, %arg1: memref<9x8x128xbf16, #tpu.memory_space<vmem>>, %arg2: memref<8x128xf32, #tpu.memory_space<vmem>>, %arg3: memref<8x1xf32, #tpu.memory_space<vmem>>, %arg4: memref<8x1xf32, #tpu.memory_space<vmem>>) attributes {dimension_semantics = [#tpu.dimension_semantics<arbitrary>], iteration_bounds = array<i64: 1>, scalar_prefetch = 0 : i64, scratch_operands = 0 : i64, tpu.core_type = #tpu.core_type<tc>, window_params = [{transform_indices = @transform_0, window_bounds = array<i64: 9, 8, 128>}, {transform_indices = @transform_1, window_bounds = array<i64: 8, 128>}, {pipeline_mode = #tpu.pipeline_mode<synchronous>, transform_indices = @transform_2, window_bounds = array<i64: 8, 1>}, {pipeline_mode = #tpu.pipeline_mode<synchronous>, transform_indices = @transform_3, window_bounds = array<i64: 8, 1>}]} {
    %c0 = arith.constant 0 : index
    %c0_0 = arith.constant 0 : index
    %c0_1 = arith.constant 0 : index
    %0 = vector.load %arg1[%c0, %c0_0, %c0_1] : memref<9x8x128xbf16, #tpu.memory_space<vmem>>, vector<1x8x128xbf16>
    %1 = vector.shape_cast %0 : vector<1x8x128xbf16> to vector<8x128xbf16>
    %c1 = arith.constant 1 : index
    %c0_2 = arith.constant 0 : index
    %c0_3 = arith.constant 0 : index
    %2 = vector.load %arg1[%c1, %c0_2, %c0_3] : memref<9x8x128xbf16, #tpu.memory_space<vmem>>, vector<1x8x128xbf16>
    %3 = vector.shape_cast %2 : vector<1x8x128xbf16> to vector<8x128xbf16>
    %4 = arith.maximumf %1, %3 : vector<8x128xbf16>
    %c2 = arith.constant 2 : index
    %c0_4 = arith.constant 0 : index
    %c0_5 = arith.constant 0 : index
    %5 = vector.load %arg1[%c2, %c0_4, %c0_5] : memref<9x8x128xbf16, #tpu.memory_space<vmem>>, vector<1x8x128xbf16>
    %6 = vector.shape_cast %5 : vector<1x8x128xbf16> to vector<8x128xbf16>
    %7 = arith.maximumf %4, %6 : vector<8x128xbf16>
    %c3 = arith.constant 3 : index
    %c0_6 = arith.constant 0 : index
    %c0_7 = arith.constant 0 : index
    %8 = vector.load %arg1[%c3, %c0_6, %c0_7] : memref<9x8x128xbf16, #tpu.memory_space<vmem>>, vector<1x8x128xbf16>
    %9 = vector.shape_cast %8 : vector<1x8x128xbf16> to vector<8x128xbf16>
    %10 = arith.maximumf %7, %9 : vector<8x128xbf16>
    %c4 = arith.constant 4 : index
    %c0_8 = arith.constant 0 : index
    %c0_9 = arith.constant 0 : index
    %11 = vector.load %arg1[%c4, %c0_8, %c0_9] : memref<9x8x128xbf16, #tpu.memory_space<vmem>>, vector<1x8x128xbf16>
    %12 = vector.shape_cast %11 : vector<1x8x128xbf16> to vector<8x128xbf16>
    %13 = arith.maximumf %10, %12 : vector<8x128xbf16>
    %c5 = arith.constant 5 : index
    %c0_10 = arith.constant 0 : index
    %c0_11 = arith.constant 0 : index
    %14 = vector.load %arg1[%c5, %c0_10, %c0_11] : memref<9x8x128xbf16, #tpu.memory_space<vmem>>, vector<1x8x128xbf16>
    %15 = vector.shape_cast %14 : vector<1x8x128xbf16> to vector<8x128xbf16>
    %16 = arith.maximumf %13, %15 : vector<8x128xbf16>
    %c6 = arith.constant 6 : index
    %c0_12 = arith.constant 0 : index
    %c0_13 = arith.constant 0 : index
    %17 = vector.load %arg1[%c6, %c0_12, %c0_13] : memref<9x8x128xbf16, #tpu.memory_space<vmem>>, vector<1x8x128xbf16>
    %18 = vector.shape_cast %17 : vector<1x8x128xbf16> to vector<8x128xbf16>
    %19 = arith.maximumf %16, %18 : vector<8x128xbf16>
    %c7 = arith.constant 7 : index
    %c0_14 = arith.constant 0 : index
    %c0_15 = arith.constant 0 : index
    %20 = vector.load %arg1[%c7, %c0_14, %c0_15] : memref<9x8x128xbf16, #tpu.memory_space<vmem>>, vector<1x8x128xbf16>
    %21 = vector.shape_cast %20 : vector<1x8x128xbf16> to vector<8x128xbf16>
    %22 = arith.maximumf %19, %21 : vector<8x128xbf16>
    %c8 = arith.constant 8 : index
    %c0_16 = arith.constant 0 : index
    %c0_17 = arith.constant 0 : index
    %23 = vector.load %arg1[%c8, %c0_16, %c0_17] : memref<9x8x128xbf16, #tpu.memory_space<vmem>>, vector<1x8x128xbf16>
    %24 = vector.shape_cast %23 : vector<1x8x128xbf16> to vector<8x128xbf16>
    %25 = arith.maximumf %22, %24 : vector<8x128xbf16>
    %26 = arith.extf %25 : vector<8x128xbf16> to vector<8x128xf32>
    %c0_18 = arith.constant 0 : index
    %c0_19 = arith.constant 0 : index
    %27 = vector.load %arg2[%c0_18, %c0_19] : memref<8x128xf32, #tpu.memory_space<vmem>>, vector<8x128xf32>
    tpu.vector_store %arg2[%c0_18, %c0_19], %26 {strides = array<i32>} : memref<8x128xf32, #tpu.memory_space<vmem>>, vector<8x128xf32>,
    %c0_i32 = arith.constant 0 : i32
    %28 = arith.cmpi eq, %arg0, %c0_i32 : i32
    %29 = arith.extui %28 : i1 to i32
    %c0_i32_20 = arith.constant 0 : i32
    %30 = arith.cmpi ne, %29, %c0_i32_20 : i32
    scf.if %30 {
      %cst_30 = arith.constant 0.000000e+00 : f32
      %42 = vector.broadcast %cst_30 : f32 to vector<8x1xf32>
      %c0_31 = arith.constant 0 : index
      %c0_32 = arith.constant 0 : index
      %43 = vector.load %arg3[%c0_31, %c0_32] : memref<8x1xf32, #tpu.memory_space<vmem>>, vector<8x1xf32>
      tpu.vector_store %arg3[%c0_31, %c0_32], %42 {strides = array<i32>} : memref<8x1xf32, #tpu.memory_space<vmem>>, vector<8x1xf32>,
      %cst_33 = arith.constant 0.000000e+00 : f32
      %44 = vector.broadcast %cst_33 : f32 to vector<8x1xf32>
      %c0_34 = arith.constant 0 : index
      %c0_35 = arith.constant 0 : index
      %45 = vector.load %arg4[%c0_34, %c0_35] : memref<8x1xf32, #tpu.memory_space<vmem>>, vector<8x1xf32>
      tpu.vector_store %arg4[%c0_34, %c0_35], %44 {strides = array<i32>} : memref<8x1xf32, #tpu.memory_space<vmem>>, vector<8x1xf32>,
    } else {
    }
    %c0_21 = arith.constant 0 : index
    %c0_22 = arith.constant 0 : index
    %31 = vector.load %arg3[%c0_21, %c0_22] : memref<8x1xf32, #tpu.memory_space<vmem>>, vector<8x1xf32>
    %cst = arith.constant dense<0.000000e+00> : vector<8xf32>
    %32 = vector.multi_reduction <add>, %26, %cst [1] : vector<8x128xf32> to vector<8xf32>
    %33 = vector.shape_cast %32 : vector<8xf32> to vector<8x1xf32>
    %34 = arith.addf %31, %33 : vector<8x1xf32>
    %c0_23 = arith.constant 0 : index
    %c0_24 = arith.constant 0 : index
    %35 = vector.load %arg3[%c0_23, %c0_24] : memref<8x1xf32, #tpu.memory_space<vmem>>, vector<8x1xf32>
    tpu.vector_store %arg3[%c0_23, %c0_24], %34 {strides = array<i32>} : memref<8x1xf32, #tpu.memory_space<vmem>>, vector<8x1xf32>,
    %c0_25 = arith.constant 0 : index
    %c0_26 = arith.constant 0 : index
    %36 = vector.load %arg4[%c0_25, %c0_26] : memref<8x1xf32, #tpu.memory_space<vmem>>, vector<8x1xf32>
    %37 = arith.mulf %26, %26 : vector<8x128xf32>
    %cst_27 = arith.constant dense<0.000000e+00> : vector<8xf32>
    %38 = vector.multi_reduction <add>, %37, %cst_27 [1] : vector<8x128xf32> to vector<8xf32>
    %39 = vector.shape_cast %38 : vector<8xf32> to vector<8x1xf32>
    %40 = arith.addf %36, %39 : vector<8x1xf32>
    %c0_28 = arith.constant 0 : index
    %c0_29 = arith.constant 0 : index
    %41 = vector.load %arg4[%c0_28, %c0_29] : memref<8x1xf32, #tpu.memory_space<vmem>>, vector<8x1xf32>
    tpu.vector_store %arg4[%c0_28, %c0_29], %40 {strides = array<i32>} : memref<8x1xf32, #tpu.memory_space<vmem>>, vector<8x1xf32>,
    return
  }
  func.func @transform_0(%arg0: i32) -> (i32, i32, i32) {
    %c0_i32 = arith.constant 0 : i32
    %c0_i32_0 = arith.constant 0 : i32
    %c0_i32_1 = arith.constant 0 : i32
    return %c0_i32, %c0_i32_0, %arg0 : i32, i32, i32
  }
  func.func @transform_1(%arg0: i32) -> (i32, i32) {
    %c0_i32 = arith.constant 0 : i32
    %c0_i32_0 = arith.constant 0 : i32
    return %c0_i32, %arg0 : i32, i32
  }
  func.func @transform_2(%arg0: i32) -> (i32, i32) {
    %c0_i32 = arith.constant 0 : i32
    %c0_i32_0 = arith.constant 0 : i32
    %c0_i32_1 = arith.constant 0 : i32
    return %c0_i32, %c0_i32_0 : i32, i32
  }
  func.func @transform_3(%arg0: i32) -> (i32, i32) {
    %c0_i32 = arith.constant 0 : i32
    %c0_i32_0 = arith.constant 0 : i32
    %c0_i32_1 = arith.constant 0 : i32
    return %c0_i32, %c0_i32_0 : i32, i32
  }
}

module attributes {stable_mosaic.version = 11 : i64} {
  func.func @kernel(%arg0: i32, %arg1: memref<8x1xf32, #tpu.memory_space<vmem>>, %arg2: memref<8x1xf32, #tpu.memory_space<vmem>>, %arg3: memref<8x128xf32, #tpu.memory_space<vmem>>, %arg4: memref<8x128xf32, #tpu.memory_space<vmem>>) attributes {dimension_semantics = [#tpu.dimension_semantics<parallel>], iteration_bounds = array<i64: 1>, scalar_prefetch = 0 : i64, scratch_operands = 0 : i64, tpu.core_type = #tpu.core_type<tc>, window_params = [{pipeline_mode = #tpu.pipeline_mode<synchronous>, transform_indices = @transform_0, window_bounds = array<i64: 8, 1>}, {pipeline_mode = #tpu.pipeline_mode<synchronous>, transform_indices = @transform_1, window_bounds = array<i64: 8, 1>}, {transform_indices = @transform_2, window_bounds = array<i64: 8, 128>}, {transform_indices = @transform_3, window_bounds = array<i64: 8, 128>}]} {
    %c0 = arith.constant 0 : index
    %c0_0 = arith.constant 0 : index
    %0 = vector.load %arg1[%c0, %c0_0] : memref<8x1xf32, #tpu.memory_space<vmem>>, vector<8x1xf32>
    %cst = arith.constant 3.125000e-02 : f32
    %1 = vector.broadcast %cst : f32 to vector<8x1xf32>
    %2 = arith.mulf %0, %1 : vector<8x1xf32>
    %c0_1 = arith.constant 0 : index
    %c0_2 = arith.constant 0 : index
    %3 = vector.load %arg2[%c0_1, %c0_2] : memref<8x1xf32, #tpu.memory_space<vmem>>, vector<8x1xf32>
    %cst_3 = arith.constant 3.125000e-02 : f32
    %4 = vector.broadcast %cst_3 : f32 to vector<8x1xf32>
    %5 = arith.mulf %3, %4 : vector<8x1xf32>
    %6 = arith.mulf %2, %2 : vector<8x1xf32>
    %7 = arith.subf %5, %6 : vector<8x1xf32>
    %cst_4 = arith.constant 0.000000e+00 : f32
    %8 = vector.broadcast %cst_4 : f32 to vector<8x1xf32>
    %9 = arith.maximumf %7, %8 : vector<8x1xf32>
    %c0_5 = arith.constant 0 : index
    %c0_6 = arith.constant 0 : index
    %10 = vector.load %arg3[%c0_5, %c0_6] : memref<8x128xf32, #tpu.memory_space<vmem>>, vector<8x128xf32>
    %11 = vector.broadcast %2 : vector<8x1xf32> to vector<8x128xf32>
    %12 = arith.subf %10, %11 : vector<8x128xf32>
    %cst_7 = arith.constant 9.99999974E-6 : f32
    %13 = vector.broadcast %cst_7 : f32 to vector<8x1xf32>
    %14 = arith.addf %9, %13 : vector<8x1xf32>
    %15 = math.rsqrt %14 : vector<8x1xf32>
    %16 = vector.broadcast %15 : vector<8x1xf32> to vector<8x128xf32>
    %17 = arith.mulf %12, %16 : vector<8x128xf32>
    %c0_8 = arith.constant 0 : index
    %c0_9 = arith.constant 0 : index
    %18 = vector.load %arg4[%c0_8, %c0_9] : memref<8x128xf32, #tpu.memory_space<vmem>>, vector<8x128xf32>
    tpu.vector_store %arg4[%c0_8, %c0_9], %17 {strides = array<i32>} : memref<8x128xf32, #tpu.memory_space<vmem>>, vector<8x128xf32>,
    return
  }
  func.func @transform_0(%arg0: i32) -> (i32, i32) {
    %c0_i32 = arith.constant 0 : i32
    %c0_i32_0 = arith.constant 0 : i32
    %c0_i32_1 = arith.constant 0 : i32
    return %c0_i32, %c0_i32_0 : i32, i32
  }
  func.func @transform_1(%arg0: i32) -> (i32, i32) {
    %c0_i32 = arith.constant 0 : i32
    %c0_i32_0 = arith.constant 0 : i32
    %c0_i32_1 = arith.constant 0 : i32
    return %c0_i32, %c0_i32_0 : i32, i32
  }
  func.func @transform_2(%arg0: i32) -> (i32, i32) {
    %c0_i32 = arith.constant 0 : i32
    %c0_i32_0 = arith.constant 0 : i32
    return %c0_i32, %arg0 : i32, i32
  }
  func.func @transform_3(%arg0: i32) -> (i32, i32) {
    %c0_i32 = arith.constant 0 : i32
    %c0_i32_0 = arith.constant 0 : i32
    return %c0_i32, %arg0 : i32, i32
  }
}

module attributes {stable_mosaic.version = 11 : i64} {
  func.func @kernel(%arg0: i32, %arg1: memref<8x16xbf16, #tpu.memory_space<vmem>>, %arg2: memref<16x128xf32, #tpu.memory_space<vmem>>, %arg3: memref<8x128xf32, #tpu.memory_space<vmem>>, %arg4: memref<8x1xf32, #tpu.memory_space<vmem>>, %arg5: memref<8x1xf32, #tpu.memory_space<vmem>>) attributes {dimension_semantics = [#tpu.dimension_semantics<arbitrary>], iteration_bounds = array<i64: 1>, scalar_prefetch = 0 : i64, scratch_operands = 0 : i64, tpu.core_type = #tpu.core_type<tc>, window_params = [{pipeline_mode = #tpu.pipeline_mode<synchronous>, transform_indices = @transform_0, window_bounds = array<i64: 8, 16>}, {transform_indices = @transform_1, window_bounds = array<i64: 16, 128>}, {transform_indices = @transform_2, window_bounds = array<i64: 8, 128>}, {pipeline_mode = #tpu.pipeline_mode<synchronous>, transform_indices = @transform_3, window_bounds = array<i64: 8, 1>}, {pipeline_mode = #tpu.pipeline_mode<synchronous>, transform_indices = @transform_4, window_bounds = array<i64: 8, 1>}]} {
    %c0 = arith.constant 0 : index
    %c0_0 = arith.constant 0 : index
    %0 = vector.load %arg2[%c0, %c0_0] : memref<16x128xf32, #tpu.memory_space<vmem>>, vector<16x128xf32>
    %cst = arith.constant 0.000000e+00 : f32
    %1 = vector.broadcast %cst : f32 to vector<16x128xf32>
    %2 = arith.maximumf %0, %1 : vector<16x128xf32>
    %c0_1 = arith.constant 0 : index
    %c0_2 = arith.constant 0 : index
    %3 = vector.load %arg1[%c0_1, %c0_2] : memref<8x16xbf16, #tpu.memory_space<vmem>>, vector<8x16xbf16>
    %4 = arith.truncf %2 : vector<16x128xf32> to vector<16x128xbf16>
    %cst_3 = arith.constant dense<0.000000e+00> : vector<8x128xf32>
    %5 = tpu.matmul %3, %4, %cst_3 {dimension_numbers = #tpu.dot_dimension_numbers<[1], [0], [0], [1], [0, 0, 1, 1], [], []>} : vector<8x16xbf16>, vector<16x128xbf16>, vector<8x128xf32> -> vector<8x128xf32>
    %c0_4 = arith.constant 0 : index
    %c0_5 = arith.constant 0 : index
    %6 = vector.load %arg3[%c0_4, %c0_5] : memref<8x128xf32, #tpu.memory_space<vmem>>, vector<8x128xf32>
    tpu.vector_store %arg3[%c0_4, %c0_5], %5 {strides = array<i32>} : memref<8x128xf32, #tpu.memory_space<vmem>>, vector<8x128xf32>,
    %c0_i32 = arith.constant 0 : i32
    %7 = arith.cmpi eq, %arg0, %c0_i32 : i32
    %8 = arith.extui %7 : i1 to i32
    %c0_i32_6 = arith.constant 0 : i32
    %9 = arith.cmpi ne, %8, %c0_i32_6 : i32
    scf.if %9 {
      %cst_17 = arith.constant 0.000000e+00 : f32
      %21 = vector.broadcast %cst_17 : f32 to vector<8x1xf32>
      %c0_18 = arith.constant 0 : index
      %c0_19 = arith.constant 0 : index
      %22 = vector.load %arg4[%c0_18, %c0_19] : memref<8x1xf32, #tpu.memory_space<vmem>>, vector<8x1xf32>
      tpu.vector_store %arg4[%c0_18, %c0_19], %21 {strides = array<i32>} : memref<8x1xf32, #tpu.memory_space<vmem>>, vector<8x1xf32>,
      %cst_20 = arith.constant 0.000000e+00 : f32
      %23 = vector.broadcast %cst_20 : f32 to vector<8x1xf32>
      %c0_21 = arith.constant 0 : index
      %c0_22 = arith.constant 0 : index
      %24 = vector.load %arg5[%c0_21, %c0_22] : memref<8x1xf32, #tpu.memory_space<vmem>>, vector<8x1xf32>
      tpu.vector_store %arg5[%c0_21, %c0_22], %23 {strides = array<i32>} : memref<8x1xf32, #tpu.memory_space<vmem>>, vector<8x1xf32>,
    } else {
    }
    %c0_7 = arith.constant 0 : index
    %c0_8 = arith.constant 0 : index
    %10 = vector.load %arg4[%c0_7, %c0_8] : memref<8x1xf32, #tpu.memory_space<vmem>>, vector<8x1xf32>
    %cst_9 = arith.constant dense<0.000000e+00> : vector<8xf32>
    %11 = vector.multi_reduction <add>, %5, %cst_9 [1] : vector<8x128xf32> to vector<8xf32>
    %12 = vector.shape_cast %11 : vector<8xf32> to vector<8x1xf32>
    %13 = arith.addf %10, %12 : vector<8x1xf32>
    %c0_10 = arith.constant 0 : index
    %c0_11 = arith.constant 0 : index
    %14 = vector.load %arg4[%c0_10, %c0_11] : memref<8x1xf32, #tpu.memory_space<vmem>>, vector<8x1xf32>
    tpu.vector_store %arg4[%c0_10, %c0_11], %13 {strides = array<i32>} : memref<8x1xf32, #tpu.memory_space<vmem>>, vector<8x1xf32>,
    %c0_12 = arith.constant 0 : index
    %c0_13 = arith.constant 0 : index
    %15 = vector.load %arg5[%c0_12, %c0_13] : memref<8x1xf32, #tpu.memory_space<vmem>>, vector<8x1xf32>
    %16 = arith.mulf %5, %5 : vector<8x128xf32>
    %cst_14 = arith.constant dense<0.000000e+00> : vector<8xf32>
    %17 = vector.multi_reduction <add>, %16, %cst_14 [1] : vector<8x128xf32> to vector<8xf32>
    %18 = vector.shape_cast %17 : vector<8xf32> to vector<8x1xf32>
    %19 = arith.addf %15, %18 : vector<8x1xf32>
    %c0_15 = arith.constant 0 : index
    %c0_16 = arith.constant 0 : index
    %20 = vector.load %arg5[%c0_15, %c0_16] : memref<8x1xf32, #tpu.memory_space<vmem>>, vector<8x1xf32>
    tpu.vector_store %arg5[%c0_15, %c0_16], %19 {strides = array<i32>} : memref<8x1xf32, #tpu.memory_space<vmem>>, vector<8x1xf32>,
    return
  }
  func.func @transform_0(%arg0: i32) -> (i32, i32) {
    %c0_i32 = arith.constant 0 : i32
    %c0_i32_0 = arith.constant 0 : i32
    %c0_i32_1 = arith.constant 0 : i32
    return %c0_i32, %c0_i32_0 : i32, i32
  }
  func.func @transform_1(%arg0: i32) -> (i32, i32) {
    %c0_i32 = arith.constant 0 : i32
    %c0_i32_0 = arith.constant 0 : i32
    return %c0_i32, %arg0 : i32, i32
  }
  func.func @transform_2(%arg0: i32) -> (i32, i32) {
    %c0_i32 = arith.constant 0 : i32
    %c0_i32_0 = arith.constant 0 : i32
    return %c0_i32, %arg0 : i32, i32
  }
  func.func @transform_3(%arg0: i32) -> (i32, i32) {
    %c0_i32 = arith.constant 0 : i32
    %c0_i32_0 = arith.constant 0 : i32
    %c0_i32_1 = arith.constant 0 : i32
    return %c0_i32, %c0_i32_0 : i32, i32
  }
  func.func @transform_4(%arg0: i32) -> (i32, i32) {
    %c0_i32 = arith.constant 0 : i32
    %c0_i32_0 = arith.constant 0 : i32
    %c0_i32_1 = arith.constant 0 : i32
    return %c0_i32, %c0_i32_0 : i32, i32
  }
}

module attributes {stable_mosaic.version = 11 : i64} {
  func.func @kernel(%arg0: i32, %arg1: memref<9x8x128xbf16, #tpu.memory_space<vmem>>, %arg2: memref<9x8x1xf32, #tpu.memory_space<vmem>>, %arg3: memref<8x8xbf16, #tpu.memory_space<vmem>>, %arg4: memref<8x128xf32, #tpu.memory_space<vmem>>, %arg5: memref<8x1xf32, #tpu.memory_space<vmem>>, %arg6: memref<8x1xf32, #tpu.memory_space<vmem>>) attributes {dimension_semantics = [#tpu.dimension_semantics<arbitrary>], iteration_bounds = array<i64: 1>, scalar_prefetch = 0 : i64, scratch_operands = 0 : i64, tpu.core_type = #tpu.core_type<tc>, window_params = [{transform_indices = @transform_0, window_bounds = array<i64: 9, 8, 128>}, {pipeline_mode = #tpu.pipeline_mode<synchronous>, transform_indices = @transform_1, window_bounds = array<i64: 9, 8, 1>}, {pipeline_mode = #tpu.pipeline_mode<synchronous>, transform_indices = @transform_2, window_bounds = array<i64: 8, 8>}, {transform_indices = @transform_3, window_bounds = array<i64: 8, 128>}, {pipeline_mode = #tpu.pipeline_mode<synchronous>, transform_indices = @transform_4, window_bounds = array<i64: 8, 1>}, {pipeline_mode = #tpu.pipeline_mode<synchronous>, transform_indices = @transform_5, window_bounds = array<i64: 8, 1>}]} {
    %c0 = arith.constant 0 : index
    %c0_0 = arith.constant 0 : index
    %c0_1 = arith.constant 0 : index
    %0 = vector.load %arg1[%c0, %c0_0, %c0_1] : memref<9x8x128xbf16, #tpu.memory_space<vmem>>, vector<1x8x128xbf16>
    %1 = vector.shape_cast %0 : vector<1x8x128xbf16> to vector<8x128xbf16>
    %2 = arith.extf %1 : vector<8x128xbf16> to vector<8x128xf32>
    %cst = arith.constant 0.000000e+00 : f32
    %3 = vector.broadcast %cst : f32 to vector<8x128xf32>
    %4 = arith.maximumf %2, %3 : vector<8x128xf32>
    %c0_2 = arith.constant 0 : index
    %c0_3 = arith.constant 0 : index
    %c0_4 = arith.constant 0 : index
    %5 = vector.load %arg2[%c0_2, %c0_3, %c0_4] : memref<9x8x1xf32, #tpu.memory_space<vmem>>, vector<1x8x1xf32>
    %6 = vector.shape_cast %5 : vector<1x8x1xf32> to vector<8x1xf32>
    %7 = vector.broadcast %6 : vector<8x1xf32> to vector<8x128xf32>
    %8 = arith.mulf %4, %7 : vector<8x128xf32>
    %c1 = arith.constant 1 : index
    %c0_5 = arith.constant 0 : index
    %c0_6 = arith.constant 0 : index
    %9 = vector.load %arg1[%c1, %c0_5, %c0_6] : memref<9x8x128xbf16, #tpu.memory_space<vmem>>, vector<1x8x128xbf16>
    %10 = vector.shape_cast %9 : vector<1x8x128xbf16> to vector<8x128xbf16>
    %11 = arith.extf %10 : vector<8x128xbf16> to vector<8x128xf32>
    %cst_7 = arith.constant 0.000000e+00 : f32
    %12 = vector.broadcast %cst_7 : f32 to vector<8x128xf32>
    %13 = arith.maximumf %11, %12 : vector<8x128xf32>
    %c1_8 = arith.constant 1 : index
    %c0_9 = arith.constant 0 : index
    %c0_10 = arith.constant 0 : index
    %14 = vector.load %arg2[%c1_8, %c0_9, %c0_10] : memref<9x8x1xf32, #tpu.memory_space<vmem>>, vector<1x8x1xf32>
    %15 = vector.shape_cast %14 : vector<1x8x1xf32> to vector<8x1xf32>
    %16 = vector.broadcast %15 : vector<8x1xf32> to vector<8x128xf32>
    %17 = arith.mulf %13, %16 : vector<8x128xf32>
    %18 = arith.addf %8, %17 : vector<8x128xf32>
    %c2 = arith.constant 2 : index
    %c0_11 = arith.constant 0 : index
    %c0_12 = arith.constant 0 : index
    %19 = vector.load %arg1[%c2, %c0_11, %c0_12] : memref<9x8x128xbf16, #tpu.memory_space<vmem>>, vector<1x8x128xbf16>
    %20 = vector.shape_cast %19 : vector<1x8x128xbf16> to vector<8x128xbf16>
    %21 = arith.extf %20 : vector<8x128xbf16> to vector<8x128xf32>
    %cst_13 = arith.constant 0.000000e+00 : f32
    %22 = vector.broadcast %cst_13 : f32 to vector<8x128xf32>
    %23 = arith.maximumf %21, %22 : vector<8x128xf32>
    %c2_14 = arith.constant 2 : index
    %c0_15 = arith.constant 0 : index
    %c0_16 = arith.constant 0 : index
    %24 = vector.load %arg2[%c2_14, %c0_15, %c0_16] : memref<9x8x1xf32, #tpu.memory_space<vmem>>, vector<1x8x1xf32>
    %25 = vector.shape_cast %24 : vector<1x8x1xf32> to vector<8x1xf32>
    %26 = vector.broadcast %25 : vector<8x1xf32> to vector<8x128xf32>
    %27 = arith.mulf %23, %26 : vector<8x128xf32>
    %28 = arith.addf %18, %27 : vector<8x128xf32>
    %c3 = arith.constant 3 : index
    %c0_17 = arith.constant 0 : index
    %c0_18 = arith.constant 0 : index
    %29 = vector.load %arg1[%c3, %c0_17, %c0_18] : memref<9x8x128xbf16, #tpu.memory_space<vmem>>, vector<1x8x128xbf16>
    %30 = vector.shape_cast %29 : vector<1x8x128xbf16> to vector<8x128xbf16>
    %31 = arith.extf %30 : vector<8x128xbf16> to vector<8x128xf32>
    %cst_19 = arith.constant 0.000000e+00 : f32
    %32 = vector.broadcast %cst_19 : f32 to vector<8x128xf32>
    %33 = arith.maximumf %31, %32 : vector<8x128xf32>
    %c3_20 = arith.constant 3 : index
    %c0_21 = arith.constant 0 : index
    %c0_22 = arith.constant 0 : index
    %34 = vector.load %arg2[%c3_20, %c0_21, %c0_22] : memref<9x8x1xf32, #tpu.memory_space<vmem>>, vector<1x8x1xf32>
    %35 = vector.shape_cast %34 : vector<1x8x1xf32> to vector<8x1xf32>
    %36 = vector.broadcast %35 : vector<8x1xf32> to vector<8x128xf32>
    %37 = arith.mulf %33, %36 : vector<8x128xf32>
    %38 = arith.addf %28, %37 : vector<8x128xf32>
    %c4 = arith.constant 4 : index
    %c0_23 = arith.constant 0 : index
    %c0_24 = arith.constant 0 : index
    %39 = vector.load %arg1[%c4, %c0_23, %c0_24] : memref<9x8x128xbf16, #tpu.memory_space<vmem>>, vector<1x8x128xbf16>
    %40 = vector.shape_cast %39 : vector<1x8x128xbf16> to vector<8x128xbf16>
    %41 = arith.extf %40 : vector<8x128xbf16> to vector<8x128xf32>
    %cst_25 = arith.constant 0.000000e+00 : f32
    %42 = vector.broadcast %cst_25 : f32 to vector<8x128xf32>
    %43 = arith.maximumf %41, %42 : vector<8x128xf32>
    %c4_26 = arith.constant 4 : index
    %c0_27 = arith.constant 0 : index
    %c0_28 = arith.constant 0 : index
    %44 = vector.load %arg2[%c4_26, %c0_27, %c0_28] : memref<9x8x1xf32, #tpu.memory_space<vmem>>, vector<1x8x1xf32>
    %45 = vector.shape_cast %44 : vector<1x8x1xf32> to vector<8x1xf32>
    %46 = vector.broadcast %45 : vector<8x1xf32> to vector<8x128xf32>
    %47 = arith.mulf %43, %46 : vector<8x128xf32>
    %48 = arith.addf %38, %47 : vector<8x128xf32>
    %c5 = arith.constant 5 : index
    %c0_29 = arith.constant 0 : index
    %c0_30 = arith.constant 0 : index
    %49 = vector.load %arg1[%c5, %c0_29, %c0_30] : memref<9x8x128xbf16, #tpu.memory_space<vmem>>, vector<1x8x128xbf16>
    %50 = vector.shape_cast %49 : vector<1x8x128xbf16> to vector<8x128xbf16>
    %51 = arith.extf %50 : vector<8x128xbf16> to vector<8x128xf32>
    %cst_31 = arith.constant 0.000000e+00 : f32
    %52 = vector.broadcast %cst_31 : f32 to vector<8x128xf32>
    %53 = arith.maximumf %51, %52 : vector<8x128xf32>
    %c5_32 = arith.constant 5 : index
    %c0_33 = arith.constant 0 : index
    %c0_34 = arith.constant 0 : index
    %54 = vector.load %arg2[%c5_32, %c0_33, %c0_34] : memref<9x8x1xf32, #tpu.memory_space<vmem>>, vector<1x8x1xf32>
    %55 = vector.shape_cast %54 : vector<1x8x1xf32> to vector<8x1xf32>
    %56 = vector.broadcast %55 : vector<8x1xf32> to vector<8x128xf32>
    %57 = arith.mulf %53, %56 : vector<8x128xf32>
    %58 = arith.addf %48, %57 : vector<8x128xf32>
    %c6 = arith.constant 6 : index
    %c0_35 = arith.constant 0 : index
    %c0_36 = arith.constant 0 : index
    %59 = vector.load %arg1[%c6, %c0_35, %c0_36] : memref<9x8x128xbf16, #tpu.memory_space<vmem>>, vector<1x8x128xbf16>
    %60 = vector.shape_cast %59 : vector<1x8x128xbf16> to vector<8x128xbf16>
    %61 = arith.extf %60 : vector<8x128xbf16> to vector<8x128xf32>
    %cst_37 = arith.constant 0.000000e+00 : f32
    %62 = vector.broadcast %cst_37 : f32 to vector<8x128xf32>
    %63 = arith.maximumf %61, %62 : vector<8x128xf32>
    %c6_38 = arith.constant 6 : index
    %c0_39 = arith.constant 0 : index
    %c0_40 = arith.constant 0 : index
    %64 = vector.load %arg2[%c6_38, %c0_39, %c0_40] : memref<9x8x1xf32, #tpu.memory_space<vmem>>, vector<1x8x1xf32>
    %65 = vector.shape_cast %64 : vector<1x8x1xf32> to vector<8x1xf32>
    %66 = vector.broadcast %65 : vector<8x1xf32> to vector<8x128xf32>
    %67 = arith.mulf %63, %66 : vector<8x128xf32>
    %68 = arith.addf %58, %67 : vector<8x128xf32>
    %c7 = arith.constant 7 : index
    %c0_41 = arith.constant 0 : index
    %c0_42 = arith.constant 0 : index
    %69 = vector.load %arg1[%c7, %c0_41, %c0_42] : memref<9x8x128xbf16, #tpu.memory_space<vmem>>, vector<1x8x128xbf16>
    %70 = vector.shape_cast %69 : vector<1x8x128xbf16> to vector<8x128xbf16>
    %71 = arith.extf %70 : vector<8x128xbf16> to vector<8x128xf32>
    %cst_43 = arith.constant 0.000000e+00 : f32
    %72 = vector.broadcast %cst_43 : f32 to vector<8x128xf32>
    %73 = arith.maximumf %71, %72 : vector<8x128xf32>
    %c7_44 = arith.constant 7 : index
    %c0_45 = arith.constant 0 : index
    %c0_46 = arith.constant 0 : index
    %74 = vector.load %arg2[%c7_44, %c0_45, %c0_46] : memref<9x8x1xf32, #tpu.memory_space<vmem>>, vector<1x8x1xf32>
    %75 = vector.shape_cast %74 : vector<1x8x1xf32> to vector<8x1xf32>
    %76 = vector.broadcast %75 : vector<8x1xf32> to vector<8x128xf32>
    %77 = arith.mulf %73, %76 : vector<8x128xf32>
    %78 = arith.addf %68, %77 : vector<8x128xf32>
    %c8 = arith.constant 8 : index
    %c0_47 = arith.constant 0 : index
    %c0_48 = arith.constant 0 : index
    %79 = vector.load %arg1[%c8, %c0_47, %c0_48] : memref<9x8x128xbf16, #tpu.memory_space<vmem>>, vector<1x8x128xbf16>
    %80 = vector.shape_cast %79 : vector<1x8x128xbf16> to vector<8x128xbf16>
    %81 = arith.extf %80 : vector<8x128xbf16> to vector<8x128xf32>
    %cst_49 = arith.constant 0.000000e+00 : f32
    %82 = vector.broadcast %cst_49 : f32 to vector<8x128xf32>
    %83 = arith.maximumf %81, %82 : vector<8x128xf32>
    %c8_50 = arith.constant 8 : index
    %c0_51 = arith.constant 0 : index
    %c0_52 = arith.constant 0 : index
    %84 = vector.load %arg2[%c8_50, %c0_51, %c0_52] : memref<9x8x1xf32, #tpu.memory_space<vmem>>, vector<1x8x1xf32>
    %85 = vector.shape_cast %84 : vector<1x8x1xf32> to vector<8x1xf32>
    %86 = vector.broadcast %85 : vector<8x1xf32> to vector<8x128xf32>
    %87 = arith.mulf %83, %86 : vector<8x128xf32>
    %88 = arith.addf %78, %87 : vector<8x128xf32>
    %c0_53 = arith.constant 0 : index
    %c0_54 = arith.constant 0 : index
    %89 = vector.load %arg3[%c0_53, %c0_54] : memref<8x8xbf16, #tpu.memory_space<vmem>>, vector<8x8xbf16>
    %90 = arith.truncf %88 : vector<8x128xf32> to vector<8x128xbf16>
    %cst_55 = arith.constant dense<0.000000e+00> : vector<8x128xf32>
    %91 = tpu.matmul %89, %90, %cst_55 {dimension_numbers = #tpu.dot_dimension_numbers<[1], [0], [0], [1], [0, 0, 1, 1], [], []>} : vector<8x8xbf16>, vector<8x128xbf16>, vector<8x128xf32> -> vector<8x128xf32>
    %c0_56 = arith.constant 0 : index
    %c0_57 = arith.constant 0 : index
    %92 = vector.load %arg4[%c0_56, %c0_57] : memref<8x128xf32, #tpu.memory_space<vmem>>, vector<8x128xf32>
    tpu.vector_store %arg4[%c0_56, %c0_57], %91 {strides = array<i32>} : memref<8x128xf32, #tpu.memory_space<vmem>>, vector<8x128xf32>,
    %c0_i32 = arith.constant 0 : i32
    %93 = arith.cmpi eq, %arg0, %c0_i32 : i32
    %94 = arith.extui %93 : i1 to i32
    %c0_i32_58 = arith.constant 0 : i32
    %95 = arith.cmpi ne, %94, %c0_i32_58 : i32
    scf.if %95 {
      %cst_69 = arith.constant 0.000000e+00 : f32
      %107 = vector.broadcast %cst_69 : f32 to vector<8x1xf32>
      %c0_70 = arith.constant 0 : index
      %c0_71 = arith.constant 0 : index
      %108 = vector.load %arg5[%c0_70, %c0_71] : memref<8x1xf32, #tpu.memory_space<vmem>>, vector<8x1xf32>
      tpu.vector_store %arg5[%c0_70, %c0_71], %107 {strides = array<i32>} : memref<8x1xf32, #tpu.memory_space<vmem>>, vector<8x1xf32>,
      %cst_72 = arith.constant 0.000000e+00 : f32
      %109 = vector.broadcast %cst_72 : f32 to vector<8x1xf32>
      %c0_73 = arith.constant 0 : index
      %c0_74 = arith.constant 0 : index
      %110 = vector.load %arg6[%c0_73, %c0_74] : memref<8x1xf32, #tpu.memory_space<vmem>>, vector<8x1xf32>
      tpu.vector_store %arg6[%c0_73, %c0_74], %109 {strides = array<i32>} : memref<8x1xf32, #tpu.memory_space<vmem>>, vector<8x1xf32>,
    } else {
    }
    %c0_59 = arith.constant 0 : index
    %c0_60 = arith.constant 0 : index
    %96 = vector.load %arg5[%c0_59, %c0_60] : memref<8x1xf32, #tpu.memory_space<vmem>>, vector<8x1xf32>
    %cst_61 = arith.constant dense<0.000000e+00> : vector<8xf32>
    %97 = vector.multi_reduction <add>, %91, %cst_61 [1] : vector<8x128xf32> to vector<8xf32>
    %98 = vector.shape_cast %97 : vector<8xf32> to vector<8x1xf32>
    %99 = arith.addf %96, %98 : vector<8x1xf32>
    %c0_62 = arith.constant 0 : index
    %c0_63 = arith.constant 0 : index
    %100 = vector.load %arg5[%c0_62, %c0_63] : memref<8x1xf32, #tpu.memory_space<vmem>>, vector<8x1xf32>
    tpu.vector_store %arg5[%c0_62, %c0_63], %99 {strides = array<i32>} : memref<8x1xf32, #tpu.memory_space<vmem>>, vector<8x1xf32>,
    %c0_64 = arith.constant 0 : index
    %c0_65 = arith.constant 0 : index
    %101 = vector.load %arg6[%c0_64, %c0_65] : memref<8x1xf32, #tpu.memory_space<vmem>>, vector<8x1xf32>
    %102 = arith.mulf %91, %91 : vector<8x128xf32>
    %cst_66 = arith.constant dense<0.000000e+00> : vector<8xf32>
    %103 = vector.multi_reduction <add>, %102, %cst_66 [1] : vector<8x128xf32> to vector<8xf32>
    %104 = vector.shape_cast %103 : vector<8xf32> to vector<8x1xf32>
    %105 = arith.addf %101, %104 : vector<8x1xf32>
    %c0_67 = arith.constant 0 : index
    %c0_68 = arith.constant 0 : index
    %106 = vector.load %arg6[%c0_67, %c0_68] : memref<8x1xf32, #tpu.memory_space<vmem>>, vector<8x1xf32>
    tpu.vector_store %arg6[%c0_67, %c0_68], %105 {strides = array<i32>} : memref<8x1xf32, #tpu.memory_space<vmem>>, vector<8x1xf32>,
    return
  }
  func.func @transform_0(%arg0: i32) -> (i32, i32, i32) {
    %c0_i32 = arith.constant 0 : i32
    %c0_i32_0 = arith.constant 0 : i32
    %c0_i32_1 = arith.constant 0 : i32
    return %c0_i32, %c0_i32_0, %arg0 : i32, i32, i32
  }
  func.func @transform_1(%arg0: i32) -> (i32, i32, i32) {
    %c0_i32 = arith.constant 0 : i32
    %c0_i32_0 = arith.constant 0 : i32
    %c0_i32_1 = arith.constant 0 : i32
    %c0_i32_2 = arith.constant 0 : i32
    return %c0_i32, %c0_i32_0, %c0_i32_1 : i32, i32, i32
  }
  func.func @transform_2(%arg0: i32) -> (i32, i32) {
    %c0_i32 = arith.constant 0 : i32
    %c0_i32_0 = arith.constant 0 : i32
    %c0_i32_1 = arith.constant 0 : i32
    return %c0_i32, %c0_i32_0 : i32, i32
  }
  func.func @transform_3(%arg0: i32) -> (i32, i32) {
    %c0_i32 = arith.constant 0 : i32
    %c0_i32_0 = arith.constant 0 : i32
    return %c0_i32, %arg0 : i32, i32
  }
  func.func @transform_4(%arg0: i32) -> (i32, i32) {
    %c0_i32 = arith.constant 0 : i32
    %c0_i32_0 = arith.constant 0 : i32
    %c0_i32_1 = arith.constant 0 : i32
    return %c0_i32, %c0_i32_0 : i32, i32
  }
  func.func @transform_5(%arg0: i32) -> (i32, i32) {
    %c0_i32 = arith.constant 0 : i32
    %c0_i32_0 = arith.constant 0 : i32
    %c0_i32_1 = arith.constant 0 : i32
    return %c0_i32, %c0_i32_0 : i32, i32
  }
}

module attributes {stable_mosaic.version = 11 : i64} {
  func.func @kernel(%arg0: i32, %arg1: memref<9x8x128xbf16, #tpu.memory_space<vmem>>, %arg2: memref<1x128xf32, #tpu.memory_space<vmem>>, %arg3: memref<8x128xf32, #tpu.memory_space<vmem>>, %arg4: memref<8x1xf32, #tpu.memory_space<vmem>>, %arg5: memref<8x1xf32, #tpu.memory_space<vmem>>) attributes {dimension_semantics = [#tpu.dimension_semantics<arbitrary>], iteration_bounds = array<i64: 1>, scalar_prefetch = 0 : i64, scratch_operands = 0 : i64, tpu.core_type = #tpu.core_type<tc>, window_params = [{transform_indices = @transform_0, window_bounds = array<i64: 9, 8, 128>}, {transform_indices = @transform_1, window_bounds = array<i64: 1, 128>}, {transform_indices = @transform_2, window_bounds = array<i64: 8, 128>}, {pipeline_mode = #tpu.pipeline_mode<synchronous>, transform_indices = @transform_3, window_bounds = array<i64: 8, 1>}, {pipeline_mode = #tpu.pipeline_mode<synchronous>, transform_indices = @transform_4, window_bounds = array<i64: 8, 1>}]} {
    %c0 = arith.constant 0 : index
    %c0_0 = arith.constant 0 : index
    %c0_1 = arith.constant 0 : index
    %0 = vector.load %arg1[%c0, %c0_0, %c0_1] : memref<9x8x128xbf16, #tpu.memory_space<vmem>>, vector<1x8x128xbf16>
    %1 = vector.shape_cast %0 : vector<1x8x128xbf16> to vector<8x128xbf16>
    %2 = arith.extf %1 : vector<8x128xbf16> to vector<8x128xf32>
    %c1 = arith.constant 1 : index
    %c0_2 = arith.constant 0 : index
    %c0_3 = arith.constant 0 : index
    %3 = vector.load %arg1[%c1, %c0_2, %c0_3] : memref<9x8x128xbf16, #tpu.memory_space<vmem>>, vector<1x8x128xbf16>
    %4 = vector.shape_cast %3 : vector<1x8x128xbf16> to vector<8x128xbf16>
    %5 = arith.extf %4 : vector<8x128xbf16> to vector<8x128xf32>
    %6 = arith.addf %2, %5 : vector<8x128xf32>
    %c2 = arith.constant 2 : index
    %c0_4 = arith.constant 0 : index
    %c0_5 = arith.constant 0 : index
    %7 = vector.load %arg1[%c2, %c0_4, %c0_5] : memref<9x8x128xbf16, #tpu.memory_space<vmem>>, vector<1x8x128xbf16>
    %8 = vector.shape_cast %7 : vector<1x8x128xbf16> to vector<8x128xbf16>
    %9 = arith.extf %8 : vector<8x128xbf16> to vector<8x128xf32>
    %10 = arith.addf %6, %9 : vector<8x128xf32>
    %c3 = arith.constant 3 : index
    %c0_6 = arith.constant 0 : index
    %c0_7 = arith.constant 0 : index
    %11 = vector.load %arg1[%c3, %c0_6, %c0_7] : memref<9x8x128xbf16, #tpu.memory_space<vmem>>, vector<1x8x128xbf16>
    %12 = vector.shape_cast %11 : vector<1x8x128xbf16> to vector<8x128xbf16>
    %13 = arith.extf %12 : vector<8x128xbf16> to vector<8x128xf32>
    %14 = arith.addf %10, %13 : vector<8x128xf32>
    %c4 = arith.constant 4 : index
    %c0_8 = arith.constant 0 : index
    %c0_9 = arith.constant 0 : index
    %15 = vector.load %arg1[%c4, %c0_8, %c0_9] : memref<9x8x128xbf16, #tpu.memory_space<vmem>>, vector<1x8x128xbf16>
    %16 = vector.shape_cast %15 : vector<1x8x128xbf16> to vector<8x128xbf16>
    %17 = arith.extf %16 : vector<8x128xbf16> to vector<8x128xf32>
    %18 = arith.addf %14, %17 : vector<8x128xf32>
    %c5 = arith.constant 5 : index
    %c0_10 = arith.constant 0 : index
    %c0_11 = arith.constant 0 : index
    %19 = vector.load %arg1[%c5, %c0_10, %c0_11] : memref<9x8x128xbf16, #tpu.memory_space<vmem>>, vector<1x8x128xbf16>
    %20 = vector.shape_cast %19 : vector<1x8x128xbf16> to vector<8x128xbf16>
    %21 = arith.extf %20 : vector<8x128xbf16> to vector<8x128xf32>
    %22 = arith.addf %18, %21 : vector<8x128xf32>
    %c6 = arith.constant 6 : index
    %c0_12 = arith.constant 0 : index
    %c0_13 = arith.constant 0 : index
    %23 = vector.load %arg1[%c6, %c0_12, %c0_13] : memref<9x8x128xbf16, #tpu.memory_space<vmem>>, vector<1x8x128xbf16>
    %24 = vector.shape_cast %23 : vector<1x8x128xbf16> to vector<8x128xbf16>
    %25 = arith.extf %24 : vector<8x128xbf16> to vector<8x128xf32>
    %26 = arith.addf %22, %25 : vector<8x128xf32>
    %c7 = arith.constant 7 : index
    %c0_14 = arith.constant 0 : index
    %c0_15 = arith.constant 0 : index
    %27 = vector.load %arg1[%c7, %c0_14, %c0_15] : memref<9x8x128xbf16, #tpu.memory_space<vmem>>, vector<1x8x128xbf16>
    %28 = vector.shape_cast %27 : vector<1x8x128xbf16> to vector<8x128xbf16>
    %29 = arith.extf %28 : vector<8x128xbf16> to vector<8x128xf32>
    %30 = arith.addf %26, %29 : vector<8x128xf32>
    %c8 = arith.constant 8 : index
    %c0_16 = arith.constant 0 : index
    %c0_17 = arith.constant 0 : index
    %31 = vector.load %arg1[%c8, %c0_16, %c0_17] : memref<9x8x128xbf16, #tpu.memory_space<vmem>>, vector<1x8x128xbf16>
    %32 = vector.shape_cast %31 : vector<1x8x128xbf16> to vector<8x128xbf16>
    %33 = arith.extf %32 : vector<8x128xbf16> to vector<8x128xf32>
    %34 = arith.addf %30, %33 : vector<8x128xf32>
    %c0_18 = arith.constant 0 : index
    %c0_19 = arith.constant 0 : index
    %35 = vector.load %arg2[%c0_18, %c0_19] : memref<1x128xf32, #tpu.memory_space<vmem>>, vector<1x128xf32>
    %36 = vector.broadcast %35 : vector<1x128xf32> to vector<8x128xf32>
    %37 = arith.mulf %34, %36 : vector<8x128xf32>
    %c0_20 = arith.constant 0 : index
    %c0_21 = arith.constant 0 : index
    %38 = vector.load %arg3[%c0_20, %c0_21] : memref<8x128xf32, #tpu.memory_space<vmem>>, vector<8x128xf32>
    tpu.vector_store %arg3[%c0_20, %c0_21], %37 {strides = array<i32>} : memref<8x128xf32, #tpu.memory_space<vmem>>, vector<8x128xf32>,
    %c0_i32 = arith.constant 0 : i32
    %39 = arith.cmpi eq, %arg0, %c0_i32 : i32
    %40 = arith.extui %39 : i1 to i32
    %c0_i32_22 = arith.constant 0 : i32
    %41 = arith.cmpi ne, %40, %c0_i32_22 : i32
    scf.if %41 {
      %cst_32 = arith.constant 0.000000e+00 : f32
      %53 = vector.broadcast %cst_32 : f32 to vector<8x1xf32>
      %c0_33 = arith.constant 0 : index
      %c0_34 = arith.constant 0 : index
      %54 = vector.load %arg4[%c0_33, %c0_34] : memref<8x1xf32, #tpu.memory_space<vmem>>, vector<8x1xf32>
      tpu.vector_store %arg4[%c0_33, %c0_34], %53 {strides = array<i32>} : memref<8x1xf32, #tpu.memory_space<vmem>>, vector<8x1xf32>,
      %cst_35 = arith.constant 0.000000e+00 : f32
      %55 = vector.broadcast %cst_35 : f32 to vector<8x1xf32>
      %c0_36 = arith.constant 0 : index
      %c0_37 = arith.constant 0 : index
      %56 = vector.load %arg5[%c0_36, %c0_37] : memref<8x1xf32, #tpu.memory_space<vmem>>, vector<8x1xf32>
      tpu.vector_store %arg5[%c0_36, %c0_37], %55 {strides = array<i32>} : memref<8x1xf32, #tpu.memory_space<vmem>>, vector<8x1xf32>,
    } else {
    }
    %c0_23 = arith.constant 0 : index
    %c0_24 = arith.constant 0 : index
    %42 = vector.load %arg4[%c0_23, %c0_24] : memref<8x1xf32, #tpu.memory_space<vmem>>, vector<8x1xf32>
    %cst = arith.constant dense<0.000000e+00> : vector<8xf32>
    %43 = vector.multi_reduction <add>, %37, %cst [1] : vector<8x128xf32> to vector<8xf32>
    %44 = vector.shape_cast %43 : vector<8xf32> to vector<8x1xf32>
    %45 = arith.addf %42, %44 : vector<8x1xf32>
    %c0_25 = arith.constant 0 : index
    %c0_26 = arith.constant 0 : index
    %46 = vector.load %arg4[%c0_25, %c0_26] : memref<8x1xf32, #tpu.memory_space<vmem>>, vector<8x1xf32>
    tpu.vector_store %arg4[%c0_25, %c0_26], %45 {strides = array<i32>} : memref<8x1xf32, #tpu.memory_space<vmem>>, vector<8x1xf32>,
    %c0_27 = arith.constant 0 : index
    %c0_28 = arith.constant 0 : index
    %47 = vector.load %arg5[%c0_27, %c0_28] : memref<8x1xf32, #tpu.memory_space<vmem>>, vector<8x1xf32>
    %48 = arith.mulf %37, %37 : vector<8x128xf32>
    %cst_29 = arith.constant dense<0.000000e+00> : vector<8xf32>
    %49 = vector.multi_reduction <add>, %48, %cst_29 [1] : vector<8x128xf32> to vector<8xf32>
    %50 = vector.shape_cast %49 : vector<8xf32> to vector<8x1xf32>
    %51 = arith.addf %47, %50 : vector<8x1xf32>
    %c0_30 = arith.constant 0 : index
    %c0_31 = arith.constant 0 : index
    %52 = vector.load %arg5[%c0_30, %c0_31] : memref<8x1xf32, #tpu.memory_space<vmem>>, vector<8x1xf32>
    tpu.vector_store %arg5[%c0_30, %c0_31], %51 {strides = array<i32>} : memref<8x1xf32, #tpu.memory_space<vmem>>, vector<8x1xf32>,
    return
  }
  func.func @transform_0(%arg0: i32) -> (i32, i32, i32) {
    %c0_i32 = arith.constant 0 : i32
    %c0_i32_0 = arith.constant 0 : i32
    %c0_i32_1 = arith.constant 0 : i32
    return %c0_i32, %c0_i32_0, %arg0 : i32, i32, i32
  }
  func.func @transform_1(%arg0: i32) -> (i32, i32) {
    %c0_i32 = arith.constant 0 : i32
    %c0_i32_0 = arith.constant 0 : i32
    return %c0_i32, %arg0 : i32, i32
  }
  func.func @transform_2(%arg0: i32) -> (i32, i32) {
    %c0_i32 = arith.constant 0 : i32
    %c0_i32_0 = arith.constant 0 : i32
    return %c0_i32, %arg0 : i32, i32
  }
  func.func @transform_3(%arg0: i32) -> (i32, i32) {
    %c0_i32 = arith.constant 0 : i32
    %c0_i32_0 = arith.constant 0 : i32
    %c0_i32_1 = arith.constant 0 : i32
    return %c0_i32, %c0_i32_0 : i32, i32
  }
  func.func @transform_4(%arg0: i32) -> (i32, i32) {
    %c0_i32 = arith.constant 0 : i32
    %c0_i32_0 = arith.constant 0 : i32
    %c0_i32_1 = arith.constant 0 : i32
    return %c0_i32, %c0_i32_0 : i32, i32
  }
}

module attributes {stable_mosaic.version = 11 : i64} {
  func.func @kernel(%arg0: i32, %arg1: memref<25x8x128xbf16, #tpu.memory_space<vmem>>, %arg2: memref<25x8x1xf32, #tpu.memory_space<vmem>>, %arg3: memref<8x8xbf16, #tpu.memory_space<vmem>>, %arg4: memref<8x128xf32, #tpu.memory_space<vmem>>, %arg5: memref<8x1xf32, #tpu.memory_space<vmem>>, %arg6: memref<8x1xf32, #tpu.memory_space<vmem>>) attributes {dimension_semantics = [#tpu.dimension_semantics<arbitrary>], iteration_bounds = array<i64: 1>, scalar_prefetch = 0 : i64, scratch_operands = 0 : i64, tpu.core_type = #tpu.core_type<tc>, window_params = [{transform_indices = @transform_0, window_bounds = array<i64: 25, 8, 128>}, {pipeline_mode = #tpu.pipeline_mode<synchronous>, transform_indices = @transform_1, window_bounds = array<i64: 25, 8, 1>}, {pipeline_mode = #tpu.pipeline_mode<synchronous>, transform_indices = @transform_2, window_bounds = array<i64: 8, 8>}, {transform_indices = @transform_3, window_bounds = array<i64: 8, 128>}, {pipeline_mode = #tpu.pipeline_mode<synchronous>, transform_indices = @transform_4, window_bounds = array<i64: 8, 1>}, {pipeline_mode = #tpu.pipeline_mode<synchronous>, transform_indices = @transform_5, window_bounds = array<i64: 8, 1>}]} {
    %c0 = arith.constant 0 : index
    %c0_0 = arith.constant 0 : index
    %c0_1 = arith.constant 0 : index
    %0 = vector.load %arg1[%c0, %c0_0, %c0_1] : memref<25x8x128xbf16, #tpu.memory_space<vmem>>, vector<1x8x128xbf16>
    %1 = vector.shape_cast %0 : vector<1x8x128xbf16> to vector<8x128xbf16>
    %2 = arith.extf %1 : vector<8x128xbf16> to vector<8x128xf32>
    %cst = arith.constant 0.000000e+00 : f32
    %3 = vector.broadcast %cst : f32 to vector<8x128xf32>
    %4 = arith.maximumf %2, %3 : vector<8x128xf32>
    %c0_2 = arith.constant 0 : index
    %c0_3 = arith.constant 0 : index
    %c0_4 = arith.constant 0 : index
    %5 = vector.load %arg2[%c0_2, %c0_3, %c0_4] : memref<25x8x1xf32, #tpu.memory_space<vmem>>, vector<1x8x1xf32>
    %6 = vector.shape_cast %5 : vector<1x8x1xf32> to vector<8x1xf32>
    %7 = vector.broadcast %6 : vector<8x1xf32> to vector<8x128xf32>
    %8 = arith.mulf %4, %7 : vector<8x128xf32>
    %c1 = arith.constant 1 : index
    %c0_5 = arith.constant 0 : index
    %c0_6 = arith.constant 0 : index
    %9 = vector.load %arg1[%c1, %c0_5, %c0_6] : memref<25x8x128xbf16, #tpu.memory_space<vmem>>, vector<1x8x128xbf16>
    %10 = vector.shape_cast %9 : vector<1x8x128xbf16> to vector<8x128xbf16>
    %11 = arith.extf %10 : vector<8x128xbf16> to vector<8x128xf32>
    %cst_7 = arith.constant 0.000000e+00 : f32
    %12 = vector.broadcast %cst_7 : f32 to vector<8x128xf32>
    %13 = arith.maximumf %11, %12 : vector<8x128xf32>
    %c1_8 = arith.constant 1 : index
    %c0_9 = arith.constant 0 : index
    %c0_10 = arith.constant 0 : index
    %14 = vector.load %arg2[%c1_8, %c0_9, %c0_10] : memref<25x8x1xf32, #tpu.memory_space<vmem>>, vector<1x8x1xf32>
    %15 = vector.shape_cast %14 : vector<1x8x1xf32> to vector<8x1xf32>
    %16 = vector.broadcast %15 : vector<8x1xf32> to vector<8x128xf32>
    %17 = arith.mulf %13, %16 : vector<8x128xf32>
    %18 = arith.addf %8, %17 : vector<8x128xf32>
    %c2 = arith.constant 2 : index
    %c0_11 = arith.constant 0 : index
    %c0_12 = arith.constant 0 : index
    %19 = vector.load %arg1[%c2, %c0_11, %c0_12] : memref<25x8x128xbf16, #tpu.memory_space<vmem>>, vector<1x8x128xbf16>
    %20 = vector.shape_cast %19 : vector<1x8x128xbf16> to vector<8x128xbf16>
    %21 = arith.extf %20 : vector<8x128xbf16> to vector<8x128xf32>
    %cst_13 = arith.constant 0.000000e+00 : f32
    %22 = vector.broadcast %cst_13 : f32 to vector<8x128xf32>
    %23 = arith.maximumf %21, %22 : vector<8x128xf32>
    %c2_14 = arith.constant 2 : index
    %c0_15 = arith.constant 0 : index
    %c0_16 = arith.constant 0 : index
    %24 = vector.load %arg2[%c2_14, %c0_15, %c0_16] : memref<25x8x1xf32, #tpu.memory_space<vmem>>, vector<1x8x1xf32>
    %25 = vector.shape_cast %24 : vector<1x8x1xf32> to vector<8x1xf32>
    %26 = vector.broadcast %25 : vector<8x1xf32> to vector<8x128xf32>
    %27 = arith.mulf %23, %26 : vector<8x128xf32>
    %28 = arith.addf %18, %27 : vector<8x128xf32>
    %c3 = arith.constant 3 : index
    %c0_17 = arith.constant 0 : index
    %c0_18 = arith.constant 0 : index
    %29 = vector.load %arg1[%c3, %c0_17, %c0_18] : memref<25x8x128xbf16, #tpu.memory_space<vmem>>, vector<1x8x128xbf16>
    %30 = vector.shape_cast %29 : vector<1x8x128xbf16> to vector<8x128xbf16>
    %31 = arith.extf %30 : vector<8x128xbf16> to vector<8x128xf32>
    %cst_19 = arith.constant 0.000000e+00 : f32
    %32 = vector.broadcast %cst_19 : f32 to vector<8x128xf32>
    %33 = arith.maximumf %31, %32 : vector<8x128xf32>
    %c3_20 = arith.constant 3 : index
    %c0_21 = arith.constant 0 : index
    %c0_22 = arith.constant 0 : index
    %34 = vector.load %arg2[%c3_20, %c0_21, %c0_22] : memref<25x8x1xf32, #tpu.memory_space<vmem>>, vector<1x8x1xf32>
    %35 = vector.shape_cast %34 : vector<1x8x1xf32> to vector<8x1xf32>
    %36 = vector.broadcast %35 : vector<8x1xf32> to vector<8x128xf32>
    %37 = arith.mulf %33, %36 : vector<8x128xf32>
    %38 = arith.addf %28, %37 : vector<8x128xf32>
    %c4 = arith.constant 4 : index
    %c0_23 = arith.constant 0 : index
    %c0_24 = arith.constant 0 : index
    %39 = vector.load %arg1[%c4, %c0_23, %c0_24] : memref<25x8x128xbf16, #tpu.memory_space<vmem>>, vector<1x8x128xbf16>
    %40 = vector.shape_cast %39 : vector<1x8x128xbf16> to vector<8x128xbf16>
    %41 = arith.extf %40 : vector<8x128xbf16> to vector<8x128xf32>
    %cst_25 = arith.constant 0.000000e+00 : f32
    %42 = vector.broadcast %cst_25 : f32 to vector<8x128xf32>
    %43 = arith.maximumf %41, %42 : vector<8x128xf32>
    %c4_26 = arith.constant 4 : index
    %c0_27 = arith.constant 0 : index
    %c0_28 = arith.constant 0 : index
    %44 = vector.load %arg2[%c4_26, %c0_27, %c0_28] : memref<25x8x1xf32, #tpu.memory_space<vmem>>, vector<1x8x1xf32>
    %45 = vector.shape_cast %44 : vector<1x8x1xf32> to vector<8x1xf32>
    %46 = vector.broadcast %45 : vector<8x1xf32> to vector<8x128xf32>
    %47 = arith.mulf %43, %46 : vector<8x128xf32>
    %48 = arith.addf %38, %47 : vector<8x128xf32>
    %c5 = arith.constant 5 : index
    %c0_29 = arith.constant 0 : index
    %c0_30 = arith.constant 0 : index
    %49 = vector.load %arg1[%c5, %c0_29, %c0_30] : memref<25x8x128xbf16, #tpu.memory_space<vmem>>, vector<1x8x128xbf16>
    %50 = vector.shape_cast %49 : vector<1x8x128xbf16> to vector<8x128xbf16>
    %51 = arith.extf %50 : vector<8x128xbf16> to vector<8x128xf32>
    %cst_31 = arith.constant 0.000000e+00 : f32
    %52 = vector.broadcast %cst_31 : f32 to vector<8x128xf32>
    %53 = arith.maximumf %51, %52 : vector<8x128xf32>
    %c5_32 = arith.constant 5 : index
    %c0_33 = arith.constant 0 : index
    %c0_34 = arith.constant 0 : index
    %54 = vector.load %arg2[%c5_32, %c0_33, %c0_34] : memref<25x8x1xf32, #tpu.memory_space<vmem>>, vector<1x8x1xf32>
    %55 = vector.shape_cast %54 : vector<1x8x1xf32> to vector<8x1xf32>
    %56 = vector.broadcast %55 : vector<8x1xf32> to vector<8x128xf32>
    %57 = arith.mulf %53, %56 : vector<8x128xf32>
    %58 = arith.addf %48, %57 : vector<8x128xf32>
    %c6 = arith.constant 6 : index
    %c0_35 = arith.constant 0 : index
    %c0_36 = arith.constant 0 : index
    %59 = vector.load %arg1[%c6, %c0_35, %c0_36] : memref<25x8x128xbf16, #tpu.memory_space<vmem>>, vector<1x8x128xbf16>
    %60 = vector.shape_cast %59 : vector<1x8x128xbf16> to vector<8x128xbf16>
    %61 = arith.extf %60 : vector<8x128xbf16> to vector<8x128xf32>
    %cst_37 = arith.constant 0.000000e+00 : f32
    %62 = vector.broadcast %cst_37 : f32 to vector<8x128xf32>
    %63 = arith.maximumf %61, %62 : vector<8x128xf32>
    %c6_38 = arith.constant 6 : index
    %c0_39 = arith.constant 0 : index
    %c0_40 = arith.constant 0 : index
    %64 = vector.load %arg2[%c6_38, %c0_39, %c0_40] : memref<25x8x1xf32, #tpu.memory_space<vmem>>, vector<1x8x1xf32>
    %65 = vector.shape_cast %64 : vector<1x8x1xf32> to vector<8x1xf32>
    %66 = vector.broadcast %65 : vector<8x1xf32> to vector<8x128xf32>
    %67 = arith.mulf %63, %66 : vector<8x128xf32>
    %68 = arith.addf %58, %67 : vector<8x128xf32>
    %c7 = arith.constant 7 : index
    %c0_41 = arith.constant 0 : index
    %c0_42 = arith.constant 0 : index
    %69 = vector.load %arg1[%c7, %c0_41, %c0_42] : memref<25x8x128xbf16, #tpu.memory_space<vmem>>, vector<1x8x128xbf16>
    %70 = vector.shape_cast %69 : vector<1x8x128xbf16> to vector<8x128xbf16>
    %71 = arith.extf %70 : vector<8x128xbf16> to vector<8x128xf32>
    %cst_43 = arith.constant 0.000000e+00 : f32
    %72 = vector.broadcast %cst_43 : f32 to vector<8x128xf32>
    %73 = arith.maximumf %71, %72 : vector<8x128xf32>
    %c7_44 = arith.constant 7 : index
    %c0_45 = arith.constant 0 : index
    %c0_46 = arith.constant 0 : index
    %74 = vector.load %arg2[%c7_44, %c0_45, %c0_46] : memref<25x8x1xf32, #tpu.memory_space<vmem>>, vector<1x8x1xf32>
    %75 = vector.shape_cast %74 : vector<1x8x1xf32> to vector<8x1xf32>
    %76 = vector.broadcast %75 : vector<8x1xf32> to vector<8x128xf32>
    %77 = arith.mulf %73, %76 : vector<8x128xf32>
    %78 = arith.addf %68, %77 : vector<8x128xf32>
    %c8 = arith.constant 8 : index
    %c0_47 = arith.constant 0 : index
    %c0_48 = arith.constant 0 : index
    %79 = vector.load %arg1[%c8, %c0_47, %c0_48] : memref<25x8x128xbf16, #tpu.memory_space<vmem>>, vector<1x8x128xbf16>
    %80 = vector.shape_cast %79 : vector<1x8x128xbf16> to vector<8x128xbf16>
    %81 = arith.extf %80 : vector<8x128xbf16> to vector<8x128xf32>
    %cst_49 = arith.constant 0.000000e+00 : f32
    %82 = vector.broadcast %cst_49 : f32 to vector<8x128xf32>
    %83 = arith.maximumf %81, %82 : vector<8x128xf32>
    %c8_50 = arith.constant 8 : index
    %c0_51 = arith.constant 0 : index
    %c0_52 = arith.constant 0 : index
    %84 = vector.load %arg2[%c8_50, %c0_51, %c0_52] : memref<25x8x1xf32, #tpu.memory_space<vmem>>, vector<1x8x1xf32>
    %85 = vector.shape_cast %84 : vector<1x8x1xf32> to vector<8x1xf32>
    %86 = vector.broadcast %85 : vector<8x1xf32> to vector<8x128xf32>
    %87 = arith.mulf %83, %86 : vector<8x128xf32>
    %88 = arith.addf %78, %87 : vector<8x128xf32>
    %c9 = arith.constant 9 : index
    %c0_53 = arith.constant 0 : index
    %c0_54 = arith.constant 0 : index
    %89 = vector.load %arg1[%c9, %c0_53, %c0_54] : memref<25x8x128xbf16, #tpu.memory_space<vmem>>, vector<1x8x128xbf16>
    %90 = vector.shape_cast %89 : vector<1x8x128xbf16> to vector<8x128xbf16>
    %91 = arith.extf %90 : vector<8x128xbf16> to vector<8x128xf32>
    %cst_55 = arith.constant 0.000000e+00 : f32
    %92 = vector.broadcast %cst_55 : f32 to vector<8x128xf32>
    %93 = arith.maximumf %91, %92 : vector<8x128xf32>
    %c9_56 = arith.constant 9 : index
    %c0_57 = arith.constant 0 : index
    %c0_58 = arith.constant 0 : index
    %94 = vector.load %arg2[%c9_56, %c0_57, %c0_58] : memref<25x8x1xf32, #tpu.memory_space<vmem>>, vector<1x8x1xf32>
    %95 = vector.shape_cast %94 : vector<1x8x1xf32> to vector<8x1xf32>
    %96 = vector.broadcast %95 : vector<8x1xf32> to vector<8x128xf32>
    %97 = arith.mulf %93, %96 : vector<8x128xf32>
    %98 = arith.addf %88, %97 : vector<8x128xf32>
    %c10 = arith.constant 10 : index
    %c0_59 = arith.constant 0 : index
    %c0_60 = arith.constant 0 : index
    %99 = vector.load %arg1[%c10, %c0_59, %c0_60] : memref<25x8x128xbf16, #tpu.memory_space<vmem>>, vector<1x8x128xbf16>
    %100 = vector.shape_cast %99 : vector<1x8x128xbf16> to vector<8x128xbf16>
    %101 = arith.extf %100 : vector<8x128xbf16> to vector<8x128xf32>
    %cst_61 = arith.constant 0.000000e+00 : f32
    %102 = vector.broadcast %cst_61 : f32 to vector<8x128xf32>
    %103 = arith.maximumf %101, %102 : vector<8x128xf32>
    %c10_62 = arith.constant 10 : index
    %c0_63 = arith.constant 0 : index
    %c0_64 = arith.constant 0 : index
    %104 = vector.load %arg2[%c10_62, %c0_63, %c0_64] : memref<25x8x1xf32, #tpu.memory_space<vmem>>, vector<1x8x1xf32>
    %105 = vector.shape_cast %104 : vector<1x8x1xf32> to vector<8x1xf32>
    %106 = vector.broadcast %105 : vector<8x1xf32> to vector<8x128xf32>
    %107 = arith.mulf %103, %106 : vector<8x128xf32>
    %108 = arith.addf %98, %107 : vector<8x128xf32>
    %c11 = arith.constant 11 : index
    %c0_65 = arith.constant 0 : index
    %c0_66 = arith.constant 0 : index
    %109 = vector.load %arg1[%c11, %c0_65, %c0_66] : memref<25x8x128xbf16, #tpu.memory_space<vmem>>, vector<1x8x128xbf16>
    %110 = vector.shape_cast %109 : vector<1x8x128xbf16> to vector<8x128xbf16>
    %111 = arith.extf %110 : vector<8x128xbf16> to vector<8x128xf32>
    %cst_67 = arith.constant 0.000000e+00 : f32
    %112 = vector.broadcast %cst_67 : f32 to vector<8x128xf32>
    %113 = arith.maximumf %111, %112 : vector<8x128xf32>
    %c11_68 = arith.constant 11 : index
    %c0_69 = arith.constant 0 : index
    %c0_70 = arith.constant 0 : index
    %114 = vector.load %arg2[%c11_68, %c0_69, %c0_70] : memref<25x8x1xf32, #tpu.memory_space<vmem>>, vector<1x8x1xf32>
    %115 = vector.shape_cast %114 : vector<1x8x1xf32> to vector<8x1xf32>
    %116 = vector.broadcast %115 : vector<8x1xf32> to vector<8x128xf32>
    %117 = arith.mulf %113, %116 : vector<8x128xf32>
    %118 = arith.addf %108, %117 : vector<8x128xf32>
    %c12 = arith.constant 12 : index
    %c0_71 = arith.constant 0 : index
    %c0_72 = arith.constant 0 : index
    %119 = vector.load %arg1[%c12, %c0_71, %c0_72] : memref<25x8x128xbf16, #tpu.memory_space<vmem>>, vector<1x8x128xbf16>
    %120 = vector.shape_cast %119 : vector<1x8x128xbf16> to vector<8x128xbf16>
    %121 = arith.extf %120 : vector<8x128xbf16> to vector<8x128xf32>
    %cst_73 = arith.constant 0.000000e+00 : f32
    %122 = vector.broadcast %cst_73 : f32 to vector<8x128xf32>
    %123 = arith.maximumf %121, %122 : vector<8x128xf32>
    %c12_74 = arith.constant 12 : index
    %c0_75 = arith.constant 0 : index
    %c0_76 = arith.constant 0 : index
    %124 = vector.load %arg2[%c12_74, %c0_75, %c0_76] : memref<25x8x1xf32, #tpu.memory_space<vmem>>, vector<1x8x1xf32>
    %125 = vector.shape_cast %124 : vector<1x8x1xf32> to vector<8x1xf32>
    %126 = vector.broadcast %125 : vector<8x1xf32> to vector<8x128xf32>
    %127 = arith.mulf %123, %126 : vector<8x128xf32>
    %128 = arith.addf %118, %127 : vector<8x128xf32>
    %c13 = arith.constant 13 : index
    %c0_77 = arith.constant 0 : index
    %c0_78 = arith.constant 0 : index
    %129 = vector.load %arg1[%c13, %c0_77, %c0_78] : memref<25x8x128xbf16, #tpu.memory_space<vmem>>, vector<1x8x128xbf16>
    %130 = vector.shape_cast %129 : vector<1x8x128xbf16> to vector<8x128xbf16>
    %131 = arith.extf %130 : vector<8x128xbf16> to vector<8x128xf32>
    %cst_79 = arith.constant 0.000000e+00 : f32
    %132 = vector.broadcast %cst_79 : f32 to vector<8x128xf32>
    %133 = arith.maximumf %131, %132 : vector<8x128xf32>
    %c13_80 = arith.constant 13 : index
    %c0_81 = arith.constant 0 : index
    %c0_82 = arith.constant 0 : index
    %134 = vector.load %arg2[%c13_80, %c0_81, %c0_82] : memref<25x8x1xf32, #tpu.memory_space<vmem>>, vector<1x8x1xf32>
    %135 = vector.shape_cast %134 : vector<1x8x1xf32> to vector<8x1xf32>
    %136 = vector.broadcast %135 : vector<8x1xf32> to vector<8x128xf32>
    %137 = arith.mulf %133, %136 : vector<8x128xf32>
    %138 = arith.addf %128, %137 : vector<8x128xf32>
    %c14 = arith.constant 14 : index
    %c0_83 = arith.constant 0 : index
    %c0_84 = arith.constant 0 : index
    %139 = vector.load %arg1[%c14, %c0_83, %c0_84] : memref<25x8x128xbf16, #tpu.memory_space<vmem>>, vector<1x8x128xbf16>
    %140 = vector.shape_cast %139 : vector<1x8x128xbf16> to vector<8x128xbf16>
    %141 = arith.extf %140 : vector<8x128xbf16> to vector<8x128xf32>
    %cst_85 = arith.constant 0.000000e+00 : f32
    %142 = vector.broadcast %cst_85 : f32 to vector<8x128xf32>
    %143 = arith.maximumf %141, %142 : vector<8x128xf32>
    %c14_86 = arith.constant 14 : index
    %c0_87 = arith.constant 0 : index
    %c0_88 = arith.constant 0 : index
    %144 = vector.load %arg2[%c14_86, %c0_87, %c0_88] : memref<25x8x1xf32, #tpu.memory_space<vmem>>, vector<1x8x1xf32>
    %145 = vector.shape_cast %144 : vector<1x8x1xf32> to vector<8x1xf32>
    %146 = vector.broadcast %145 : vector<8x1xf32> to vector<8x128xf32>
    %147 = arith.mulf %143, %146 : vector<8x128xf32>
    %148 = arith.addf %138, %147 : vector<8x128xf32>
    %c15 = arith.constant 15 : index
    %c0_89 = arith.constant 0 : index
    %c0_90 = arith.constant 0 : index
    %149 = vector.load %arg1[%c15, %c0_89, %c0_90] : memref<25x8x128xbf16, #tpu.memory_space<vmem>>, vector<1x8x128xbf16>
    %150 = vector.shape_cast %149 : vector<1x8x128xbf16> to vector<8x128xbf16>
    %151 = arith.extf %150 : vector<8x128xbf16> to vector<8x128xf32>
    %cst_91 = arith.constant 0.000000e+00 : f32
    %152 = vector.broadcast %cst_91 : f32 to vector<8x128xf32>
    %153 = arith.maximumf %151, %152 : vector<8x128xf32>
    %c15_92 = arith.constant 15 : index
    %c0_93 = arith.constant 0 : index
    %c0_94 = arith.constant 0 : index
    %154 = vector.load %arg2[%c15_92, %c0_93, %c0_94] : memref<25x8x1xf32, #tpu.memory_space<vmem>>, vector<1x8x1xf32>
    %155 = vector.shape_cast %154 : vector<1x8x1xf32> to vector<8x1xf32>
    %156 = vector.broadcast %155 : vector<8x1xf32> to vector<8x128xf32>
    %157 = arith.mulf %153, %156 : vector<8x128xf32>
    %158 = arith.addf %148, %157 : vector<8x128xf32>
    %c16 = arith.constant 16 : index
    %c0_95 = arith.constant 0 : index
    %c0_96 = arith.constant 0 : index
    %159 = vector.load %arg1[%c16, %c0_95, %c0_96] : memref<25x8x128xbf16, #tpu.memory_space<vmem>>, vector<1x8x128xbf16>
    %160 = vector.shape_cast %159 : vector<1x8x128xbf16> to vector<8x128xbf16>
    %161 = arith.extf %160 : vector<8x128xbf16> to vector<8x128xf32>
    %cst_97 = arith.constant 0.000000e+00 : f32
    %162 = vector.broadcast %cst_97 : f32 to vector<8x128xf32>
    %163 = arith.maximumf %161, %162 : vector<8x128xf32>
    %c16_98 = arith.constant 16 : index
    %c0_99 = arith.constant 0 : index
    %c0_100 = arith.constant 0 : index
    %164 = vector.load %arg2[%c16_98, %c0_99, %c0_100] : memref<25x8x1xf32, #tpu.memory_space<vmem>>, vector<1x8x1xf32>
    %165 = vector.shape_cast %164 : vector<1x8x1xf32> to vector<8x1xf32>
    %166 = vector.broadcast %165 : vector<8x1xf32> to vector<8x128xf32>
    %167 = arith.mulf %163, %166 : vector<8x128xf32>
    %168 = arith.addf %158, %167 : vector<8x128xf32>
    %c17 = arith.constant 17 : index
    %c0_101 = arith.constant 0 : index
    %c0_102 = arith.constant 0 : index
    %169 = vector.load %arg1[%c17, %c0_101, %c0_102] : memref<25x8x128xbf16, #tpu.memory_space<vmem>>, vector<1x8x128xbf16>
    %170 = vector.shape_cast %169 : vector<1x8x128xbf16> to vector<8x128xbf16>
    %171 = arith.extf %170 : vector<8x128xbf16> to vector<8x128xf32>
    %cst_103 = arith.constant 0.000000e+00 : f32
    %172 = vector.broadcast %cst_103 : f32 to vector<8x128xf32>
    %173 = arith.maximumf %171, %172 : vector<8x128xf32>
    %c17_104 = arith.constant 17 : index
    %c0_105 = arith.constant 0 : index
    %c0_106 = arith.constant 0 : index
    %174 = vector.load %arg2[%c17_104, %c0_105, %c0_106] : memref<25x8x1xf32, #tpu.memory_space<vmem>>, vector<1x8x1xf32>
    %175 = vector.shape_cast %174 : vector<1x8x1xf32> to vector<8x1xf32>
    %176 = vector.broadcast %175 : vector<8x1xf32> to vector<8x128xf32>
    %177 = arith.mulf %173, %176 : vector<8x128xf32>
    %178 = arith.addf %168, %177 : vector<8x128xf32>
    %c18 = arith.constant 18 : index
    %c0_107 = arith.constant 0 : index
    %c0_108 = arith.constant 0 : index
    %179 = vector.load %arg1[%c18, %c0_107, %c0_108] : memref<25x8x128xbf16, #tpu.memory_space<vmem>>, vector<1x8x128xbf16>
    %180 = vector.shape_cast %179 : vector<1x8x128xbf16> to vector<8x128xbf16>
    %181 = arith.extf %180 : vector<8x128xbf16> to vector<8x128xf32>
    %cst_109 = arith.constant 0.000000e+00 : f32
    %182 = vector.broadcast %cst_109 : f32 to vector<8x128xf32>
    %183 = arith.maximumf %181, %182 : vector<8x128xf32>
    %c18_110 = arith.constant 18 : index
    %c0_111 = arith.constant 0 : index
    %c0_112 = arith.constant 0 : index
    %184 = vector.load %arg2[%c18_110, %c0_111, %c0_112] : memref<25x8x1xf32, #tpu.memory_space<vmem>>, vector<1x8x1xf32>
    %185 = vector.shape_cast %184 : vector<1x8x1xf32> to vector<8x1xf32>
    %186 = vector.broadcast %185 : vector<8x1xf32> to vector<8x128xf32>
    %187 = arith.mulf %183, %186 : vector<8x128xf32>
    %188 = arith.addf %178, %187 : vector<8x128xf32>
    %c19 = arith.constant 19 : index
    %c0_113 = arith.constant 0 : index
    %c0_114 = arith.constant 0 : index
    %189 = vector.load %arg1[%c19, %c0_113, %c0_114] : memref<25x8x128xbf16, #tpu.memory_space<vmem>>, vector<1x8x128xbf16>
    %190 = vector.shape_cast %189 : vector<1x8x128xbf16> to vector<8x128xbf16>
    %191 = arith.extf %190 : vector<8x128xbf16> to vector<8x128xf32>
    %cst_115 = arith.constant 0.000000e+00 : f32
    %192 = vector.broadcast %cst_115 : f32 to vector<8x128xf32>
    %193 = arith.maximumf %191, %192 : vector<8x128xf32>
    %c19_116 = arith.constant 19 : index
    %c0_117 = arith.constant 0 : index
    %c0_118 = arith.constant 0 : index
    %194 = vector.load %arg2[%c19_116, %c0_117, %c0_118] : memref<25x8x1xf32, #tpu.memory_space<vmem>>, vector<1x8x1xf32>
    %195 = vector.shape_cast %194 : vector<1x8x1xf32> to vector<8x1xf32>
    %196 = vector.broadcast %195 : vector<8x1xf32> to vector<8x128xf32>
    %197 = arith.mulf %193, %196 : vector<8x128xf32>
    %198 = arith.addf %188, %197 : vector<8x128xf32>
    %c20 = arith.constant 20 : index
    %c0_119 = arith.constant 0 : index
    %c0_120 = arith.constant 0 : index
    %199 = vector.load %arg1[%c20, %c0_119, %c0_120] : memref<25x8x128xbf16, #tpu.memory_space<vmem>>, vector<1x8x128xbf16>
    %200 = vector.shape_cast %199 : vector<1x8x128xbf16> to vector<8x128xbf16>
    %201 = arith.extf %200 : vector<8x128xbf16> to vector<8x128xf32>
    %cst_121 = arith.constant 0.000000e+00 : f32
    %202 = vector.broadcast %cst_121 : f32 to vector<8x128xf32>
    %203 = arith.maximumf %201, %202 : vector<8x128xf32>
    %c20_122 = arith.constant 20 : index
    %c0_123 = arith.constant 0 : index
    %c0_124 = arith.constant 0 : index
    %204 = vector.load %arg2[%c20_122, %c0_123, %c0_124] : memref<25x8x1xf32, #tpu.memory_space<vmem>>, vector<1x8x1xf32>
    %205 = vector.shape_cast %204 : vector<1x8x1xf32> to vector<8x1xf32>
    %206 = vector.broadcast %205 : vector<8x1xf32> to vector<8x128xf32>
    %207 = arith.mulf %203, %206 : vector<8x128xf32>
    %208 = arith.addf %198, %207 : vector<8x128xf32>
    %c21 = arith.constant 21 : index
    %c0_125 = arith.constant 0 : index
    %c0_126 = arith.constant 0 : index
    %209 = vector.load %arg1[%c21, %c0_125, %c0_126] : memref<25x8x128xbf16, #tpu.memory_space<vmem>>, vector<1x8x128xbf16>
    %210 = vector.shape_cast %209 : vector<1x8x128xbf16> to vector<8x128xbf16>
    %211 = arith.extf %210 : vector<8x128xbf16> to vector<8x128xf32>
    %cst_127 = arith.constant 0.000000e+00 : f32
    %212 = vector.broadcast %cst_127 : f32 to vector<8x128xf32>
    %213 = arith.maximumf %211, %212 : vector<8x128xf32>
    %c21_128 = arith.constant 21 : index
    %c0_129 = arith.constant 0 : index
    %c0_130 = arith.constant 0 : index
    %214 = vector.load %arg2[%c21_128, %c0_129, %c0_130] : memref<25x8x1xf32, #tpu.memory_space<vmem>>, vector<1x8x1xf32>
    %215 = vector.shape_cast %214 : vector<1x8x1xf32> to vector<8x1xf32>
    %216 = vector.broadcast %215 : vector<8x1xf32> to vector<8x128xf32>
    %217 = arith.mulf %213, %216 : vector<8x128xf32>
    %218 = arith.addf %208, %217 : vector<8x128xf32>
    %c22 = arith.constant 22 : index
    %c0_131 = arith.constant 0 : index
    %c0_132 = arith.constant 0 : index
    %219 = vector.load %arg1[%c22, %c0_131, %c0_132] : memref<25x8x128xbf16, #tpu.memory_space<vmem>>, vector<1x8x128xbf16>
    %220 = vector.shape_cast %219 : vector<1x8x128xbf16> to vector<8x128xbf16>
    %221 = arith.extf %220 : vector<8x128xbf16> to vector<8x128xf32>
    %cst_133 = arith.constant 0.000000e+00 : f32
    %222 = vector.broadcast %cst_133 : f32 to vector<8x128xf32>
    %223 = arith.maximumf %221, %222 : vector<8x128xf32>
    %c22_134 = arith.constant 22 : index
    %c0_135 = arith.constant 0 : index
    %c0_136 = arith.constant 0 : index
    %224 = vector.load %arg2[%c22_134, %c0_135, %c0_136] : memref<25x8x1xf32, #tpu.memory_space<vmem>>, vector<1x8x1xf32>
    %225 = vector.shape_cast %224 : vector<1x8x1xf32> to vector<8x1xf32>
    %226 = vector.broadcast %225 : vector<8x1xf32> to vector<8x128xf32>
    %227 = arith.mulf %223, %226 : vector<8x128xf32>
    %228 = arith.addf %218, %227 : vector<8x128xf32>
    %c23 = arith.constant 23 : index
    %c0_137 = arith.constant 0 : index
    %c0_138 = arith.constant 0 : index
    %229 = vector.load %arg1[%c23, %c0_137, %c0_138] : memref<25x8x128xbf16, #tpu.memory_space<vmem>>, vector<1x8x128xbf16>
    %230 = vector.shape_cast %229 : vector<1x8x128xbf16> to vector<8x128xbf16>
    %231 = arith.extf %230 : vector<8x128xbf16> to vector<8x128xf32>
    %cst_139 = arith.constant 0.000000e+00 : f32
    %232 = vector.broadcast %cst_139 : f32 to vector<8x128xf32>
    %233 = arith.maximumf %231, %232 : vector<8x128xf32>
    %c23_140 = arith.constant 23 : index
    %c0_141 = arith.constant 0 : index
    %c0_142 = arith.constant 0 : index
    %234 = vector.load %arg2[%c23_140, %c0_141, %c0_142] : memref<25x8x1xf32, #tpu.memory_space<vmem>>, vector<1x8x1xf32>
    %235 = vector.shape_cast %234 : vector<1x8x1xf32> to vector<8x1xf32>
    %236 = vector.broadcast %235 : vector<8x1xf32> to vector<8x128xf32>
    %237 = arith.mulf %233, %236 : vector<8x128xf32>
    %238 = arith.addf %228, %237 : vector<8x128xf32>
    %c24 = arith.constant 24 : index
    %c0_143 = arith.constant 0 : index
    %c0_144 = arith.constant 0 : index
    %239 = vector.load %arg1[%c24, %c0_143, %c0_144] : memref<25x8x128xbf16, #tpu.memory_space<vmem>>, vector<1x8x128xbf16>
    %240 = vector.shape_cast %239 : vector<1x8x128xbf16> to vector<8x128xbf16>
    %241 = arith.extf %240 : vector<8x128xbf16> to vector<8x128xf32>
    %cst_145 = arith.constant 0.000000e+00 : f32
    %242 = vector.broadcast %cst_145 : f32 to vector<8x128xf32>
    %243 = arith.maximumf %241, %242 : vector<8x128xf32>
    %c24_146 = arith.constant 24 : index
    %c0_147 = arith.constant 0 : index
    %c0_148 = arith.constant 0 : index
    %244 = vector.load %arg2[%c24_146, %c0_147, %c0_148] : memref<25x8x1xf32, #tpu.memory_space<vmem>>, vector<1x8x1xf32>
    %245 = vector.shape_cast %244 : vector<1x8x1xf32> to vector<8x1xf32>
    %246 = vector.broadcast %245 : vector<8x1xf32> to vector<8x128xf32>
    %247 = arith.mulf %243, %246 : vector<8x128xf32>
    %248 = arith.addf %238, %247 : vector<8x128xf32>
    %c0_149 = arith.constant 0 : index
    %c0_150 = arith.constant 0 : index
    %249 = vector.load %arg3[%c0_149, %c0_150] : memref<8x8xbf16, #tpu.memory_space<vmem>>, vector<8x8xbf16>
    %250 = arith.truncf %248 : vector<8x128xf32> to vector<8x128xbf16>
    %cst_151 = arith.constant dense<0.000000e+00> : vector<8x128xf32>
    %251 = tpu.matmul %249, %250, %cst_151 {dimension_numbers = #tpu.dot_dimension_numbers<[1], [0], [0], [1], [0, 0, 1, 1], [], []>} : vector<8x8xbf16>, vector<8x128xbf16>, vector<8x128xf32> -> vector<8x128xf32>
    %c0_152 = arith.constant 0 : index
    %c0_153 = arith.constant 0 : index
    %252 = vector.load %arg4[%c0_152, %c0_153] : memref<8x128xf32, #tpu.memory_space<vmem>>, vector<8x128xf32>
    tpu.vector_store %arg4[%c0_152, %c0_153], %251 {strides = array<i32>} : memref<8x128xf32, #tpu.memory_space<vmem>>, vector<8x128xf32>,
    %c0_i32 = arith.constant 0 : i32
    %253 = arith.cmpi eq, %arg0, %c0_i32 : i32
    %254 = arith.extui %253 : i1 to i32
    %c0_i32_154 = arith.constant 0 : i32
    %255 = arith.cmpi ne, %254, %c0_i32_154 : i32
    scf.if %255 {
      %cst_165 = arith.constant 0.000000e+00 : f32
      %267 = vector.broadcast %cst_165 : f32 to vector<8x1xf32>
      %c0_166 = arith.constant 0 : index
      %c0_167 = arith.constant 0 : index
      %268 = vector.load %arg5[%c0_166, %c0_167] : memref<8x1xf32, #tpu.memory_space<vmem>>, vector<8x1xf32>
      tpu.vector_store %arg5[%c0_166, %c0_167], %267 {strides = array<i32>} : memref<8x1xf32, #tpu.memory_space<vmem>>, vector<8x1xf32>,
      %cst_168 = arith.constant 0.000000e+00 : f32
      %269 = vector.broadcast %cst_168 : f32 to vector<8x1xf32>
      %c0_169 = arith.constant 0 : index
      %c0_170 = arith.constant 0 : index
      %270 = vector.load %arg6[%c0_169, %c0_170] : memref<8x1xf32, #tpu.memory_space<vmem>>, vector<8x1xf32>
      tpu.vector_store %arg6[%c0_169, %c0_170], %269 {strides = array<i32>} : memref<8x1xf32, #tpu.memory_space<vmem>>, vector<8x1xf32>,
    } else {
    }
    %c0_155 = arith.constant 0 : index
    %c0_156 = arith.constant 0 : index
    %256 = vector.load %arg5[%c0_155, %c0_156] : memref<8x1xf32, #tpu.memory_space<vmem>>, vector<8x1xf32>
    %cst_157 = arith.constant dense<0.000000e+00> : vector<8xf32>
    %257 = vector.multi_reduction <add>, %251, %cst_157 [1] : vector<8x128xf32> to vector<8xf32>
    %258 = vector.shape_cast %257 : vector<8xf32> to vector<8x1xf32>
    %259 = arith.addf %256, %258 : vector<8x1xf32>
    %c0_158 = arith.constant 0 : index
    %c0_159 = arith.constant 0 : index
    %260 = vector.load %arg5[%c0_158, %c0_159] : memref<8x1xf32, #tpu.memory_space<vmem>>, vector<8x1xf32>
    tpu.vector_store %arg5[%c0_158, %c0_159], %259 {strides = array<i32>} : memref<8x1xf32, #tpu.memory_space<vmem>>, vector<8x1xf32>,
    %c0_160 = arith.constant 0 : index
    %c0_161 = arith.constant 0 : index
    %261 = vector.load %arg6[%c0_160, %c0_161] : memref<8x1xf32, #tpu.memory_space<vmem>>, vector<8x1xf32>
    %262 = arith.mulf %251, %251 : vector<8x128xf32>
    %cst_162 = arith.constant dense<0.000000e+00> : vector<8xf32>
    %263 = vector.multi_reduction <add>, %262, %cst_162 [1] : vector<8x128xf32> to vector<8xf32>
    %264 = vector.shape_cast %263 : vector<8xf32> to vector<8x1xf32>
    %265 = arith.addf %261, %264 : vector<8x1xf32>
    %c0_163 = arith.constant 0 : index
    %c0_164 = arith.constant 0 : index
    %266 = vector.load %arg6[%c0_163, %c0_164] : memref<8x1xf32, #tpu.memory_space<vmem>>, vector<8x1xf32>
    tpu.vector_store %arg6[%c0_163, %c0_164], %265 {strides = array<i32>} : memref<8x1xf32, #tpu.memory_space<vmem>>, vector<8x1xf32>,
    return
  }
  func.func @transform_0(%arg0: i32) -> (i32, i32, i32) {
    %c0_i32 = arith.constant 0 : i32
    %c0_i32_0 = arith.constant 0 : i32
    %c0_i32_1 = arith.constant 0 : i32
    return %c0_i32, %c0_i32_0, %arg0 : i32, i32, i32
  }
  func.func @transform_1(%arg0: i32) -> (i32, i32, i32) {
    %c0_i32 = arith.constant 0 : i32
    %c0_i32_0 = arith.constant 0 : i32
    %c0_i32_1 = arith.constant 0 : i32
    %c0_i32_2 = arith.constant 0 : i32
    return %c0_i32, %c0_i32_0, %c0_i32_1 : i32, i32, i32
  }
  func.func @transform_2(%arg0: i32) -> (i32, i32) {
    %c0_i32 = arith.constant 0 : i32
    %c0_i32_0 = arith.constant 0 : i32
    %c0_i32_1 = arith.constant 0 : i32
    return %c0_i32, %c0_i32_0 : i32, i32
  }
  func.func @transform_3(%arg0: i32) -> (i32, i32) {
    %c0_i32 = arith.constant 0 : i32
    %c0_i32_0 = arith.constant 0 : i32
    return %c0_i32, %arg0 : i32, i32
  }
  func.func @transform_4(%arg0: i32) -> (i32, i32) {
    %c0_i32 = arith.constant 0 : i32
    %c0_i32_0 = arith.constant 0 : i32
    %c0_i32_1 = arith.constant 0 : i32
    return %c0_i32, %c0_i32_0 : i32, i32
  }
  func.func @transform_5(%arg0: i32) -> (i32, i32) {
    %c0_i32 = arith.constant 0 : i32
    %c0_i32_0 = arith.constant 0 : i32
    %c0_i32_1 = arith.constant 0 : i32
    return %c0_i32, %c0_i32_0 : i32, i32
  }
}

module attributes {stable_mosaic.version = 11 : i64} {
  func.func @kernel(%arg0: i32, %arg1: memref<8x32xf32, #tpu.memory_space<vmem>>, %arg2: memref<8x32xf32, #tpu.memory_space<vmem>>, %arg3: memref<8x32xf32, #tpu.memory_space<vmem>>, %arg4: memref<8x32xf32, #tpu.memory_space<vmem>>, %arg5: memref<8x32xf32, #tpu.memory_space<vmem>>, %arg6: memref<8x32xf32, #tpu.memory_space<vmem>>, %arg7: memref<8x32xf32, #tpu.memory_space<vmem>>, %arg8: memref<7x1xf32, #tpu.memory_space<smem>>, %arg9: memref<8x32xf32, #tpu.memory_space<vmem>>) attributes {dimension_semantics = [#tpu.dimension_semantics<parallel>], iteration_bounds = array<i64: 1>, scalar_prefetch = 0 : i64, scratch_operands = 0 : i64, tpu.core_type = #tpu.core_type<tc>, window_params = [{transform_indices = @transform_0, window_bounds = array<i64: 8, 32>}, {transform_indices = @transform_1, window_bounds = array<i64: 8, 32>}, {transform_indices = @transform_2, window_bounds = array<i64: 8, 32>}, {transform_indices = @transform_3, window_bounds = array<i64: 8, 32>}, {transform_indices = @transform_4, window_bounds = array<i64: 8, 32>}, {transform_indices = @transform_5, window_bounds = array<i64: 8, 32>}, {transform_indices = @transform_6, window_bounds = array<i64: 8, 32>}, {transform_indices = @transform_7, window_bounds = array<i64: 7, 1>}, {transform_indices = @transform_8, window_bounds = array<i64: 8, 32>}]} {
    %c0 = arith.constant 0 : index
    %c0_0 = arith.constant 0 : index
    %0 = vector.load %arg1[%c0, %c0_0] : memref<8x32xf32, #tpu.memory_space<vmem>>, vector<8x32xf32>
    %c0_1 = arith.constant 0 : index
    %c0_2 = arith.constant 0 : index
    %1 = memref.load %arg8[%c0_1, %c0_2] : memref<7x1xf32, #tpu.memory_space<smem>>
    %2 = vector.broadcast %1 : f32 to vector<8x32xf32>
    %3 = arith.mulf %0, %2 : vector<8x32xf32>
    %c0_3 = arith.constant 0 : index
    %c0_4 = arith.constant 0 : index
    %4 = vector.load %arg2[%c0_3, %c0_4] : memref<8x32xf32, #tpu.memory_space<vmem>>, vector<8x32xf32>
    %c1 = arith.constant 1 : index
    %c0_5 = arith.constant 0 : index
    %5 = memref.load %arg8[%c1, %c0_5] : memref<7x1xf32, #tpu.memory_space<smem>>
    %6 = vector.broadcast %5 : f32 to vector<8x32xf32>
    %7 = arith.mulf %4, %6 : vector<8x32xf32>
    %8 = arith.addf %3, %7 : vector<8x32xf32>
    %c0_6 = arith.constant 0 : index
    %c0_7 = arith.constant 0 : index
    %9 = vector.load %arg3[%c0_6, %c0_7] : memref<8x32xf32, #tpu.memory_space<vmem>>, vector<8x32xf32>
    %c2 = arith.constant 2 : index
    %c0_8 = arith.constant 0 : index
    %10 = memref.load %arg8[%c2, %c0_8] : memref<7x1xf32, #tpu.memory_space<smem>>
    %11 = vector.broadcast %10 : f32 to vector<8x32xf32>
    %12 = arith.mulf %9, %11 : vector<8x32xf32>
    %13 = arith.addf %8, %12 : vector<8x32xf32>
    %c0_9 = arith.constant 0 : index
    %c0_10 = arith.constant 0 : index
    %14 = vector.load %arg4[%c0_9, %c0_10] : memref<8x32xf32, #tpu.memory_space<vmem>>, vector<8x32xf32>
    %c3 = arith.constant 3 : index
    %c0_11 = arith.constant 0 : index
    %15 = memref.load %arg8[%c3, %c0_11] : memref<7x1xf32, #tpu.memory_space<smem>>
    %16 = vector.broadcast %15 : f32 to vector<8x32xf32>
    %17 = arith.mulf %14, %16 : vector<8x32xf32>
    %18 = arith.addf %13, %17 : vector<8x32xf32>
    %c0_12 = arith.constant 0 : index
    %c0_13 = arith.constant 0 : index
    %19 = vector.load %arg5[%c0_12, %c0_13] : memref<8x32xf32, #tpu.memory_space<vmem>>, vector<8x32xf32>
    %c4 = arith.constant 4 : index
    %c0_14 = arith.constant 0 : index
    %20 = memref.load %arg8[%c4, %c0_14] : memref<7x1xf32, #tpu.memory_space<smem>>
    %21 = vector.broadcast %20 : f32 to vector<8x32xf32>
    %22 = arith.mulf %19, %21 : vector<8x32xf32>
    %23 = arith.addf %18, %22 : vector<8x32xf32>
    %c0_15 = arith.constant 0 : index
    %c0_16 = arith.constant 0 : index
    %24 = vector.load %arg6[%c0_15, %c0_16] : memref<8x32xf32, #tpu.memory_space<vmem>>, vector<8x32xf32>
    %c5 = arith.constant 5 : index
    %c0_17 = arith.constant 0 : index
    %25 = memref.load %arg8[%c5, %c0_17] : memref<7x1xf32, #tpu.memory_space<smem>>
    %26 = vector.broadcast %25 : f32 to vector<8x32xf32>
    %27 = arith.mulf %24, %26 : vector<8x32xf32>
    %28 = arith.addf %23, %27 : vector<8x32xf32>
    %c0_18 = arith.constant 0 : index
    %c0_19 = arith.constant 0 : index
    %29 = vector.load %arg7[%c0_18, %c0_19] : memref<8x32xf32, #tpu.memory_space<vmem>>, vector<8x32xf32>
    %c6 = arith.constant 6 : index
    %c0_20 = arith.constant 0 : index
    %30 = memref.load %arg8[%c6, %c0_20] : memref<7x1xf32, #tpu.memory_space<smem>>
    %31 = vector.broadcast %30 : f32 to vector<8x32xf32>
    %32 = arith.mulf %29, %31 : vector<8x32xf32>
    %33 = arith.addf %28, %32 : vector<8x32xf32>
    %c0_21 = arith.constant 0 : index
    %c0_22 = arith.constant 0 : index
    %34 = vector.load %arg9[%c0_21, %c0_22] : memref<8x32xf32, #tpu.memory_space<vmem>>, vector<8x32xf32>
    tpu.vector_store %arg9[%c0_21, %c0_22], %33 {strides = array<i32>} : memref<8x32xf32, #tpu.memory_space<vmem>>, vector<8x32xf32>,
    return
  }
  func.func @transform_0(%arg0: i32) -> (i32, i32) {
    %c0_i32 = arith.constant 0 : i32
    %c0_i32_0 = arith.constant 0 : i32
    return %c0_i32, %arg0 : i32, i32
  }
  func.func @transform_1(%arg0: i32) -> (i32, i32) {
    %c0_i32 = arith.constant 0 : i32
    %c0_i32_0 = arith.constant 0 : i32
    return %c0_i32, %arg0 : i32, i32
  }
  func.func @transform_2(%arg0: i32) -> (i32, i32) {
    %c0_i32 = arith.constant 0 : i32
    %c0_i32_0 = arith.constant 0 : i32
    return %c0_i32, %arg0 : i32, i32
  }
  func.func @transform_3(%arg0: i32) -> (i32, i32) {
    %c0_i32 = arith.constant 0 : i32
    %c0_i32_0 = arith.constant 0 : i32
    return %c0_i32, %arg0 : i32, i32
  }
  func.func @transform_4(%arg0: i32) -> (i32, i32) {
    %c0_i32 = arith.constant 0 : i32
    %c0_i32_0 = arith.constant 0 : i32
    return %c0_i32, %arg0 : i32, i32
  }
  func.func @transform_5(%arg0: i32) -> (i32, i32) {
    %c0_i32 = arith.constant 0 : i32
    %c0_i32_0 = arith.constant 0 : i32
    return %c0_i32, %arg0 : i32, i32
  }
  func.func @transform_6(%arg0: i32) -> (i32, i32) {
    %c0_i32 = arith.constant 0 : i32
    %c0_i32_0 = arith.constant 0 : i32
    return %c0_i32, %arg0 : i32, i32
  }
  func.func @transform_7(%arg0: i32) -> (i32, i32) {
    %c0_i32 = arith.constant 0 : i32
    %c0_i32_0 = arith.constant 0 : i32
    %c0_i32_1 = arith.constant 0 : i32
    return %c0_i32, %c0_i32_0 : i32, i32
  }
  func.func @transform_8(%arg0: i32) -> (i32, i32) {
    %c0_i32 = arith.constant 0 : i32
    %c0_i32_0 = arith.constant 0 : i32
    return %c0_i32, %arg0 : i32, i32
  }
}

module attributes {stable_mosaic.version = 11 : i64} {
  func.func @kernel(%arg0: i32, %arg1: memref<4x24x128xbf16, #tpu.memory_space<vmem>>, %arg2: memref<24x128xf32, #tpu.memory_space<vmem>>) attributes {dimension_semantics = [#tpu.dimension_semantics<parallel>], iteration_bounds = array<i64: 1>, scalar_prefetch = 0 : i64, scratch_operands = 0 : i64, tpu.core_type = #tpu.core_type<tc>, window_params = [{transform_indices = @transform_0, window_bounds = array<i64: 4, 24, 128>}, {transform_indices = @transform_1, window_bounds = array<i64: 24, 128>}]} {
    %c0 = arith.constant 0 : index
    %c0_0 = arith.constant 0 : index
    %c0_1 = arith.constant 0 : index
    %0 = vector.load %arg1[%c0, %c0_0, %c0_1] : memref<4x24x128xbf16, #tpu.memory_space<vmem>>, vector<1x24x128xbf16>
    %1 = vector.shape_cast %0 : vector<1x24x128xbf16> to vector<24x128xbf16>
    %c1 = arith.constant 1 : index
    %c0_2 = arith.constant 0 : index
    %c0_3 = arith.constant 0 : index
    %2 = vector.load %arg1[%c1, %c0_2, %c0_3] : memref<4x24x128xbf16, #tpu.memory_space<vmem>>, vector<1x24x128xbf16>
    %3 = vector.shape_cast %2 : vector<1x24x128xbf16> to vector<24x128xbf16>
    %4 = arith.maximumf %1, %3 : vector<24x128xbf16>
    %c2 = arith.constant 2 : index
    %c0_4 = arith.constant 0 : index
    %c0_5 = arith.constant 0 : index
    %5 = vector.load %arg1[%c2, %c0_4, %c0_5] : memref<4x24x128xbf16, #tpu.memory_space<vmem>>, vector<1x24x128xbf16>
    %6 = vector.shape_cast %5 : vector<1x24x128xbf16> to vector<24x128xbf16>
    %7 = arith.maximumf %4, %6 : vector<24x128xbf16>
    %c3 = arith.constant 3 : index
    %c0_6 = arith.constant 0 : index
    %c0_7 = arith.constant 0 : index
    %8 = vector.load %arg1[%c3, %c0_6, %c0_7] : memref<4x24x128xbf16, #tpu.memory_space<vmem>>, vector<1x24x128xbf16>
    %9 = vector.shape_cast %8 : vector<1x24x128xbf16> to vector<24x128xbf16>
    %10 = arith.maximumf %7, %9 : vector<24x128xbf16>
    %11 = arith.extf %10 : vector<24x128xbf16> to vector<24x128xf32>
    %c0_8 = arith.constant 0 : index
    %c0_9 = arith.constant 0 : index
    %12 = vector.load %arg2[%c0_8, %c0_9] : memref<24x128xf32, #tpu.memory_space<vmem>>, vector<24x128xf32>
    tpu.vector_store %arg2[%c0_8, %c0_9], %11 {strides = array<i32>} : memref<24x128xf32, #tpu.memory_space<vmem>>, vector<24x128xf32>,
    return
  }
  func.func @transform_0(%arg0: i32) -> (i32, i32, i32) {
    %c0_i32 = arith.constant 0 : i32
    %c0_i32_0 = arith.constant 0 : i32
    %c0_i32_1 = arith.constant 0 : i32
    return %c0_i32, %c0_i32_0, %arg0 : i32, i32, i32
  }
  func.func @transform_1(%arg0: i32) -> (i32, i32) {
    %c0_i32 = arith.constant 0 : i32
    %c0_i32_0 = arith.constant 0 : i32
    return %c0_i32, %arg0 : i32, i32
  }
}

module attributes {stable_mosaic.version = 11 : i64} {
  func.func @kernel(%arg0: i32, %arg1: memref<32x32xf32, #tpu.memory_space<vmem>>, %arg2: memref<32x32xf32, #tpu.memory_space<vmem>>, %arg3: memref<2x1xf32, #tpu.memory_space<smem>>, %arg4: memref<32x32xf32, #tpu.memory_space<vmem>>) attributes {dimension_semantics = [#tpu.dimension_semantics<parallel>], iteration_bounds = array<i64: 1>, scalar_prefetch = 0 : i64, scratch_operands = 0 : i64, tpu.core_type = #tpu.core_type<tc>, window_params = [{transform_indices = @transform_0, window_bounds = array<i64: 32, 32>}, {transform_indices = @transform_1, window_bounds = array<i64: 32, 32>}, {transform_indices = @transform_2, window_bounds = array<i64: 2, 1>}, {transform_indices = @transform_3, window_bounds = array<i64: 32, 32>}]} {
    %c0 = arith.constant 0 : index
    %c0_0 = arith.constant 0 : index
    %0 = vector.load %arg1[%c0, %c0_0] : memref<32x32xf32, #tpu.memory_space<vmem>>, vector<32x32xf32>
    %c0_1 = arith.constant 0 : index
    %c0_2 = arith.constant 0 : index
    %1 = memref.load %arg3[%c0_1, %c0_2] : memref<2x1xf32, #tpu.memory_space<smem>>
    %2 = vector.broadcast %1 : f32 to vector<32x32xf32>
    %3 = arith.mulf %0, %2 : vector<32x32xf32>
    %c0_3 = arith.constant 0 : index
    %c0_4 = arith.constant 0 : index
    %4 = vector.load %arg2[%c0_3, %c0_4] : memref<32x32xf32, #tpu.memory_space<vmem>>, vector<32x32xf32>
    %c1 = arith.constant 1 : index
    %c0_5 = arith.constant 0 : index
    %5 = memref.load %arg3[%c1, %c0_5] : memref<2x1xf32, #tpu.memory_space<smem>>
    %6 = vector.broadcast %5 : f32 to vector<32x32xf32>
    %7 = arith.mulf %4, %6 : vector<32x32xf32>
    %8 = arith.addf %3, %7 : vector<32x32xf32>
    %c0_6 = arith.constant 0 : index
    %c0_7 = arith.constant 0 : index
    %9 = vector.load %arg4[%c0_6, %c0_7] : memref<32x32xf32, #tpu.memory_space<vmem>>, vector<32x32xf32>
    tpu.vector_store %arg4[%c0_6, %c0_7], %8 {strides = array<i32>} : memref<32x32xf32, #tpu.memory_space<vmem>>, vector<32x32xf32>,
    return
  }
  func.func @transform_0(%arg0: i32) -> (i32, i32) {
    %c0_i32 = arith.constant 0 : i32
    %c0_i32_0 = arith.constant 0 : i32
    return %c0_i32, %arg0 : i32, i32
  }
  func.func @transform_1(%arg0: i32) -> (i32, i32) {
    %c0_i32 = arith.constant 0 : i32
    %c0_i32_0 = arith.constant 0 : i32
    return %c0_i32, %arg0 : i32, i32
  }
  func.func @transform_2(%arg0: i32) -> (i32, i32) {
    %c0_i32 = arith.constant 0 : i32
    %c0_i32_0 = arith.constant 0 : i32
    %c0_i32_1 = arith.constant 0 : i32
    return %c0_i32, %c0_i32_0 : i32, i32
  }
  func.func @transform_3(%arg0: i32) -> (i32, i32) {
    %c0_i32 = arith.constant 0 : i32
    %c0_i32_0 = arith.constant 0 : i32
    return %c0_i32, %arg0 : i32, i32
  }
}

module attributes {stable_mosaic.version = 11 : i64} {
  func.func @kernel(%arg0: i32, %arg1: memref<32x32xf32, #tpu.memory_space<vmem>>, %arg2: memref<32x32xf32, #tpu.memory_space<vmem>>, %arg3: memref<32x32xf32, #tpu.memory_space<vmem>>, %arg4: memref<3x1xf32, #tpu.memory_space<smem>>, %arg5: memref<32x32xf32, #tpu.memory_space<vmem>>) attributes {dimension_semantics = [#tpu.dimension_semantics<parallel>], iteration_bounds = array<i64: 1>, scalar_prefetch = 0 : i64, scratch_operands = 0 : i64, tpu.core_type = #tpu.core_type<tc>, window_params = [{transform_indices = @transform_0, window_bounds = array<i64: 32, 32>}, {transform_indices = @transform_1, window_bounds = array<i64: 32, 32>}, {transform_indices = @transform_2, window_bounds = array<i64: 32, 32>}, {transform_indices = @transform_3, window_bounds = array<i64: 3, 1>}, {transform_indices = @transform_4, window_bounds = array<i64: 32, 32>}]} {
    %c0 = arith.constant 0 : index
    %c0_0 = arith.constant 0 : index
    %0 = vector.load %arg1[%c0, %c0_0] : memref<32x32xf32, #tpu.memory_space<vmem>>, vector<32x32xf32>
    %c0_1 = arith.constant 0 : index
    %c0_2 = arith.constant 0 : index
    %1 = memref.load %arg4[%c0_1, %c0_2] : memref<3x1xf32, #tpu.memory_space<smem>>
    %2 = vector.broadcast %1 : f32 to vector<32x32xf32>
    %3 = arith.mulf %0, %2 : vector<32x32xf32>
    %c0_3 = arith.constant 0 : index
    %c0_4 = arith.constant 0 : index
    %4 = vector.load %arg2[%c0_3, %c0_4] : memref<32x32xf32, #tpu.memory_space<vmem>>, vector<32x32xf32>
    %c1 = arith.constant 1 : index
    %c0_5 = arith.constant 0 : index
    %5 = memref.load %arg4[%c1, %c0_5] : memref<3x1xf32, #tpu.memory_space<smem>>
    %6 = vector.broadcast %5 : f32 to vector<32x32xf32>
    %7 = arith.mulf %4, %6 : vector<32x32xf32>
    %8 = arith.addf %3, %7 : vector<32x32xf32>
    %c0_6 = arith.constant 0 : index
    %c0_7 = arith.constant 0 : index
    %9 = vector.load %arg3[%c0_6, %c0_7] : memref<32x32xf32, #tpu.memory_space<vmem>>, vector<32x32xf32>
    %c2 = arith.constant 2 : index
    %c0_8 = arith.constant 0 : index
    %10 = memref.load %arg4[%c2, %c0_8] : memref<3x1xf32, #tpu.memory_space<smem>>
    %11 = vector.broadcast %10 : f32 to vector<32x32xf32>
    %12 = arith.mulf %9, %11 : vector<32x32xf32>
    %13 = arith.addf %8, %12 : vector<32x32xf32>
    %c0_9 = arith.constant 0 : index
    %c0_10 = arith.constant 0 : index
    %14 = vector.load %arg5[%c0_9, %c0_10] : memref<32x32xf32, #tpu.memory_space<vmem>>, vector<32x32xf32>
    tpu.vector_store %arg5[%c0_9, %c0_10], %13 {strides = array<i32>} : memref<32x32xf32, #tpu.memory_space<vmem>>, vector<32x32xf32>,
    return
  }
  func.func @transform_0(%arg0: i32) -> (i32, i32) {
    %c0_i32 = arith.constant 0 : i32
    %c0_i32_0 = arith.constant 0 : i32
    return %c0_i32, %arg0 : i32, i32
  }
  func.func @transform_1(%arg0: i32) -> (i32, i32) {
    %c0_i32 = arith.constant 0 : i32
    %c0_i32_0 = arith.constant 0 : i32
    return %c0_i32, %arg0 : i32, i32
  }
  func.func @transform_2(%arg0: i32) -> (i32, i32) {
    %c0_i32 = arith.constant 0 : i32
    %c0_i32_0 = arith.constant 0 : i32
    return %c0_i32, %arg0 : i32, i32
  }
  func.func @transform_3(%arg0: i32) -> (i32, i32) {
    %c0_i32 = arith.constant 0 : i32
    %c0_i32_0 = arith.constant 0 : i32
    %c0_i32_1 = arith.constant 0 : i32
    return %c0_i32, %c0_i32_0 : i32, i32
  }
  func.func @transform_4(%arg0: i32) -> (i32, i32) {
    %c0_i32 = arith.constant 0 : i32
    %c0_i32_0 = arith.constant 0 : i32
    return %c0_i32, %arg0 : i32, i32
  }
}

module attributes {stable_mosaic.version = 11 : i64} {
  func.func @_gap_linear_kernel(%arg0: memref<64x32xf32, #tpu.memory_space<vmem>>, %arg1: memref<32x2xf32, #tpu.memory_space<vmem>>, %arg2: memref<10x64xf32, #tpu.memory_space<vmem>>, %arg3: memref<10x1xf32, #tpu.memory_space<vmem>>, %arg4: memref<10x2xf32, #tpu.memory_space<vmem>>) attributes {dimension_semantics = [], scalar_prefetch = 0 : i64, scratch_operands = 0 : i64, tpu.core_type = #tpu.core_type<tc>} {
    %c0 = arith.constant 0 : index
    %c0_0 = arith.constant 0 : index
    %0 = vector.load %arg0[%c0, %c0_0] : memref<64x32xf32, #tpu.memory_space<vmem>>, vector<64x32xf32>
    %c0_1 = arith.constant 0 : index
    %c0_2 = arith.constant 0 : index
    %1 = vector.load %arg1[%c0_1, %c0_2] : memref<32x2xf32, #tpu.memory_space<vmem>>, vector<32x2xf32>
    %cst = arith.constant dense<0.000000e+00> : vector<64x2xf32>
    %2 = tpu.matmul %0, %1, %cst {dimension_numbers = #tpu.dot_dimension_numbers<[1], [0], [0], [1], [0, 0, 1, 1], [], []>} : vector<64x32xf32>, vector<32x2xf32>, vector<64x2xf32> -> vector<64x2xf32>
    %c0_3 = arith.constant 0 : index
    %c0_4 = arith.constant 0 : index
    %3 = vector.load %arg2[%c0_3, %c0_4] : memref<10x64xf32, #tpu.memory_space<vmem>>, vector<10x64xf32>
    %cst_5 = arith.constant dense<0.000000e+00> : vector<10x2xf32>
    %4 = tpu.matmul %3, %2, %cst_5 {dimension_numbers = #tpu.dot_dimension_numbers<[1], [0], [0], [1], [0, 0, 1, 1], [], []>} : vector<10x64xf32>, vector<64x2xf32>, vector<10x2xf32> -> vector<10x2xf32>
    %c0_6 = arith.constant 0 : index
    %c0_7 = arith.constant 0 : index
    %5 = vector.load %arg3[%c0_6, %c0_7] : memref<10x1xf32, #tpu.memory_space<vmem>>, vector<10x1xf32>
    %6 = vector.broadcast %5 : vector<10x1xf32> to vector<10x2xf32>
    %7 = arith.addf %4, %6 : vector<10x2xf32>
    %c0_8 = arith.constant 0 : index
    %c0_9 = arith.constant 0 : index
    %8 = vector.load %arg4[%c0_8, %c0_9] : memref<10x2xf32, #tpu.memory_space<vmem>>, vector<10x2xf32>
    tpu.vector_store %arg4[%c0_8, %c0_9], %7 {strides = array<i32>} : memref<10x2xf32, #tpu.memory_space<vmem>>, vector<10x2xf32>,
    return
  }
}

</mosaic_0001>

<llo_original>
// kernel: forward.212
$region0: #{forward.212}
  #allocation0 [shape = 'u32[]', space=smem, size = 0x4, offset = 0x4, fixed_abs, tag = 'smem constant byte address 0x4 - core index']
  #allocation1 [shape = 'u32[144,128]{1,0:T(1,128)}', space=vmem, size = 0x12000, scoped, tag = 'internal scratch']
  %s0 = inlined_call_operand.vmem [shape: f32[16,1], index: 0, kind: input, shape index: {}]
  %s1 = inlined_call_operand.vmem [shape: f32[16,1], index: 1, kind: input, shape index: {}]
  %s2 = inlined_call_operand.vmem [shape: f32[16,512], index: 2, kind: input, shape index: {}]
  %s3 = inlined_call_operand.vmem [shape: f32[16,512], index: 3, kind: output, shape index: {}]
  %s4 = sld [smem:[#allocation0]]
  $region22: #{forward.212} parent=0
    _
  %s6 = ssub.s32 1, %s4
  %s7 = scalar_select 0, %s6, %s4
  // Predicated region
  $region2: #{forward.212} parent=0 // pred_check
    _
  $region3: #{forward.212} parent=0 // pred_check_branch
    %9 = sbr.rel (0) target = $region5
  $region4: #{forward.212} parent=0 // pred_region
    _
  $region5: #{forward.212} parent=0 // pred_fallthru
    _
  // Predicated region
  $region6: #{forward.212} parent=0 // pred_check
    _
  $region7: #{forward.212} parent=0 // pred_check_branch
    %11 = sbr.rel (0) target = $region9
  $region8: #{forward.212} parent=0 // pred_region
    _
  $region9: #{forward.212} parent=0 // pred_fallthru
    _
  // Predicated region
  $region10: #{forward.212} parent=0 // pred_check
    _
  $region11: #{forward.212} parent=0 // pred_check_branch
    %13 = sbr.rel (0) target = $region13
  $region12: #{forward.212} parent=0 // pred_region
    _
  $region13: #{forward.212} parent=0 // pred_fallthru
    _
  %v14 = vld [vmem:[%s0] sm:$0xff]
  %v15 = vld [vmem:[%s0 + $0x8] sm:$0xff]
  %v16 = vmul.f32 %v14, 0.001953125
  %v17 = vmul.f32 %v15, 0.001953125
  %v18 = vld [vmem:[%s1] sm:$0xff]
  %v19 = vld [vmem:[%s1 + $0x8] sm:$0xff]
  %v20 = vmul.f32 %v18, 0.001953125
  %v21 = vmul.f32 %v19, 0.001953125
  %v22 = vmul.f32 %v16, %v16
  %v23 = vmul.f32 %v17, %v17
  %v24 = vsub.f32 %v20, %v22
  %v25 = vsub.f32 %v21, %v23
  %v26 = vmax.f32 %v24, 0.0
  %v27 = vmax.f32 %v25, 0.0
  %v28 = vld [vmem:[%s2] sm:$0xff]
  %v29 = vld [vmem:[%s2 + $0x8] sm:$0xff]
  %v30 = vld [vmem:[%s2 + $0x10] sm:$0xff]
  %v31 = vld [vmem:[%s2 + $0x18] sm:$0xff]
  %v32 = vld [vmem:[%s2 + $0x20] sm:$0xff]
  %v33 = vld [vmem:[%s2 + $0x28] sm:$0xff]
  %v34 = vld [vmem:[%s2 + $0x30] sm:$0xff]
  %v35 = vld [vmem:[%s2 + $0x38] sm:$0xff]
  %37 = vset.pattern.permute.xlu0 0
  %38 = vperm.xlu0 %37, %v16
  %v39 = vpop.permute.xlu0 %38
  %42 = vset.pattern.permute.xlu0 0
  %43 = vperm.xlu0 %42, %v17
  %v44 = vpop.permute.xlu0 %43
  %v46 = vsub.f32 %v28, %v39
  %v47 = vsub.f32 %v29, %v39
  %v48 = vsub.f32 %v30, %v39
  %v49 = vsub.f32 %v31, %v39
  %v50 = vsub.f32 %v32, %v44
  %v51 = vsub.f32 %v33, %v44
  %v52 = vsub.f32 %v34, %v44
  %v53 = vsub.f32 %v35, %v44
  %v54 = vadd.f32 %v26, 1e-05
  %v55 = vadd.f32 %v27, 1e-05
  %v56 = vrsqrt.pop %v54
  %v57 = vrsqrt.pop %v55
  %59 = vset.pattern.permute.xlu0 0
  %60 = vperm.xlu0 %59, %v56
  %v61 = vpop.permute.xlu0 %60
  %64 = vset.pattern.permute.xlu0 0
  %65 = vperm.xlu0 %64, %v57
  %v66 = vpop.permute.xlu0 %65
  %v68 = vmul.f32 %v46, %v61
  %v69 = vmul.f32 %v47, %v61
  %v70 = vmul.f32 %v48, %v61
  %v71 = vmul.f32 %v49, %v61
  %v72 = vmul.f32 %v50, %v66
  %v73 = vmul.f32 %v51, %v66
  %v74 = vmul.f32 %v52, %v66
  %v75 = vmul.f32 %v53, %v66
  %76 = vst [vmem:[%s3] sm:$0xff] %v68
  %77 = vst [vmem:[%s3 + $0x8] sm:$0xff] %v69
  %78 = vst [vmem:[%s3 + $0x10] sm:$0xff] %v70
  %79 = vst [vmem:[%s3 + $0x18] sm:$0xff] %v71
  %80 = vst [vmem:[%s3 + $0x20] sm:$0xff] %v72
  %81 = vst [vmem:[%s3 + $0x28] sm:$0xff] %v73
  %82 = vst [vmem:[%s3 + $0x30] sm:$0xff] %v74
  %83 = vst [vmem:[%s3 + $0x38] sm:$0xff] %v75
  // Predicated region
  $region14: #{forward.212} parent=0 // pred_check
    _
  $region15: #{forward.212} parent=0 // pred_check_branch
    %85 = sbr.rel (0) target = $region17
  $region16: #{forward.212} parent=0 // pred_region
    _
  $region17: #{forward.212} parent=0 // pred_fallthru
    _
  // Predicated region
  $region18: #{forward.212} parent=0 // pred_check
    _
  $region19: #{forward.212} parent=0 // pred_check_branch
    %87 = sbr.rel (0) target = $region21
  $region20: #{forward.212} parent=0 // pred_region
    _
  $region21: #{forward.212} parent=0 // pred_fallthru
    _

// kernel: forward.210
$region0: #{forward.210}
  #allocation0 [shape = 'u32[]', space=smem, size = 0x4, offset = 0x4, fixed_abs, tag = 'smem constant byte address 0x4 - core index']
  #allocation1 [shape = 'u32[144,128]{1,0:T(1,128)}', space=vmem, size = 0x12000, scoped, tag = 'internal scratch']
  %s0 = inlined_call_operand.vmem [shape: f32[24,1], index: 0, kind: input, shape index: {}]
  %s1 = inlined_call_operand.vmem [shape: f32[24,1], index: 1, kind: input, shape index: {}]
  %s2 = inlined_call_operand.vmem [shape: f32[24,512], index: 2, kind: input, shape index: {}]
  %s3 = inlined_call_operand.vmem [shape: f32[24,512], index: 3, kind: output, shape index: {}]
  %s4 = sld [smem:[#allocation0]]
  $region22: #{forward.210} parent=0
    _
  %s6 = ssub.s32 1, %s4
  %s7 = scalar_select 0, %s6, %s4
  // Predicated region
  $region2: #{forward.210} parent=0 // pred_check
    _
  $region3: #{forward.210} parent=0 // pred_check_branch
    %9 = sbr.rel (0) target = $region5
  $region4: #{forward.210} parent=0 // pred_region
    _
  $region5: #{forward.210} parent=0 // pred_fallthru
    _
  // Predicated region
  $region6: #{forward.210} parent=0 // pred_check
    _
  $region7: #{forward.210} parent=0 // pred_check_branch
    %11 = sbr.rel (0) target = $region9
  $region8: #{forward.210} parent=0 // pred_region
    _
  $region9: #{forward.210} parent=0 // pred_fallthru
    _
  // Predicated region
  $region10: #{forward.210} parent=0 // pred_check
    _
  $region11: #{forward.210} parent=0 // pred_check_branch
    %13 = sbr.rel (0) target = $region13
  $region12: #{forward.210} parent=0 // pred_region
    _
  $region13: #{forward.210} parent=0 // pred_fallthru
    _
  %v14 = vld [vmem:[%s0] sm:$0xff]
  %v15 = vld [vmem:[%s0 + $0x8] sm:$0xff]
  %v16 = vld [vmem:[%s0 + $0x10] sm:$0xff]
  %v17 = vmul.f32 %v14, 0.001953125
  %v18 = vmul.f32 %v15, 0.001953125
  %v19 = vmul.f32 %v16, 0.001953125
  %v20 = vld [vmem:[%s1] sm:$0xff]
  %v21 = vld [vmem:[%s1 + $0x8] sm:$0xff]
  %v22 = vld [vmem:[%s1 + $0x10] sm:$0xff]
  %v23 = vmul.f32 %v20, 0.001953125
  %v24 = vmul.f32 %v21, 0.001953125
  %v25 = vmul.f32 %v22, 0.001953125
  %v26 = vmul.f32 %v17, %v17
  %v27 = vmul.f32 %v18, %v18
  %v28 = vmul.f32 %v19, %v19
  %v29 = vsub.f32 %v23, %v26
  %v30 = vsub.f32 %v24, %v27
  %v31 = vsub.f32 %v25, %v28
  %v32 = vmax.f32 %v29, 0.0
  %v33 = vmax.f32 %v30, 0.0
  %v34 = vmax.f32 %v31, 0.0
  %v35 = vld [vmem:[%s2] sm:$0xff]
  %v36 = vld [vmem:[%s2 + $0x8] sm:$0xff]
  %v37 = vld [vmem:[%s2 + $0x10] sm:$0xff]
  %v38 = vld [vmem:[%s2 + $0x18] sm:$0xff]
  %v39 = vld [vmem:[%s2 + $0x20] sm:$0xff]
  %v40 = vld [vmem:[%s2 + $0x28] sm:$0xff]
  %v41 = vld [vmem:[%s2 + $0x30] sm:$0xff]
  %v42 = vld [vmem:[%s2 + $0x38] sm:$0xff]
  %v43 = vld [vmem:[%s2 + $0x40] sm:$0xff]
  %v44 = vld [vmem:[%s2 + $0x48] sm:$0xff]
  %v45 = vld [vmem:[%s2 + $0x50] sm:$0xff]
  %v46 = vld [vmem:[%s2 + $0x58] sm:$0xff]
  %48 = vset.pattern.permute.xlu0 0
  %49 = vperm.xlu0 %48, %v17
  %v50 = vpop.permute.xlu0 %49
  %53 = vset.pattern.permute.xlu0 0
  %54 = vperm.xlu0 %53, %v18
  %v55 = vpop.permute.xlu0 %54
  %58 = vset.pattern.permute.xlu0 0
  %59 = vperm.xlu0 %58, %v19
  %v60 = vpop.permute.xlu0 %59
  %v62 = vsub.f32 %v35, %v50
  %v63 = vsub.f32 %v36, %v50
  %v64 = vsub.f32 %v37, %v50
  %v65 = vsub.f32 %v38, %v50
  %v66 = vsub.f32 %v39, %v55
  %v67 = vsub.f32 %v40, %v55
  %v68 = vsub.f32 %v41, %v55
  %v69 = vsub.f32 %v42, %v55
  %v70 = vsub.f32 %v43, %v60
  %v71 = vsub.f32 %v44, %v60
  %v72 = vsub.f32 %v45, %v60
  %v73 = vsub.f32 %v46, %v60
  %v74 = vadd.f32 %v32, 1e-05
  %v75 = vadd.f32 %v33, 1e-05
  %v76 = vadd.f32 %v34, 1e-05
  %v77 = vrsqrt.pop %v74
  %v78 = vrsqrt.pop %v75
  %v79 = vrsqrt.pop %v76
  %81 = vset.pattern.permute.xlu0 0
  %82 = vperm.xlu0 %81, %v77
  %v83 = vpop.permute.xlu0 %82
  %86 = vset.pattern.permute.xlu0 0
  %87 = vperm.xlu0 %86, %v78
  %v88 = vpop.permute.xlu0 %87
  %91 = vset.pattern.permute.xlu0 0
  %92 = vperm.xlu0 %91, %v79
  %v93 = vpop.permute.xlu0 %92
  %v95 = vmul.f32 %v62, %v83
  %v96 = vmul.f32 %v63, %v83
  %v97 = vmul.f32 %v64, %v83
  %v98 = vmul.f32 %v65, %v83
  %v99 = vmul.f32 %v66, %v88
  %v100 = vmul.f32 %v67, %v88
  %v101 = vmul.f32 %v68, %v88
  %v102 = vmul.f32 %v69, %v88
  %v103 = vmul.f32 %v70, %v93
  %v104 = vmul.f32 %v71, %v93
  %v105 = vmul.f32 %v72, %v93
  %v106 = vmul.f32 %v73, %v93
  %107 = vst [vmem:[%s3] sm:$0xff] %v95
  %108 = vst [vmem:[%s3 + $0x8] sm:$0xff] %v96
  %109 = vst [vmem:[%s3 + $0x10] sm:$0xff] %v97
  %110 = vst [vmem:[%s3 + $0x18] sm:$0xff] %v98
  %111 = vst [vmem:[%s3 + $0x20] sm:$0xff] %v99
  %112 = vst [vmem:[%s3 + $0x28] sm:$0xff] %v100
  %113 = vst [vmem:[%s3 + $0x30] sm:$0xff] %v101
  %114 = vst [vmem:[%s3 + $0x38] sm:$0xff] %v102
  %115 = vst [vmem:[%s3 + $0x40] sm:$0xff] %v103
  %116 = vst [vmem:[%s3 + $0x48] sm:$0xff] %v104
  %117 = vst [vmem:[%s3 + $0x50] sm:$0xff] %v105
  %118 = vst [vmem:[%s3 + $0x58] sm:$0xff] %v106
  // Predicated region
  $region14: #{forward.210} parent=0 // pred_check
    _
  $region15: #{forward.210} parent=0 // pred_check_branch
    %120 = sbr.rel (0) target = $region17
  $region16: #{forward.210} parent=0 // pred_region
    _
  $region17: #{forward.210} parent=0 // pred_fallthru
    _
  // Predicated region
  $region18: #{forward.210} parent=0 // pred_check
    _
  $region19: #{forward.210} parent=0 // pred_check_branch
    %122 = sbr.rel (0) target = $region21
  $region20: #{forward.210} parent=0 // pred_region
    _
  $region21: #{forward.210} parent=0 // pred_fallthru
    _

// kernel: forward.209
$region0: #{forward.209}
  #allocation0 [shape = 'u32[]', space=smem, size = 0x4, offset = 0x4, fixed_abs, tag = 'smem constant byte address 0x4 - core index']
  #allocation1 [shape = 'u32[144,128]{1,0:T(1,128)}', space=vmem, size = 0x12000, scoped, tag = 'internal scratch']
  %s0 = inlined_call_operand.vmem [shape: bf16[24,27], index: 0, kind: input, shape index: {}]
  %s1 = inlined_call_operand.vmem [shape: bf16[27,512], index: 1, kind: input, shape index: {}]
  %s2 = inlined_call_operand.vmem [shape: f32[24,512], index: 2, kind: output, shape index: {0}]
  %s3 = inlined_call_operand.vmem [shape: f32[24,1], index: 3, kind: output, shape index: {1}]
  %s4 = inlined_call_operand.vmem [shape: f32[24,1], index: 4, kind: output, shape index: {2}]
  %5 = xla_tuple %s2, %s3, %s4
  %s6 = sld [smem:[#allocation0]]
  $region38: #{forward.209} parent=0
    _
  %s8 = ssub.s32 1, %s6
  %s9 = scalar_select 0, %s8, %s6
  // Predicated region
  $region2: #{forward.209} parent=0 // pred_check
    _
  $region3: #{forward.209} parent=0 // pred_check_branch
    %11 = sbr.rel (0) target = $region5
  $region4: #{forward.209} parent=0 // pred_region
    _
  $region5: #{forward.209} parent=0 // pred_fallthru
    _
  // Predicated region
  $region6: #{forward.209} parent=0 // pred_check
    _
  $region7: #{forward.209} parent=0 // pred_check_branch
    %13 = sbr.rel (0) target = $region9
  $region8: #{forward.209} parent=0 // pred_region
    _
  $region9: #{forward.209} parent=0 // pred_fallthru
    _
  %v15 = vld [vmem:[%s1] sm:$0xff]
  %v16 = vld [vmem:[%s1 + $0x8] sm:$0xff]
  %v17 = vld [vmem:[%s1 + $0x10] sm:$0xff]
  %v18 = vld [vmem:[%s1 + $0x18] sm:$0xff]
  %v19 = vld [vmem:[%s1 + $0x20] sm:$0xff]
  %v20 = vld [vmem:[%s1 + $0x28] sm:$0xff]
  %v21 = vld [vmem:[%s1 + $0x30] sm:$0x33]
  %v22 = vld [vmem:[%s1 + $0x38] sm:$0x33]
  %v23 = vld [vmem:[%s0] sm:$0xf]
  %v24 = vld [vmem:[%s0 + $0x4] sm:$0xf]
  %v25 = vld [vmem:[%s0 + $0x8] sm:$0xf]
  %v29 = vunpack.c.l.b16 %v23
  %v30 = vunpack.c.l.b16 %v24
  %v31 = vunpack.c.l.b16 %v25
  %v32 = vpack.c.b16 %v30, %v29
  %v33 = vpack.c.b16 %v31, %v31
  %v42 = vunpack.c.l.b16 %v15
  %v43 = vunpack.c.h.b16 %v15
  %v44 = vunpack.c.l.b16 %v16
  %v45 = vunpack.c.h.b16 %v16
  %v46 = vunpack.c.l.b16 %v17
  %v47 = vunpack.c.h.b16 %v17
  %v48 = vunpack.c.l.b16 %v18
  %v49 = vunpack.c.h.b16 %v18
  %v50 = vunpack.c.l.b16 %v19
  %v51 = vunpack.c.h.b16 %v19
  %v52 = vunpack.c.l.b16 %v20
  %v53 = vunpack.c.h.b16 %v20
  %v54 = vunpack.c.l.b16 %v21
  %v55 = vunpack.c.h.b16 %v21
  %v56 = vunpack.c.l.b16 %v22
  %v57 = vunpack.c.h.b16 %v22
  %v58 = vpack.c.b16 %v46, %v42
  %v59 = vpack.c.b16 %v47, %v43
  %v60 = vpack.c.b16 %v48, %v44
  %v61 = vpack.c.b16 %v49, %v45
  %v62 = vpack.c.b16 %v54, %v50
  %v63 = vpack.c.b16 %v55, %v51
  %v64 = vpack.c.b16 %v56, %v52
  %v65 = vpack.c.b16 %v57, %v53
  %vm70 = vcmask 220160
  %v72 = vsel %vm70, %v32, 0
  %v75 = vsel %vm70, %v33, 0
  %vm77 = vcmask 1044480
  %vm78 = vcmask 1045504
  %v79 = vsel %vm77, 4294967295, 65535
  %v80 = vsel %vm78, %v79, 0
  %v82 = vand.u32 %v62, %v80
  %v85 = vand.u32 %v63, %v80
  %v88 = vand.u32 %v64, %v80
  %v91 = vand.u32 %v65, %v80
  %93 = vmatprep.subr.bf16.mxu0 0
  %94 = vmatpush1.bf16.msra.mxu0 0
  %95 = vmatprep.subr.bf16.mxu0 0
  %96 = vmatpush1.bf16.msra.mxu0 0
  %97 = vmatprep.subr.bf16.mxu0 0
  %98 = vmatpush1.bf16.msra.mxu0 0
  %99 = vmatprep.subr.bf16.mxu0 0
  %100 = vmatpush1.bf16.msra.mxu0 0
  %101 = vmatprep.subr.bf16.mxu0 0
  %102 = vmatpush1.bf16.msra.mxu0 0
  %103 = vmatprep.subr.bf16.mxu0 0
  %104 = vmatpush1.bf16.msra.mxu0 0
  %105 = vmatprep.subr.bf16.mxu0 %v85
  %106 = vmatpush1.bf16.msra.mxu0 %v82
  %107 = vmatprep.subr.bf16.mxu0 %v59
  %108 = vmatpush1.bf16.msra.mxu0 %v58
  %109 = vmatprep.subr.bf16.mxu0 0
  %110 = vmatpush2.bf16.msra.mxu0 0
  %111 = vmatprep.subr.bf16.mxu0 0
  %112 = vmatpush2.bf16.msra.mxu0 0
  %113 = vmatprep.subr.bf16.mxu0 0
  %114 = vmatpush2.bf16.msra.mxu0 0
  %115 = vmatprep.subr.bf16.mxu0 0
  %116 = vmatpush2.bf16.msra.mxu0 0
  %117 = vmatprep.subr.bf16.mxu0 0
  %118 = vmatpush2.bf16.msra.mxu0 0
  %119 = vmatprep.subr.bf16.mxu0 0
  %120 = vmatpush2.bf16.msra.mxu0 0
  %121 = vmatprep.subr.bf16.mxu0 0
  %122 = vmatpush2.bf16.msra.mxu0 0
  %123 = vmatprep.subr.bf16.mxu0 0
  %124 = vmatpush2.bf16.msra.mxu0 0
  %125 = vmatprep.mubr.bf16.mxu0 0
  %126 = vmatmul.mubr.bf16.gmra.mxu0 %v72
  %v127 = vpop.f32.mrf.mxu0
  %v128 = vadd.f32 0.0, %v127
  %v129 = vpop.f32.mrf.mxu0
  %v130 = vadd.f32 0.0, %v129
  %v131 = vpop.f32.mrf.mxu0
  %v132 = vadd.f32 0.0, %v131
  %v133 = vpop.f32.mrf.mxu0
  %v134 = vadd.f32 0.0, %v133
  %135 = vmatprep.mubr.bf16.mxu0 0
  %136 = vmatmul.mubr.bf16.gmra.mxu0 %v75
  %v137 = vpop.f32.mrf.mxu0
  %v138 = vadd.f32 0.0, %v137
  %v139 = vpop.f32.mrf.mxu0
  %v140 = vadd.f32 0.0, %v139
  %v141 = vpop.f32.mrf.mxu0
  %v142 = vpop.f32.mrf.mxu0
  %143 = vdwg.mxu0
  %144 = vmatprep.subr.bf16.mxu0 0
  %145 = vmatpush1.bf16.msra.mxu0 0
  %146 = vmatprep.subr.bf16.mxu0 0
  %147 = vmatpush1.bf16.msra.mxu0 0
  %148 = vmatprep.subr.bf16.mxu0 0
  %149 = vmatpush1.bf16.msra.mxu0 0
  %150 = vmatprep.subr.bf16.mxu0 0
  %151 = vmatpush1.bf16.msra.mxu0 0
  %152 = vmatprep.subr.bf16.mxu0 0
  %153 = vmatpush1.bf16.msra.mxu0 0
  %154 = vmatprep.subr.bf16.mxu0 0
  %155 = vmatpush1.bf16.msra.mxu0 0
  %156 = vmatprep.subr.bf16.mxu0 %v91
  %157 = vmatpush1.bf16.msra.mxu0 %v88
  %158 = vmatprep.subr.bf16.mxu0 %v61
  %159 = vmatpush1.bf16.msra.mxu0 %v60
  %160 = vmatprep.subr.bf16.mxu0 0
  %161 = vmatpush2.bf16.msra.mxu0 0
  %162 = vmatprep.subr.bf16.mxu0 0
  %163 = vmatpush2.bf16.msra.mxu0 0
  %164 = vmatprep.subr.bf16.mxu0 0
  %165 = vmatpush2.bf16.msra.mxu0 0
  %166 = vmatprep.subr.bf16.mxu0 0
  %167 = vmatpush2.bf16.msra.mxu0 0
  %168 = vmatprep.subr.bf16.mxu0 0
  %169 = vmatpush2.bf16.msra.mxu0 0
  %170 = vmatprep.subr.bf16.mxu0 0
  %171 = vmatpush2.bf16.msra.mxu0 0
  %172 = vmatprep.subr.bf16.mxu0 0
  %173 = vmatpush2.bf16.msra.mxu0 0
  %174 = vmatprep.subr.bf16.mxu0 0
  %175 = vmatpush2.bf16.msra.mxu0 0
  %176 = vmatprep.mubr.bf16.mxu0 0
  %177 = vmatmul.mubr.bf16.gmra.mxu0 %v72
  %v178 = vpop.f32.mrf.mxu0
  %v179 = vadd.f32 0.0, %v178
  %v180 = vpop.f32.mrf.mxu0
  %v181 = vadd.f32 0.0, %v180
  %v182 = vpop.f32.mrf.mxu0
  %v183 = vadd.f32 0.0, %v182
  %v184 = vpop.f32.mrf.mxu0
  %v185 = vadd.f32 0.0, %v184
  %186 = vmatprep.mubr.bf16.mxu0 0
  %187 = vmatmul.mubr.bf16.gmra.mxu0 %v75
  %v188 = vpop.f32.mrf.mxu0
  %v189 = vadd.f32 0.0, %v188
  %v190 = vpop.f32.mrf.mxu0
  %v191 = vadd.f32 0.0, %v190
  %v192 = vpop.f32.mrf.mxu0
  %v193 = vpop.f32.mrf.mxu0
  %194 = vdwg.mxu0
  %195 = vst [vmem:[%s2] sm:$0xff] %v128
  %196 = vst [vmem:[%s2 + $0x8] sm:$0xff] %v130
  %197 = vst [vmem:[%s2 + $0x10] sm:$0xff] %v179
  %198 = vst [vmem:[%s2 + $0x18] sm:$0xff] %v181
  %199 = vst [vmem:[%s2 + $0x20] sm:$0xff] %v132
  %200 = vst [vmem:[%s2 + $0x28] sm:$0xff] %v134
  %201 = vst [vmem:[%s2 + $0x30] sm:$0xff] %v183
  %202 = vst [vmem:[%s2 + $0x38] sm:$0xff] %v185
  %203 = vst [vmem:[%s2 + $0x40] sm:$0xff] %v138
  %204 = vst [vmem:[%s2 + $0x48] sm:$0xff] %v140
  %205 = vst [vmem:[%s2 + $0x50] sm:$0xff] %v189
  %206 = vst [vmem:[%s2 + $0x58] sm:$0xff] %v191
  %p207 = scmp.eq.s32.totalorder 0, 0
  // Predicated region
  $region10: #{forward.209} parent=0 // pred_check
    %p208 = pneg %p207
  $region11: #{forward.209} parent=0 // pred_check_branch
    %210 = sbr.rel (%p208) target = $region13
  $region12: #{forward.209} parent=0 // pred_region
    %vm211 = vcmask 7168
    %212 = vst.msk [vmem:[%s3] sm:$0xff] %vm211, 0.0
    %213 = vst.msk [vmem:[%s3 + $0x8] sm:$0xff] %vm211, 0.0
    %214 = vst.msk [vmem:[%s3 + $0x10] sm:$0xff] %vm211, 0.0
    %215 = vst.msk [vmem:[%s4] sm:$0xff] %vm211, 0.0
    %216 = vst.msk [vmem:[%s4 + $0x8] sm:$0xff] %vm211, 0.0
    %217 = vst.msk [vmem:[%s4 + $0x10] sm:$0xff] %vm211, 0.0
  $region13: #{forward.209} parent=0 // pred_fallthru
    _
  %v218 = vld [vmem:[%s3] sm:$0xff]
  %v219 = vld [vmem:[%s3 + $0x8] sm:$0xff]
  %v220 = vld [vmem:[%s3 + $0x10] sm:$0xff]
  %v221 = vadd.f32 %v128, %v130
  %v222 = vadd.f32 %v221, %v179
  %v223 = vadd.f32 %v222, %v181
  %224 = vadd.xlane.f32.xlu0 %v223
  %v225 = vpop.xlane.xlu0 %224
  %v226 = vadd.f32 %v132, %v134
  %v227 = vadd.f32 %v226, %v183
  %v228 = vadd.f32 %v227, %v185
  %229 = vadd.xlane.f32.xlu0 %v228
  %v230 = vpop.xlane.xlu0 %229
  %v231 = vadd.f32 %v138, %v140
  %v232 = vadd.f32 %v231, %v189
  %v233 = vadd.f32 %v232, %v191
  %234 = vadd.xlane.f32.xlu0 %v233
  %v235 = vpop.xlane.xlu0 %234
  %v236 = vadd.f32 %v218, %v225
  %v237 = vadd.f32 %v219, %v230
  %v238 = vadd.f32 %v220, %v235
  %vm239 = vcmask 7168
  %240 = vst.msk [vmem:[%s3] sm:$0xff] %vm239, %v236
  %241 = vst.msk [vmem:[%s3 + $0x8] sm:$0xff] %vm239, %v237
  %242 = vst.msk [vmem:[%s3 + $0x10] sm:$0xff] %vm239, %v238
  %v243 = vld [vmem:[%s4] sm:$0xff]
  %v244 = vld [vmem:[%s4 + $0x8] sm:$0xff]
  %v245 = vld [vmem:[%s4 + $0x10] sm:$0xff]
  %v246 = vmul.f32 %v128, %v128
  %v247 = vmul.f32 %v130, %v130
  %v248 = vmul.f32 %v179, %v179
  %v249 = vmul.f32 %v181, %v181
  %v250 = vmul.f32 %v132, %v132
  %v251 = vmul.f32 %v134, %v134
  %v252 = vmul.f32 %v183, %v183
  %v253 = vmul.f32 %v185, %v185
  %v254 = vmul.f32 %v138, %v138
  %v255 = vmul.f32 %v140, %v140
  %v256 = vmul.f32 %v189, %v189
  %v257 = vmul.f32 %v191, %v191
  %v258 = vadd.f32 %v246, %v247
  %v259 = vadd.f32 %v258, %v248
  %v260 = vadd.f32 %v259, %v249
  %261 = vadd.xlane.f32.xlu0 %v260
  %v262 = vpop.xlane.xlu0 %261
  %v263 = vadd.f32 %v250, %v251
  %v264 = vadd.f32 %v263, %v252
  %v265 = vadd.f32 %v264, %v253
  %266 = vadd.xlane.f32.xlu0 %v265
  %v267 = vpop.xlane.xlu0 %266
  %v268 = vadd.f32 %v254, %v255
  %v269 = vadd.f32 %v268, %v256
  %v270 = vadd.f32 %v269, %v257
  %271 = vadd.xlane.f32.xlu0 %v270
  %v272 = vpop.xlane.xlu0 %271
  %v273 = vadd.f32 %v243, %v262
  %v274 = vadd.f32 %v244, %v267
  %v275 = vadd.f32 %v245, %v272
  %276 = vst.msk [vmem:[%s4] sm:$0xff] %vm239, %v273
  %277 = vst.msk [vmem:[%s4 + $0x8] sm:$0xff] %vm239, %v274
  %278 = vst.msk [vmem:[%s4 + $0x10] sm:$0xff] %vm239, %v275
  // Predicated region
  $region14: #{forward.209} parent=0 // pred_check
    _
  $region15: #{forward.209} parent=0 // pred_check_branch
    %280 = sbr.rel (0) target = $region17
  $region16: #{forward.209} parent=0 // pred_region
    _
  $region17: #{forward.209} parent=0 // pred_fallthru
    _
  // Predicated region
  $region18: #{forward.209} parent=0 // pred_check
    _
  $region19: #{forward.209} parent=0 // pred_check_branch
    %282 = sbr.rel (0) target = $region21
  $region20: #{forward.209} parent=0 // pred_region
    _
  $region21: #{forward.209} parent=0 // pred_fallthru
    _
  // Predicated region
  $region22: #{forward.209} parent=0 // pred_check
    _
  $region23: #{forward.209} parent=0 // pred_check_branch
    %284 = sbr.rel (0) target = $region25
  $region24: #{forward.209} parent=0 // pred_region
    _
  $region25: #{forward.209} parent=0 // pred_fallthru
    _
  // Predicated region
  $region26: #{forward.209} parent=0 // pred_check
    _
  $region27: #{forward.209} parent=0 // pred_check_branch
    %286 = sbr.rel (0) target = $region29
  $region28: #{forward.209} parent=0 // pred_region
    _
  $region29: #{forward.209} parent=0 // pred_fallthru
    _
  // Predicated region
  $region30: #{forward.209} parent=0 // pred_check
    _
  $region31: #{forward.209} parent=0 // pred_check_branch
    %288 = sbr.rel (0) target = $region33
  $region32: #{forward.209} parent=0 // pred_region
    _
  $region33: #{forward.209} parent=0 // pred_fallthru
    _
  // Predicated region
  $region34: #{forward.209} parent=0 // pred_check
    _
  $region35: #{forward.209} parent=0 // pred_check_branch
    %290 = sbr.rel (0) target = $region37
  $region36: #{forward.209} parent=0 // pred_region
    _
  $region37: #{forward.209} parent=0 // pred_fallthru
    _

// kernel: forward.211
$region0: #{forward.211}
  #allocation0 [shape = 'u32[]', space=smem, size = 0x4, offset = 0x4, fixed_abs, tag = 'smem constant byte address 0x4 - core index']
  #allocation1 [shape = 'u32[144,128]{1,0:T(1,128)}', space=vmem, size = 0x12000, scoped, tag = 'internal scratch']
  %s0 = inlined_call_operand.vmem [shape: bf16[16,24], index: 0, kind: input, shape index: {}]
  %s1 = inlined_call_operand.vmem [shape: f32[24,512], index: 1, kind: input, shape index: {}]
  %s2 = inlined_call_operand.vmem [shape: f32[16,512], index: 2, kind: output, shape index: {0}]
  %s3 = inlined_call_operand.vmem [shape: f32[16,1], index: 3, kind: output, shape index: {1}]
  %s4 = inlined_call_operand.vmem [shape: f32[16,1], index: 4, kind: output, shape index: {2}]
  %5 = xla_tuple %s2, %s3, %s4
  %s6 = sld [smem:[#allocation0]]
  $region38: #{forward.211} parent=0
    _
  %s8 = ssub.s32 1, %s6
  %s9 = scalar_select 0, %s8, %s6
  // Predicated region
  $region2: #{forward.211} parent=0 // pred_check
    _
  $region3: #{forward.211} parent=0 // pred_check_branch
    %11 = sbr.rel (0) target = $region5
  $region4: #{forward.211} parent=0 // pred_region
    _
  $region5: #{forward.211} parent=0 // pred_fallthru
    _
  // Predicated region
  $region6: #{forward.211} parent=0 // pred_check
    _
  $region7: #{forward.211} parent=0 // pred_check_branch
    %13 = sbr.rel (0) target = $region9
  $region8: #{forward.211} parent=0 // pred_region
    _
  $region9: #{forward.211} parent=0 // pred_fallthru
    _
  %v15 = vld [vmem:[%s1] sm:$0xff]
  %v16 = vld [vmem:[%s1 + $0x8] sm:$0xff]
  %v17 = vld [vmem:[%s1 + $0x10] sm:$0xff]
  %v18 = vld [vmem:[%s1 + $0x18] sm:$0xff]
  %v19 = vld [vmem:[%s1 + $0x20] sm:$0xff]
  %v20 = vld [vmem:[%s1 + $0x28] sm:$0xff]
  %v21 = vld [vmem:[%s1 + $0x30] sm:$0xff]
  %v22 = vld [vmem:[%s1 + $0x38] sm:$0xff]
  %v23 = vld [vmem:[%s1 + $0x40] sm:$0xff]
  %v24 = vld [vmem:[%s1 + $0x48] sm:$0xff]
  %v25 = vld [vmem:[%s1 + $0x50] sm:$0xff]
  %v26 = vld [vmem:[%s1 + $0x58] sm:$0xff]
  %v27 = vmax.f32 %v15, 0.0
  %v28 = vmax.f32 %v16, 0.0
  %v29 = vmax.f32 %v17, 0.0
  %v30 = vmax.f32 %v18, 0.0
  %v31 = vmax.f32 %v19, 0.0
  %v32 = vmax.f32 %v20, 0.0
  %v33 = vmax.f32 %v21, 0.0
  %v34 = vmax.f32 %v22, 0.0
  %v35 = vmax.f32 %v23, 0.0
  %v36 = vmax.f32 %v24, 0.0
  %v37 = vmax.f32 %v25, 0.0
  %v38 = vmax.f32 %v26, 0.0
  %v39 = vld [vmem:[%s0] sm:$0xf]
  %v40 = vld [vmem:[%s0 + $0x4] sm:$0xf]
  %v41 = vpack.c.bf16 %v31, %v27
  %v42 = vpack.c.bf16 %v32, %v28
  %v43 = vpack.c.bf16 %v33, %v29
  %v44 = vpack.c.bf16 %v34, %v30
  %v45 = vpack.c.bf16 %v35, %v35
  %v46 = vpack.c.bf16 %v36, %v36
  %v47 = vpack.c.bf16 %v37, %v37
  %v48 = vpack.c.bf16 %v38, %v38
  %v51 = vunpack.c.l.b16 %v39
  %v52 = vunpack.c.l.b16 %v40
  %v53 = vpack.c.b16 %v52, %v51
  %vm54 = vcmask 195584
  %v56 = vsel %vm54, %v53, 0
  %vm58 = vcmask 1043456
  %v60 = vsel %vm58, %v45, 0
  %v63 = vsel %vm58, %v46, 0
  %v66 = vsel %vm58, %v47, 0
  %v69 = vsel %vm58, %v48, 0
  %71 = vmatprep.subr.bf16.mxu0 0
  %72 = vmatpush1.bf16.msra.mxu0 0
  %73 = vmatprep.subr.bf16.mxu0 0
  %74 = vmatpush1.bf16.msra.mxu0 0
  %75 = vmatprep.subr.bf16.mxu0 0
  %76 = vmatpush1.bf16.msra.mxu0 0
  %77 = vmatprep.subr.bf16.mxu0 0
  %78 = vmatpush1.bf16.msra.mxu0 0
  %79 = vmatprep.subr.bf16.mxu0 0
  %80 = vmatpush1.bf16.msra.mxu0 0
  %81 = vmatprep.subr.bf16.mxu0 0
  %82 = vmatpush1.bf16.msra.mxu0 0
  %83 = vmatprep.subr.bf16.mxu0 %v63
  %84 = vmatpush1.bf16.msra.mxu0 %v60
  %85 = vmatprep.subr.bf16.mxu0 %v42
  %86 = vmatpush1.bf16.msra.mxu0 %v41
  %87 = vmatprep.subr.bf16.mxu0 0
  %88 = vmatpush2.bf16.msra.mxu0 0
  %89 = vmatprep.subr.bf16.mxu0 0
  %90 = vmatpush2.bf16.msra.mxu0 0
  %91 = vmatprep.subr.bf16.mxu0 0
  %92 = vmatpush2.bf16.msra.mxu0 0
  %93 = vmatprep.subr.bf16.mxu0 0
  %94 = vmatpush2.bf16.msra.mxu0 0
  %95 = vmatprep.subr.bf16.mxu0 0
  %96 = vmatpush2.bf16.msra.mxu0 0
  %97 = vmatprep.subr.bf16.mxu0 0
  %98 = vmatpush2.bf16.msra.mxu0 0
  %99 = vmatprep.subr.bf16.mxu0 0
  %100 = vmatpush2.bf16.msra.mxu0 0
  %101 = vmatprep.subr.bf16.mxu0 0
  %102 = vmatpush2.bf16.msra.mxu0 0
  %103 = vmatprep.mubr.bf16.mxu0 0
  %104 = vmatmul.mubr.bf16.gmra.mxu0 %v56
  %v105 = vpop.f32.mrf.mxu0
  %v106 = vadd.f32 0.0, %v105
  %v107 = vpop.f32.mrf.mxu0
  %v108 = vadd.f32 0.0, %v107
  %v109 = vpop.f32.mrf.mxu0
  %v110 = vadd.f32 0.0, %v109
  %v111 = vpop.f32.mrf.mxu0
  %v112 = vadd.f32 0.0, %v111
  %113 = vdwg.mxu0
  %114 = vmatprep.subr.bf16.mxu0 0
  %115 = vmatpush1.bf16.msra.mxu0 0
  %116 = vmatprep.subr.bf16.mxu0 0
  %117 = vmatpush1.bf16.msra.mxu0 0
  %118 = vmatprep.subr.bf16.mxu0 0
  %119 = vmatpush1.bf16.msra.mxu0 0
  %120 = vmatprep.subr.bf16.mxu0 0
  %121 = vmatpush1.bf16.msra.mxu0 0
  %122 = vmatprep.subr.bf16.mxu0 0
  %123 = vmatpush1.bf16.msra.mxu0 0
  %124 = vmatprep.subr.bf16.mxu0 0
  %125 = vmatpush1.bf16.msra.mxu0 0
  %126 = vmatprep.subr.bf16.mxu0 %v69
  %127 = vmatpush1.bf16.msra.mxu0 %v66
  %128 = vmatprep.subr.bf16.mxu0 %v44
  %129 = vmatpush1.bf16.msra.mxu0 %v43
  %130 = vmatprep.subr.bf16.mxu0 0
  %131 = vmatpush2.bf16.msra.mxu0 0
  %132 = vmatprep.subr.bf16.mxu0 0
  %133 = vmatpush2.bf16.msra.mxu0 0
  %134 = vmatprep.subr.bf16.mxu0 0
  %135 = vmatpush2.bf16.msra.mxu0 0
  %136 = vmatprep.subr.bf16.mxu0 0
  %137 = vmatpush2.bf16.msra.mxu0 0
  %138 = vmatprep.subr.bf16.mxu0 0
  %139 = vmatpush2.bf16.msra.mxu0 0
  %140 = vmatprep.subr.bf16.mxu0 0
  %141 = vmatpush2.bf16.msra.mxu0 0
  %142 = vmatprep.subr.bf16.mxu0 0
  %143 = vmatpush2.bf16.msra.mxu0 0
  %144 = vmatprep.subr.bf16.mxu0 0
  %145 = vmatpush2.bf16.msra.mxu0 0
  %146 = vmatprep.mubr.bf16.mxu0 0
  %147 = vmatmul.mubr.bf16.gmra.mxu0 %v56
  %v148 = vpop.f32.mrf.mxu0
  %v149 = vadd.f32 0.0, %v148
  %v150 = vpop.f32.mrf.mxu0
  %v151 = vadd.f32 0.0, %v150
  %v152 = vpop.f32.mrf.mxu0
  %v153 = vadd.f32 0.0, %v152
  %v154 = vpop.f32.mrf.mxu0
  %v155 = vadd.f32 0.0, %v154
  %156 = vdwg.mxu0
  %157 = vst [vmem:[%s2] sm:$0xff] %v106
  %158 = vst [vmem:[%s2 + $0x8] sm:$0xff] %v108
  %159 = vst [vmem:[%s2 + $0x10] sm:$0xff] %v149
  %160 = vst [vmem:[%s2 + $0x18] sm:$0xff] %v151
  %161 = vst [vmem:[%s2 + $0x20] sm:$0xff] %v110
  %162 = vst [vmem:[%s2 + $0x28] sm:$0xff] %v112
  %163 = vst [vmem:[%s2 + $0x30] sm:$0xff] %v153
  %164 = vst [vmem:[%s2 + $0x38] sm:$0xff] %v155
  %p165 = scmp.eq.s32.totalorder 0, 0
  // Predicated region
  $region10: #{forward.211} parent=0 // pred_check
    %p166 = pneg %p165
  $region11: #{forward.211} parent=0 // pred_check_branch
    %168 = sbr.rel (%p166) target = $region13
  $region12: #{forward.211} parent=0 // pred_region
    %vm169 = vcmask 7168
    %170 = vst.msk [vmem:[%s3] sm:$0xff] %vm169, 0.0
    %171 = vst.msk [vmem:[%s3 + $0x8] sm:$0xff] %vm169, 0.0
    %172 = vst.msk [vmem:[%s4] sm:$0xff] %vm169, 0.0
    %173 = vst.msk [vmem:[%s4 + $0x8] sm:$0xff] %vm169, 0.0
  $region13: #{forward.211} parent=0 // pred_fallthru
    _
  %v174 = vld [vmem:[%s3] sm:$0xff]
  %v175 = vld [vmem:[%s3 + $0x8] sm:$0xff]
  %v176 = vadd.f32 %v106, %v108
  %v177 = vadd.f32 %v176, %v149
  %v178 = vadd.f32 %v177, %v151
  %179 = vadd.xlane.f32.xlu0 %v178
  %v180 = vpop.xlane.xlu0 %179
  %v181 = vadd.f32 %v110, %v112
  %v182 = vadd.f32 %v181, %v153
  %v183 = vadd.f32 %v182, %v155
  %184 = vadd.xlane.f32.xlu0 %v183
  %v185 = vpop.xlane.xlu0 %184
  %v186 = vadd.f32 %v174, %v180
  %v187 = vadd.f32 %v175, %v185
  %vm188 = vcmask 7168
  %189 = vst.msk [vmem:[%s3] sm:$0xff] %vm188, %v186
  %190 = vst.msk [vmem:[%s3 + $0x8] sm:$0xff] %vm188, %v187
  %v191 = vld [vmem:[%s4] sm:$0xff]
  %v192 = vld [vmem:[%s4 + $0x8] sm:$0xff]
  %v193 = vmul.f32 %v106, %v106
  %v194 = vmul.f32 %v108, %v108
  %v195 = vmul.f32 %v149, %v149
  %v196 = vmul.f32 %v151, %v151
  %v197 = vmul.f32 %v110, %v110
  %v198 = vmul.f32 %v112, %v112
  %v199 = vmul.f32 %v153, %v153
  %v200 = vmul.f32 %v155, %v155
  %v201 = vadd.f32 %v193, %v194
  %v202 = vadd.f32 %v201, %v195
  %v203 = vadd.f32 %v202, %v196
  %204 = vadd.xlane.f32.xlu0 %v203
  %v205 = vpop.xlane.xlu0 %204
  %v206 = vadd.f32 %v197, %v198
  %v207 = vadd.f32 %v206, %v199
  %v208 = vadd.f32 %v207, %v200
  %209 = vadd.xlane.f32.xlu0 %v208
  %v210 = vpop.xlane.xlu0 %209
  %v211 = vadd.f32 %v191, %v205
  %v212 = vadd.f32 %v192, %v210
  %213 = vst.msk [vmem:[%s4] sm:$0xff] %vm188, %v211
  %214 = vst.msk [vmem:[%s4 + $0x8] sm:$0xff] %vm188, %v212
  // Predicated region
  $region14: #{forward.211} parent=0 // pred_check
    _
  $region15: #{forward.211} parent=0 // pred_check_branch
    %216 = sbr.rel (0) target = $region17
  $region16: #{forward.211} parent=0 // pred_region
    _
  $region17: #{forward.211} parent=0 // pred_fallthru
    _
  // Predicated region
  $region18: #{forward.211} parent=0 // pred_check
    _
  $region19: #{forward.211} parent=0 // pred_check_branch
    %218 = sbr.rel (0) target = $region21
  $region20: #{forward.211} parent=0 // pred_region
    _
  $region21: #{forward.211} parent=0 // pred_fallthru
    _
  // Predicated region
  $region22: #{forward.211} parent=0 // pred_check
    _
  $region23: #{forward.211} parent=0 // pred_check_branch
    %220 = sbr.rel (0) target = $region25
  $region24: #{forward.211} parent=0 // pred_region
    _
  $region25: #{forward.211} parent=0 // pred_fallthru
    _
  // Predicated region
  $region26: #{forward.211} parent=0 // pred_check
    _
  $region27: #{forward.211} parent=0 // pred_check_branch
    %222 = sbr.rel (0) target = $region29
  $region28: #{forward.211} parent=0 // pred_region
    _
  $region29: #{forward.211} parent=0 // pred_fallthru
    _
  // Predicated region
  $region30: #{forward.211} parent=0 // pred_check
    _
  $region31: #{forward.211} parent=0 // pred_check_branch
    %224 = sbr.rel (0) target = $region33
  $region32: #{forward.211} parent=0 // pred_region
    _
  $region33: #{forward.211} parent=0 // pred_fallthru
    _
  // Predicated region
  $region34: #{forward.211} parent=0 // pred_check
    _
  $region35: #{forward.211} parent=0 // pred_check_branch
    %226 = sbr.rel (0) target = $region37
  $region36: #{forward.211} parent=0 // pred_region
    _
  $region37: #{forward.211} parent=0 // pred_fallthru
    _

// kernel: forward.234
$region0: #{forward.234}
  #allocation0 [shape = 'u32[]', space=smem, size = 0x4, offset = 0x4, fixed_abs, tag = 'smem constant byte address 0x4 - core index']
  #allocation1 [shape = 'u32[144,128]{1,0:T(1,128)}', space=vmem, size = 0x12000, scoped, tag = 'internal scratch']
  %s0 = inlined_call_operand.vmem [shape: bf16[4,12,128], index: 0, kind: input, shape index: {}]
  %s1 = inlined_call_operand.vmem [shape: f32[12,128], index: 1, kind: output, shape index: {}]
  %s2 = sld [smem:[#allocation0]]
  $region14: #{forward.234} parent=0
    _
  %s4 = ssub.s32 1, %s2
  %s5 = scalar_select 0, %s4, %s2
  // Predicated region
  $region2: #{forward.234} parent=0 // pred_check
    _
  $region3: #{forward.234} parent=0 // pred_check_branch
    %7 = sbr.rel (0) target = $region5
  $region4: #{forward.234} parent=0 // pred_region
    _
  $region5: #{forward.234} parent=0 // pred_fallthru
    _
  %v8 = vld [vmem:[%s0] sm:$0xf]
  %v9 = vld [vmem:[%s0 + $0x4] sm:$0x3]
  %s10 = scalar_lea.vmem %s0, 8
  %v11 = vld [vmem:[%s10] sm:$0xf]
  %v12 = vld [vmem:[%s10 + $0x4] sm:$0x3]
  %v13 = vmax.bf16 %v8, %v11
  %v14 = vmax.bf16 %v9, %v12
  %s15 = scalar_lea.vmem %s0, 16
  %v16 = vld [vmem:[%s15] sm:$0xf]
  %v17 = vld [vmem:[%s15 + $0x4] sm:$0x3]
  %v18 = vmax.bf16 %v13, %v16
  %v19 = vmax.bf16 %v14, %v17
  %s20 = scalar_lea.vmem %s0, 24
  %v21 = vld [vmem:[%s20] sm:$0xf]
  %v22 = vld [vmem:[%s20 + $0x4] sm:$0x3]
  %v23 = vmax.bf16 %v18, %v21
  %v24 = vmax.bf16 %v19, %v22
  %v25 = vunpack.c.l.bf16 %v23
  %v26 = vunpack.c.l.bf16 %v24
  %27 = vst [vmem:[%s1] sm:$0xff] %v25
  %28 = vst [vmem:[%s1 + $0x8] sm:$0xf] %v26
  // Predicated region
  $region6: #{forward.234} parent=0 // pred_check
    _
  $region7: #{forward.234} parent=0 // pred_check_branch
    %30 = sbr.rel (0) target = $region9
  $region8: #{forward.234} parent=0 // pred_region
    _
  $region9: #{forward.234} parent=0 // pred_fallthru
    _
  // Predicated region
  $region10: #{forward.234} parent=0 // pred_check
    _
  $region11: #{forward.234} parent=0 // pred_check_branch
    %32 = sbr.rel (0) target = $region13
  $region12: #{forward.234} parent=0 // pred_region
    _
  $region13: #{forward.234} parent=0 // pred_fallthru
    _

// kernel: forward.215
$region0: #{forward.215}
  #allocation0 [shape = 'u32[]', space=smem, size = 0x4, offset = 0x4, fixed_abs, tag = 'smem constant byte address 0x4 - core index']
  #allocation1 [shape = 'u32[144,128]{1,0:T(1,128)}', space=vmem, size = 0x12000, scoped, tag = 'internal scratch']
  %s0 = inlined_call_operand.vmem [shape: bf16[9,4,128], index: 0, kind: input, shape index: {}]
  %s1 = inlined_call_operand.vmem [shape: f32[4,128], index: 1, kind: output, shape index: {0}]
  %s2 = inlined_call_operand.vmem [shape: f32[4,1], index: 2, kind: output, shape index: {1}]
  %s3 = inlined_call_operand.vmem [shape: f32[4,1], index: 3, kind: output, shape index: {2}]
  %4 = xla_tuple %s1, %s2, %s3
  %s5 = sld [smem:[#allocation0]]
  $region34: #{forward.215} parent=0
    _
  %s7 = ssub.s32 1, %s5
  %s8 = scalar_select 0, %s7, %s5
  // Predicated region
  $region2: #{forward.215} parent=0 // pred_check
    _
  $region3: #{forward.215} parent=0 // pred_check_branch
    %10 = sbr.rel (0) target = $region5
  $region4: #{forward.215} parent=0 // pred_region
    _
  $region5: #{forward.215} parent=0 // pred_fallthru
    _
  %v11 = vld [vmem:[%s0] sm:$0x3]
  %s12 = scalar_lea.vmem %s0, 2
  %v13 = vld [vmem:[%s12] sm:$0x3]
  %v14 = vmax.bf16 %v11, %v13
  %s15 = scalar_lea.vmem %s0, 4
  %v16 = vld [vmem:[%s15] sm:$0x3]
  %v17 = vmax.bf16 %v14, %v16
  %s18 = scalar_lea.vmem %s0, 6
  %v19 = vld [vmem:[%s18] sm:$0x3]
  %v20 = vmax.bf16 %v17, %v19
  %s21 = scalar_lea.vmem %s0, 8
  %v22 = vld [vmem:[%s21] sm:$0x3]
  %v23 = vmax.bf16 %v20, %v22
  %s24 = scalar_lea.vmem %s0, 10
  %v25 = vld [vmem:[%s24] sm:$0x3]
  %v26 = vmax.bf16 %v23, %v25
  %s27 = scalar_lea.vmem %s0, 12
  %v28 = vld [vmem:[%s27] sm:$0x3]
  %v29 = vmax.bf16 %v26, %v28
  %s30 = scalar_lea.vmem %s0, 14
  %v31 = vld [vmem:[%s30] sm:$0x3]
  %v32 = vmax.bf16 %v29, %v31
  %s33 = scalar_lea.vmem %s0, 16
  %v34 = vld [vmem:[%s33] sm:$0x3]
  %v35 = vmax.bf16 %v32, %v34
  %v36 = vunpack.c.l.bf16 %v35
  %37 = vst [vmem:[%s1] sm:$0xf] %v36
  %p38 = scmp.eq.s32.totalorder 0, 0
  // Predicated region
  $region6: #{forward.215} parent=0 // pred_check
    %p39 = pneg %p38
  $region7: #{forward.215} parent=0 // pred_check_branch
    %41 = sbr.rel (%p39) target = $region9
  $region8: #{forward.215} parent=0 // pred_region
    %vm42 = vcmask 3072
    %43 = vst.msk [vmem:[%s2] sm:$0xf] %vm42, 0.0
    %44 = vst.msk [vmem:[%s3] sm:$0xf] %vm42, 0.0
  $region9: #{forward.215} parent=0 // pred_fallthru
    _
  %v45 = vld [vmem:[%s2] sm:$0xf]
  %vm46 = vcmask 1043456
  %v47 = vsel %vm46, %v36, 0.0
  %48 = vadd.xlane.f32.xlu0 %v47
  %v49 = vpop.xlane.xlu0 %48
  %v50 = vadd.f32 %v45, %v49
  %vm51 = vcmask 3072
  %52 = vst.msk [vmem:[%s2] sm:$0xf] %vm51, %v50
  %v53 = vld [vmem:[%s3] sm:$0xf]
  %v54 = vmul.f32 %v36, %v36
  %v55 = vsel %vm46, %v54, 0.0
  %56 = vadd.xlane.f32.xlu0 %v55
  %v57 = vpop.xlane.xlu0 %56
  %v58 = vadd.f32 %v53, %v57
  %59 = vst.msk [vmem:[%s3] sm:$0xf] %vm51, %v58
  // Predicated region
  $region10: #{forward.215} parent=0 // pred_check
    _
  $region11: #{forward.215} parent=0 // pred_check_branch
    %61 = sbr.rel (0) target = $region13
  $region12: #{forward.215} parent=0 // pred_region
    _
  $region13: #{forward.215} parent=0 // pred_fallthru
    _
  // Predicated region
  $region14: #{forward.215} parent=0 // pred_check
    _
  $region15: #{forward.215} parent=0 // pred_check_branch
    %63 = sbr.rel (0) target = $region17
  $region16: #{forward.215} parent=0 // pred_region
    _
  $region17: #{forward.215} parent=0 // pred_fallthru
    _
  // Predicated region
  $region18: #{forward.215} parent=0 // pred_check
    _
  $region19: #{forward.215} parent=0 // pred_check_branch
    %65 = sbr.rel (0) target = $region21
  $region20: #{forward.215} parent=0 // pred_region
    _
  $region21: #{forward.215} parent=0 // pred_fallthru
    _
  // Predicated region
  $region22: #{forward.215} parent=0 // pred_check
    _
  $region23: #{forward.215} parent=0 // pred_check_branch
    %67 = sbr.rel (0) target = $region25
  $region24: #{forward.215} parent=0 // pred_region
    _
  $region25: #{forward.215} parent=0 // pred_fallthru
    _
  // Predicated region
  $region26: #{forward.215} parent=0 // pred_check
    _
  $region27: #{forward.215} parent=0 // pred_check_branch
    %69 = sbr.rel (0) target = $region29
  $region28: #{forward.215} parent=0 // pred_region
    _
  $region29: #{forward.215} parent=0 // pred_fallthru
    _
  // Predicated region
  $region30: #{forward.215} parent=0 // pred_check
    _
  $region31: #{forward.215} parent=0 // pred_check_branch
    %71 = sbr.rel (0) target = $region33
  $region32: #{forward.215} parent=0 // pred_region
    _
  $region33: #{forward.215} parent=0 // pred_fallthru
    _

// kernel: forward.216
$region0: #{forward.216}
  #allocation0 [shape = 'u32[]', space=smem, size = 0x4, offset = 0x4, fixed_abs, tag = 'smem constant byte address 0x4 - core index']
  #allocation1 [shape = 'u32[144,128]{1,0:T(1,128)}', space=vmem, size = 0x12000, scoped, tag = 'internal scratch']
  %s0 = inlined_call_operand.vmem [shape: f32[4,1], index: 0, kind: input, shape index: {}]
  %s1 = inlined_call_operand.vmem [shape: f32[4,1], index: 1, kind: input, shape index: {}]
  %s2 = inlined_call_operand.vmem [shape: f32[4,128], index: 2, kind: input, shape index: {}]
  %s3 = inlined_call_operand.vmem [shape: f32[4,128], index: 3, kind: output, shape index: {}]
  %s4 = sld [smem:[#allocation0]]
  $region22: #{forward.216} parent=0
    _
  %s6 = ssub.s32 1, %s4
  %s7 = scalar_select 0, %s6, %s4
  // Predicated region
  $region2: #{forward.216} parent=0 // pred_check
    _
  $region3: #{forward.216} parent=0 // pred_check_branch
    %9 = sbr.rel (0) target = $region5
  $region4: #{forward.216} parent=0 // pred_region
    _
  $region5: #{forward.216} parent=0 // pred_fallthru
    _
  // Predicated region
  $region6: #{forward.216} parent=0 // pred_check
    _
  $region7: #{forward.216} parent=0 // pred_check_branch
    %11 = sbr.rel (0) target = $region9
  $region8: #{forward.216} parent=0 // pred_region
    _
  $region9: #{forward.216} parent=0 // pred_fallthru
    _
  // Predicated region
  $region10: #{forward.216} parent=0 // pred_check
    _
  $region11: #{forward.216} parent=0 // pred_check_branch
    %13 = sbr.rel (0) target = $region13
  $region12: #{forward.216} parent=0 // pred_region
    _
  $region13: #{forward.216} parent=0 // pred_fallthru
    _
  %v14 = vld [vmem:[%s0] sm:$0xf]
  %v15 = vmul.f32 %v14, 0.0078125
  %v16 = vld [vmem:[%s1] sm:$0xf]
  %v17 = vmul.f32 %v16, 0.0078125
  %v18 = vmul.f32 %v15, %v15
  %v19 = vsub.f32 %v17, %v18
  %v20 = vmax.f32 %v19, 0.0
  %v21 = vld [vmem:[%s2] sm:$0xf]
  %23 = vset.pattern.permute.xlu0 0
  %24 = vperm.xlu0 %23, %v15
  %v25 = vpop.permute.xlu0 %24
  %v27 = vsub.f32 %v21, %v25
  %v28 = vadd.f32 %v20, 1e-05
  %v29 = vrsqrt.pop %v28
  %31 = vset.pattern.permute.xlu0 0
  %32 = vperm.xlu0 %31, %v29
  %v33 = vpop.permute.xlu0 %32
  %v35 = vmul.f32 %v27, %v33
  %36 = vst [vmem:[%s3] sm:$0xf] %v35
  // Predicated region
  $region14: #{forward.216} parent=0 // pred_check
    _
  $region15: #{forward.216} parent=0 // pred_check_branch
    %38 = sbr.rel (0) target = $region17
  $region16: #{forward.216} parent=0 // pred_region
    _
  $region17: #{forward.216} parent=0 // pred_fallthru
    _
  // Predicated region
  $region18: #{forward.216} parent=0 // pred_check
    _
  $region19: #{forward.216} parent=0 // pred_check_branch
    %40 = sbr.rel (0) target = $region21
  $region20: #{forward.216} parent=0 // pred_region
    _
  $region21: #{forward.216} parent=0 // pred_fallthru
    _

// kernel: forward.217
$region0: #{forward.217}
  #allocation0 [shape = 'u32[]', space=smem, size = 0x4, offset = 0x4, fixed_abs, tag = 'smem constant byte address 0x4 - core index']
  #allocation1 [shape = 'u32[144,128]{1,0:T(1,128)}', space=vmem, size = 0x12000, scoped, tag = 'internal scratch']
  %s0 = inlined_call_operand.vmem [shape: bf16[9,4,128], index: 0, kind: input, shape index: {}]
  %s1 = inlined_call_operand.vmem [shape: f32[1,128], index: 1, kind: input, shape index: {}]
  %s2 = inlined_call_operand.vmem [shape: f32[4,128], index: 2, kind: output, shape index: {0}]
  %s3 = inlined_call_operand.vmem [shape: f32[4,1], index: 3, kind: output, shape index: {1}]
  %s4 = inlined_call_operand.vmem [shape: f32[4,1], index: 4, kind: output, shape index: {2}]
  %5 = xla_tuple %s2, %s3, %s4
  %s6 = sld [smem:[#allocation0]]
  $region38: #{forward.217} parent=0
    _
  %s8 = ssub.s32 1, %s6
  %s9 = scalar_select 0, %s8, %s6
  // Predicated region
  $region2: #{forward.217} parent=0 // pred_check
    _
  $region3: #{forward.217} parent=0 // pred_check_branch
    %11 = sbr.rel (0) target = $region5
  $region4: #{forward.217} parent=0 // pred_region
    _
  $region5: #{forward.217} parent=0 // pred_fallthru
    _
  // Predicated region
  $region6: #{forward.217} parent=0 // pred_check
    _
  $region7: #{forward.217} parent=0 // pred_check_branch
    %13 = sbr.rel (0) target = $region9
  $region8: #{forward.217} parent=0 // pred_region
    _
  $region9: #{forward.217} parent=0 // pred_fallthru
    _
  %v14 = vld [vmem:[%s0] sm:$0x3]
  %v15 = vunpack.c.l.bf16 %v14
  %s16 = scalar_lea.vmem %s0, 2
  %v17 = vld [vmem:[%s16] sm:$0x3]
  %v18 = vunpack.c.l.bf16 %v17
  %v19 = vadd.f32 %v15, %v18
  %s20 = scalar_lea.vmem %s0, 4
  %v21 = vld [vmem:[%s20] sm:$0x3]
  %v22 = vunpack.c.l.bf16 %v21
  %v23 = vadd.f32 %v19, %v22
  %s24 = scalar_lea.vmem %s0, 6
  %v25 = vld [vmem:[%s24] sm:$0x3]
  %v26 = vunpack.c.l.bf16 %v25
  %v27 = vadd.f32 %v23, %v26
  %s28 = scalar_lea.vmem %s0, 8
  %v29 = vld [vmem:[%s28] sm:$0x3]
  %v30 = vunpack.c.l.bf16 %v29
  %v31 = vadd.f32 %v27, %v30
  %s32 = scalar_lea.vmem %s0, 10
  %v33 = vld [vmem:[%s32] sm:$0x3]
  %v34 = vunpack.c.l.bf16 %v33
  %v35 = vadd.f32 %v31, %v34
  %s36 = scalar_lea.vmem %s0, 12
  %v37 = vld [vmem:[%s36] sm:$0x3]
  %v38 = vunpack.c.l.bf16 %v37
  %v39 = vadd.f32 %v35, %v38
  %s40 = scalar_lea.vmem %s0, 14
  %v41 = vld [vmem:[%s40] sm:$0x3]
  %v42 = vunpack.c.l.bf16 %v41
  %v43 = vadd.f32 %v39, %v42
  %s44 = scalar_lea.vmem %s0, 16
  %v45 = vld [vmem:[%s44] sm:$0x3]
  %v46 = vunpack.c.l.bf16 %v45
  %v47 = vadd.f32 %v43, %v46
  %v48 = vld [vmem:[%s1] sm:$0x1]
  %v50 = vlaneseq
  %v51 = vshrl.u32 %v50, 7
  %v52 = vsub.s32 0, %v51
  %v53 = vrot.slane %v48, %v52
  %v55 = vmul.f32 %v47, %v53
  %56 = vst [vmem:[%s2] sm:$0xf] %v55
  %p57 = scmp.eq.s32.totalorder 0, 0
  // Predicated region
  $region10: #{forward.217} parent=0 // pred_check
    %p58 = pneg %p57
  $region11: #{forward.217} parent=0 // pred_check_branch
    %60 = sbr.rel (%p58) target = $region13
  $region12: #{forward.217} parent=0 // pred_region
    %vm61 = vcmask 3072
    %62 = vst.msk [vmem:[%s3] sm:$0xf] %vm61, 0.0
    %63 = vst.msk [vmem:[%s4] sm:$0xf] %vm61, 0.0
  $region13: #{forward.217} parent=0 // pred_fallthru
    _
  %v64 = vld [vmem:[%s3] sm:$0xf]
  %vm65 = vcmask 1043456
  %v66 = vsel %vm65, %v55, 0.0
  %67 = vadd.xlane.f32.xlu0 %v66
  %v68 = vpop.xlane.xlu0 %67
  %v69 = vadd.f32 %v64, %v68
  %vm70 = vcmask 3072
  %71 = vst.msk [vmem:[%s3] sm:$0xf] %vm70, %v69
  %v72 = vld [vmem:[%s4] sm:$0xf]
  %v73 = vmul.f32 %v55, %v55
  %v74 = vsel %vm65, %v73, 0.0
  %75 = vadd.xlane.f32.xlu0 %v74
  %v76 = vpop.xlane.xlu0 %75
  %v77 = vadd.f32 %v72, %v76
  %78 = vst.msk [vmem:[%s4] sm:$0xf] %vm70, %v77
  // Predicated region
  $region14: #{forward.217} parent=0 // pred_check
    _
  $region15: #{forward.217} parent=0 // pred_check_branch
    %80 = sbr.rel (0) target = $region17
  $region16: #{forward.217} parent=0 // pred_region
    _
  $region17: #{forward.217} parent=0 // pred_fallthru
    _
  // Predicated region
  $region18: #{forward.217} parent=0 // pred_check
    _
  $region19: #{forward.217} parent=0 // pred_check_branch
    %82 = sbr.rel (0) target = $region21
  $region20: #{forward.217} parent=0 // pred_region
    _
  $region21: #{forward.217} parent=0 // pred_fallthru
    _
  // Predicated region
  $region22: #{forward.217} parent=0 // pred_check
    _
  $region23: #{forward.217} parent=0 // pred_check_branch
    %84 = sbr.rel (0) target = $region25
  $region24: #{forward.217} parent=0 // pred_region
    _
  $region25: #{forward.217} parent=0 // pred_fallthru
    _
  // Predicated region
  $region26: #{forward.217} parent=0 // pred_check
    _
  $region27: #{forward.217} parent=0 // pred_check_branch
    %86 = sbr.rel (0) target = $region29
  $region28: #{forward.217} parent=0 // pred_region
    _
  $region29: #{forward.217} parent=0 // pred_fallthru
    _
  // Predicated region
  $region30: #{forward.217} parent=0 // pred_check
    _
  $region31: #{forward.217} parent=0 // pred_check_branch
    %88 = sbr.rel (0) target = $region33
  $region32: #{forward.217} parent=0 // pred_region
    _
  $region33: #{forward.217} parent=0 // pred_fallthru
    _
  // Predicated region
  $region34: #{forward.217} parent=0 // pred_check
    _
  $region35: #{forward.217} parent=0 // pred_check_branch
    %90 = sbr.rel (0) target = $region37
  $region36: #{forward.217} parent=0 // pred_region
    _
  $region37: #{forward.217} parent=0 // pred_fallthru
    _

// kernel: forward.219
$region0: #{forward.219}
  #allocation0 [shape = 'u32[]', space=smem, size = 0x4, offset = 0x4, fixed_abs, tag = 'smem constant byte address 0x4 - core index']
  #allocation1 [shape = 'u32[144,128]{1,0:T(1,128)}', space=vmem, size = 0x12000, scoped, tag = 'internal scratch']
  %s0 = inlined_call_operand.vmem [shape: bf16[4,8], index: 0, kind: input, shape index: {}]
  %s1 = inlined_call_operand.vmem [shape: f32[8,128], index: 1, kind: input, shape index: {}]
  %s2 = inlined_call_operand.vmem [shape: f32[4,128], index: 2, kind: output, shape index: {0}]
  %s3 = inlined_call_operand.vmem [shape: f32[4,1], index: 3, kind: output, shape index: {1}]
  %s4 = inlined_call_operand.vmem [shape: f32[4,1], index: 4, kind: output, shape index: {2}]
  %5 = xla_tuple %s2, %s3, %s4
  %s6 = sld [smem:[#allocation0]]
  $region38: #{forward.219} parent=0
    _
  %s8 = ssub.s32 1, %s6
  %s9 = scalar_select 0, %s8, %s6
  // Predicated region
  $region2: #{forward.219} parent=0 // pred_check
    _
  $region3: #{forward.219} parent=0 // pred_check_branch
    %11 = sbr.rel (0) target = $region5
  $region4: #{forward.219} parent=0 // pred_region
    _
  $region5: #{forward.219} parent=0 // pred_fallthru
    _
  // Predicated region
  $region6: #{forward.219} parent=0 // pred_check
    _
  $region7: #{forward.219} parent=0 // pred_check_branch
    %13 = sbr.rel (0) target = $region9
  $region8: #{forward.219} parent=0 // pred_region
    _
  $region9: #{forward.219} parent=0 // pred_fallthru
    _
  %v15 = vld [vmem:[%s1] sm:$0xff]
  %v16 = vmax.f32 %v15, 0.0
  %v17 = vld [vmem:[%s0] sm:$0x3]
  %v18 = vpack.c.bf16 %v16, %v16
  %vm19 = vcmask 64512
  %v21 = vsel %vm19, %v17, 0
  %vm23 = vcmask 1043456
  %v25 = vsel %vm23, %v18, 0
  %27 = vmatprep.subr.bf16.mxu0 0
  %28 = vmatpush1.bf16.msra.mxu0 0
  %29 = vmatprep.subr.bf16.mxu0 0
  %30 = vmatpush1.bf16.msra.mxu0 0
  %31 = vmatprep.subr.bf16.mxu0 0
  %32 = vmatpush1.bf16.msra.mxu0 0
  %33 = vmatprep.subr.bf16.mxu0 0
  %34 = vmatpush1.bf16.msra.mxu0 0
  %35 = vmatprep.subr.bf16.mxu0 0
  %36 = vmatpush1.bf16.msra.mxu0 0
  %37 = vmatprep.subr.bf16.mxu0 0
  %38 = vmatpush1.bf16.msra.mxu0 0
  %39 = vmatprep.subr.bf16.mxu0 0
  %40 = vmatpush1.bf16.msra.mxu0 0
  %41 = vmatprep.subr.bf16.mxu0 0
  %42 = vmatpush1.bf16.msra.mxu0 %v25
  %43 = vmatprep.subr.bf16.mxu0 0
  %44 = vmatpush2.bf16.msra.mxu0 0
  %45 = vmatprep.subr.bf16.mxu0 0
  %46 = vmatpush2.bf16.msra.mxu0 0
  %47 = vmatprep.subr.bf16.mxu0 0
  %48 = vmatpush2.bf16.msra.mxu0 0
  %49 = vmatprep.subr.bf16.mxu0 0
  %50 = vmatpush2.bf16.msra.mxu0 0
  %51 = vmatprep.subr.bf16.mxu0 0
  %52 = vmatpush2.bf16.msra.mxu0 0
  %53 = vmatprep.subr.bf16.mxu0 0
  %54 = vmatpush2.bf16.msra.mxu0 0
  %55 = vmatprep.subr.bf16.mxu0 0
  %56 = vmatpush2.bf16.msra.mxu0 0
  %57 = vmatprep.subr.bf16.mxu0 0
  %58 = vmatpush2.bf16.msra.mxu0 0
  %59 = vmatprep.mubr.bf16.mxu0 0
  %60 = vmatmul.mubr.bf16.gmra.mxu0 %v21
  %v61 = vpop.f32.mrf.mxu0
  %v62 = vadd.f32 0.0, %v61
  %v63 = vpop.f32.mrf.mxu0
  %v64 = vpop.f32.mrf.mxu0
  %v65 = vpop.f32.mrf.mxu0
  %66 = vdwg.mxu0
  %67 = vst [vmem:[%s2] sm:$0xf] %v62
  %p68 = scmp.eq.s32.totalorder 0, 0
  // Predicated region
  $region10: #{forward.219} parent=0 // pred_check
    %p69 = pneg %p68
  $region11: #{forward.219} parent=0 // pred_check_branch
    %71 = sbr.rel (%p69) target = $region13
  $region12: #{forward.219} parent=0 // pred_region
    %vm72 = vcmask 3072
    %73 = vst.msk [vmem:[%s3] sm:$0xf] %vm72, 0.0
    %74 = vst.msk [vmem:[%s4] sm:$0xf] %vm72, 0.0
  $region13: #{forward.219} parent=0 // pred_fallthru
    _
  %v75 = vld [vmem:[%s3] sm:$0xf]
  %v76 = vsel %vm23, %v62, 0.0
  %77 = vadd.xlane.f32.xlu0 %v76
  %v78 = vpop.xlane.xlu0 %77
  %v79 = vadd.f32 %v75, %v78
  %vm80 = vcmask 3072
  %81 = vst.msk [vmem:[%s3] sm:$0xf] %vm80, %v79
  %v82 = vld [vmem:[%s4] sm:$0xf]
  %v83 = vmul.f32 %v62, %v62
  %v84 = vsel %vm23, %v83, 0.0
  %85 = vadd.xlane.f32.xlu0 %v84
  %v86 = vpop.xlane.xlu0 %85
  %v87 = vadd.f32 %v82, %v86
  %88 = vst.msk [vmem:[%s4] sm:$0xf] %vm80, %v87
  // Predicated region
  $region14: #{forward.219} parent=0 // pred_check
    _
  $region15: #{forward.219} parent=0 // pred_check_branch
    %90 = sbr.rel (0) target = $region17
  $region16: #{forward.219} parent=0 // pred_region
    _
  $region17: #{forward.219} parent=0 // pred_fallthru
    _
  // Predicated region
  $region18: #{forward.219} parent=0 // pred_check
    _
  $region19: #{forward.219} parent=0 // pred_check_branch
    %92 = sbr.rel (0) target = $region21
  $region20: #{forward.219} parent=0 // pred_region
    _
  $region21: #{forward.219} parent=0 // pred_fallthru
    _
  // Predicated region
  $region22: #{forward.219} parent=0 // pred_check
    _
  $region23: #{forward.219} parent=0 // pred_check_branch
    %94 = sbr.rel (0) target = $region25
  $region24: #{forward.219} parent=0 // pred_region
    _
  $region25: #{forward.219} parent=0 // pred_fallthru
    _
  // Predicated region
  $region26: #{forward.219} parent=0 // pred_check
    _
  $region27: #{forward.219} parent=0 // pred_check_branch
    %96 = sbr.rel (0) target = $region29
  $region28: #{forward.219} parent=0 // pred_region
    _
  $region29: #{forward.219} parent=0 // pred_fallthru
    _
  // Predicated region
  $region30: #{forward.219} parent=0 // pred_check
    _
  $region31: #{forward.219} parent=0 // pred_check_branch
    %98 = sbr.rel (0) target = $region33
  $region32: #{forward.219} parent=0 // pred_region
    _
  $region33: #{forward.219} parent=0 // pred_fallthru
    _
  // Predicated region
  $region34: #{forward.219} parent=0 // pred_check
    _
  $region35: #{forward.219} parent=0 // pred_check_branch
    %100 = sbr.rel (0) target = $region37
  $region36: #{forward.219} parent=0 // pred_region
    _
  $region37: #{forward.219} parent=0 // pred_fallthru
    _

// kernel: forward.221
$region0: #{forward.221}
  #allocation0 [shape = 'u32[]', space=smem, size = 0x4, offset = 0x4, fixed_abs, tag = 'smem constant byte address 0x4 - core index']
  #allocation1 [shape = 'u32[144,128]{1,0:T(1,128)}', space=vmem, size = 0x12000, scoped, tag = 'internal scratch']
  %s0 = inlined_call_operand.vmem [shape: bf16[9,4,128], index: 0, kind: input, shape index: {}]
  %s1 = inlined_call_operand.vmem [shape: f32[9,4,1], index: 1, kind: input, shape index: {}]
  %s2 = inlined_call_operand.vmem [shape: bf16[4,4], index: 2, kind: input, shape index: {}]
  %s3 = inlined_call_operand.vmem [shape: f32[4,128], index: 3, kind: output, shape index: {0}]
  %s4 = inlined_call_operand.vmem [shape: f32[4,1], index: 4, kind: output, shape index: {1}]
  %s5 = inlined_call_operand.vmem [shape: f32[4,1], index: 5, kind: output, shape index: {2}]
  %6 = xla_tuple %s3, %s4, %s5
  %s7 = sld [smem:[#allocation0]]
  $region42: #{forward.221} parent=0
    _
  %s9 = ssub.s32 1, %s7
  %s10 = scalar_select 0, %s9, %s7
  // Predicated region
  $region2: #{forward.221} parent=0 // pred_check
    _
  $region3: #{forward.221} parent=0 // pred_check_branch
    %12 = sbr.rel (0) target = $region5
  $region4: #{forward.221} parent=0 // pred_region
    _
  $region5: #{forward.221} parent=0 // pred_fallthru
    _
  // Predicated region
  $region6: #{forward.221} parent=0 // pred_check
    _
  $region7: #{forward.221} parent=0 // pred_check_branch
    %14 = sbr.rel (0) target = $region9
  $region8: #{forward.221} parent=0 // pred_region
    _
  $region9: #{forward.221} parent=0 // pred_fallthru
    _
  // Predicated region
  $region10: #{forward.221} parent=0 // pred_check
    _
  $region11: #{forward.221} parent=0 // pred_check_branch
    %16 = sbr.rel (0) target = $region13
  $region12: #{forward.221} parent=0 // pred_region
    _
  $region13: #{forward.221} parent=0 // pred_fallthru
    _
  %v18 = vld [vmem:[%s0] sm:$0x3]
  %v19 = vunpack.c.l.bf16 %v18
  %v20 = vmax.f32 %v19, 0.0
  %v21 = vld [vmem:[%s1] sm:$0xf]
  %23 = vset.pattern.permute.xlu0 0
  %24 = vperm.xlu0 %23, %v21
  %v25 = vpop.permute.xlu0 %24
  %v27 = vmul.f32 %v20, %v25
  %s28 = scalar_lea.vmem %s0, 2
  %v29 = vld [vmem:[%s28] sm:$0x3]
  %v30 = vunpack.c.l.bf16 %v29
  %v31 = vmax.f32 %v30, 0.0
  %s32 = scalar_lea.vmem %s1, 4
  %v33 = vld [vmem:[%s32] sm:$0xf]
  %35 = vset.pattern.permute.xlu0 0
  %36 = vperm.xlu0 %35, %v33
  %v37 = vpop.permute.xlu0 %36
  %v39 = vmul.f32 %v31, %v37
  %v40 = vadd.f32 %v27, %v39
  %s41 = scalar_lea.vmem %s0, 4
  %v42 = vld [vmem:[%s41] sm:$0x3]
  %v43 = vunpack.c.l.bf16 %v42
  %v44 = vmax.f32 %v43, 0.0
  %s45 = scalar_lea.vmem %s1, 8
  %v46 = vld [vmem:[%s45] sm:$0xf]
  %48 = vset.pattern.permute.xlu0 0
  %49 = vperm.xlu0 %48, %v46
  %v50 = vpop.permute.xlu0 %49
  %v52 = vmul.f32 %v44, %v50
  %v53 = vadd.f32 %v40, %v52
  %s54 = scalar_lea.vmem %s0, 6
  %v55 = vld [vmem:[%s54] sm:$0x3]
  %v56 = vunpack.c.l.bf16 %v55
  %v57 = vmax.f32 %v56, 0.0
  %s58 = scalar_lea.vmem %s1, 12
  %v59 = vld [vmem:[%s58] sm:$0xf]
  %61 = vset.pattern.permute.xlu0 0
  %62 = vperm.xlu0 %61, %v59
  %v63 = vpop.permute.xlu0 %62
  %v65 = vmul.f32 %v57, %v63
  %v66 = vadd.f32 %v53, %v65
  %s67 = scalar_lea.vmem %s0, 8
  %v68 = vld [vmem:[%s67] sm:$0x3]
  %v69 = vunpack.c.l.bf16 %v68
  %v70 = vmax.f32 %v69, 0.0
  %s71 = scalar_lea.vmem %s1, 16
  %v72 = vld [vmem:[%s71] sm:$0xf]
  %74 = vset.pattern.permute.xlu0 0
  %75 = vperm.xlu0 %74, %v72
  %v76 = vpop.permute.xlu0 %75
  %v78 = vmul.f32 %v70, %v76
  %v79 = vadd.f32 %v66, %v78
  %s80 = scalar_lea.vmem %s0, 10
  %v81 = vld [vmem:[%s80] sm:$0x3]
  %v82 = vunpack.c.l.bf16 %v81
  %v83 = vmax.f32 %v82, 0.0
  %s84 = scalar_lea.vmem %s1, 20
  %v85 = vld [vmem:[%s84] sm:$0xf]
  %87 = vset.pattern.permute.xlu0 0
  %88 = vperm.xlu0 %87, %v85
  %v89 = vpop.permute.xlu0 %88
  %v91 = vmul.f32 %v83, %v89
  %v92 = vadd.f32 %v79, %v91
  %s93 = scalar_lea.vmem %s0, 12
  %v94 = vld [vmem:[%s93] sm:$0x3]
  %v95 = vunpack.c.l.bf16 %v94
  %v96 = vmax.f32 %v95, 0.0
  %s97 = scalar_lea.vmem %s1, 24
  %v98 = vld [vmem:[%s97] sm:$0xf]
  %100 = vset.pattern.permute.xlu0 0
  %101 = vperm.xlu0 %100, %v98
  %v102 = vpop.permute.xlu0 %101
  %v104 = vmul.f32 %v96, %v102
  %v105 = vadd.f32 %v92, %v104
  %s106 = scalar_lea.vmem %s0, 14
  %v107 = vld [vmem:[%s106] sm:$0x3]
  %v108 = vunpack.c.l.bf16 %v107
  %v109 = vmax.f32 %v108, 0.0
  %s110 = scalar_lea.vmem %s1, 28
  %v111 = vld [vmem:[%s110] sm:$0xf]
  %113 = vset.pattern.permute.xlu0 0
  %114 = vperm.xlu0 %113, %v111
  %v115 = vpop.permute.xlu0 %114
  %v117 = vmul.f32 %v109, %v115
  %v118 = vadd.f32 %v105, %v117
  %s119 = scalar_lea.vmem %s0, 16
  %v120 = vld [vmem:[%s119] sm:$0x3]
  %v121 = vunpack.c.l.bf16 %v120
  %v122 = vmax.f32 %v121, 0.0
  %s123 = scalar_lea.vmem %s1, 32
  %v124 = vld [vmem:[%s123] sm:$0xf]
  %126 = vset.pattern.permute.xlu0 0
  %127 = vperm.xlu0 %126, %v124
  %v128 = vpop.permute.xlu0 %127
  %v130 = vmul.f32 %v122, %v128
  %v131 = vadd.f32 %v118, %v130
  %v132 = vld [vmem:[%s2] sm:$0x3]
  %v133 = vpack.c.bf16 %v131, %v131
  %vm134 = vcmask 31744
  %v136 = vsel %vm134, %v132, 0
  %vm138 = vcmask 1041408
  %v140 = vsel %vm138, %v133, 0
  %142 = vmatprep.subr.bf16.mxu0 0
  %143 = vmatpush1.bf16.msra.mxu0 0
  %144 = vmatprep.subr.bf16.mxu0 0
  %145 = vmatpush1.bf16.msra.mxu0 0
  %146 = vmatprep.subr.bf16.mxu0 0
  %147 = vmatpush1.bf16.msra.mxu0 0
  %148 = vmatprep.subr.bf16.mxu0 0
  %149 = vmatpush1.bf16.msra.mxu0 0
  %150 = vmatprep.subr.bf16.mxu0 0
  %151 = vmatpush1.bf16.msra.mxu0 0
  %152 = vmatprep.subr.bf16.mxu0 0
  %153 = vmatpush1.bf16.msra.mxu0 0
  %154 = vmatprep.subr.bf16.mxu0 0
  %155 = vmatpush1.bf16.msra.mxu0 0
  %156 = vmatprep.subr.bf16.mxu0 0
  %157 = vmatpush1.bf16.msra.mxu0 %v140
  %158 = vmatprep.subr.bf16.mxu0 0
  %159 = vmatpush2.bf16.msra.mxu0 0
  %160 = vmatprep.subr.bf16.mxu0 0
  %161 = vmatpush2.bf16.msra.mxu0 0
  %162 = vmatprep.subr.bf16.mxu0 0
  %163 = vmatpush2.bf16.msra.mxu0 0
  %164 = vmatprep.subr.bf16.mxu0 0
  %165 = vmatpush2.bf16.msra.mxu0 0
  %166 = vmatprep.subr.bf16.mxu0 0
  %167 = vmatpush2.bf16.msra.mxu0 0
  %168 = vmatprep.subr.bf16.mxu0 0
  %169 = vmatpush2.bf16.msra.mxu0 0
  %170 = vmatprep.subr.bf16.mxu0 0
  %171 = vmatpush2.bf16.msra.mxu0 0
  %172 = vmatprep.subr.bf16.mxu0 0
  %173 = vmatpush2.bf16.msra.mxu0 0
  %174 = vmatprep.mubr.bf16.mxu0 0
  %175 = vmatmul.mubr.bf16.gmra.mxu0 %v136
  %v176 = vpop.f32.mrf.mxu0
  %v177 = vadd.f32 0.0, %v176
  %v178 = vpop.f32.mrf.mxu0
  %v179 = vpop.f32.mrf.mxu0
  %v180 = vpop.f32.mrf.mxu0
  %181 = vdwg.mxu0
  %182 = vst [vmem:[%s3] sm:$0xf] %v177
  %p183 = scmp.eq.s32.totalorder 0, 0
  // Predicated region
  $region14: #{forward.221} parent=0 // pred_check
    %p184 = pneg %p183
  $region15: #{forward.221} parent=0 // pred_check_branch
    %186 = sbr.rel (%p184) target = $region17
  $region16: #{forward.221} parent=0 // pred_region
    %vm187 = vcmask 3072
    %188 = vst.msk [vmem:[%s4] sm:$0xf] %vm187, 0.0
    %189 = vst.msk [vmem:[%s5] sm:$0xf] %vm187, 0.0
  $region17: #{forward.221} parent=0 // pred_fallthru
    _
  %v190 = vld [vmem:[%s4] sm:$0xf]
  %vm191 = vcmask 1043456
  %v192 = vsel %vm191, %v177, 0.0
  %193 = vadd.xlane.f32.xlu0 %v192
  %v194 = vpop.xlane.xlu0 %193
  %v195 = vadd.f32 %v190, %v194
  %vm196 = vcmask 3072
  %197 = vst.msk [vmem:[%s4] sm:$0xf] %vm196, %v195
  %v198 = vld [vmem:[%s5] sm:$0xf]
  %v199 = vmul.f32 %v177, %v177
  %v200 = vsel %vm191, %v199, 0.0
  %201 = vadd.xlane.f32.xlu0 %v200
  %v202 = vpop.xlane.xlu0 %201
  %v203 = vadd.f32 %v198, %v202
  %204 = vst.msk [vmem:[%s5] sm:$0xf] %vm196, %v203
  // Predicated region
  $region18: #{forward.221} parent=0 // pred_check
    _
  $region19: #{forward.221} parent=0 // pred_check_branch
    %206 = sbr.rel (0) target = $region21
  $region20: #{forward.221} parent=0 // pred_region
    _
  $region21: #{forward.221} parent=0 // pred_fallthru
    _
  // Predicated region
  $region22: #{forward.221} parent=0 // pred_check
    _
  $region23: #{forward.221} parent=0 // pred_check_branch
    %208 = sbr.rel (0) target = $region25
  $region24: #{forward.221} parent=0 // pred_region
    _
  $region25: #{forward.221} parent=0 // pred_fallthru
    _
  // Predicated region
  $region26: #{forward.221} parent=0 // pred_check
    _
  $region27: #{forward.221} parent=0 // pred_check_branch
    %210 = sbr.rel (0) target = $region29
  $region28: #{forward.221} parent=0 // pred_region
    _
  $region29: #{forward.221} parent=0 // pred_fallthru
    _
  // Predicated region
  $region30: #{forward.221} parent=0 // pred_check
    _
  $region31: #{forward.221} parent=0 // pred_check_branch
    %212 = sbr.rel (0) target = $region33
  $region32: #{forward.221} parent=0 // pred_region
    _
  $region33: #{forward.221} parent=0 // pred_fallthru
    _
  // Predicated region
  $region34: #{forward.221} parent=0 // pred_check
    _
  $region35: #{forward.221} parent=0 // pred_check_branch
    %214 = sbr.rel (0) target = $region37
  $region36: #{forward.221} parent=0 // pred_region
    _
  $region37: #{forward.221} parent=0 // pred_fallthru
    _
  // Predicated region
  $region38: #{forward.221} parent=0 // pred_check
    _
  $region39: #{forward.221} parent=0 // pred_check_branch
    %216 = sbr.rel (0) target = $region41
  $region40: #{forward.221} parent=0 // pred_region
    _
  $region41: #{forward.221} parent=0 // pred_fallthru
    _

// kernel: forward.225
$region0: #{forward.225}
  #allocation0 [shape = 'u32[]', space=smem, size = 0x4, offset = 0x4, fixed_abs, tag = 'smem constant byte address 0x4 - core index']
  #allocation1 [shape = 'u32[144,128]{1,0:T(1,128)}', space=vmem, size = 0x12000, scoped, tag = 'internal scratch']
  %s0 = inlined_call_operand.vmem [shape: bf16[25,4,128], index: 0, kind: input, shape index: {}]
  %s1 = inlined_call_operand.vmem [shape: f32[25,4,1], index: 1, kind: input, shape index: {}]
  %s2 = inlined_call_operand.vmem [shape: bf16[4,4], index: 2, kind: input, shape index: {}]
  %s3 = inlined_call_operand.vmem [shape: f32[4,128], index: 3, kind: output, shape index: {0}]
  %s4 = inlined_call_operand.vmem [shape: f32[4,1], index: 4, kind: output, shape index: {1}]
  %s5 = inlined_call_operand.vmem [shape: f32[4,1], index: 5, kind: output, shape index: {2}]
  %6 = xla_tuple %s3, %s4, %s5
  %s7 = sld [smem:[#allocation0]]
  $region42: #{forward.225} parent=0
    _
  %s9 = ssub.s32 1, %s7
  %s10 = scalar_select 0, %s9, %s7
  // Predicated region
  $region2: #{forward.225} parent=0 // pred_check
    _
  $region3: #{forward.225} parent=0 // pred_check_branch
    %12 = sbr.rel (0) target = $region5
  $region4: #{forward.225} parent=0 // pred_region
    _
  $region5: #{forward.225} parent=0 // pred_fallthru
    _
  // Predicated region
  $region6: #{forward.225} parent=0 // pred_check
    _
  $region7: #{forward.225} parent=0 // pred_check_branch
    %14 = sbr.rel (0) target = $region9
  $region8: #{forward.225} parent=0 // pred_region
    _
  $region9: #{forward.225} parent=0 // pred_fallthru
    _
  // Predicated region
  $region10: #{forward.225} parent=0 // pred_check
    _
  $region11: #{forward.225} parent=0 // pred_check_branch
    %16 = sbr.rel (0) target = $region13
  $region12: #{forward.225} parent=0 // pred_region
    _
  $region13: #{forward.225} parent=0 // pred_fallthru
    _
  %v18 = vld [vmem:[%s0] sm:$0x3]
  %v19 = vunpack.c.l.bf16 %v18
  %v20 = vmax.f32 %v19, 0.0
  %v21 = vld [vmem:[%s1] sm:$0xf]
  %23 = vset.pattern.permute.xlu0 0
  %24 = vperm.xlu0 %23, %v21
  %v25 = vpop.permute.xlu0 %24
  %v27 = vmul.f32 %v20, %v25
  %s28 = scalar_lea.vmem %s0, 2
  %v29 = vld [vmem:[%s28] sm:$0x3]
  %v30 = vunpack.c.l.bf16 %v29
  %v31 = vmax.f32 %v30, 0.0
  %s32 = scalar_lea.vmem %s1, 4
  %v33 = vld [vmem:[%s32] sm:$0xf]
  %35 = vset.pattern.permute.xlu0 0
  %36 = vperm.xlu0 %35, %v33
  %v37 = vpop.permute.xlu0 %36
  %v39 = vmul.f32 %v31, %v37
  %v40 = vadd.f32 %v27, %v39
  %s41 = scalar_lea.vmem %s0, 4
  %v42 = vld [vmem:[%s41] sm:$0x3]
  %v43 = vunpack.c.l.bf16 %v42
  %v44 = vmax.f32 %v43, 0.0
  %s45 = scalar_lea.vmem %s1, 8
  %v46 = vld [vmem:[%s45] sm:$0xf]
  %48 = vset.pattern.permute.xlu0 0
  %49 = vperm.xlu0 %48, %v46
  %v50 = vpop.permute.xlu0 %49
  %v52 = vmul.f32 %v44, %v50
  %v53 = vadd.f32 %v40, %v52
  %s54 = scalar_lea.vmem %s0, 6
  %v55 = vld [vmem:[%s54] sm:$0x3]
  %v56 = vunpack.c.l.bf16 %v55
  %v57 = vmax.f32 %v56, 0.0
  %s58 = scalar_lea.vmem %s1, 12
  %v59 = vld [vmem:[%s58] sm:$0xf]
  %61 = vset.pattern.permute.xlu0 0
  %62 = vperm.xlu0 %61, %v59
  %v63 = vpop.permute.xlu0 %62
  %v65 = vmul.f32 %v57, %v63
  %v66 = vadd.f32 %v53, %v65
  %s67 = scalar_lea.vmem %s0, 8
  %v68 = vld [vmem:[%s67] sm:$0x3]
  %v69 = vunpack.c.l.bf16 %v68
  %v70 = vmax.f32 %v69, 0.0
  %s71 = scalar_lea.vmem %s1, 16
  %v72 = vld [vmem:[%s71] sm:$0xf]
  %74 = vset.pattern.permute.xlu0 0
  %75 = vperm.xlu0 %74, %v72
  %v76 = vpop.permute.xlu0 %75
  %v78 = vmul.f32 %v70, %v76
  %v79 = vadd.f32 %v66, %v78
  %s80 = scalar_lea.vmem %s0, 10
  %v81 = vld [vmem:[%s80] sm:$0x3]
  %v82 = vunpack.c.l.bf16 %v81
  %v83 = vmax.f32 %v82, 0.0
  %s84 = scalar_lea.vmem %s1, 20
  %v85 = vld [vmem:[%s84] sm:$0xf]
  %87 = vset.pattern.permute.xlu0 0
  %88 = vperm.xlu0 %87, %v85
  %v89 = vpop.permute.xlu0 %88
  %v91 = vmul.f32 %v83, %v89
  %v92 = vadd.f32 %v79, %v91
  %s93 = scalar_lea.vmem %s0, 12
  %v94 = vld [vmem:[%s93] sm:$0x3]
  %v95 = vunpack.c.l.bf16 %v94
  %v96 = vmax.f32 %v95, 0.0
  %s97 = scalar_lea.vmem %s1, 24
  %v98 = vld [vmem:[%s97] sm:$0xf]
  %100 = vset.pattern.permute.xlu0 0
  %101 = vperm.xlu0 %100, %v98
  %v102 = vpop.permute.xlu0 %101
  %v104 = vmul.f32 %v96, %v102
  %v105 = vadd.f32 %v92, %v104
  %s106 = scalar_lea.vmem %s0, 14
  %v107 = vld [vmem:[%s106] sm:$0x3]
  %v108 = vunpack.c.l.bf16 %v107
  %v109 = vmax.f32 %v108, 0.0
  %s110 = scalar_lea.vmem %s1, 28
  %v111 = vld [vmem:[%s110] sm:$0xf]
  %113 = vset.pattern.permute.xlu0 0
  %114 = vperm.xlu0 %113, %v111
  %v115 = vpop.permute.xlu0 %114
  %v117 = vmul.f32 %v109, %v115
  %v118 = vadd.f32 %v105, %v117
  %s119 = scalar_lea.vmem %s0, 16
  %v120 = vld [vmem:[%s119] sm:$0x3]
  %v121 = vunpack.c.l.bf16 %v120
  %v122 = vmax.f32 %v121, 0.0
  %s123 = scalar_lea.vmem %s1, 32
  %v124 = vld [vmem:[%s123] sm:$0xf]
  %126 = vset.pattern.permute.xlu0 0
  %127 = vperm.xlu0 %126, %v124
  %v128 = vpop.permute.xlu0 %127
  %v130 = vmul.f32 %v122, %v128
  %v131 = vadd.f32 %v118, %v130
  %s132 = scalar_lea.vmem %s0, 18
  %v133 = vld [vmem:[%s132] sm:$0x3]
  %v134 = vunpack.c.l.bf16 %v133
  %v135 = vmax.f32 %v134, 0.0
  %s136 = scalar_lea.vmem %s1, 36
  %v137 = vld [vmem:[%s136] sm:$0xf]
  %139 = vset.pattern.permute.xlu0 0
  %140 = vperm.xlu0 %139, %v137
  %v141 = vpop.permute.xlu0 %140
  %v143 = vmul.f32 %v135, %v141
  %v144 = vadd.f32 %v131, %v143
  %s145 = scalar_lea.vmem %s0, 20
  %v146 = vld [vmem:[%s145] sm:$0x3]
  %v147 = vunpack.c.l.bf16 %v146
  %v148 = vmax.f32 %v147, 0.0
  %s149 = scalar_lea.vmem %s1, 40
  %v150 = vld [vmem:[%s149] sm:$0xf]
  %152 = vset.pattern.permute.xlu0 0
  %153 = vperm.xlu0 %152, %v150
  %v154 = vpop.permute.xlu0 %153
  %v156 = vmul.f32 %v148, %v154
  %v157 = vadd.f32 %v144, %v156
  %s158 = scalar_lea.vmem %s0, 22
  %v159 = vld [vmem:[%s158] sm:$0x3]
  %v160 = vunpack.c.l.bf16 %v159
  %v161 = vmax.f32 %v160, 0.0
  %s162 = scalar_lea.vmem %s1, 44
  %v163 = vld [vmem:[%s162] sm:$0xf]
  %165 = vset.pattern.permute.xlu0 0
  %166 = vperm.xlu0 %165, %v163
  %v167 = vpop.permute.xlu0 %166
  %v169 = vmul.f32 %v161, %v167
  %v170 = vadd.f32 %v157, %v169
  %s171 = scalar_lea.vmem %s0, 24
  %v172 = vld [vmem:[%s171] sm:$0x3]
  %v173 = vunpack.c.l.bf16 %v172
  %v174 = vmax.f32 %v173, 0.0
  %s175 = scalar_lea.vmem %s1, 48
  %v176 = vld [vmem:[%s175] sm:$0xf]
  %178 = vset.pattern.permute.xlu0 0
  %179 = vperm.xlu0 %178, %v176
  %v180 = vpop.permute.xlu0 %179
  %v182 = vmul.f32 %v174, %v180
  %v183 = vadd.f32 %v170, %v182
  %s184 = scalar_lea.vmem %s0, 26
  %v185 = vld [vmem:[%s184] sm:$0x3]
  %v186 = vunpack.c.l.bf16 %v185
  %v187 = vmax.f32 %v186, 0.0
  %s188 = scalar_lea.vmem %s1, 52
  %v189 = vld [vmem:[%s188] sm:$0xf]
  %191 = vset.pattern.permute.xlu0 0
  %192 = vperm.xlu0 %191, %v189
  %v193 = vpop.permute.xlu0 %192
  %v195 = vmul.f32 %v187, %v193
  %v196 = vadd.f32 %v183, %v195
  %s197 = scalar_lea.vmem %s0, 28
  %v198 = vld [vmem:[%s197] sm:$0x3]
  %v199 = vunpack.c.l.bf16 %v198
  %v200 = vmax.f32 %v199, 0.0
  %s201 = scalar_lea.vmem %s1, 56
  %v202 = vld [vmem:[%s201] sm:$0xf]
  %204 = vset.pattern.permute.xlu0 0
  %205 = vperm.xlu0 %204, %v202
  %v206 = vpop.permute.xlu0 %205
  %v208 = vmul.f32 %v200, %v206
  %v209 = vadd.f32 %v196, %v208
  %s210 = scalar_lea.vmem %s0, 30
  %v211 = vld [vmem:[%s210] sm:$0x3]
  %v212 = vunpack.c.l.bf16 %v211
  %v213 = vmax.f32 %v212, 0.0
  %s214 = scalar_lea.vmem %s1, 60
  %v215 = vld [vmem:[%s214] sm:$0xf]
  %217 = vset.pattern.permute.xlu0 0
  %218 = vperm.xlu0 %217, %v215
  %v219 = vpop.permute.xlu0 %218
  %v221 = vmul.f32 %v213, %v219
  %v222 = vadd.f32 %v209, %v221
  %s223 = scalar_lea.vmem %s0, 32
  %v224 = vld [vmem:[%s223] sm:$0x3]
  %v225 = vunpack.c.l.bf16 %v224
  %v226 = vmax.f32 %v225, 0.0
  %s227 = scalar_lea.vmem %s1, 64
  %v228 = vld [vmem:[%s227] sm:$0xf]
  %230 = vset.pattern.permute.xlu0 0
  %231 = vperm.xlu0 %230, %v228
  %v232 = vpop.permute.xlu0 %231
  %v234 = vmul.f32 %v226, %v232
  %v235 = vadd.f32 %v222, %v234
  %s236 = scalar_lea.vmem %s0, 34
  %v237 = vld [vmem:[%s236] sm:$0x3]
  %v238 = vunpack.c.l.bf16 %v237
  %v239 = vmax.f32 %v238, 0.0
  %s240 = scalar_lea.vmem %s1, 68
  %v241 = vld [vmem:[%s240] sm:$0xf]
  %243 = vset.pattern.permute.xlu0 0
  %244 = vperm.xlu0 %243, %v241
  %v245 = vpop.permute.xlu0 %244
  %v247 = vmul.f32 %v239, %v245
  %v248 = vadd.f32 %v235, %v247
  %s249 = scalar_lea.vmem %s0, 36
  %v250 = vld [vmem:[%s249] sm:$0x3]
  %v251 = vunpack.c.l.bf16 %v250
  %v252 = vmax.f32 %v251, 0.0
  %s253 = scalar_lea.vmem %s1, 72
  %v254 = vld [vmem:[%s253] sm:$0xf]
  %256 = vset.pattern.permute.xlu0 0
  %257 = vperm.xlu0 %256, %v254
  %v258 = vpop.permute.xlu0 %257
  %v260 = vmul.f32 %v252, %v258
  %v261 = vadd.f32 %v248, %v260
  %s262 = scalar_lea.vmem %s0, 38
  %v263 = vld [vmem:[%s262] sm:$0x3]
  %v264 = vunpack.c.l.bf16 %v263
  %v265 = vmax.f32 %v264, 0.0
  %s266 = scalar_lea.vmem %s1, 76
  %v267 = vld [vmem:[%s266] sm:$0xf]
  %269 = vset.pattern.permute.xlu0 0
  %270 = vperm.xlu0 %269, %v267
  %v271 = vpop.permute.xlu0 %270
  %v273 = vmul.f32 %v265, %v271
  %v274 = vadd.f32 %v261, %v273
  %s275 = scalar_lea.vmem %s0, 40
  %v276 = vld [vmem:[%s275] sm:$0x3]
  %v277 = vunpack.c.l.bf16 %v276
  %v278 = vmax.f32 %v277, 0.0
  %s279 = scalar_lea.vmem %s1, 80
  %v280 = vld [vmem:[%s279] sm:$0xf]
  %282 = vset.pattern.permute.xlu0 0
  %283 = vperm.xlu0 %282, %v280
  %v284 = vpop.permute.xlu0 %283
  %v286 = vmul.f32 %v278, %v284
  %v287 = vadd.f32 %v274, %v286
  %s288 = scalar_lea.vmem %s0, 42
  %v289 = vld [vmem:[%s288] sm:$0x3]
  %v290 = vunpack.c.l.bf16 %v289
  %v291 = vmax.f32 %v290, 0.0
  %s292 = scalar_lea.vmem %s1, 84
  %v293 = vld [vmem:[%s292] sm:$0xf]
  %295 = vset.pattern.permute.xlu0 0
  %296 = vperm.xlu0 %295, %v293
  %v297 = vpop.permute.xlu0 %296
  %v299 = vmul.f32 %v291, %v297
  %v300 = vadd.f32 %v287, %v299
  %s301 = scalar_lea.vmem %s0, 44
  %v302 = vld [vmem:[%s301] sm:$0x3]
  %v303 = vunpack.c.l.bf16 %v302
  %v304 = vmax.f32 %v303, 0.0
  %s305 = scalar_lea.vmem %s1, 88
  %v306 = vld [vmem:[%s305] sm:$0xf]
  %308 = vset.pattern.permute.xlu0 0
  %309 = vperm.xlu0 %308, %v306
  %v310 = vpop.permute.xlu0 %309
  %v312 = vmul.f32 %v304, %v310
  %v313 = vadd.f32 %v300, %v312
  %s314 = scalar_lea.vmem %s0, 46
  %v315 = vld [vmem:[%s314] sm:$0x3]
  %v316 = vunpack.c.l.bf16 %v315
  %v317 = vmax.f32 %v316, 0.0
  %s318 = scalar_lea.vmem %s1, 92
  %v319 = vld [vmem:[%s318] sm:$0xf]
  %321 = vset.pattern.permute.xlu0 0
  %322 = vperm.xlu0 %321, %v319
  %v323 = vpop.permute.xlu0 %322
  %v325 = vmul.f32 %v317, %v323
  %v326 = vadd.f32 %v313, %v325
  %s327 = scalar_lea.vmem %s0, 48
  %v328 = vld [vmem:[%s327] sm:$0x3]
  %v329 = vunpack.c.l.bf16 %v328
  %v330 = vmax.f32 %v329, 0.0
  %s331 = scalar_lea.vmem %s1, 96
  %v332 = vld [vmem:[%s331] sm:$0xf]
  %334 = vset.pattern.permute.xlu0 0
  %335 = vperm.xlu0 %334, %v332
  %v336 = vpop.permute.xlu0 %335
  %v338 = vmul.f32 %v330, %v336
  %v339 = vadd.f32 %v326, %v338
  %v340 = vld [vmem:[%s2] sm:$0x3]
  %v341 = vpack.c.bf16 %v339, %v339
  %vm342 = vcmask 31744
  %v344 = vsel %vm342, %v340, 0
  %vm346 = vcmask 1041408
  %v348 = vsel %vm346, %v341, 0
  %350 = vmatprep.subr.bf16.mxu0 0
  %351 = vmatpush1.bf16.msra.mxu0 0
  %352 = vmatprep.subr.bf16.mxu0 0
  %353 = vmatpush1.bf16.msra.mxu0 0
  %354 = vmatprep.subr.bf16.mxu0 0
  %355 = vmatpush1.bf16.msra.mxu0 0
  %356 = vmatprep.subr.bf16.mxu0 0
  %357 = vmatpush1.bf16.msra.mxu0 0
  %358 = vmatprep.subr.bf16.mxu0 0
  %359 = vmatpush1.bf16.msra.mxu0 0
  %360 = vmatprep.subr.bf16.mxu0 0
  %361 = vmatpush1.bf16.msra.mxu0 0
  %362 = vmatprep.subr.bf16.mxu0 0
  %363 = vmatpush1.bf16.msra.mxu0 0
  %364 = vmatprep.subr.bf16.mxu0 0
  %365 = vmatpush1.bf16.msra.mxu0 %v348
  %366 = vmatprep.subr.bf16.mxu0 0
  %367 = vmatpush2.bf16.msra.mxu0 0
  %368 = vmatprep.subr.bf16.mxu0 0
  %369 = vmatpush2.bf16.msra.mxu0 0
  %370 = vmatprep.subr.bf16.mxu0 0
  %371 = vmatpush2.bf16.msra.mxu0 0
  %372 = vmatprep.subr.bf16.mxu0 0
  %373 = vmatpush2.bf16.msra.mxu0 0
  %374 = vmatprep.subr.bf16.mxu0 0
  %375 = vmatpush2.bf16.msra.mxu0 0
  %376 = vmatprep.subr.bf16.mxu0 0
  %377 = vmatpush2.bf16.msra.mxu0 0
  %378 = vmatprep.subr.bf16.mxu0 0
  %379 = vmatpush2.bf16.msra.mxu0 0
  %380 = vmatprep.subr.bf16.mxu0 0
  %381 = vmatpush2.bf16.msra.mxu0 0
  %382 = vmatprep.mubr.bf16.mxu0 0
  %383 = vmatmul.mubr.bf16.gmra.mxu0 %v344
  %v384 = vpop.f32.mrf.mxu0
  %v385 = vadd.f32 0.0, %v384
  %v386 = vpop.f32.mrf.mxu0
  %v387 = vpop.f32.mrf.mxu0
  %v388 = vpop.f32.mrf.mxu0
  %389 = vdwg.mxu0
  %390 = vst [vmem:[%s3] sm:$0xf] %v385
  %p391 = scmp.eq.s32.totalorder 0, 0
  // Predicated region
  $region14: #{forward.225} parent=0 // pred_check
    %p392 = pneg %p391
  $region15: #{forward.225} parent=0 // pred_check_branch
    %394 = sbr.rel (%p392) target = $region17
  $region16: #{forward.225} parent=0 // pred_region
    %vm395 = vcmask 3072
    %396 = vst.msk [vmem:[%s4] sm:$0xf] %vm395, 0.0
    %397 = vst.msk [vmem:[%s5] sm:$0xf] %vm395, 0.0
  $region17: #{forward.225} parent=0 // pred_fallthru
    _
  %v398 = vld [vmem:[%s4] sm:$0xf]
  %vm399 = vcmask 1043456
  %v400 = vsel %vm399, %v385, 0.0
  %401 = vadd.xlane.f32.xlu0 %v400
  %v402 = vpop.xlane.xlu0 %401
  %v403 = vadd.f32 %v398, %v402
  %vm404 = vcmask 3072
  %405 = vst.msk [vmem:[%s4] sm:$0xf] %vm404, %v403
  %v406 = vld [vmem:[%s5] sm:$0xf]
  %v407 = vmul.f32 %v385, %v385
  %v408 = vsel %vm399, %v407, 0.0
  %409 = vadd.xlane.f32.xlu0 %v408
  %v410 = vpop.xlane.xlu0 %409
  %v411 = vadd.f32 %v406, %v410
  %412 = vst.msk [vmem:[%s5] sm:$0xf] %vm404, %v411
  // Predicated region
  $region18: #{forward.225} parent=0 // pred_check
    _
  $region19: #{forward.225} parent=0 // pred_check_branch
    %414 = sbr.rel (0) target = $region21
  $region20: #{forward.225} parent=0 // pred_region
    _
  $region21: #{forward.225} parent=0 // pred_fallthru
    _
  // Predicated region
  $region22: #{forward.225} parent=0 // pred_check
    _
  $region23: #{forward.225} parent=0 // pred_check_branch
    %416 = sbr.rel (0) target = $region25
  $region24: #{forward.225} parent=0 // pred_region
    _
  $region25: #{forward.225} parent=0 // pred_fallthru
    _
  // Predicated region
  $region26: #{forward.225} parent=0 // pred_check
    _
  $region27: #{forward.225} parent=0 // pred_check_branch
    %418 = sbr.rel (0) target = $region29
  $region28: #{forward.225} parent=0 // pred_region
    _
  $region29: #{forward.225} parent=0 // pred_fallthru
    _
  // Predicated region
  $region30: #{forward.225} parent=0 // pred_check
    _
  $region31: #{forward.225} parent=0 // pred_check_branch
    %420 = sbr.rel (0) target = $region33
  $region32: #{forward.225} parent=0 // pred_region
    _
  $region33: #{forward.225} parent=0 // pred_fallthru
    _
  // Predicated region
  $region34: #{forward.225} parent=0 // pred_check
    _
  $region35: #{forward.225} parent=0 // pred_check_branch
    %422 = sbr.rel (0) target = $region37
  $region36: #{forward.225} parent=0 // pred_region
    _
  $region37: #{forward.225} parent=0 // pred_fallthru
    _
  // Predicated region
  $region38: #{forward.225} parent=0 // pred_check
    _
  $region39: #{forward.225} parent=0 // pred_check_branch
    %424 = sbr.rel (0) target = $region41
  $region40: #{forward.225} parent=0 // pred_region
    _
  $region41: #{forward.225} parent=0 // pred_fallthru
    _

// kernel: forward.233
$region0: #{forward.233}
  #allocation0 [shape = 'u32[]', space=smem, size = 0x4, offset = 0x4, fixed_abs, tag = 'smem constant byte address 0x4 - core index']
  #allocation1 [shape = 'u32[144,128]{1,0:T(1,128)}', space=vmem, size = 0x12000, scoped, tag = 'internal scratch']
  %s0 = inlined_call_operand.vmem [shape: f32[4,128], index: 0, kind: input, shape index: {}]
  %s1 = inlined_call_operand.vmem [shape: f32[4,128], index: 1, kind: input, shape index: {}]
  %s2 = inlined_call_operand.vmem [shape: f32[4,128], index: 2, kind: input, shape index: {}]
  %s3 = inlined_call_operand.vmem [shape: f32[4,128], index: 3, kind: input, shape index: {}]
  %s4 = inlined_call_operand.vmem [shape: f32[4,128], index: 4, kind: input, shape index: {}]
  %s5 = inlined_call_operand.vmem [shape: f32[4,128], index: 5, kind: input, shape index: {}]
  %s6 = inlined_call_operand.vmem [shape: f32[4,128], index: 6, kind: input, shape index: {}]
  %s7 = inlined_call_operand.vmem [shape: f32[7,1], index: 7, kind: input, shape index: {}]
  %s8 = inlined_call_operand.vmem [shape: f32[4,128], index: 8, kind: output, shape index: {}]
  %s9 = sld [smem:[#allocation0]]
  $region46: #{forward.233} parent=0
    _
  %s11 = ssub.s32 1, %s9
  %s12 = scalar_select 0, %s11, %s9
  $region1: #{forward.233} parent=0
    #allocation2 [shape = 'u8[4096]{0}', space=smem, size = 0x1000, scoped, tag = 'input window, operand 7, single buffered']
    #allocation3 [shape = 's32[1]{0}', space=sflag, size = 0x4, scoped, tag = 'scoped memory for forward.233']
    %13 = vsyncpa [#allocation3], 0
    // Predicated region
    $region2: #{forward.233} parent=1 // pred_check
      _
    $region3: #{forward.233} parent=1 // pred_check_branch
      %15 = sbr.rel (0) target = $region5
    $region4: #{forward.233} parent=1 // pred_region
      _
    $region5: #{forward.233} parent=1 // pred_fallthru
      _
    // Predicated region
    $region6: #{forward.233} parent=1 // pred_check
      _
    $region7: #{forward.233} parent=1 // pred_check_branch
      %17 = sbr.rel (0) target = $region9
    $region8: #{forward.233} parent=1 // pred_region
      _
    $region9: #{forward.233} parent=1 // pred_fallthru
      _
    // Predicated region
    $region10: #{forward.233} parent=1 // pred_check
      _
    $region11: #{forward.233} parent=1 // pred_check_branch
      %19 = sbr.rel (0) target = $region13
    $region12: #{forward.233} parent=1 // pred_region
      _
    $region13: #{forward.233} parent=1 // pred_fallthru
      _
    // Predicated region
    $region14: #{forward.233} parent=1 // pred_check
      _
    $region15: #{forward.233} parent=1 // pred_check_branch
      %21 = sbr.rel (0) target = $region17
    $region16: #{forward.233} parent=1 // pred_region
      _
    $region17: #{forward.233} parent=1 // pred_fallthru
      _
    // Predicated region
    $region18: #{forward.233} parent=1 // pred_check
      _
    $region19: #{forward.233} parent=1 // pred_check_branch
      %23 = sbr.rel (0) target = $region21
    $region20: #{forward.233} parent=1 // pred_region
      _
    $region21: #{forward.233} parent=1 // pred_fallthru
      _
    // Predicated region
    $region22: #{forward.233} parent=1 // pred_check
      _
    $region23: #{forward.233} parent=1 // pred_check_branch
      %25 = sbr.rel (0) target = $region25
    $region24: #{forward.233} parent=1 // pred_region
      _
    $region25: #{forward.233} parent=1 // pred_fallthru
      _
    // Predicated region
    $region26: #{forward.233} parent=1 // pred_check
      _
    $region27: #{forward.233} parent=1 // pred_check_branch
      %27 = sbr.rel (0) target = $region29
    $region28: #{forward.233} parent=1 // pred_region
      _
    $region29: #{forward.233} parent=1 // pred_fallthru
      _
    // Predicated region
    $region30: #{forward.233} parent=1 // pred_check
      _
    $region31: #{forward.233} parent=1 // pred_check_branch
      %29 = sbr.rel (0) target = $region33
    $region32: #{forward.233} parent=1 // pred_region
      %s31 = ssub.s32 128, 128
      %32 = vsyncadd [#allocation3], %s31
      %s34 = sshll.u32 %s7, 4
      %s35 = int_to_ptr.vmem [resolvable:$true] %s34
      %37 = dma.vmem_to_smem %s35, 128, [#allocation2], [#allocation3]
    $region33: #{forward.233} parent=1 // pred_fallthru
      _
    // Predicated region
    $region34: #{forward.233} parent=1 // pred_check
      _
    $region35: #{forward.233} parent=1 // pred_check_branch
      %39 = sbr.rel (0) target = $region37
    $region36: #{forward.233} parent=1 // pred_region
      %40 = dma.done [#allocation3], 128
    $region37: #{forward.233} parent=1 // pred_fallthru
      _
    %41 = sfence
    %v42 = vld [vmem:[%s0] sm:$0xf]
    %s43 = sld [smem:[#allocation2]]
    %v44 = vstv %s43
    %v45 = vmul.f32 %v42, %v44
    %v46 = vld [vmem:[%s1] sm:$0xf]
    %s47 = sld [smem:[#allocation2 + $0x80]]
    %v48 = vstv %s47
    %v49 = vmul.f32 %v46, %v48
    %v50 = vadd.f32 %v45, %v49
    %v51 = vld [vmem:[%s2] sm:$0xf]
    %s52 = sld [smem:[#allocation2 + $0x100]]
    %v53 = vstv %s52
    %v54 = vmul.f32 %v51, %v53
    %v55 = vadd.f32 %v50, %v54
    %v56 = vld [vmem:[%s3] sm:$0xf]
    %s57 = sld [smem:[#allocation2 + $0x180]]
    %v58 = vstv %s57
    %v59 = vmul.f32 %v56, %v58
    %v60 = vadd.f32 %v55, %v59
    %v61 = vld [vmem:[%s4] sm:$0xf]
    %s62 = sld [smem:[#allocation2 + $0x200]]
    %v63 = vstv %s62
    %v64 = vmul.f32 %v61, %v63
    %v65 = vadd.f32 %v60, %v64
    %v66 = vld [vmem:[%s5] sm:$0xf]
    %s67 = sld [smem:[#allocation2 + $0x280]]
    %v68 = vstv %s67
    %v69 = vmul.f32 %v66, %v68
    %v70 = vadd.f32 %v65, %v69
    %v71 = vld [vmem:[%s6] sm:$0xf]
    %s72 = sld [smem:[#allocation2 + $0x300]]
    %v73 = vstv %s72
    %v74 = vmul.f32 %v71, %v73
    %v75 = vadd.f32 %v70, %v74
    %76 = vst [vmem:[%s8] sm:$0xf] %v75
    // Predicated region
    $region38: #{forward.233} parent=1 // pred_check
      _
    $region39: #{forward.233} parent=1 // pred_check_branch
      %78 = sbr.rel (0) target = $region41
    $region40: #{forward.233} parent=1 // pred_region
      _
    $region41: #{forward.233} parent=1 // pred_fallthru
      _
    // Predicated region
    $region42: #{forward.233} parent=1 // pred_check
      _
    $region43: #{forward.233} parent=1 // pred_check_branch
      %80 = sbr.rel (0) target = $region45
    $region44: #{forward.233} parent=1 // pred_region
      _
    $region45: #{forward.233} parent=1 // pred_fallthru
      _
    %81 = vsyncpa [#allocation3], 1

// kernel: forward.255
$region0: #{forward.255}
  #allocation0 [shape = 'u32[]', space=smem, size = 0x4, offset = 0x4, fixed_abs, tag = 'smem constant byte address 0x4 - core index']
  #allocation1 [shape = 'u32[144,128]{1,0:T(1,128)}', space=vmem, size = 0x12000, scoped, tag = 'internal scratch']
  %s0 = inlined_call_operand.vmem [shape: f32[16,128], index: 0, kind: input, shape index: {}]
  %s1 = inlined_call_operand.vmem [shape: f32[16,128], index: 1, kind: input, shape index: {}]
  %s2 = inlined_call_operand.vmem [shape: f32[2,1], index: 2, kind: input, shape index: {}]
  %s3 = inlined_call_operand.vmem [shape: f32[16,128], index: 3, kind: output, shape index: {}]
  %s4 = sld [smem:[#allocation0]]
  $region26: #{forward.255} parent=0
    _
  %s6 = ssub.s32 1, %s4
  %s7 = scalar_select 0, %s6, %s4
  $region1: #{forward.255} parent=0
    #allocation2 [shape = 'u8[1024]{0}', space=smem, size = 0x400, scoped, tag = 'input window, operand 2, single buffered']
    #allocation3 [shape = 's32[1]{0}', space=sflag, size = 0x4, scoped, tag = 'scoped memory for forward.255']
    %8 = vsyncpa [#allocation3], 0
    // Predicated region
    $region2: #{forward.255} parent=1 // pred_check
      _
    $region3: #{forward.255} parent=1 // pred_check_branch
      %10 = sbr.rel (0) target = $region5
    $region4: #{forward.255} parent=1 // pred_region
      _
    $region5: #{forward.255} parent=1 // pred_fallthru
      _
    // Predicated region
    $region6: #{forward.255} parent=1 // pred_check
      _
    $region7: #{forward.255} parent=1 // pred_check_branch
      %12 = sbr.rel (0) target = $region9
    $region8: #{forward.255} parent=1 // pred_region
      _
    $region9: #{forward.255} parent=1 // pred_fallthru
      _
    // Predicated region
    $region10: #{forward.255} parent=1 // pred_check
      _
    $region11: #{forward.255} parent=1 // pred_check_branch
      %14 = sbr.rel (0) target = $region13
    $region12: #{forward.255} parent=1 // pred_region
      %s16 = ssub.s32 32, 32
      %17 = vsyncadd [#allocation3], %s16
      %s19 = sshll.u32 %s2, 4
      %s20 = int_to_ptr.vmem [resolvable:$true] %s19
      %22 = dma.vmem_to_smem %s20, 32, [#allocation2], [#allocation3]
    $region13: #{forward.255} parent=1 // pred_fallthru
      _
    // Predicated region
    $region14: #{forward.255} parent=1 // pred_check
      _
    $region15: #{forward.255} parent=1 // pred_check_branch
      %24 = sbr.rel (0) target = $region17
    $region16: #{forward.255} parent=1 // pred_region
      %25 = dma.done [#allocation3], 32
    $region17: #{forward.255} parent=1 // pred_fallthru
      _
    %26 = sfence
    %v27 = vld [vmem:[%s0] sm:$0xff]
    %v28 = vld [vmem:[%s0 + $0x8] sm:$0xff]
    %s29 = sld [smem:[#allocation2]]
    %v30 = vstv %s29
    %v31 = vmul.f32 %v27, %v30
    %v32 = vmul.f32 %v28, %v30
    %v33 = vld [vmem:[%s1] sm:$0xff]
    %v34 = vld [vmem:[%s1 + $0x8] sm:$0xff]
    %s35 = sld [smem:[#allocation2 + $0x80]]
    %v36 = vstv %s35
    %v37 = vmul.f32 %v33, %v36
    %v38 = vmul.f32 %v34, %v36
    %v39 = vadd.f32 %v31, %v37
    %v40 = vadd.f32 %v32, %v38
    %41 = vst [vmem:[%s3] sm:$0xff] %v39
    %42 = vst [vmem:[%s3 + $0x8] sm:$0xff] %v40
    // Predicated region
    $region18: #{forward.255} parent=1 // pred_check
      _
    $region19: #{forward.255} parent=1 // pred_check_branch
      %44 = sbr.rel (0) target = $region21
    $region20: #{forward.255} parent=1 // pred_region
      _
    $region21: #{forward.255} parent=1 // pred_fallthru
      _
    // Predicated region
    $region22: #{forward.255} parent=1 // pred_check
      _
    $region23: #{forward.255} parent=1 // pred_check_branch
      %46 = sbr.rel (0) target = $region25
    $region24: #{forward.255} parent=1 // pred_region
      _
    $region25: #{forward.255} parent=1 // pred_fallthru
      _
    %47 = vsyncpa [#allocation3], 1

// kernel: forward.307
$region0: #{forward.307}
  #allocation0 [shape = 'u32[]', space=smem, size = 0x4, offset = 0x4, fixed_abs, tag = 'smem constant byte address 0x4 - core index']
  #allocation1 [shape = 'u32[144,128]{1,0:T(1,128)}', space=vmem, size = 0x12000, scoped, tag = 'internal scratch']
  %s0 = inlined_call_operand.vmem [shape: f32[32,1], index: 0, kind: input, shape index: {}]
  %s1 = inlined_call_operand.vmem [shape: f32[32,1], index: 1, kind: input, shape index: {}]
  %s2 = inlined_call_operand.vmem [shape: f32[32,128], index: 2, kind: input, shape index: {}]
  %s3 = inlined_call_operand.vmem [shape: f32[32,128], index: 3, kind: output, shape index: {}]
  %s4 = sld [smem:[#allocation0]]
  $region22: #{forward.307} parent=0
    _
  %s6 = ssub.s32 1, %s4
  %s7 = scalar_select 0, %s6, %s4
  // Predicated region
  $region2: #{forward.307} parent=0 // pred_check
    _
  $region3: #{forward.307} parent=0 // pred_check_branch
    %9 = sbr.rel (0) target = $region5
  $region4: #{forward.307} parent=0 // pred_region
    _
  $region5: #{forward.307} parent=0 // pred_fallthru
    _
  // Predicated region
  $region6: #{forward.307} parent=0 // pred_check
    _
  $region7: #{forward.307} parent=0 // pred_check_branch
    %11 = sbr.rel (0) target = $region9
  $region8: #{forward.307} parent=0 // pred_region
    _
  $region9: #{forward.307} parent=0 // pred_fallthru
    _
  // Predicated region
  $region10: #{forward.307} parent=0 // pred_check
    _
  $region11: #{forward.307} parent=0 // pred_check_branch
    %13 = sbr.rel (0) target = $region13
  $region12: #{forward.307} parent=0 // pred_region
    _
  $region13: #{forward.307} parent=0 // pred_fallthru
    _
  %v14 = vld [vmem:[%s0] sm:$0xff]
  %v15 = vld [vmem:[%s0 + $0x8] sm:$0xff]
  %v16 = vld [vmem:[%s0 + $0x10] sm:$0xff]
  %v17 = vld [vmem:[%s0 + $0x18] sm:$0xff]
  %v18 = vmul.f32 %v14, 0.0078125
  %v19 = vmul.f32 %v15, 0.0078125
  %v20 = vmul.f32 %v16, 0.0078125
  %v21 = vmul.f32 %v17, 0.0078125
  %v22 = vld [vmem:[%s1] sm:$0xff]
  %v23 = vld [vmem:[%s1 + $0x8] sm:$0xff]
  %v24 = vld [vmem:[%s1 + $0x10] sm:$0xff]
  %v25 = vld [vmem:[%s1 + $0x18] sm:$0xff]
  %v26 = vmul.f32 %v22, 0.0078125
  %v27 = vmul.f32 %v23, 0.0078125
  %v28 = vmul.f32 %v24, 0.0078125
  %v29 = vmul.f32 %v25, 0.0078125
  %v30 = vmul.f32 %v18, %v18
  %v31 = vmul.f32 %v19, %v19
  %v32 = vmul.f32 %v20, %v20
  %v33 = vmul.f32 %v21, %v21
  %v34 = vsub.f32 %v26, %v30
  %v35 = vsub.f32 %v27, %v31
  %v36 = vsub.f32 %v28, %v32
  %v37 = vsub.f32 %v29, %v33
  %v38 = vmax.f32 %v34, 0.0
  %v39 = vmax.f32 %v35, 0.0
  %v40 = vmax.f32 %v36, 0.0
  %v41 = vmax.f32 %v37, 0.0
  %v42 = vld [vmem:[%s2] sm:$0xff]
  %v43 = vld [vmem:[%s2 + $0x8] sm:$0xff]
  %v44 = vld [vmem:[%s2 + $0x10] sm:$0xff]
  %v45 = vld [vmem:[%s2 + $0x18] sm:$0xff]
  %47 = vset.pattern.permute.xlu0 0
  %48 = vperm.xlu0 %47, %v18
  %v49 = vpop.permute.xlu0 %48
  %52 = vset.pattern.permute.xlu0 0
  %53 = vperm.xlu0 %52, %v19
  %v54 = vpop.permute.xlu0 %53
  %57 = vset.pattern.permute.xlu0 0
  %58 = vperm.xlu0 %57, %v20
  %v59 = vpop.permute.xlu0 %58
  %62 = vset.pattern.permute.xlu0 0
  %63 = vperm.xlu0 %62, %v21
  %v64 = vpop.permute.xlu0 %63
  %v66 = vsub.f32 %v42, %v49
  %v67 = vsub.f32 %v43, %v54
  %v68 = vsub.f32 %v44, %v59
  %v69 = vsub.f32 %v45, %v64
  %v70 = vadd.f32 %v38, 1e-05
  %v71 = vadd.f32 %v39, 1e-05
  %v72 = vadd.f32 %v40, 1e-05
  %v73 = vadd.f32 %v41, 1e-05
  %v74 = vrsqrt.pop %v70
  %v75 = vrsqrt.pop %v71
  %v76 = vrsqrt.pop %v72
  %v77 = vrsqrt.pop %v73
  %79 = vset.pattern.permute.xlu0 0
  %80 = vperm.xlu0 %79, %v74
  %v81 = vpop.permute.xlu0 %80
  %84 = vset.pattern.permute.xlu0 0
  %85 = vperm.xlu0 %84, %v75
  %v86 = vpop.permute.xlu0 %85
  %89 = vset.pattern.permute.xlu0 0
  %90 = vperm.xlu0 %89, %v76
  %v91 = vpop.permute.xlu0 %90
  %94 = vset.pattern.permute.xlu0 0
  %95 = vperm.xlu0 %94, %v77
  %v96 = vpop.permute.xlu0 %95
  %v98 = vmul.f32 %v66, %v81
  %v99 = vmul.f32 %v67, %v86
  %v100 = vmul.f32 %v68, %v91
  %v101 = vmul.f32 %v69, %v96
  %102 = vst [vmem:[%s3] sm:$0xff] %v98
  %103 = vst [vmem:[%s3 + $0x8] sm:$0xff] %v99
  %104 = vst [vmem:[%s3 + $0x10] sm:$0xff] %v100
  %105 = vst [vmem:[%s3 + $0x18] sm:$0xff] %v101
  // Predicated region
  $region14: #{forward.307} parent=0 // pred_check
    _
  $region15: #{forward.307} parent=0 // pred_check_branch
    %107 = sbr.rel (0) target = $region17
  $region16: #{forward.307} parent=0 // pred_region
    _
  $region17: #{forward.307} parent=0 // pred_fallthru
    _
  // Predicated region
  $region18: #{forward.307} parent=0 // pred_check
    _
  $region19: #{forward.307} parent=0 // pred_check_branch
    %109 = sbr.rel (0) target = $region21
  $region20: #{forward.307} parent=0 // pred_region
    _
  $region21: #{forward.307} parent=0 // pred_fallthru
    _

// kernel: forward.306
$region0: #{forward.306}
  #allocation0 [shape = 'u32[]', space=smem, size = 0x4, offset = 0x4, fixed_abs, tag = 'smem constant byte address 0x4 - core index']
  #allocation1 [shape = 'u32[144,128]{1,0:T(1,128)}', space=vmem, size = 0x12000, scoped, tag = 'internal scratch']
  %s0 = inlined_call_operand.vmem [shape: bf16[32,32], index: 0, kind: input, shape index: {}]
  %s1 = inlined_call_operand.vmem [shape: f32[32,128], index: 1, kind: input, shape index: {}]
  %s2 = inlined_call_operand.vmem [shape: f32[32,128], index: 2, kind: output, shape index: {0}]
  %s3 = inlined_call_operand.vmem [shape: f32[32,1], index: 3, kind: output, shape index: {1}]
  %s4 = inlined_call_operand.vmem [shape: f32[32,1], index: 4, kind: output, shape index: {2}]
  %5 = xla_tuple %s2, %s3, %s4
  %s6 = sld [smem:[#allocation0]]
  $region38: #{forward.306} parent=0
    _
  %s8 = ssub.s32 1, %s6
  %s9 = scalar_select 0, %s8, %s6
  // Predicated region
  $region2: #{forward.306} parent=0 // pred_check
    _
  $region3: #{forward.306} parent=0 // pred_check_branch
    %11 = sbr.rel (0) target = $region5
  $region4: #{forward.306} parent=0 // pred_region
    _
  $region5: #{forward.306} parent=0 // pred_fallthru
    _
  // Predicated region
  $region6: #{forward.306} parent=0 // pred_check
    _
  $region7: #{forward.306} parent=0 // pred_check_branch
    %13 = sbr.rel (0) target = $region9
  $region8: #{forward.306} parent=0 // pred_region
    _
  $region9: #{forward.306} parent=0 // pred_fallthru
    _
  %v15 = vld [vmem:[%s1] sm:$0xff]
  %v16 = vld [vmem:[%s1 + $0x8] sm:$0xff]
  %v17 = vld [vmem:[%s1 + $0x10] sm:$0xff]
  %v18 = vld [vmem:[%s1 + $0x18] sm:$0xff]
  %v19 = vmax.f32 %v15, 0.0
  %v20 = vmax.f32 %v16, 0.0
  %v21 = vmax.f32 %v17, 0.0
  %v22 = vmax.f32 %v18, 0.0
  %v23 = vld [vmem:[%s0] sm:$0xf]
  %v24 = vld [vmem:[%s0 + $0x4] sm:$0xf]
  %v25 = vld [vmem:[%s0 + $0x8] sm:$0xf]
  %v26 = vld [vmem:[%s0 + $0xc] sm:$0xf]
  %v27 = vpack.c.bf16 %v20, %v19
  %v28 = vpack.c.bf16 %v22, %v21
  %v33 = vunpack.c.l.b16 %v23
  %v34 = vunpack.c.l.b16 %v24
  %v35 = vunpack.c.l.b16 %v25
  %v36 = vunpack.c.l.b16 %v26
  %v37 = vpack.c.b16 %v34, %v33
  %v38 = vpack.c.b16 %v36, %v35
  %vm39 = vcmask 261120
  %v41 = vsel %vm39, %v37, 0
  %v44 = vsel %vm39, %v38, 0
  %46 = vmatprep.subr.bf16.mxu0 0
  %47 = vmatpush1.bf16.msra.mxu0 0
  %48 = vmatprep.subr.bf16.mxu0 0
  %49 = vmatpush1.bf16.msra.mxu0 0
  %50 = vmatprep.subr.bf16.mxu0 0
  %51 = vmatpush1.bf16.msra.mxu0 0
  %52 = vmatprep.subr.bf16.mxu0 0
  %53 = vmatpush1.bf16.msra.mxu0 0
  %54 = vmatprep.subr.bf16.mxu0 0
  %55 = vmatpush1.bf16.msra.mxu0 0
  %56 = vmatprep.subr.bf16.mxu0 0
  %57 = vmatpush1.bf16.msra.mxu0 0
  %58 = vmatprep.subr.bf16.mxu0 0
  %59 = vmatpush1.bf16.msra.mxu0 %v28
  %60 = vmatprep.subr.bf16.mxu0 0
  %61 = vmatpush1.bf16.msra.mxu0 %v27
  %62 = vmatprep.subr.bf16.mxu0 0
  %63 = vmatpush2.bf16.msra.mxu0 0
  %64 = vmatprep.subr.bf16.mxu0 0
  %65 = vmatpush2.bf16.msra.mxu0 0
  %66 = vmatprep.subr.bf16.mxu0 0
  %67 = vmatpush2.bf16.msra.mxu0 0
  %68 = vmatprep.subr.bf16.mxu0 0
  %69 = vmatpush2.bf16.msra.mxu0 0
  %70 = vmatprep.subr.bf16.mxu0 0
  %71 = vmatpush2.bf16.msra.mxu0 0
  %72 = vmatprep.subr.bf16.mxu0 0
  %73 = vmatpush2.bf16.msra.mxu0 0
  %74 = vmatprep.subr.bf16.mxu0 0
  %75 = vmatpush2.bf16.msra.mxu0 0
  %76 = vmatprep.subr.bf16.mxu0 0
  %77 = vmatpush2.bf16.msra.mxu0 0
  %78 = vmatprep.mubr.bf16.mxu0 0
  %79 = vmatmul.mubr.bf16.gmra.mxu0 %v41
  %v80 = vpop.f32.mrf.mxu0
  %v81 = vadd.f32 0.0, %v80
  %v82 = vpop.f32.mrf.mxu0
  %v83 = vpop.f32.mrf.mxu0
  %v84 = vadd.f32 0.0, %v83
  %v85 = vpop.f32.mrf.mxu0
  %86 = vmatprep.mubr.bf16.mxu0 0
  %87 = vmatmul.mubr.bf16.gmra.mxu0 %v44
  %v88 = vpop.f32.mrf.mxu0
  %v89 = vadd.f32 0.0, %v88
  %v90 = vpop.f32.mrf.mxu0
  %v91 = vpop.f32.mrf.mxu0
  %v92 = vadd.f32 0.0, %v91
  %v93 = vpop.f32.mrf.mxu0
  %94 = vdwg.mxu0
  %95 = vst [vmem:[%s2] sm:$0xff] %v81
  %96 = vst [vmem:[%s2 + $0x8] sm:$0xff] %v84
  %97 = vst [vmem:[%s2 + $0x10] sm:$0xff] %v89
  %98 = vst [vmem:[%s2 + $0x18] sm:$0xff] %v92
  %p99 = scmp.eq.s32.totalorder 0, 0
  // Predicated region
  $region10: #{forward.306} parent=0 // pred_check
    %p100 = pneg %p99
  $region11: #{forward.306} parent=0 // pred_check_branch
    %102 = sbr.rel (%p100) target = $region13
  $region12: #{forward.306} parent=0 // pred_region
    %vm103 = vcmask 7168
    %104 = vst.msk [vmem:[%s3] sm:$0xff] %vm103, 0.0
    %105 = vst.msk [vmem:[%s3 + $0x8] sm:$0xff] %vm103, 0.0
    %106 = vst.msk [vmem:[%s3 + $0x10] sm:$0xff] %vm103, 0.0
    %107 = vst.msk [vmem:[%s3 + $0x18] sm:$0xff] %vm103, 0.0
    %108 = vst.msk [vmem:[%s4] sm:$0xff] %vm103, 0.0
    %109 = vst.msk [vmem:[%s4 + $0x8] sm:$0xff] %vm103, 0.0
    %110 = vst.msk [vmem:[%s4 + $0x10] sm:$0xff] %vm103, 0.0
    %111 = vst.msk [vmem:[%s4 + $0x18] sm:$0xff] %vm103, 0.0
  $region13: #{forward.306} parent=0 // pred_fallthru
    _
  %v112 = vld [vmem:[%s3] sm:$0xff]
  %v113 = vld [vmem:[%s3 + $0x8] sm:$0xff]
  %v114 = vld [vmem:[%s3 + $0x10] sm:$0xff]
  %v115 = vld [vmem:[%s3 + $0x18] sm:$0xff]
  %116 = vadd.xlane.f32.xlu0 %v81
  %v117 = vpop.xlane.xlu0 %116
  %118 = vadd.xlane.f32.xlu0 %v84
  %v119 = vpop.xlane.xlu0 %118
  %120 = vadd.xlane.f32.xlu0 %v89
  %v121 = vpop.xlane.xlu0 %120
  %122 = vadd.xlane.f32.xlu0 %v92
  %v123 = vpop.xlane.xlu0 %122
  %v124 = vadd.f32 %v112, %v117
  %v125 = vadd.f32 %v113, %v119
  %v126 = vadd.f32 %v114, %v121
  %v127 = vadd.f32 %v115, %v123
  %vm128 = vcmask 7168
  %129 = vst.msk [vmem:[%s3] sm:$0xff] %vm128, %v124
  %130 = vst.msk [vmem:[%s3 + $0x8] sm:$0xff] %vm128, %v125
  %131 = vst.msk [vmem:[%s3 + $0x10] sm:$0xff] %vm128, %v126
  %132 = vst.msk [vmem:[%s3 + $0x18] sm:$0xff] %vm128, %v127
  %v133 = vld [vmem:[%s4] sm:$0xff]
  %v134 = vld [vmem:[%s4 + $0x8] sm:$0xff]
  %v135 = vld [vmem:[%s4 + $0x10] sm:$0xff]
  %v136 = vld [vmem:[%s4 + $0x18] sm:$0xff]
  %v137 = vmul.f32 %v81, %v81
  %v138 = vmul.f32 %v84, %v84
  %v139 = vmul.f32 %v89, %v89
  %v140 = vmul.f32 %v92, %v92
  %141 = vadd.xlane.f32.xlu0 %v137
  %v142 = vpop.xlane.xlu0 %141
  %143 = vadd.xlane.f32.xlu0 %v138
  %v144 = vpop.xlane.xlu0 %143
  %145 = vadd.xlane.f32.xlu0 %v139
  %v146 = vpop.xlane.xlu0 %145
  %147 = vadd.xlane.f32.xlu0 %v140
  %v148 = vpop.xlane.xlu0 %147
  %v149 = vadd.f32 %v133, %v142
  %v150 = vadd.f32 %v134, %v144
  %v151 = vadd.f32 %v135, %v146
  %v152 = vadd.f32 %v136, %v148
  %153 = vst.msk [vmem:[%s4] sm:$0xff] %vm128, %v149
  %154 = vst.msk [vmem:[%s4 + $0x8] sm:$0xff] %vm128, %v150
  %155 = vst.msk [vmem:[%s4 + $0x10] sm:$0xff] %vm128, %v151
  %156 = vst.msk [vmem:[%s4 + $0x18] sm:$0xff] %vm128, %v152
  // Predicated region
  $region14: #{forward.306} parent=0 // pred_check
    _
  $region15: #{forward.306} parent=0 // pred_check_branch
    %158 = sbr.rel (0) target = $region17
  $region16: #{forward.306} parent=0 // pred_region
    _
  $region17: #{forward.306} parent=0 // pred_fallthru
    _
  // Predicated region
  $region18: #{forward.306} parent=0 // pred_check
    _
  $region19: #{forward.306} parent=0 // pred_check_branch
    %160 = sbr.rel (0) target = $region21
  $region20: #{forward.306} parent=0 // pred_region
    _
  $region21: #{forward.306} parent=0 // pred_fallthru
    _
  // Predicated region
  $region22: #{forward.306} parent=0 // pred_check
    _
  $region23: #{forward.306} parent=0 // pred_check_branch
    %162 = sbr.rel (0) target = $region25
  $region24: #{forward.306} parent=0 // pred_region
    _
  $region25: #{forward.306} parent=0 // pred_fallthru
    _
  // Predicated region
  $region26: #{forward.306} parent=0 // pred_check
    _
  $region27: #{forward.306} parent=0 // pred_check_branch
    %164 = sbr.rel (0) target = $region29
  $region28: #{forward.306} parent=0 // pred_region
    _
  $region29: #{forward.306} parent=0 // pred_fallthru
    _
  // Predicated region
  $region30: #{forward.306} parent=0 // pred_check
    _
  $region31: #{forward.306} parent=0 // pred_check_branch
    %166 = sbr.rel (0) target = $region33
  $region32: #{forward.306} parent=0 // pred_region
    _
  $region33: #{forward.306} parent=0 // pred_fallthru
    _
  // Predicated region
  $region34: #{forward.306} parent=0 // pred_check
    _
  $region35: #{forward.306} parent=0 // pred_check_branch
    %168 = sbr.rel (0) target = $region37
  $region36: #{forward.306} parent=0 // pred_region
    _
  $region37: #{forward.306} parent=0 // pred_fallthru
    _

// kernel: forward.303
$region0: #{forward.303}
  #allocation0 [shape = 'u32[]', space=smem, size = 0x4, offset = 0x4, fixed_abs, tag = 'smem constant byte address 0x4 - core index']
  #allocation1 [shape = 'u32[144,128]{1,0:T(1,128)}', space=vmem, size = 0x12000, scoped, tag = 'internal scratch']
  %s0 = inlined_call_operand.vmem [shape: f32[16,128], index: 0, kind: input, shape index: {}]
  %s1 = inlined_call_operand.vmem [shape: f32[16,128], index: 1, kind: input, shape index: {}]
  %s2 = inlined_call_operand.vmem [shape: f32[16,128], index: 2, kind: input, shape index: {}]
  %s3 = inlined_call_operand.vmem [shape: f32[3,1], index: 3, kind: input, shape index: {}]
  %s4 = inlined_call_operand.vmem [shape: f32[16,128], index: 4, kind: output, shape index: {}]
  %s5 = sld [smem:[#allocation0]]
  $region30: #{forward.303} parent=0
    _
  %s7 = ssub.s32 1, %s5
  %s8 = scalar_select 0, %s7, %s5
  $region1: #{forward.303} parent=0
    #allocation2 [shape = 'u8[2048]{0}', space=smem, size = 0x800, scoped, tag = 'input window, operand 3, single buffered']
    #allocation3 [shape = 's32[1]{0}', space=sflag, size = 0x4, scoped, tag = 'scoped memory for forward.303']
    %9 = vsyncpa [#allocation3], 0
    // Predicated region
    $region2: #{forward.303} parent=1 // pred_check
      _
    $region3: #{forward.303} parent=1 // pred_check_branch
      %11 = sbr.rel (0) target = $region5
    $region4: #{forward.303} parent=1 // pred_region
      _
    $region5: #{forward.303} parent=1 // pred_fallthru
      _
    // Predicated region
    $region6: #{forward.303} parent=1 // pred_check
      _
    $region7: #{forward.303} parent=1 // pred_check_branch
      %13 = sbr.rel (0) target = $region9
    $region8: #{forward.303} parent=1 // pred_region
      _
    $region9: #{forward.303} parent=1 // pred_fallthru
      _
    // Predicated region
    $region10: #{forward.303} parent=1 // pred_check
      _
    $region11: #{forward.303} parent=1 // pred_check_branch
      %15 = sbr.rel (0) target = $region13
    $region12: #{forward.303} parent=1 // pred_region
      _
    $region13: #{forward.303} parent=1 // pred_fallthru
      _
    // Predicated region
    $region14: #{forward.303} parent=1 // pred_check
      _
    $region15: #{forward.303} parent=1 // pred_check_branch
      %17 = sbr.rel (0) target = $region17
    $region16: #{forward.303} parent=1 // pred_region
      %s19 = ssub.s32 64, 64
      %20 = vsyncadd [#allocation3], %s19
      %s22 = sshll.u32 %s3, 4
      %s23 = int_to_ptr.vmem [resolvable:$true] %s22
      %25 = dma.vmem_to_smem %s23, 64, [#allocation2], [#allocation3]
    $region17: #{forward.303} parent=1 // pred_fallthru
      _
    // Predicated region
    $region18: #{forward.303} parent=1 // pred_check
      _
    $region19: #{forward.303} parent=1 // pred_check_branch
      %27 = sbr.rel (0) target = $region21
    $region20: #{forward.303} parent=1 // pred_region
      %28 = dma.done [#allocation3], 64
    $region21: #{forward.303} parent=1 // pred_fallthru
      _
    %29 = sfence
    %v30 = vld [vmem:[%s0] sm:$0xff]
    %v31 = vld [vmem:[%s0 + $0x8] sm:$0xff]
    %s32 = sld [smem:[#allocation2]]
    %v33 = vstv %s32
    %v34 = vmul.f32 %v30, %v33
    %v35 = vmul.f32 %v31, %v33
    %v36 = vld [vmem:[%s1] sm:$0xff]
    %v37 = vld [vmem:[%s1 + $0x8] sm:$0xff]
    %s38 = sld [smem:[#allocation2 + $0x80]]
    %v39 = vstv %s38
    %v40 = vmul.f32 %v36, %v39
    %v41 = vmul.f32 %v37, %v39
    %v42 = vadd.f32 %v34, %v40
    %v43 = vadd.f32 %v35, %v41
    %v44 = vld [vmem:[%s2] sm:$0xff]
    %v45 = vld [vmem:[%s2 + $0x8] sm:$0xff]
    %s46 = sld [smem:[#allocation2 + $0x100]]
    %v47 = vstv %s46
    %v48 = vmul.f32 %v44, %v47
    %v49 = vmul.f32 %v45, %v47
    %v50 = vadd.f32 %v42, %v48
    %v51 = vadd.f32 %v43, %v49
    %52 = vst [vmem:[%s4] sm:$0xff] %v50
    %53 = vst [vmem:[%s4 + $0x8] sm:$0xff] %v51
    // Predicated region
    $region22: #{forward.303} parent=1 // pred_check
      _
    $region23: #{forward.303} parent=1 // pred_check_branch
      %55 = sbr.rel (0) target = $region25
    $region24: #{forward.303} parent=1 // pred_region
      _
    $region25: #{forward.303} parent=1 // pred_fallthru
      _
    // Predicated region
    $region26: #{forward.303} parent=1 // pred_check
      _
    $region27: #{forward.303} parent=1 // pred_check_branch
      %57 = sbr.rel (0) target = $region29
    $region28: #{forward.303} parent=1 // pred_region
      _
    $region29: #{forward.303} parent=1 // pred_fallthru
      _
    %58 = vsyncpa [#allocation3], 1

// kernel: forward.304
$region0: #{forward.304}
  #allocation0 [shape = 'u32[]', space=smem, size = 0x4, offset = 0x4, fixed_abs, tag = 'smem constant byte address 0x4 - core index']
  #allocation1 [shape = 'u32[144,128]{1,0:T(1,128)}', space=vmem, size = 0x12000, scoped, tag = 'internal scratch']
  %s0 = inlined_call_operand.vmem [shape: bf16[32,48], index: 0, kind: input, shape index: {}]
  %s1 = inlined_call_operand.vmem [shape: f32[48,128], index: 1, kind: input, shape index: {}]
  %s2 = inlined_call_operand.vmem [shape: f32[32,128], index: 2, kind: output, shape index: {0}]
  %s3 = inlined_call_operand.vmem [shape: f32[32,1], index: 3, kind: output, shape index: {1}]
  %s4 = inlined_call_operand.vmem [shape: f32[32,1], index: 4, kind: output, shape index: {2}]
  %5 = xla_tuple %s2, %s3, %s4
  %s6 = sld [smem:[#allocation0]]
  $region38: #{forward.304} parent=0
    _
  %s8 = ssub.s32 1, %s6
  %s9 = scalar_select 0, %s8, %s6
  // Predicated region
  $region2: #{forward.304} parent=0 // pred_check
    _
  $region3: #{forward.304} parent=0 // pred_check_branch
    %11 = sbr.rel (0) target = $region5
  $region4: #{forward.304} parent=0 // pred_region
    _
  $region5: #{forward.304} parent=0 // pred_fallthru
    _
  // Predicated region
  $region6: #{forward.304} parent=0 // pred_check
    _
  $region7: #{forward.304} parent=0 // pred_check_branch
    %13 = sbr.rel (0) target = $region9
  $region8: #{forward.304} parent=0 // pred_region
    _
  $region9: #{forward.304} parent=0 // pred_fallthru
    _
  %v15 = vld [vmem:[%s1] sm:$0xff]
  %v16 = vld [vmem:[%s1 + $0x8] sm:$0xff]
  %v17 = vld [vmem:[%s1 + $0x10] sm:$0xff]
  %v18 = vld [vmem:[%s1 + $0x18] sm:$0xff]
  %v19 = vld [vmem:[%s1 + $0x20] sm:$0xff]
  %v20 = vld [vmem:[%s1 + $0x28] sm:$0xff]
  %v21 = vmax.f32 %v15, 0.0
  %v22 = vmax.f32 %v16, 0.0
  %v23 = vmax.f32 %v17, 0.0
  %v24 = vmax.f32 %v18, 0.0
  %v25 = vmax.f32 %v19, 0.0
  %v26 = vmax.f32 %v20, 0.0
  %v27 = vld [vmem:[%s0] sm:$0xf]
  %v28 = vld [vmem:[%s0 + $0x4] sm:$0xf]
  %v29 = vld [vmem:[%s0 + $0x8] sm:$0xf]
  %v30 = vld [vmem:[%s0 + $0xc] sm:$0xf]
  %v31 = vpack.c.bf16 %v22, %v21
  %v32 = vpack.c.bf16 %v24, %v23
  %v33 = vpack.c.bf16 %v26, %v25
  %v38 = vunpack.c.l.b16 %v27
  %v39 = vunpack.c.l.b16 %v28
  %v40 = vunpack.c.l.b16 %v29
  %v41 = vunpack.c.l.b16 %v30
  %v42 = vpack.c.b16 %v39, %v38
  %v43 = vpack.c.b16 %v41, %v40
  %vm44 = vcmask 392192
  %v46 = vsel %vm44, %v42, 0
  %v49 = vsel %vm44, %v43, 0
  %51 = vmatprep.subr.bf16.mxu0 0
  %52 = vmatpush1.bf16.msra.mxu0 0
  %53 = vmatprep.subr.bf16.mxu0 0
  %54 = vmatpush1.bf16.msra.mxu0 0
  %55 = vmatprep.subr.bf16.mxu0 0
  %56 = vmatpush1.bf16.msra.mxu0 0
  %57 = vmatprep.subr.bf16.mxu0 0
  %58 = vmatpush1.bf16.msra.mxu0 0
  %59 = vmatprep.subr.bf16.mxu0 0
  %60 = vmatpush1.bf16.msra.mxu0 0
  %61 = vmatprep.subr.bf16.mxu0 0
  %62 = vmatpush1.bf16.msra.mxu0 %v33
  %63 = vmatprep.subr.bf16.mxu0 0
  %64 = vmatpush1.bf16.msra.mxu0 %v32
  %65 = vmatprep.subr.bf16.mxu0 0
  %66 = vmatpush1.bf16.msra.mxu0 %v31
  %67 = vmatprep.subr.bf16.mxu0 0
  %68 = vmatpush2.bf16.msra.mxu0 0
  %69 = vmatprep.subr.bf16.mxu0 0
  %70 = vmatpush2.bf16.msra.mxu0 0
  %71 = vmatprep.subr.bf16.mxu0 0
  %72 = vmatpush2.bf16.msra.mxu0 0
  %73 = vmatprep.subr.bf16.mxu0 0
  %74 = vmatpush2.bf16.msra.mxu0 0
  %75 = vmatprep.subr.bf16.mxu0 0
  %76 = vmatpush2.bf16.msra.mxu0 0
  %77 = vmatprep.subr.bf16.mxu0 0
  %78 = vmatpush2.bf16.msra.mxu0 0
  %79 = vmatprep.subr.bf16.mxu0 0
  %80 = vmatpush2.bf16.msra.mxu0 0
  %81 = vmatprep.subr.bf16.mxu0 0
  %82 = vmatpush2.bf16.msra.mxu0 0
  %83 = vmatprep.mubr.bf16.mxu0 0
  %84 = vmatmul.mubr.bf16.gmra.mxu0 %v46
  %v85 = vpop.f32.mrf.mxu0
  %v86 = vadd.f32 0.0, %v85
  %v87 = vpop.f32.mrf.mxu0
  %v88 = vpop.f32.mrf.mxu0
  %v89 = vadd.f32 0.0, %v88
  %v90 = vpop.f32.mrf.mxu0
  %91 = vmatprep.mubr.bf16.mxu0 0
  %92 = vmatmul.mubr.bf16.gmra.mxu0 %v49
  %v93 = vpop.f32.mrf.mxu0
  %v94 = vadd.f32 0.0, %v93
  %v95 = vpop.f32.mrf.mxu0
  %v96 = vpop.f32.mrf.mxu0
  %v97 = vadd.f32 0.0, %v96
  %v98 = vpop.f32.mrf.mxu0
  %99 = vdwg.mxu0
  %100 = vst [vmem:[%s2] sm:$0xff] %v86
  %101 = vst [vmem:[%s2 + $0x8] sm:$0xff] %v89
  %102 = vst [vmem:[%s2 + $0x10] sm:$0xff] %v94
  %103 = vst [vmem:[%s2 + $0x18] sm:$0xff] %v97
  %p104 = scmp.eq.s32.totalorder 0, 0
  // Predicated region
  $region10: #{forward.304} parent=0 // pred_check
    %p105 = pneg %p104
  $region11: #{forward.304} parent=0 // pred_check_branch
    %107 = sbr.rel (%p105) target = $region13
  $region12: #{forward.304} parent=0 // pred_region
    %vm108 = vcmask 7168
    %109 = vst.msk [vmem:[%s3] sm:$0xff] %vm108, 0.0
    %110 = vst.msk [vmem:[%s3 + $0x8] sm:$0xff] %vm108, 0.0
    %111 = vst.msk [vmem:[%s3 + $0x10] sm:$0xff] %vm108, 0.0
    %112 = vst.msk [vmem:[%s3 + $0x18] sm:$0xff] %vm108, 0.0
    %113 = vst.msk [vmem:[%s4] sm:$0xff] %vm108, 0.0
    %114 = vst.msk [vmem:[%s4 + $0x8] sm:$0xff] %vm108, 0.0
    %115 = vst.msk [vmem:[%s4 + $0x10] sm:$0xff] %vm108, 0.0
    %116 = vst.msk [vmem:[%s4 + $0x18] sm:$0xff] %vm108, 0.0
  $region13: #{forward.304} parent=0 // pred_fallthru
    _
  %v117 = vld [vmem:[%s3] sm:$0xff]
  %v118 = vld [vmem:[%s3 + $0x8] sm:$0xff]
  %v119 = vld [vmem:[%s3 + $0x10] sm:$0xff]
  %v120 = vld [vmem:[%s3 + $0x18] sm:$0xff]
  %121 = vadd.xlane.f32.xlu0 %v86
  %v122 = vpop.xlane.xlu0 %121
  %123 = vadd.xlane.f32.xlu0 %v89
  %v124 = vpop.xlane.xlu0 %123
  %125 = vadd.xlane.f32.xlu0 %v94
  %v126 = vpop.xlane.xlu0 %125
  %127 = vadd.xlane.f32.xlu0 %v97
  %v128 = vpop.xlane.xlu0 %127
  %v129 = vadd.f32 %v117, %v122
  %v130 = vadd.f32 %v118, %v124
  %v131 = vadd.f32 %v119, %v126
  %v132 = vadd.f32 %v120, %v128
  %vm133 = vcmask 7168
  %134 = vst.msk [vmem:[%s3] sm:$0xff] %vm133, %v129
  %135 = vst.msk [vmem:[%s3 + $0x8] sm:$0xff] %vm133, %v130
  %136 = vst.msk [vmem:[%s3 + $0x10] sm:$0xff] %vm133, %v131
  %137 = vst.msk [vmem:[%s3 + $0x18] sm:$0xff] %vm133, %v132
  %v138 = vld [vmem:[%s4] sm:$0xff]
  %v139 = vld [vmem:[%s4 + $0x8] sm:$0xff]
  %v140 = vld [vmem:[%s4 + $0x10] sm:$0xff]
  %v141 = vld [vmem:[%s4 + $0x18] sm:$0xff]
  %v142 = vmul.f32 %v86, %v86
  %v143 = vmul.f32 %v89, %v89
  %v144 = vmul.f32 %v94, %v94
  %v145 = vmul.f32 %v97, %v97
  %146 = vadd.xlane.f32.xlu0 %v142
  %v147 = vpop.xlane.xlu0 %146
  %148 = vadd.xlane.f32.xlu0 %v143
  %v149 = vpop.xlane.xlu0 %148
  %150 = vadd.xlane.f32.xlu0 %v144
  %v151 = vpop.xlane.xlu0 %150
  %152 = vadd.xlane.f32.xlu0 %v145
  %v153 = vpop.xlane.xlu0 %152
  %v154 = vadd.f32 %v138, %v147
  %v155 = vadd.f32 %v139, %v149
  %v156 = vadd.f32 %v140, %v151
  %v157 = vadd.f32 %v141, %v153
  %158 = vst.msk [vmem:[%s4] sm:$0xff] %vm133, %v154
  %159 = vst.msk [vmem:[%s4 + $0x8] sm:$0xff] %vm133, %v155
  %160 = vst.msk [vmem:[%s4 + $0x10] sm:$0xff] %vm133, %v156
  %161 = vst.msk [vmem:[%s4 + $0x18] sm:$0xff] %vm133, %v157
  // Predicated region
  $region14: #{forward.304} parent=0 // pred_check
    _
  $region15: #{forward.304} parent=0 // pred_check_branch
    %163 = sbr.rel (0) target = $region17
  $region16: #{forward.304} parent=0 // pred_region
    _
  $region17: #{forward.304} parent=0 // pred_fallthru
    _
  // Predicated region
  $region18: #{forward.304} parent=0 // pred_check
    _
  $region19: #{forward.304} parent=0 // pred_check_branch
    %165 = sbr.rel (0) target = $region21
  $region20: #{forward.304} parent=0 // pred_region
    _
  $region21: #{forward.304} parent=0 // pred_fallthru
    _
  // Predicated region
  $region22: #{forward.304} parent=0 // pred_check
    _
  $region23: #{forward.304} parent=0 // pred_check_branch
    %167 = sbr.rel (0) target = $region25
  $region24: #{forward.304} parent=0 // pred_region
    _
  $region25: #{forward.304} parent=0 // pred_fallthru
    _
  // Predicated region
  $region26: #{forward.304} parent=0 // pred_check
    _
  $region27: #{forward.304} parent=0 // pred_check_branch
    %169 = sbr.rel (0) target = $region29
  $region28: #{forward.304} parent=0 // pred_region
    _
  $region29: #{forward.304} parent=0 // pred_fallthru
    _
  // Predicated region
  $region30: #{forward.304} parent=0 // pred_check
    _
  $region31: #{forward.304} parent=0 // pred_check_branch
    %171 = sbr.rel (0) target = $region33
  $region32: #{forward.304} parent=0 // pred_region
    _
  $region33: #{forward.304} parent=0 // pred_fallthru
    _
  // Predicated region
  $region34: #{forward.304} parent=0 // pred_check
    _
  $region35: #{forward.304} parent=0 // pred_check_branch
    %173 = sbr.rel (0) target = $region37
  $region36: #{forward.304} parent=0 // pred_region
    _
  $region37: #{forward.304} parent=0 // pred_fallthru
    _

// kernel: forward.308
$region0: #{forward.308}
  #allocation0 [shape = 'u32[]', space=smem, size = 0x4, offset = 0x4, fixed_abs, tag = 'smem constant byte address 0x4 - core index']
  #allocation1 [shape = 'u32[144,128]{1,0:T(1,128)}', space=vmem, size = 0x12000, scoped, tag = 'internal scratch']
  %s0 = inlined_call_operand.vmem [shape: bf16[9,8,128], index: 0, kind: input, shape index: {}]
  %s1 = inlined_call_operand.vmem [shape: f32[8,128], index: 1, kind: output, shape index: {0}]
  %s2 = inlined_call_operand.vmem [shape: f32[8,1], index: 2, kind: output, shape index: {1}]
  %s3 = inlined_call_operand.vmem [shape: f32[8,1], index: 3, kind: output, shape index: {2}]
  %4 = xla_tuple %s1, %s2, %s3
  %s5 = sld [smem:[#allocation0]]
  $region34: #{forward.308} parent=0
    _
  %s7 = ssub.s32 1, %s5
  %s8 = scalar_select 0, %s7, %s5
  // Predicated region
  $region2: #{forward.308} parent=0 // pred_check
    _
  $region3: #{forward.308} parent=0 // pred_check_branch
    %10 = sbr.rel (0) target = $region5
  $region4: #{forward.308} parent=0 // pred_region
    _
  $region5: #{forward.308} parent=0 // pred_fallthru
    _
  %v11 = vld [vmem:[%s0] sm:$0xf]
  %s12 = scalar_lea.vmem %s0, 4
  %v13 = vld [vmem:[%s12] sm:$0xf]
  %v14 = vmax.bf16 %v11, %v13
  %s15 = scalar_lea.vmem %s0, 8
  %v16 = vld [vmem:[%s15] sm:$0xf]
  %v17 = vmax.bf16 %v14, %v16
  %s18 = scalar_lea.vmem %s0, 12
  %v19 = vld [vmem:[%s18] sm:$0xf]
  %v20 = vmax.bf16 %v17, %v19
  %s21 = scalar_lea.vmem %s0, 16
  %v22 = vld [vmem:[%s21] sm:$0xf]
  %v23 = vmax.bf16 %v20, %v22
  %s24 = scalar_lea.vmem %s0, 20
  %v25 = vld [vmem:[%s24] sm:$0xf]
  %v26 = vmax.bf16 %v23, %v25
  %s27 = scalar_lea.vmem %s0, 24
  %v28 = vld [vmem:[%s27] sm:$0xf]
  %v29 = vmax.bf16 %v26, %v28
  %s30 = scalar_lea.vmem %s0, 28
  %v31 = vld [vmem:[%s30] sm:$0xf]
  %v32 = vmax.bf16 %v29, %v31
  %s33 = scalar_lea.vmem %s0, 32
  %v34 = vld [vmem:[%s33] sm:$0xf]
  %v35 = vmax.bf16 %v32, %v34
  %v36 = vunpack.c.l.bf16 %v35
  %37 = vst [vmem:[%s1] sm:$0xff] %v36
  %p38 = scmp.eq.s32.totalorder 0, 0
  // Predicated region
  $region6: #{forward.308} parent=0 // pred_check
    %p39 = pneg %p38
  $region7: #{forward.308} parent=0 // pred_check_branch
    %41 = sbr.rel (%p39) target = $region9
  $region8: #{forward.308} parent=0 // pred_region
    %vm42 = vcmask 7168
    %43 = vst.msk [vmem:[%s2] sm:$0xff] %vm42, 0.0
    %44 = vst.msk [vmem:[%s3] sm:$0xff] %vm42, 0.0
  $region9: #{forward.308} parent=0 // pred_fallthru
    _
  %v45 = vld [vmem:[%s2] sm:$0xff]
  %46 = vadd.xlane.f32.xlu0 %v36
  %v47 = vpop.xlane.xlu0 %46
  %v48 = vadd.f32 %v45, %v47
  %vm49 = vcmask 7168
  %50 = vst.msk [vmem:[%s2] sm:$0xff] %vm49, %v48
  %v51 = vld [vmem:[%s3] sm:$0xff]
  %v52 = vmul.f32 %v36, %v36
  %53 = vadd.xlane.f32.xlu0 %v52
  %v54 = vpop.xlane.xlu0 %53
  %v55 = vadd.f32 %v51, %v54
  %56 = vst.msk [vmem:[%s3] sm:$0xff] %vm49, %v55
  // Predicated region
  $region10: #{forward.308} parent=0 // pred_check
    _
  $region11: #{forward.308} parent=0 // pred_check_branch
    %58 = sbr.rel (0) target = $region13
  $region12: #{forward.308} parent=0 // pred_region
    _
  $region13: #{forward.308} parent=0 // pred_fallthru
    _
  // Predicated region
  $region14: #{forward.308} parent=0 // pred_check
    _
  $region15: #{forward.308} parent=0 // pred_check_branch
    %60 = sbr.rel (0) target = $region17
  $region16: #{forward.308} parent=0 // pred_region
    _
  $region17: #{forward.308} parent=0 // pred_fallthru
    _
  // Predicated region
  $region18: #{forward.308} parent=0 // pred_check
    _
  $region19: #{forward.308} parent=0 // pred_check_branch
    %62 = sbr.rel (0) target = $region21
  $region20: #{forward.308} parent=0 // pred_region
    _
  $region21: #{forward.308} parent=0 // pred_fallthru
    _
  // Predicated region
  $region22: #{forward.308} parent=0 // pred_check
    _
  $region23: #{forward.308} parent=0 // pred_check_branch
    %64 = sbr.rel (0) target = $region25
  $region24: #{forward.308} parent=0 // pred_region
    _
  $region25: #{forward.308} parent=0 // pred_fallthru
    _
  // Predicated region
  $region26: #{forward.308} parent=0 // pred_check
    _
  $region27: #{forward.308} parent=0 // pred_check_branch
    %66 = sbr.rel (0) target = $region29
  $region28: #{forward.308} parent=0 // pred_region
    _
  $region29: #{forward.308} parent=0 // pred_fallthru
    _
  // Predicated region
  $region30: #{forward.308} parent=0 // pred_check
    _
  $region31: #{forward.308} parent=0 // pred_check_branch
    %68 = sbr.rel (0) target = $region33
  $region32: #{forward.308} parent=0 // pred_region
    _
  $region33: #{forward.308} parent=0 // pred_fallthru
    _

// kernel: forward.309
$region0: #{forward.309}
  #allocation0 [shape = 'u32[]', space=smem, size = 0x4, offset = 0x4, fixed_abs, tag = 'smem constant byte address 0x4 - core index']
  #allocation1 [shape = 'u32[144,128]{1,0:T(1,128)}', space=vmem, size = 0x12000, scoped, tag = 'internal scratch']
  %s0 = inlined_call_operand.vmem [shape: f32[8,1], index: 0, kind: input, shape index: {}]
  %s1 = inlined_call_operand.vmem [shape: f32[8,1], index: 1, kind: input, shape index: {}]
  %s2 = inlined_call_operand.vmem [shape: f32[8,128], index: 2, kind: input, shape index: {}]
  %s3 = inlined_call_operand.vmem [shape: f32[8,128], index: 3, kind: output, shape index: {}]
  %s4 = sld [smem:[#allocation0]]
  $region22: #{forward.309} parent=0
    _
  %s6 = ssub.s32 1, %s4
  %s7 = scalar_select 0, %s6, %s4
  // Predicated region
  $region2: #{forward.309} parent=0 // pred_check
    _
  $region3: #{forward.309} parent=0 // pred_check_branch
    %9 = sbr.rel (0) target = $region5
  $region4: #{forward.309} parent=0 // pred_region
    _
  $region5: #{forward.309} parent=0 // pred_fallthru
    _
  // Predicated region
  $region6: #{forward.309} parent=0 // pred_check
    _
  $region7: #{forward.309} parent=0 // pred_check_branch
    %11 = sbr.rel (0) target = $region9
  $region8: #{forward.309} parent=0 // pred_region
    _
  $region9: #{forward.309} parent=0 // pred_fallthru
    _
  // Predicated region
  $region10: #{forward.309} parent=0 // pred_check
    _
  $region11: #{forward.309} parent=0 // pred_check_branch
    %13 = sbr.rel (0) target = $region13
  $region12: #{forward.309} parent=0 // pred_region
    _
  $region13: #{forward.309} parent=0 // pred_fallthru
    _
  %v14 = vld [vmem:[%s0] sm:$0xff]
  %v15 = vmul.f32 %v14, 0.03125
  %v16 = vld [vmem:[%s1] sm:$0xff]
  %v17 = vmul.f32 %v16, 0.03125
  %v18 = vmul.f32 %v15, %v15
  %v19 = vsub.f32 %v17, %v18
  %v20 = vmax.f32 %v19, 0.0
  %v21 = vld [vmem:[%s2] sm:$0xff]
  %23 = vset.pattern.permute.xlu0 0
  %24 = vperm.xlu0 %23, %v15
  %v25 = vpop.permute.xlu0 %24
  %v27 = vsub.f32 %v21, %v25
  %v28 = vadd.f32 %v20, 1e-05
  %v29 = vrsqrt.pop %v28
  %31 = vset.pattern.permute.xlu0 0
  %32 = vperm.xlu0 %31, %v29
  %v33 = vpop.permute.xlu0 %32
  %v35 = vmul.f32 %v27, %v33
  %36 = vst [vmem:[%s3] sm:$0xff] %v35
  // Predicated region
  $region14: #{forward.309} parent=0 // pred_check
    _
  $region15: #{forward.309} parent=0 // pred_check_branch
    %38 = sbr.rel (0) target = $region17
  $region16: #{forward.309} parent=0 // pred_region
    _
  $region17: #{forward.309} parent=0 // pred_fallthru
    _
  // Predicated region
  $region18: #{forward.309} parent=0 // pred_check
    _
  $region19: #{forward.309} parent=0 // pred_check_branch
    %40 = sbr.rel (0) target = $region21
  $region20: #{forward.309} parent=0 // pred_region
    _
  $region21: #{forward.309} parent=0 // pred_fallthru
    _

// kernel: forward.312
$region0: #{forward.312}
  #allocation0 [shape = 'u32[]', space=smem, size = 0x4, offset = 0x4, fixed_abs, tag = 'smem constant byte address 0x4 - core index']
  #allocation1 [shape = 'u32[144,128]{1,0:T(1,128)}', space=vmem, size = 0x12000, scoped, tag = 'internal scratch']
  %s0 = inlined_call_operand.vmem [shape: bf16[8,16], index: 0, kind: input, shape index: {}]
  %s1 = inlined_call_operand.vmem [shape: f32[16,128], index: 1, kind: input, shape index: {}]
  %s2 = inlined_call_operand.vmem [shape: f32[8,128], index: 2, kind: output, shape index: {0}]
  %s3 = inlined_call_operand.vmem [shape: f32[8,1], index: 3, kind: output, shape index: {1}]
  %s4 = inlined_call_operand.vmem [shape: f32[8,1], index: 4, kind: output, shape index: {2}]
  %5 = xla_tuple %s2, %s3, %s4
  %s6 = sld [smem:[#allocation0]]
  $region38: #{forward.312} parent=0
    _
  %s8 = ssub.s32 1, %s6
  %s9 = scalar_select 0, %s8, %s6
  // Predicated region
  $region2: #{forward.312} parent=0 // pred_check
    _
  $region3: #{forward.312} parent=0 // pred_check_branch
    %11 = sbr.rel (0) target = $region5
  $region4: #{forward.312} parent=0 // pred_region
    _
  $region5: #{forward.312} parent=0 // pred_fallthru
    _
  // Predicated region
  $region6: #{forward.312} parent=0 // pred_check
    _
  $region7: #{forward.312} parent=0 // pred_check_branch
    %13 = sbr.rel (0) target = $region9
  $region8: #{forward.312} parent=0 // pred_region
    _
  $region9: #{forward.312} parent=0 // pred_fallthru
    _
  %v15 = vld [vmem:[%s1] sm:$0xff]
  %v16 = vld [vmem:[%s1 + $0x8] sm:$0xff]
  %v17 = vmax.f32 %v15, 0.0
  %v18 = vmax.f32 %v16, 0.0
  %v19 = vld [vmem:[%s0] sm:$0xf]
  %v20 = vpack.c.bf16 %v18, %v17
  %vm21 = vcmask 130048
  %v23 = vsel %vm21, %v19, 0
  %25 = vmatprep.subr.bf16.mxu0 0
  %26 = vmatpush1.bf16.msra.mxu0 0
  %27 = vmatprep.subr.bf16.mxu0 0
  %28 = vmatpush1.bf16.msra.mxu0 0
  %29 = vmatprep.subr.bf16.mxu0 0
  %30 = vmatpush1.bf16.msra.mxu0 0
  %31 = vmatprep.subr.bf16.mxu0 0
  %32 = vmatpush1.bf16.msra.mxu0 0
  %33 = vmatprep.subr.bf16.mxu0 0
  %34 = vmatpush1.bf16.msra.mxu0 0
  %35 = vmatprep.subr.bf16.mxu0 0
  %36 = vmatpush1.bf16.msra.mxu0 0
  %37 = vmatprep.subr.bf16.mxu0 0
  %38 = vmatpush1.bf16.msra.mxu0 0
  %39 = vmatprep.subr.bf16.mxu0 0
  %40 = vmatpush1.bf16.msra.mxu0 %v20
  %41 = vmatprep.subr.bf16.mxu0 0
  %42 = vmatpush2.bf16.msra.mxu0 0
  %43 = vmatprep.subr.bf16.mxu0 0
  %44 = vmatpush2.bf16.msra.mxu0 0
  %45 = vmatprep.subr.bf16.mxu0 0
  %46 = vmatpush2.bf16.msra.mxu0 0
  %47 = vmatprep.subr.bf16.mxu0 0
  %48 = vmatpush2.bf16.msra.mxu0 0
  %49 = vmatprep.subr.bf16.mxu0 0
  %50 = vmatpush2.bf16.msra.mxu0 0
  %51 = vmatprep.subr.bf16.mxu0 0
  %52 = vmatpush2.bf16.msra.mxu0 0
  %53 = vmatprep.subr.bf16.mxu0 0
  %54 = vmatpush2.bf16.msra.mxu0 0
  %55 = vmatprep.subr.bf16.mxu0 0
  %56 = vmatpush2.bf16.msra.mxu0 0
  %57 = vmatprep.mubr.bf16.mxu0 0
  %58 = vmatmul.mubr.bf16.gmra.mxu0 %v23
  %v59 = vpop.f32.mrf.mxu0
  %v60 = vadd.f32 0.0, %v59
  %v61 = vpop.f32.mrf.mxu0
  %v62 = vpop.f32.mrf.mxu0
  %v63 = vpop.f32.mrf.mxu0
  %64 = vdwg.mxu0
  %65 = vst [vmem:[%s2] sm:$0xff] %v60
  %p66 = scmp.eq.s32.totalorder 0, 0
  // Predicated region
  $region10: #{forward.312} parent=0 // pred_check
    %p67 = pneg %p66
  $region11: #{forward.312} parent=0 // pred_check_branch
    %69 = sbr.rel (%p67) target = $region13
  $region12: #{forward.312} parent=0 // pred_region
    %vm70 = vcmask 7168
    %71 = vst.msk [vmem:[%s3] sm:$0xff] %vm70, 0.0
    %72 = vst.msk [vmem:[%s4] sm:$0xff] %vm70, 0.0
  $region13: #{forward.312} parent=0 // pred_fallthru
    _
  %v73 = vld [vmem:[%s3] sm:$0xff]
  %74 = vadd.xlane.f32.xlu0 %v60
  %v75 = vpop.xlane.xlu0 %74
  %v76 = vadd.f32 %v73, %v75
  %vm77 = vcmask 7168
  %78 = vst.msk [vmem:[%s3] sm:$0xff] %vm77, %v76
  %v79 = vld [vmem:[%s4] sm:$0xff]
  %v80 = vmul.f32 %v60, %v60
  %81 = vadd.xlane.f32.xlu0 %v80
  %v82 = vpop.xlane.xlu0 %81
  %v83 = vadd.f32 %v79, %v82
  %84 = vst.msk [vmem:[%s4] sm:$0xff] %vm77, %v83
  // Predicated region
  $region14: #{forward.312} parent=0 // pred_check
    _
  $region15: #{forward.312} parent=0 // pred_check_branch
    %86 = sbr.rel (0) target = $region17
  $region16: #{forward.312} parent=0 // pred_region
    _
  $region17: #{forward.312} parent=0 // pred_fallthru
    _
  // Predicated region
  $region18: #{forward.312} parent=0 // pred_check
    _
  $region19: #{forward.312} parent=0 // pred_check_branch
    %88 = sbr.rel (0) target = $region21
  $region20: #{forward.312} parent=0 // pred_region
    _
  $region21: #{forward.312} parent=0 // pred_fallthru
    _
  // Predicated region
  $region22: #{forward.312} parent=0 // pred_check
    _
  $region23: #{forward.312} parent=0 // pred_check_branch
    %90 = sbr.rel (0) target = $region25
  $region24: #{forward.312} parent=0 // pred_region
    _
  $region25: #{forward.312} parent=0 // pred_fallthru
    _
  // Predicated region
  $region26: #{forward.312} parent=0 // pred_check
    _
  $region27: #{forward.312} parent=0 // pred_check_branch
    %92 = sbr.rel (0) target = $region29
  $region28: #{forward.312} parent=0 // pred_region
    _
  $region29: #{forward.312} parent=0 // pred_fallthru
    _
  // Predicated region
  $region30: #{forward.312} parent=0 // pred_check
    _
  $region31: #{forward.312} parent=0 // pred_check_branch
    %94 = sbr.rel (0) target = $region33
  $region32: #{forward.312} parent=0 // pred_region
    _
  $region33: #{forward.312} parent=0 // pred_fallthru
    _
  // Predicated region
  $region34: #{forward.312} parent=0 // pred_check
    _
  $region35: #{forward.312} parent=0 // pred_check_branch
    %96 = sbr.rel (0) target = $region37
  $region36: #{forward.312} parent=0 // pred_region
    _
  $region37: #{forward.312} parent=0 // pred_fallthru
    _

// kernel: forward.310
$region0: #{forward.310}
  #allocation0 [shape = 'u32[]', space=smem, size = 0x4, offset = 0x4, fixed_abs, tag = 'smem constant byte address 0x4 - core index']
  #allocation1 [shape = 'u32[144,128]{1,0:T(1,128)}', space=vmem, size = 0x12000, scoped, tag = 'internal scratch']
  %s0 = inlined_call_operand.vmem [shape: bf16[9,8,128], index: 0, kind: input, shape index: {}]
  %s1 = inlined_call_operand.vmem [shape: f32[1,128], index: 1, kind: input, shape index: {}]
  %s2 = inlined_call_operand.vmem [shape: f32[8,128], index: 2, kind: output, shape index: {0}]
  %s3 = inlined_call_operand.vmem [shape: f32[8,1], index: 3, kind: output, shape index: {1}]
  %s4 = inlined_call_operand.vmem [shape: f32[8,1], index: 4, kind: output, shape index: {2}]
  %5 = xla_tuple %s2, %s3, %s4
  %s6 = sld [smem:[#allocation0]]
  $region38: #{forward.310} parent=0
    _
  %s8 = ssub.s32 1, %s6
  %s9 = scalar_select 0, %s8, %s6
  // Predicated region
  $region2: #{forward.310} parent=0 // pred_check
    _
  $region3: #{forward.310} parent=0 // pred_check_branch
    %11 = sbr.rel (0) target = $region5
  $region4: #{forward.310} parent=0 // pred_region
    _
  $region5: #{forward.310} parent=0 // pred_fallthru
    _
  // Predicated region
  $region6: #{forward.310} parent=0 // pred_check
    _
  $region7: #{forward.310} parent=0 // pred_check_branch
    %13 = sbr.rel (0) target = $region9
  $region8: #{forward.310} parent=0 // pred_region
    _
  $region9: #{forward.310} parent=0 // pred_fallthru
    _
  %v14 = vld [vmem:[%s0] sm:$0xf]
  %v15 = vunpack.c.l.bf16 %v14
  %s16 = scalar_lea.vmem %s0, 4
  %v17 = vld [vmem:[%s16] sm:$0xf]
  %v18 = vunpack.c.l.bf16 %v17
  %v19 = vadd.f32 %v15, %v18
  %s20 = scalar_lea.vmem %s0, 8
  %v21 = vld [vmem:[%s20] sm:$0xf]
  %v22 = vunpack.c.l.bf16 %v21
  %v23 = vadd.f32 %v19, %v22
  %s24 = scalar_lea.vmem %s0, 12
  %v25 = vld [vmem:[%s24] sm:$0xf]
  %v26 = vunpack.c.l.bf16 %v25
  %v27 = vadd.f32 %v23, %v26
  %s28 = scalar_lea.vmem %s0, 16
  %v29 = vld [vmem:[%s28] sm:$0xf]
  %v30 = vunpack.c.l.bf16 %v29
  %v31 = vadd.f32 %v27, %v30
  %s32 = scalar_lea.vmem %s0, 20
  %v33 = vld [vmem:[%s32] sm:$0xf]
  %v34 = vunpack.c.l.bf16 %v33
  %v35 = vadd.f32 %v31, %v34
  %s36 = scalar_lea.vmem %s0, 24
  %v37 = vld [vmem:[%s36] sm:$0xf]
  %v38 = vunpack.c.l.bf16 %v37
  %v39 = vadd.f32 %v35, %v38
  %s40 = scalar_lea.vmem %s0, 28
  %v41 = vld [vmem:[%s40] sm:$0xf]
  %v42 = vunpack.c.l.bf16 %v41
  %v43 = vadd.f32 %v39, %v42
  %s44 = scalar_lea.vmem %s0, 32
  %v45 = vld [vmem:[%s44] sm:$0xf]
  %v46 = vunpack.c.l.bf16 %v45
  %v47 = vadd.f32 %v43, %v46
  %v48 = vld [vmem:[%s1] sm:$0x1]
  %v50 = vlaneseq
  %v51 = vshrl.u32 %v50, 7
  %v52 = vsub.s32 0, %v51
  %v53 = vrot.slane %v48, %v52
  %v55 = vmul.f32 %v47, %v53
  %56 = vst [vmem:[%s2] sm:$0xff] %v55
  %p57 = scmp.eq.s32.totalorder 0, 0
  // Predicated region
  $region10: #{forward.310} parent=0 // pred_check
    %p58 = pneg %p57
  $region11: #{forward.310} parent=0 // pred_check_branch
    %60 = sbr.rel (%p58) target = $region13
  $region12: #{forward.310} parent=0 // pred_region
    %vm61 = vcmask 7168
    %62 = vst.msk [vmem:[%s3] sm:$0xff] %vm61, 0.0
    %63 = vst.msk [vmem:[%s4] sm:$0xff] %vm61, 0.0
  $region13: #{forward.310} parent=0 // pred_fallthru
    _
  %v64 = vld [vmem:[%s3] sm:$0xff]
  %65 = vadd.xlane.f32.xlu0 %v55
  %v66 = vpop.xlane.xlu0 %65
  %v67 = vadd.f32 %v64, %v66
  %vm68 = vcmask 7168
  %69 = vst.msk [vmem:[%s3] sm:$0xff] %vm68, %v67
  %v70 = vld [vmem:[%s4] sm:$0xff]
  %v71 = vmul.f32 %v55, %v55
  %72 = vadd.xlane.f32.xlu0 %v71
  %v73 = vpop.xlane.xlu0 %72
  %v74 = vadd.f32 %v70, %v73
  %75 = vst.msk [vmem:[%s4] sm:$0xff] %vm68, %v74
  // Predicated region
  $region14: #{forward.310} parent=0 // pred_check
    _
  $region15: #{forward.310} parent=0 // pred_check_branch
    %77 = sbr.rel (0) target = $region17
  $region16: #{forward.310} parent=0 // pred_region
    _
  $region17: #{forward.310} parent=0 // pred_fallthru
    _
  // Predicated region
  $region18: #{forward.310} parent=0 // pred_check
    _
  $region19: #{forward.310} parent=0 // pred_check_branch
    %79 = sbr.rel (0) target = $region21
  $region20: #{forward.310} parent=0 // pred_region
    _
  $region21: #{forward.310} parent=0 // pred_fallthru
    _
  // Predicated region
  $region22: #{forward.310} parent=0 // pred_check
    _
  $region23: #{forward.310} parent=0 // pred_check_branch
    %81 = sbr.rel (0) target = $region25
  $region24: #{forward.310} parent=0 // pred_region
    _
  $region25: #{forward.310} parent=0 // pred_fallthru
    _
  // Predicated region
  $region26: #{forward.310} parent=0 // pred_check
    _
  $region27: #{forward.310} parent=0 // pred_check_branch
    %83 = sbr.rel (0) target = $region29
  $region28: #{forward.310} parent=0 // pred_region
    _
  $region29: #{forward.310} parent=0 // pred_fallthru
    _
  // Predicated region
  $region30: #{forward.310} parent=0 // pred_check
    _
  $region31: #{forward.310} parent=0 // pred_check_branch
    %85 = sbr.rel (0) target = $region33
  $region32: #{forward.310} parent=0 // pred_region
    _
  $region33: #{forward.310} parent=0 // pred_fallthru
    _
  // Predicated region
  $region34: #{forward.310} parent=0 // pred_check
    _
  $region35: #{forward.310} parent=0 // pred_check_branch
    %87 = sbr.rel (0) target = $region37
  $region36: #{forward.310} parent=0 // pred_region
    _
  $region37: #{forward.310} parent=0 // pred_fallthru
    _

// kernel: forward.314
$region0: #{forward.314}
  #allocation0 [shape = 'u32[]', space=smem, size = 0x4, offset = 0x4, fixed_abs, tag = 'smem constant byte address 0x4 - core index']
  #allocation1 [shape = 'u32[144,128]{1,0:T(1,128)}', space=vmem, size = 0x12000, scoped, tag = 'internal scratch']
  %s0 = inlined_call_operand.vmem [shape: bf16[9,8,128], index: 0, kind: input, shape index: {}]
  %s1 = inlined_call_operand.vmem [shape: f32[9,8,1], index: 1, kind: input, shape index: {}]
  %s2 = inlined_call_operand.vmem [shape: bf16[8,8], index: 2, kind: input, shape index: {}]
  %s3 = inlined_call_operand.vmem [shape: f32[8,128], index: 3, kind: output, shape index: {0}]
  %s4 = inlined_call_operand.vmem [shape: f32[8,1], index: 4, kind: output, shape index: {1}]
  %s5 = inlined_call_operand.vmem [shape: f32[8,1], index: 5, kind: output, shape index: {2}]
  %6 = xla_tuple %s3, %s4, %s5
  %s7 = sld [smem:[#allocation0]]
  $region42: #{forward.314} parent=0
    _
  %s9 = ssub.s32 1, %s7
  %s10 = scalar_select 0, %s9, %s7
  // Predicated region
  $region2: #{forward.314} parent=0 // pred_check
    _
  $region3: #{forward.314} parent=0 // pred_check_branch
    %12 = sbr.rel (0) target = $region5
  $region4: #{forward.314} parent=0 // pred_region
    _
  $region5: #{forward.314} parent=0 // pred_fallthru
    _
  // Predicated region
  $region6: #{forward.314} parent=0 // pred_check
    _
  $region7: #{forward.314} parent=0 // pred_check_branch
    %14 = sbr.rel (0) target = $region9
  $region8: #{forward.314} parent=0 // pred_region
    _
  $region9: #{forward.314} parent=0 // pred_fallthru
    _
  // Predicated region
  $region10: #{forward.314} parent=0 // pred_check
    _
  $region11: #{forward.314} parent=0 // pred_check_branch
    %16 = sbr.rel (0) target = $region13
  $region12: #{forward.314} parent=0 // pred_region
    _
  $region13: #{forward.314} parent=0 // pred_fallthru
    _
  %v18 = vld [vmem:[%s0] sm:$0xf]
  %v19 = vunpack.c.l.bf16 %v18
  %v20 = vmax.f32 %v19, 0.0
  %v21 = vld [vmem:[%s1] sm:$0xff]
  %23 = vset.pattern.permute.xlu0 0
  %24 = vperm.xlu0 %23, %v21
  %v25 = vpop.permute.xlu0 %24
  %v27 = vmul.f32 %v20, %v25
  %s28 = scalar_lea.vmem %s0, 4
  %v29 = vld [vmem:[%s28] sm:$0xf]
  %v30 = vunpack.c.l.bf16 %v29
  %v31 = vmax.f32 %v30, 0.0
  %s32 = scalar_lea.vmem %s1, 8
  %v33 = vld [vmem:[%s32] sm:$0xff]
  %35 = vset.pattern.permute.xlu0 0
  %36 = vperm.xlu0 %35, %v33
  %v37 = vpop.permute.xlu0 %36
  %v39 = vmul.f32 %v31, %v37
  %v40 = vadd.f32 %v27, %v39
  %s41 = scalar_lea.vmem %s0, 8
  %v42 = vld [vmem:[%s41] sm:$0xf]
  %v43 = vunpack.c.l.bf16 %v42
  %v44 = vmax.f32 %v43, 0.0
  %s45 = scalar_lea.vmem %s1, 16
  %v46 = vld [vmem:[%s45] sm:$0xff]
  %48 = vset.pattern.permute.xlu0 0
  %49 = vperm.xlu0 %48, %v46
  %v50 = vpop.permute.xlu0 %49
  %v52 = vmul.f32 %v44, %v50
  %v53 = vadd.f32 %v40, %v52
  %s54 = scalar_lea.vmem %s0, 12
  %v55 = vld [vmem:[%s54] sm:$0xf]
  %v56 = vunpack.c.l.bf16 %v55
  %v57 = vmax.f32 %v56, 0.0
  %s58 = scalar_lea.vmem %s1, 24
  %v59 = vld [vmem:[%s58] sm:$0xff]
  %61 = vset.pattern.permute.xlu0 0
  %62 = vperm.xlu0 %61, %v59
  %v63 = vpop.permute.xlu0 %62
  %v65 = vmul.f32 %v57, %v63
  %v66 = vadd.f32 %v53, %v65
  %s67 = scalar_lea.vmem %s0, 16
  %v68 = vld [vmem:[%s67] sm:$0xf]
  %v69 = vunpack.c.l.bf16 %v68
  %v70 = vmax.f32 %v69, 0.0
  %s71 = scalar_lea.vmem %s1, 32
  %v72 = vld [vmem:[%s71] sm:$0xff]
  %74 = vset.pattern.permute.xlu0 0
  %75 = vperm.xlu0 %74, %v72
  %v76 = vpop.permute.xlu0 %75
  %v78 = vmul.f32 %v70, %v76
  %v79 = vadd.f32 %v66, %v78
  %s80 = scalar_lea.vmem %s0, 20
  %v81 = vld [vmem:[%s80] sm:$0xf]
  %v82 = vunpack.c.l.bf16 %v81
  %v83 = vmax.f32 %v82, 0.0
  %s84 = scalar_lea.vmem %s1, 40
  %v85 = vld [vmem:[%s84] sm:$0xff]
  %87 = vset.pattern.permute.xlu0 0
  %88 = vperm.xlu0 %87, %v85
  %v89 = vpop.permute.xlu0 %88
  %v91 = vmul.f32 %v83, %v89
  %v92 = vadd.f32 %v79, %v91
  %s93 = scalar_lea.vmem %s0, 24
  %v94 = vld [vmem:[%s93] sm:$0xf]
  %v95 = vunpack.c.l.bf16 %v94
  %v96 = vmax.f32 %v95, 0.0
  %s97 = scalar_lea.vmem %s1, 48
  %v98 = vld [vmem:[%s97] sm:$0xff]
  %100 = vset.pattern.permute.xlu0 0
  %101 = vperm.xlu0 %100, %v98
  %v102 = vpop.permute.xlu0 %101
  %v104 = vmul.f32 %v96, %v102
  %v105 = vadd.f32 %v92, %v104
  %s106 = scalar_lea.vmem %s0, 28
  %v107 = vld [vmem:[%s106] sm:$0xf]
  %v108 = vunpack.c.l.bf16 %v107
  %v109 = vmax.f32 %v108, 0.0
  %s110 = scalar_lea.vmem %s1, 56
  %v111 = vld [vmem:[%s110] sm:$0xff]
  %113 = vset.pattern.permute.xlu0 0
  %114 = vperm.xlu0 %113, %v111
  %v115 = vpop.permute.xlu0 %114
  %v117 = vmul.f32 %v109, %v115
  %v118 = vadd.f32 %v105, %v117
  %s119 = scalar_lea.vmem %s0, 32
  %v120 = vld [vmem:[%s119] sm:$0xf]
  %v121 = vunpack.c.l.bf16 %v120
  %v122 = vmax.f32 %v121, 0.0
  %s123 = scalar_lea.vmem %s1, 64
  %v124 = vld [vmem:[%s123] sm:$0xff]
  %126 = vset.pattern.permute.xlu0 0
  %127 = vperm.xlu0 %126, %v124
  %v128 = vpop.permute.xlu0 %127
  %v130 = vmul.f32 %v122, %v128
  %v131 = vadd.f32 %v118, %v130
  %v132 = vld [vmem:[%s2] sm:$0xf]
  %v133 = vpack.c.bf16 %v131, %v131
  %vm134 = vcmask 64512
  %v136 = vsel %vm134, %v132, 0
  %vm138 = vcmask 1043456
  %v140 = vsel %vm138, %v133, 0
  %142 = vmatprep.subr.bf16.mxu0 0
  %143 = vmatpush1.bf16.msra.mxu0 0
  %144 = vmatprep.subr.bf16.mxu0 0
  %145 = vmatpush1.bf16.msra.mxu0 0
  %146 = vmatprep.subr.bf16.mxu0 0
  %147 = vmatpush1.bf16.msra.mxu0 0
  %148 = vmatprep.subr.bf16.mxu0 0
  %149 = vmatpush1.bf16.msra.mxu0 0
  %150 = vmatprep.subr.bf16.mxu0 0
  %151 = vmatpush1.bf16.msra.mxu0 0
  %152 = vmatprep.subr.bf16.mxu0 0
  %153 = vmatpush1.bf16.msra.mxu0 0
  %154 = vmatprep.subr.bf16.mxu0 0
  %155 = vmatpush1.bf16.msra.mxu0 0
  %156 = vmatprep.subr.bf16.mxu0 0
  %157 = vmatpush1.bf16.msra.mxu0 %v140
  %158 = vmatprep.subr.bf16.mxu0 0
  %159 = vmatpush2.bf16.msra.mxu0 0
  %160 = vmatprep.subr.bf16.mxu0 0
  %161 = vmatpush2.bf16.msra.mxu0 0
  %162 = vmatprep.subr.bf16.mxu0 0
  %163 = vmatpush2.bf16.msra.mxu0 0
  %164 = vmatprep.subr.bf16.mxu0 0
  %165 = vmatpush2.bf16.msra.mxu0 0
  %166 = vmatprep.subr.bf16.mxu0 0
  %167 = vmatpush2.bf16.msra.mxu0 0
  %168 = vmatprep.subr.bf16.mxu0 0
  %169 = vmatpush2.bf16.msra.mxu0 0
  %170 = vmatprep.subr.bf16.mxu0 0
  %171 = vmatpush2.bf16.msra.mxu0 0
  %172 = vmatprep.subr.bf16.mxu0 0
  %173 = vmatpush2.bf16.msra.mxu0 0
  %174 = vmatprep.mubr.bf16.mxu0 0
  %175 = vmatmul.mubr.bf16.gmra.mxu0 %v136
  %v176 = vpop.f32.mrf.mxu0
  %v177 = vadd.f32 0.0, %v176
  %v178 = vpop.f32.mrf.mxu0
  %v179 = vpop.f32.mrf.mxu0
  %v180 = vpop.f32.mrf.mxu0
  %181 = vdwg.mxu0
  %182 = vst [vmem:[%s3] sm:$0xff] %v177
  %p183 = scmp.eq.s32.totalorder 0, 0
  // Predicated region
  $region14: #{forward.314} parent=0 // pred_check
    %p184 = pneg %p183
  $region15: #{forward.314} parent=0 // pred_check_branch
    %186 = sbr.rel (%p184) target = $region17
  $region16: #{forward.314} parent=0 // pred_region
    %vm187 = vcmask 7168
    %188 = vst.msk [vmem:[%s4] sm:$0xff] %vm187, 0.0
    %189 = vst.msk [vmem:[%s5] sm:$0xff] %vm187, 0.0
  $region17: #{forward.314} parent=0 // pred_fallthru
    _
  %v190 = vld [vmem:[%s4] sm:$0xff]
  %191 = vadd.xlane.f32.xlu0 %v177
  %v192 = vpop.xlane.xlu0 %191
  %v193 = vadd.f32 %v190, %v192
  %vm194 = vcmask 7168
  %195 = vst.msk [vmem:[%s4] sm:$0xff] %vm194, %v193
  %v196 = vld [vmem:[%s5] sm:$0xff]
  %v197 = vmul.f32 %v177, %v177
  %198 = vadd.xlane.f32.xlu0 %v197
  %v199 = vpop.xlane.xlu0 %198
  %v200 = vadd.f32 %v196, %v199
  %201 = vst.msk [vmem:[%s5] sm:$0xff] %vm194, %v200
  // Predicated region
  $region18: #{forward.314} parent=0 // pred_check
    _
  $region19: #{forward.314} parent=0 // pred_check_branch
    %203 = sbr.rel (0) target = $region21
  $region20: #{forward.314} parent=0 // pred_region
    _
  $region21: #{forward.314} parent=0 // pred_fallthru
    _
  // Predicated region
  $region22: #{forward.314} parent=0 // pred_check
    _
  $region23: #{forward.314} parent=0 // pred_check_branch
    %205 = sbr.rel (0) target = $region25
  $region24: #{forward.314} parent=0 // pred_region
    _
  $region25: #{forward.314} parent=0 // pred_fallthru
    _
  // Predicated region
  $region26: #{forward.314} parent=0 // pred_check
    _
  $region27: #{forward.314} parent=0 // pred_check_branch
    %207 = sbr.rel (0) target = $region29
  $region28: #{forward.314} parent=0 // pred_region
    _
  $region29: #{forward.314} parent=0 // pred_fallthru
    _
  // Predicated region
  $region30: #{forward.314} parent=0 // pred_check
    _
  $region31: #{forward.314} parent=0 // pred_check_branch
    %209 = sbr.rel (0) target = $region33
  $region32: #{forward.314} parent=0 // pred_region
    _
  $region33: #{forward.314} parent=0 // pred_fallthru
    _
  // Predicated region
  $region34: #{forward.314} parent=0 // pred_check
    _
  $region35: #{forward.314} parent=0 // pred_check_branch
    %211 = sbr.rel (0) target = $region37
  $region36: #{forward.314} parent=0 // pred_region
    _
  $region37: #{forward.314} parent=0 // pred_fallthru
    _
  // Predicated region
  $region38: #{forward.314} parent=0 // pred_check
    _
  $region39: #{forward.314} parent=0 // pred_check_branch
    %213 = sbr.rel (0) target = $region41
  $region40: #{forward.314} parent=0 // pred_region
    _
  $region41: #{forward.314} parent=0 // pred_fallthru
    _

// kernel: forward.318
$region0: #{forward.318}
  #allocation0 [shape = 'u32[]', space=smem, size = 0x4, offset = 0x4, fixed_abs, tag = 'smem constant byte address 0x4 - core index']
  #allocation1 [shape = 'u32[144,128]{1,0:T(1,128)}', space=vmem, size = 0x12000, scoped, tag = 'internal scratch']
  %s0 = inlined_call_operand.vmem [shape: bf16[25,8,128], index: 0, kind: input, shape index: {}]
  %s1 = inlined_call_operand.vmem [shape: f32[25,8,1], index: 1, kind: input, shape index: {}]
  %s2 = inlined_call_operand.vmem [shape: bf16[8,8], index: 2, kind: input, shape index: {}]
  %s3 = inlined_call_operand.vmem [shape: f32[8,128], index: 3, kind: output, shape index: {0}]
  %s4 = inlined_call_operand.vmem [shape: f32[8,1], index: 4, kind: output, shape index: {1}]
  %s5 = inlined_call_operand.vmem [shape: f32[8,1], index: 5, kind: output, shape index: {2}]
  %6 = xla_tuple %s3, %s4, %s5
  %s7 = sld [smem:[#allocation0]]
  $region42: #{forward.318} parent=0
    _
  %s9 = ssub.s32 1, %s7
  %s10 = scalar_select 0, %s9, %s7
  // Predicated region
  $region2: #{forward.318} parent=0 // pred_check
    _
  $region3: #{forward.318} parent=0 // pred_check_branch
    %12 = sbr.rel (0) target = $region5
  $region4: #{forward.318} parent=0 // pred_region
    _
  $region5: #{forward.318} parent=0 // pred_fallthru
    _
  // Predicated region
  $region6: #{forward.318} parent=0 // pred_check
    _
  $region7: #{forward.318} parent=0 // pred_check_branch
    %14 = sbr.rel (0) target = $region9
  $region8: #{forward.318} parent=0 // pred_region
    _
  $region9: #{forward.318} parent=0 // pred_fallthru
    _
  // Predicated region
  $region10: #{forward.318} parent=0 // pred_check
    _
  $region11: #{forward.318} parent=0 // pred_check_branch
    %16 = sbr.rel (0) target = $region13
  $region12: #{forward.318} parent=0 // pred_region
    _
  $region13: #{forward.318} parent=0 // pred_fallthru
    _
  %v18 = vld [vmem:[%s0] sm:$0xf]
  %v19 = vunpack.c.l.bf16 %v18
  %v20 = vmax.f32 %v19, 0.0
  %v21 = vld [vmem:[%s1] sm:$0xff]
  %23 = vset.pattern.permute.xlu0 0
  %24 = vperm.xlu0 %23, %v21
  %v25 = vpop.permute.xlu0 %24
  %v27 = vmul.f32 %v20, %v25
  %s28 = scalar_lea.vmem %s0, 4
  %v29 = vld [vmem:[%s28] sm:$0xf]
  %v30 = vunpack.c.l.bf16 %v29
  %v31 = vmax.f32 %v30, 0.0
  %s32 = scalar_lea.vmem %s1, 8
  %v33 = vld [vmem:[%s32] sm:$0xff]
  %35 = vset.pattern.permute.xlu0 0
  %36 = vperm.xlu0 %35, %v33
  %v37 = vpop.permute.xlu0 %36
  %v39 = vmul.f32 %v31, %v37
  %v40 = vadd.f32 %v27, %v39
  %s41 = scalar_lea.vmem %s0, 8
  %v42 = vld [vmem:[%s41] sm:$0xf]
  %v43 = vunpack.c.l.bf16 %v42
  %v44 = vmax.f32 %v43, 0.0
  %s45 = scalar_lea.vmem %s1, 16
  %v46 = vld [vmem:[%s45] sm:$0xff]
  %48 = vset.pattern.permute.xlu0 0
  %49 = vperm.xlu0 %48, %v46
  %v50 = vpop.permute.xlu0 %49
  %v52 = vmul.f32 %v44, %v50
  %v53 = vadd.f32 %v40, %v52
  %s54 = scalar_lea.vmem %s0, 12
  %v55 = vld [vmem:[%s54] sm:$0xf]
  %v56 = vunpack.c.l.bf16 %v55
  %v57 = vmax.f32 %v56, 0.0
  %s58 = scalar_lea.vmem %s1, 24
  %v59 = vld [vmem:[%s58] sm:$0xff]
  %61 = vset.pattern.permute.xlu0 0
  %62 = vperm.xlu0 %61, %v59
  %v63 = vpop.permute.xlu0 %62
  %v65 = vmul.f32 %v57, %v63
  %v66 = vadd.f32 %v53, %v65
  %s67 = scalar_lea.vmem %s0, 16
  %v68 = vld [vmem:[%s67] sm:$0xf]
  %v69 = vunpack.c.l.bf16 %v68
  %v70 = vmax.f32 %v69, 0.0
  %s71 = scalar_lea.vmem %s1, 32
  %v72 = vld [vmem:[%s71] sm:$0xff]
  %74 = vset.pattern.permute.xlu0 0
  %75 = vperm.xlu0 %74, %v72
  %v76 = vpop.permute.xlu0 %75
  %v78 = vmul.f32 %v70, %v76
  %v79 = vadd.f32 %v66, %v78
  %s80 = scalar_lea.vmem %s0, 20
  %v81 = vld [vmem:[%s80] sm:$0xf]
  %v82 = vunpack.c.l.bf16 %v81
  %v83 = vmax.f32 %v82, 0.0
  %s84 = scalar_lea.vmem %s1, 40
  %v85 = vld [vmem:[%s84] sm:$0xff]
  %87 = vset.pattern.permute.xlu0 0
  %88 = vperm.xlu0 %87, %v85
  %v89 = vpop.permute.xlu0 %88
  %v91 = vmul.f32 %v83, %v89
  %v92 = vadd.f32 %v79, %v91
  %s93 = scalar_lea.vmem %s0, 24
  %v94 = vld [vmem:[%s93] sm:$0xf]
  %v95 = vunpack.c.l.bf16 %v94
  %v96 = vmax.f32 %v95, 0.0
  %s97 = scalar_lea.vmem %s1, 48
  %v98 = vld [vmem:[%s97] sm:$0xff]
  %100 = vset.pattern.permute.xlu0 0
  %101 = vperm.xlu0 %100, %v98
  %v102 = vpop.permute.xlu0 %101
  %v104 = vmul.f32 %v96, %v102
  %v105 = vadd.f32 %v92, %v104
  %s106 = scalar_lea.vmem %s0, 28
  %v107 = vld [vmem:[%s106] sm:$0xf]
  %v108 = vunpack.c.l.bf16 %v107
  %v109 = vmax.f32 %v108, 0.0
  %s110 = scalar_lea.vmem %s1, 56
  %v111 = vld [vmem:[%s110] sm:$0xff]
  %113 = vset.pattern.permute.xlu0 0
  %114 = vperm.xlu0 %113, %v111
  %v115 = vpop.permute.xlu0 %114
  %v117 = vmul.f32 %v109, %v115
  %v118 = vadd.f32 %v105, %v117
  %s119 = scalar_lea.vmem %s0, 32
  %v120 = vld [vmem:[%s119] sm:$0xf]
  %v121 = vunpack.c.l.bf16 %v120
  %v122 = vmax.f32 %v121, 0.0
  %s123 = scalar_lea.vmem %s1, 64
  %v124 = vld [vmem:[%s123] sm:$0xff]
  %126 = vset.pattern.permute.xlu0 0
  %127 = vperm.xlu0 %126, %v124
  %v128 = vpop.permute.xlu0 %127
  %v130 = vmul.f32 %v122, %v128
  %v131 = vadd.f32 %v118, %v130
  %s132 = scalar_lea.vmem %s0, 36
  %v133 = vld [vmem:[%s132] sm:$0xf]
  %v134 = vunpack.c.l.bf16 %v133
  %v135 = vmax.f32 %v134, 0.0
  %s136 = scalar_lea.vmem %s1, 72
  %v137 = vld [vmem:[%s136] sm:$0xff]
  %139 = vset.pattern.permute.xlu0 0
  %140 = vperm.xlu0 %139, %v137
  %v141 = vpop.permute.xlu0 %140
  %v143 = vmul.f32 %v135, %v141
  %v144 = vadd.f32 %v131, %v143
  %s145 = scalar_lea.vmem %s0, 40
  %v146 = vld [vmem:[%s145] sm:$0xf]
  %v147 = vunpack.c.l.bf16 %v146
  %v148 = vmax.f32 %v147, 0.0
  %s149 = scalar_lea.vmem %s1, 80
  %v150 = vld [vmem:[%s149] sm:$0xff]
  %152 = vset.pattern.permute.xlu0 0
  %153 = vperm.xlu0 %152, %v150
  %v154 = vpop.permute.xlu0 %153
  %v156 = vmul.f32 %v148, %v154
  %v157 = vadd.f32 %v144, %v156
  %s158 = scalar_lea.vmem %s0, 44
  %v159 = vld [vmem:[%s158] sm:$0xf]
  %v160 = vunpack.c.l.bf16 %v159
  %v161 = vmax.f32 %v160, 0.0
  %s162 = scalar_lea.vmem %s1, 88
  %v163 = vld [vmem:[%s162] sm:$0xff]
  %165 = vset.pattern.permute.xlu0 0
  %166 = vperm.xlu0 %165, %v163
  %v167 = vpop.permute.xlu0 %166
  %v169 = vmul.f32 %v161, %v167
  %v170 = vadd.f32 %v157, %v169
  %s171 = scalar_lea.vmem %s0, 48
  %v172 = vld [vmem:[%s171] sm:$0xf]
  %v173 = vunpack.c.l.bf16 %v172
  %v174 = vmax.f32 %v173, 0.0
  %s175 = scalar_lea.vmem %s1, 96
  %v176 = vld [vmem:[%s175] sm:$0xff]
  %178 = vset.pattern.permute.xlu0 0
  %179 = vperm.xlu0 %178, %v176
  %v180 = vpop.permute.xlu0 %179
  %v182 = vmul.f32 %v174, %v180
  %v183 = vadd.f32 %v170, %v182
  %s184 = scalar_lea.vmem %s0, 52
  %v185 = vld [vmem:[%s184] sm:$0xf]
  %v186 = vunpack.c.l.bf16 %v185
  %v187 = vmax.f32 %v186, 0.0
  %s188 = scalar_lea.vmem %s1, 104
  %v189 = vld [vmem:[%s188] sm:$0xff]
  %191 = vset.pattern.permute.xlu0 0
  %192 = vperm.xlu0 %191, %v189
  %v193 = vpop.permute.xlu0 %192
  %v195 = vmul.f32 %v187, %v193
  %v196 = vadd.f32 %v183, %v195
  %s197 = scalar_lea.vmem %s0, 56
  %v198 = vld [vmem:[%s197] sm:$0xf]
  %v199 = vunpack.c.l.bf16 %v198
  %v200 = vmax.f32 %v199, 0.0
  %s201 = scalar_lea.vmem %s1, 112
  %v202 = vld [vmem:[%s201] sm:$0xff]
  %204 = vset.pattern.permute.xlu0 0
  %205 = vperm.xlu0 %204, %v202
  %v206 = vpop.permute.xlu0 %205
  %v208 = vmul.f32 %v200, %v206
  %v209 = vadd.f32 %v196, %v208
  %s210 = scalar_lea.vmem %s0, 60
  %v211 = vld [vmem:[%s210] sm:$0xf]
  %v212 = vunpack.c.l.bf16 %v211
  %v213 = vmax.f32 %v212, 0.0
  %s214 = scalar_lea.vmem %s1, 120
  %v215 = vld [vmem:[%s214] sm:$0xff]
  %217 = vset.pattern.permute.xlu0 0
  %218 = vperm.xlu0 %217, %v215
  %v219 = vpop.permute.xlu0 %218
  %v221 = vmul.f32 %v213, %v219
  %v222 = vadd.f32 %v209, %v221
  %s223 = scalar_lea.vmem %s0, 64
  %v224 = vld [vmem:[%s223] sm:$0xf]
  %v225 = vunpack.c.l.bf16 %v224
  %v226 = vmax.f32 %v225, 0.0
  %s227 = scalar_lea.vmem %s1, 128
  %v228 = vld [vmem:[%s227] sm:$0xff]
  %230 = vset.pattern.permute.xlu0 0
  %231 = vperm.xlu0 %230, %v228
  %v232 = vpop.permute.xlu0 %231
  %v234 = vmul.f32 %v226, %v232
  %v235 = vadd.f32 %v222, %v234
  %s236 = scalar_lea.vmem %s0, 68
  %v237 = vld [vmem:[%s236] sm:$0xf]
  %v238 = vunpack.c.l.bf16 %v237
  %v239 = vmax.f32 %v238, 0.0
  %s240 = scalar_lea.vmem %s1, 136
  %v241 = vld [vmem:[%s240] sm:$0xff]
  %243 = vset.pattern.permute.xlu0 0
  %244 = vperm.xlu0 %243, %v241
  %v245 = vpop.permute.xlu0 %244
  %v247 = vmul.f32 %v239, %v245
  %v248 = vadd.f32 %v235, %v247
  %s249 = scalar_lea.vmem %s0, 72
  %v250 = vld [vmem:[%s249] sm:$0xf]
  %v251 = vunpack.c.l.bf16 %v250
  %v252 = vmax.f32 %v251, 0.0
  %s253 = scalar_lea.vmem %s1, 144
  %v254 = vld [vmem:[%s253] sm:$0xff]
  %256 = vset.pattern.permute.xlu0 0
  %257 = vperm.xlu0 %256, %v254
  %v258 = vpop.permute.xlu0 %257
  %v260 = vmul.f32 %v252, %v258
  %v261 = vadd.f32 %v248, %v260
  %s262 = scalar_lea.vmem %s0, 76
  %v263 = vld [vmem:[%s262] sm:$0xf]
  %v264 = vunpack.c.l.bf16 %v263
  %v265 = vmax.f32 %v264, 0.0
  %s266 = scalar_lea.vmem %s1, 152
  %v267 = vld [vmem:[%s266] sm:$0xff]
  %269 = vset.pattern.permute.xlu0 0
  %270 = vperm.xlu0 %269, %v267
  %v271 = vpop.permute.xlu0 %270
  %v273 = vmul.f32 %v265, %v271
  %v274 = vadd.f32 %v261, %v273
  %s275 = scalar_lea.vmem %s0, 80
  %v276 = vld [vmem:[%s275] sm:$0xf]
  %v277 = vunpack.c.l.bf16 %v276
  %v278 = vmax.f32 %v277, 0.0
  %s279 = scalar_lea.vmem %s1, 160
  %v280 = vld [vmem:[%s279] sm:$0xff]
  %282 = vset.pattern.permute.xlu0 0
  %283 = vperm.xlu0 %282, %v280
  %v284 = vpop.permute.xlu0 %283
  %v286 = vmul.f32 %v278, %v284
  %v287 = vadd.f32 %v274, %v286
  %s288 = scalar_lea.vmem %s0, 84
  %v289 = vld [vmem:[%s288] sm:$0xf]
  %v290 = vunpack.c.l.bf16 %v289
  %v291 = vmax.f32 %v290, 0.0
  %s292 = scalar_lea.vmem %s1, 168
  %v293 = vld [vmem:[%s292] sm:$0xff]
  %295 = vset.pattern.permute.xlu0 0
  %296 = vperm.xlu0 %295, %v293
  %v297 = vpop.permute.xlu0 %296
  %v299 = vmul.f32 %v291, %v297
  %v300 = vadd.f32 %v287, %v299
  %s301 = scalar_lea.vmem %s0, 88
  %v302 = vld [vmem:[%s301] sm:$0xf]
  %v303 = vunpack.c.l.bf16 %v302
  %v304 = vmax.f32 %v303, 0.0
  %s305 = scalar_lea.vmem %s1, 176
  %v306 = vld [vmem:[%s305] sm:$0xff]
  %308 = vset.pattern.permute.xlu0 0
  %309 = vperm.xlu0 %308, %v306
  %v310 = vpop.permute.xlu0 %309
  %v312 = vmul.f32 %v304, %v310
  %v313 = vadd.f32 %v300, %v312
  %s314 = scalar_lea.vmem %s0, 92
  %v315 = vld [vmem:[%s314] sm:$0xf]
  %v316 = vunpack.c.l.bf16 %v315
  %v317 = vmax.f32 %v316, 0.0
  %s318 = scalar_lea.vmem %s1, 184
  %v319 = vld [vmem:[%s318] sm:$0xff]
  %321 = vset.pattern.permute.xlu0 0
  %322 = vperm.xlu0 %321, %v319
  %v323 = vpop.permute.xlu0 %322
  %v325 = vmul.f32 %v317, %v323
  %v326 = vadd.f32 %v313, %v325
  %s327 = scalar_lea.vmem %s0, 96
  %v328 = vld [vmem:[%s327] sm:$0xf]
  %v329 = vunpack.c.l.bf16 %v328
  %v330 = vmax.f32 %v329, 0.0
  %s331 = scalar_lea.vmem %s1, 192
  %v332 = vld [vmem:[%s331] sm:$0xff]
  %334 = vset.pattern.permute.xlu0 0
  %335 = vperm.xlu0 %334, %v332
  %v336 = vpop.permute.xlu0 %335
  %v338 = vmul.f32 %v330, %v336
  %v339 = vadd.f32 %v326, %v338
  %v340 = vld [vmem:[%s2] sm:$0xf]
  %v341 = vpack.c.bf16 %v339, %v339
  %vm342 = vcmask 64512
  %v344 = vsel %vm342, %v340, 0
  %vm346 = vcmask 1043456
  %v348 = vsel %vm346, %v341, 0
  %350 = vmatprep.subr.bf16.mxu0 0
  %351 = vmatpush1.bf16.msra.mxu0 0
  %352 = vmatprep.subr.bf16.mxu0 0
  %353 = vmatpush1.bf16.msra.mxu0 0
  %354 = vmatprep.subr.bf16.mxu0 0
  %355 = vmatpush1.bf16.msra.mxu0 0
  %356 = vmatprep.subr.bf16.mxu0 0
  %357 = vmatpush1.bf16.msra.mxu0 0
  %358 = vmatprep.subr.bf16.mxu0 0
  %359 = vmatpush1.bf16.msra.mxu0 0
  %360 = vmatprep.subr.bf16.mxu0 0
  %361 = vmatpush1.bf16.msra.mxu0 0
  %362 = vmatprep.subr.bf16.mxu0 0
  %363 = vmatpush1.bf16.msra.mxu0 0
  %364 = vmatprep.subr.bf16.mxu0 0
  %365 = vmatpush1.bf16.msra.mxu0 %v348
  %366 = vmatprep.subr.bf16.mxu0 0
  %367 = vmatpush2.bf16.msra.mxu0 0
  %368 = vmatprep.subr.bf16.mxu0 0
  %369 = vmatpush2.bf16.msra.mxu0 0
  %370 = vmatprep.subr.bf16.mxu0 0
  %371 = vmatpush2.bf16.msra.mxu0 0
  %372 = vmatprep.subr.bf16.mxu0 0
  %373 = vmatpush2.bf16.msra.mxu0 0
  %374 = vmatprep.subr.bf16.mxu0 0
  %375 = vmatpush2.bf16.msra.mxu0 0
  %376 = vmatprep.subr.bf16.mxu0 0
  %377 = vmatpush2.bf16.msra.mxu0 0
  %378 = vmatprep.subr.bf16.mxu0 0
  %379 = vmatpush2.bf16.msra.mxu0 0
  %380 = vmatprep.subr.bf16.mxu0 0
  %381 = vmatpush2.bf16.msra.mxu0 0
  %382 = vmatprep.mubr.bf16.mxu0 0
  %383 = vmatmul.mubr.bf16.gmra.mxu0 %v344
  %v384 = vpop.f32.mrf.mxu0
  %v385 = vadd.f32 0.0, %v384
  %v386 = vpop.f32.mrf.mxu0
  %v387 = vpop.f32.mrf.mxu0
  %v388 = vpop.f32.mrf.mxu0
  %389 = vdwg.mxu0
  %390 = vst [vmem:[%s3] sm:$0xff] %v385
  %p391 = scmp.eq.s32.totalorder 0, 0
  // Predicated region
  $region14: #{forward.318} parent=0 // pred_check
    %p392 = pneg %p391
  $region15: #{forward.318} parent=0 // pred_check_branch
    %394 = sbr.rel (%p392) target = $region17
  $region16: #{forward.318} parent=0 // pred_region
    %vm395 = vcmask 7168
    %396 = vst.msk [vmem:[%s4] sm:$0xff] %vm395, 0.0
    %397 = vst.msk [vmem:[%s5] sm:$0xff] %vm395, 0.0
  $region17: #{forward.318} parent=0 // pred_fallthru
    _
  %v398 = vld [vmem:[%s4] sm:$0xff]
  %399 = vadd.xlane.f32.xlu0 %v385
  %v400 = vpop.xlane.xlu0 %399
  %v401 = vadd.f32 %v398, %v400
  %vm402 = vcmask 7168
  %403 = vst.msk [vmem:[%s4] sm:$0xff] %vm402, %v401
  %v404 = vld [vmem:[%s5] sm:$0xff]
  %v405 = vmul.f32 %v385, %v385
  %406 = vadd.xlane.f32.xlu0 %v405
  %v407 = vpop.xlane.xlu0 %406
  %v408 = vadd.f32 %v404, %v407
  %409 = vst.msk [vmem:[%s5] sm:$0xff] %vm402, %v408
  // Predicated region
  $region18: #{forward.318} parent=0 // pred_check
    _
  $region19: #{forward.318} parent=0 // pred_check_branch
    %411 = sbr.rel (0) target = $region21
  $region20: #{forward.318} parent=0 // pred_region
    _
  $region21: #{forward.318} parent=0 // pred_fallthru
    _
  // Predicated region
  $region22: #{forward.318} parent=0 // pred_check
    _
  $region23: #{forward.318} parent=0 // pred_check_branch
    %413 = sbr.rel (0) target = $region25
  $region24: #{forward.318} parent=0 // pred_region
    _
  $region25: #{forward.318} parent=0 // pred_fallthru
    _
  // Predicated region
  $region26: #{forward.318} parent=0 // pred_check
    _
  $region27: #{forward.318} parent=0 // pred_check_branch
    %415 = sbr.rel (0) target = $region29
  $region28: #{forward.318} parent=0 // pred_region
    _
  $region29: #{forward.318} parent=0 // pred_fallthru
    _
  // Predicated region
  $region30: #{forward.318} parent=0 // pred_check
    _
  $region31: #{forward.318} parent=0 // pred_check_branch
    %417 = sbr.rel (0) target = $region33
  $region32: #{forward.318} parent=0 // pred_region
    _
  $region33: #{forward.318} parent=0 // pred_fallthru
    _
  // Predicated region
  $region34: #{forward.318} parent=0 // pred_check
    _
  $region35: #{forward.318} parent=0 // pred_check_branch
    %419 = sbr.rel (0) target = $region37
  $region36: #{forward.318} parent=0 // pred_region
    _
  $region37: #{forward.318} parent=0 // pred_fallthru
    _
  // Predicated region
  $region38: #{forward.318} parent=0 // pred_check
    _
  $region39: #{forward.318} parent=0 // pred_check_branch
    %421 = sbr.rel (0) target = $region41
  $region40: #{forward.318} parent=0 // pred_region
    _
  $region41: #{forward.318} parent=0 // pred_fallthru
    _

// kernel: forward.326
$region0: #{forward.326}
  #allocation0 [shape = 'u32[]', space=smem, size = 0x4, offset = 0x4, fixed_abs, tag = 'smem constant byte address 0x4 - core index']
  #allocation1 [shape = 'u32[144,128]{1,0:T(1,128)}', space=vmem, size = 0x12000, scoped, tag = 'internal scratch']
  %s0 = inlined_call_operand.vmem [shape: f32[8,32], index: 0, kind: input, shape index: {}]
  %s1 = inlined_call_operand.vmem [shape: f32[8,32], index: 1, kind: input, shape index: {}]
  %s2 = inlined_call_operand.vmem [shape: f32[8,32], index: 2, kind: input, shape index: {}]
  %s3 = inlined_call_operand.vmem [shape: f32[8,32], index: 3, kind: input, shape index: {}]
  %s4 = inlined_call_operand.vmem [shape: f32[8,32], index: 4, kind: input, shape index: {}]
  %s5 = inlined_call_operand.vmem [shape: f32[8,32], index: 5, kind: input, shape index: {}]
  %s6 = inlined_call_operand.vmem [shape: f32[8,32], index: 6, kind: input, shape index: {}]
  %s7 = inlined_call_operand.vmem [shape: f32[7,1], index: 7, kind: input, shape index: {}]
  %s8 = inlined_call_operand.vmem [shape: f32[8,32], index: 8, kind: output, shape index: {}]
  %s9 = sld [smem:[#allocation0]]
  $region46: #{forward.326} parent=0
    _
  %s11 = ssub.s32 1, %s9
  %s12 = scalar_select 0, %s11, %s9
  $region1: #{forward.326} parent=0
    #allocation2 [shape = 'u8[4096]{0}', space=smem, size = 0x1000, scoped, tag = 'input window, operand 7, single buffered']
    #allocation3 [shape = 's32[1]{0}', space=sflag, size = 0x4, scoped, tag = 'scoped memory for forward.326']
    %13 = vsyncpa [#allocation3], 0
    // Predicated region
    $region2: #{forward.326} parent=1 // pred_check
      _
    $region3: #{forward.326} parent=1 // pred_check_branch
      %15 = sbr.rel (0) target = $region5
    $region4: #{forward.326} parent=1 // pred_region
      _
    $region5: #{forward.326} parent=1 // pred_fallthru
      _
    // Predicated region
    $region6: #{forward.326} parent=1 // pred_check
      _
    $region7: #{forward.326} parent=1 // pred_check_branch
      %17 = sbr.rel (0) target = $region9
    $region8: #{forward.326} parent=1 // pred_region
      _
    $region9: #{forward.326} parent=1 // pred_fallthru
      _
    // Predicated region
    $region10: #{forward.326} parent=1 // pred_check
      _
    $region11: #{forward.326} parent=1 // pred_check_branch
      %19 = sbr.rel (0) target = $region13
    $region12: #{forward.326} parent=1 // pred_region
      _
    $region13: #{forward.326} parent=1 // pred_fallthru
      _
    // Predicated region
    $region14: #{forward.326} parent=1 // pred_check
      _
    $region15: #{forward.326} parent=1 // pred_check_branch
      %21 = sbr.rel (0) target = $region17
    $region16: #{forward.326} parent=1 // pred_region
      _
    $region17: #{forward.326} parent=1 // pred_fallthru
      _
    // Predicated region
    $region18: #{forward.326} parent=1 // pred_check
      _
    $region19: #{forward.326} parent=1 // pred_check_branch
      %23 = sbr.rel (0) target = $region21
    $region20: #{forward.326} parent=1 // pred_region
      _
    $region21: #{forward.326} parent=1 // pred_fallthru
      _
    // Predicated region
    $region22: #{forward.326} parent=1 // pred_check
      _
    $region23: #{forward.326} parent=1 // pred_check_branch
      %25 = sbr.rel (0) target = $region25
    $region24: #{forward.326} parent=1 // pred_region
      _
    $region25: #{forward.326} parent=1 // pred_fallthru
      _
    // Predicated region
    $region26: #{forward.326} parent=1 // pred_check
      _
    $region27: #{forward.326} parent=1 // pred_check_branch
      %27 = sbr.rel (0) target = $region29
    $region28: #{forward.326} parent=1 // pred_region
      _
    $region29: #{forward.326} parent=1 // pred_fallthru
      _
    // Predicated region
    $region30: #{forward.326} parent=1 // pred_check
      _
    $region31: #{forward.326} parent=1 // pred_check_branch
      %29 = sbr.rel (0) target = $region33
    $region32: #{forward.326} parent=1 // pred_region
      %s31 = ssub.s32 128, 128
      %32 = vsyncadd [#allocation3], %s31
      %s34 = sshll.u32 %s7, 4
      %s35 = int_to_ptr.vmem [resolvable:$true] %s34
      %37 = dma.vmem_to_smem %s35, 128, [#allocation2], [#allocation3]
    $region33: #{forward.326} parent=1 // pred_fallthru
      _
    // Predicated region
    $region34: #{forward.326} parent=1 // pred_check
      _
    $region35: #{forward.326} parent=1 // pred_check_branch
      %39 = sbr.rel (0) target = $region37
    $region36: #{forward.326} parent=1 // pred_region
      %40 = dma.done [#allocation3], 128
    $region37: #{forward.326} parent=1 // pred_fallthru
      _
    %41 = sfence
    %v42 = vld [vmem:[%s0] sm:$0xff]
    %s43 = sld [smem:[#allocation2]]
    %v44 = vstv %s43
    %v45 = vmul.f32 %v42, %v44
    %v46 = vld [vmem:[%s1] sm:$0xff]
    %s47 = sld [smem:[#allocation2 + $0x80]]
    %v48 = vstv %s47
    %v49 = vmul.f32 %v46, %v48
    %v50 = vadd.f32 %v45, %v49
    %v51 = vld [vmem:[%s2] sm:$0xff]
    %s52 = sld [smem:[#allocation2 + $0x100]]
    %v53 = vstv %s52
    %v54 = vmul.f32 %v51, %v53
    %v55 = vadd.f32 %v50, %v54
    %v56 = vld [vmem:[%s3] sm:$0xff]
    %s57 = sld [smem:[#allocation2 + $0x180]]
    %v58 = vstv %s57
    %v59 = vmul.f32 %v56, %v58
    %v60 = vadd.f32 %v55, %v59
    %v61 = vld [vmem:[%s4] sm:$0xff]
    %s62 = sld [smem:[#allocation2 + $0x200]]
    %v63 = vstv %s62
    %v64 = vmul.f32 %v61, %v63
    %v65 = vadd.f32 %v60, %v64
    %v66 = vld [vmem:[%s5] sm:$0xff]
    %s67 = sld [smem:[#allocation2 + $0x280]]
    %v68 = vstv %s67
    %v69 = vmul.f32 %v66, %v68
    %v70 = vadd.f32 %v65, %v69
    %v71 = vld [vmem:[%s6] sm:$0xff]
    %s72 = sld [smem:[#allocation2 + $0x300]]
    %v73 = vstv %s72
    %v74 = vmul.f32 %v71, %v73
    %v75 = vadd.f32 %v70, %v74
    %vm76 = vcmask 261120
    %77 = vst.msk [vmem:[%s8] sm:$0xff] %vm76, %v75
    // Predicated region
    $region38: #{forward.326} parent=1 // pred_check
      _
    $region39: #{forward.326} parent=1 // pred_check_branch
      %79 = sbr.rel (0) target = $region41
    $region40: #{forward.326} parent=1 // pred_region
      _
    $region41: #{forward.326} parent=1 // pred_fallthru
      _
    // Predicated region
    $region42: #{forward.326} parent=1 // pred_check
      _
    $region43: #{forward.326} parent=1 // pred_check_branch
      %81 = sbr.rel (0) target = $region45
    $region44: #{forward.326} parent=1 // pred_region
      _
    $region45: #{forward.326} parent=1 // pred_fallthru
      _
    %82 = vsyncpa [#allocation3], 1

// kernel: forward.327
$region0: #{forward.327}
  #allocation0 [shape = 'u32[]', space=smem, size = 0x4, offset = 0x4, fixed_abs, tag = 'smem constant byte address 0x4 - core index']
  #allocation1 [shape = 'u32[144,128]{1,0:T(1,128)}', space=vmem, size = 0x12000, scoped, tag = 'internal scratch']
  %s0 = inlined_call_operand.vmem [shape: bf16[4,24,128], index: 0, kind: input, shape index: {}]
  %s1 = inlined_call_operand.vmem [shape: f32[24,128], index: 1, kind: output, shape index: {}]
  %s2 = sld [smem:[#allocation0]]
  $region14: #{forward.327} parent=0
    _
  %s4 = ssub.s32 1, %s2
  %s5 = scalar_select 0, %s4, %s2
  // Predicated region
  $region2: #{forward.327} parent=0 // pred_check
    _
  $region3: #{forward.327} parent=0 // pred_check_branch
    %7 = sbr.rel (0) target = $region5
  $region4: #{forward.327} parent=0 // pred_region
    _
  $region5: #{forward.327} parent=0 // pred_fallthru
    _
  %v8 = vld [vmem:[%s0] sm:$0xf]
  %v9 = vld [vmem:[%s0 + $0x4] sm:$0xf]
  %v10 = vld [vmem:[%s0 + $0x8] sm:$0xf]
  %s11 = scalar_lea.vmem %s0, 12
  %v12 = vld [vmem:[%s11] sm:$0xf]
  %v13 = vld [vmem:[%s11 + $0x4] sm:$0xf]
  %v14 = vld [vmem:[%s11 + $0x8] sm:$0xf]
  %v15 = vmax.bf16 %v8, %v12
  %v16 = vmax.bf16 %v9, %v13
  %v17 = vmax.bf16 %v10, %v14
  %s18 = scalar_lea.vmem %s0, 24
  %v19 = vld [vmem:[%s18] sm:$0xf]
  %v20 = vld [vmem:[%s18 + $0x4] sm:$0xf]
  %v21 = vld [vmem:[%s18 + $0x8] sm:$0xf]
  %v22 = vmax.bf16 %v15, %v19
  %v23 = vmax.bf16 %v16, %v20
  %v24 = vmax.bf16 %v17, %v21
  %s25 = scalar_lea.vmem %s0, 36
  %v26 = vld [vmem:[%s25] sm:$0xf]
  %v27 = vld [vmem:[%s25 + $0x4] sm:$0xf]
  %v28 = vld [vmem:[%s25 + $0x8] sm:$0xf]
  %v29 = vmax.bf16 %v22, %v26
  %v30 = vmax.bf16 %v23, %v27
  %v31 = vmax.bf16 %v24, %v28
  %v32 = vunpack.c.l.bf16 %v29
  %v33 = vunpack.c.l.bf16 %v30
  %v34 = vunpack.c.l.bf16 %v31
  %35 = vst [vmem:[%s1] sm:$0xff] %v32
  %36 = vst [vmem:[%s1 + $0x8] sm:$0xff] %v33
  %37 = vst [vmem:[%s1 + $0x10] sm:$0xff] %v34
  // Predicated region
  $region6: #{forward.327} parent=0 // pred_check
    _
  $region7: #{forward.327} parent=0 // pred_check_branch
    %39 = sbr.rel (0) target = $region9
  $region8: #{forward.327} parent=0 // pred_region
    _
  $region9: #{forward.327} parent=0 // pred_fallthru
    _
  // Predicated region
  $region10: #{forward.327} parent=0 // pred_check
    _
  $region11: #{forward.327} parent=0 // pred_check_branch
    %41 = sbr.rel (0) target = $region13
  $region12: #{forward.327} parent=0 // pred_region
    _
  $region13: #{forward.327} parent=0 // pred_fallthru
    _

// kernel: forward.348
$region0: #{forward.348}
  #allocation0 [shape = 'u32[]', space=smem, size = 0x4, offset = 0x4, fixed_abs, tag = 'smem constant byte address 0x4 - core index']
  #allocation1 [shape = 'u32[144,128]{1,0:T(1,128)}', space=vmem, size = 0x12000, scoped, tag = 'internal scratch']
  %s0 = inlined_call_operand.vmem [shape: f32[32,32], index: 0, kind: input, shape index: {}]
  %s1 = inlined_call_operand.vmem [shape: f32[32,32], index: 1, kind: input, shape index: {}]
  %s2 = inlined_call_operand.vmem [shape: f32[2,1], index: 2, kind: input, shape index: {}]
  %s3 = inlined_call_operand.vmem [shape: f32[32,32], index: 3, kind: output, shape index: {}]
  %s4 = sld [smem:[#allocation0]]
  $region26: #{forward.348} parent=0
    _
  %s6 = ssub.s32 1, %s4
  %s7 = scalar_select 0, %s6, %s4
  $region1: #{forward.348} parent=0
    #allocation2 [shape = 'u8[1024]{0}', space=smem, size = 0x400, scoped, tag = 'input window, operand 2, single buffered']
    #allocation3 [shape = 's32[1]{0}', space=sflag, size = 0x4, scoped, tag = 'scoped memory for forward.348']
    %8 = vsyncpa [#allocation3], 0
    // Predicated region
    $region2: #{forward.348} parent=1 // pred_check
      _
    $region3: #{forward.348} parent=1 // pred_check_branch
      %10 = sbr.rel (0) target = $region5
    $region4: #{forward.348} parent=1 // pred_region
      _
    $region5: #{forward.348} parent=1 // pred_fallthru
      _
    // Predicated region
    $region6: #{forward.348} parent=1 // pred_check
      _
    $region7: #{forward.348} parent=1 // pred_check_branch
      %12 = sbr.rel (0) target = $region9
    $region8: #{forward.348} parent=1 // pred_region
      _
    $region9: #{forward.348} parent=1 // pred_fallthru
      _
    // Predicated region
    $region10: #{forward.348} parent=1 // pred_check
      _
    $region11: #{forward.348} parent=1 // pred_check_branch
      %14 = sbr.rel (0) target = $region13
    $region12: #{forward.348} parent=1 // pred_region
      %s16 = ssub.s32 32, 32
      %17 = vsyncadd [#allocation3], %s16
      %s19 = sshll.u32 %s2, 4
      %s20 = int_to_ptr.vmem [resolvable:$true] %s19
      %22 = dma.vmem_to_smem %s20, 32, [#allocation2], [#allocation3]
    $region13: #{forward.348} parent=1 // pred_fallthru
      _
    // Predicated region
    $region14: #{forward.348} parent=1 // pred_check
      _
    $region15: #{forward.348} parent=1 // pred_check_branch
      %24 = sbr.rel (0) target = $region17
    $region16: #{forward.348} parent=1 // pred_region
      %25 = dma.done [#allocation3], 32
    $region17: #{forward.348} parent=1 // pred_fallthru
      _
    %26 = sfence
    %v27 = vld [vmem:[%s0] sm:$0xff]
    %v28 = vld [vmem:[%s0 + $0x8] sm:$0xff]
    %v29 = vld [vmem:[%s0 + $0x10] sm:$0xff]
    %v30 = vld [vmem:[%s0 + $0x18] sm:$0xff]
    %s31 = sld [smem:[#allocation2]]
    %v32 = vstv %s31
    %v33 = vmul.f32 %v27, %v32
    %v34 = vmul.f32 %v28, %v32
    %v35 = vmul.f32 %v29, %v32
    %v36 = vmul.f32 %v30, %v32
    %v37 = vld [vmem:[%s1] sm:$0xff]
    %v38 = vld [vmem:[%s1 + $0x8] sm:$0xff]
    %v39 = vld [vmem:[%s1 + $0x10] sm:$0xff]
    %v40 = vld [vmem:[%s1 + $0x18] sm:$0xff]
    %s41 = sld [smem:[#allocation2 + $0x80]]
    %v42 = vstv %s41
    %v43 = vmul.f32 %v37, %v42
    %v44 = vmul.f32 %v38, %v42
    %v45 = vmul.f32 %v39, %v42
    %v46 = vmul.f32 %v40, %v42
    %v47 = vadd.f32 %v33, %v43
    %v48 = vadd.f32 %v34, %v44
    %v49 = vadd.f32 %v35, %v45
    %v50 = vadd.f32 %v36, %v46
    %vm51 = vcmask 261120
    %52 = vst.msk [vmem:[%s3] sm:$0xff] %vm51, %v47
    %53 = vst.msk [vmem:[%s3 + $0x8] sm:$0xff] %vm51, %v48
    %54 = vst.msk [vmem:[%s3 + $0x10] sm:$0xff] %vm51, %v49
    %55 = vst.msk [vmem:[%s3 + $0x18] sm:$0xff] %vm51, %v50
    // Predicated region
    $region18: #{forward.348} parent=1 // pred_check
      _
    $region19: #{forward.348} parent=1 // pred_check_branch
      %57 = sbr.rel (0) target = $region21
    $region20: #{forward.348} parent=1 // pred_region
      _
    $region21: #{forward.348} parent=1 // pred_fallthru
      _
    // Predicated region
    $region22: #{forward.348} parent=1 // pred_check
      _
    $region23: #{forward.348} parent=1 // pred_check_branch
      %59 = sbr.rel (0) target = $region25
    $region24: #{forward.348} parent=1 // pred_region
      _
    $region25: #{forward.348} parent=1 // pred_fallthru
      _
    %60 = vsyncpa [#allocation3], 1

// kernel: forward.396
$region0: #{forward.396}
  #allocation0 [shape = 'u32[]', space=smem, size = 0x4, offset = 0x4, fixed_abs, tag = 'smem constant byte address 0x4 - core index']
  #allocation1 [shape = 'u32[144,128]{1,0:T(1,128)}', space=vmem, size = 0x12000, scoped, tag = 'internal scratch']
  %s0 = inlined_call_operand.vmem [shape: f32[32,32], index: 0, kind: input, shape index: {}]
  %s1 = inlined_call_operand.vmem [shape: f32[32,32], index: 1, kind: input, shape index: {}]
  %s2 = inlined_call_operand.vmem [shape: f32[32,32], index: 2, kind: input, shape index: {}]
  %s3 = inlined_call_operand.vmem [shape: f32[3,1], index: 3, kind: input, shape index: {}]
  %s4 = inlined_call_operand.vmem [shape: f32[32,32], index: 4, kind: output, shape index: {}]
  %s5 = sld [smem:[#allocation0]]
  $region30: #{forward.396} parent=0
    _
  %s7 = ssub.s32 1, %s5
  %s8 = scalar_select 0, %s7, %s5
  $region1: #{forward.396} parent=0
    #allocation2 [shape = 'u8[2048]{0}', space=smem, size = 0x800, scoped, tag = 'input window, operand 3, single buffered']
    #allocation3 [shape = 's32[1]{0}', space=sflag, size = 0x4, scoped, tag = 'scoped memory for forward.396']
    %9 = vsyncpa [#allocation3], 0
    // Predicated region
    $region2: #{forward.396} parent=1 // pred_check
      _
    $region3: #{forward.396} parent=1 // pred_check_branch
      %11 = sbr.rel (0) target = $region5
    $region4: #{forward.396} parent=1 // pred_region
      _
    $region5: #{forward.396} parent=1 // pred_fallthru
      _
    // Predicated region
    $region6: #{forward.396} parent=1 // pred_check
      _
    $region7: #{forward.396} parent=1 // pred_check_branch
      %13 = sbr.rel (0) target = $region9
    $region8: #{forward.396} parent=1 // pred_region
      _
    $region9: #{forward.396} parent=1 // pred_fallthru
      _
    // Predicated region
    $region10: #{forward.396} parent=1 // pred_check
      _
    $region11: #{forward.396} parent=1 // pred_check_branch
      %15 = sbr.rel (0) target = $region13
    $region12: #{forward.396} parent=1 // pred_region
      _
    $region13: #{forward.396} parent=1 // pred_fallthru
      _
    // Predicated region
    $region14: #{forward.396} parent=1 // pred_check
      _
    $region15: #{forward.396} parent=1 // pred_check_branch
      %17 = sbr.rel (0) target = $region17
    $region16: #{forward.396} parent=1 // pred_region
      %s19 = ssub.s32 64, 64
      %20 = vsyncadd [#allocation3], %s19
      %s22 = sshll.u32 %s3, 4
      %s23 = int_to_ptr.vmem [resolvable:$true] %s22
      %25 = dma.vmem_to_smem %s23, 64, [#allocation2], [#allocation3]
    $region17: #{forward.396} parent=1 // pred_fallthru
      _
    // Predicated region
    $region18: #{forward.396} parent=1 // pred_check
      _
    $region19: #{forward.396} parent=1 // pred_check_branch
      %27 = sbr.rel (0) target = $region21
    $region20: #{forward.396} parent=1 // pred_region
      %28 = dma.done [#allocation3], 64
    $region21: #{forward.396} parent=1 // pred_fallthru
      _
    %29 = sfence
    %v30 = vld [vmem:[%s0] sm:$0xff]
    %v31 = vld [vmem:[%s0 + $0x8] sm:$0xff]
    %v32 = vld [vmem:[%s0 + $0x10] sm:$0xff]
    %v33 = vld [vmem:[%s0 + $0x18] sm:$0xff]
    %s34 = sld [smem:[#allocation2]]
    %v35 = vstv %s34
    %v36 = vmul.f32 %v30, %v35
    %v37 = vmul.f32 %v31, %v35
    %v38 = vmul.f32 %v32, %v35
    %v39 = vmul.f32 %v33, %v35
    %v40 = vld [vmem:[%s1] sm:$0xff]
    %v41 = vld [vmem:[%s1 + $0x8] sm:$0xff]
    %v42 = vld [vmem:[%s1 + $0x10] sm:$0xff]
    %v43 = vld [vmem:[%s1 + $0x18] sm:$0xff]
    %s44 = sld [smem:[#allocation2 + $0x80]]
    %v45 = vstv %s44
    %v46 = vmul.f32 %v40, %v45
    %v47 = vmul.f32 %v41, %v45
    %v48 = vmul.f32 %v42, %v45
    %v49 = vmul.f32 %v43, %v45
    %v50 = vadd.f32 %v36, %v46
    %v51 = vadd.f32 %v37, %v47
    %v52 = vadd.f32 %v38, %v48
    %v53 = vadd.f32 %v39, %v49
    %v54 = vld [vmem:[%s2] sm:$0xff]
    %v55 = vld [vmem:[%s2 + $0x8] sm:$0xff]
    %v56 = vld [vmem:[%s2 + $0x10] sm:$0xff]
    %v57 = vld [vmem:[%s2 + $0x18] sm:$0xff]
    %s58 = sld [smem:[#allocation2 + $0x100]]
    %v59 = vstv %s58
    %v60 = vmul.f32 %v54, %v59
    %v61 = vmul.f32 %v55, %v59
    %v62 = vmul.f32 %v56, %v59
    %v63 = vmul.f32 %v57, %v59
    %v64 = vadd.f32 %v50, %v60
    %v65 = vadd.f32 %v51, %v61
    %v66 = vadd.f32 %v52, %v62
    %v67 = vadd.f32 %v53, %v63
    %vm68 = vcmask 261120
    %69 = vst.msk [vmem:[%s4] sm:$0xff] %vm68, %v64
    %70 = vst.msk [vmem:[%s4 + $0x8] sm:$0xff] %vm68, %v65
    %71 = vst.msk [vmem:[%s4 + $0x10] sm:$0xff] %vm68, %v66
    %72 = vst.msk [vmem:[%s4 + $0x18] sm:$0xff] %vm68, %v67
    // Predicated region
    $region22: #{forward.396} parent=1 // pred_check
      _
    $region23: #{forward.396} parent=1 // pred_check_branch
      %74 = sbr.rel (0) target = $region25
    $region24: #{forward.396} parent=1 // pred_region
      _
    $region25: #{forward.396} parent=1 // pred_fallthru
      _
    // Predicated region
    $region26: #{forward.396} parent=1 // pred_check
      _
    $region27: #{forward.396} parent=1 // pred_check_branch
      %76 = sbr.rel (0) target = $region29
    $region28: #{forward.396} parent=1 // pred_region
      _
    $region29: #{forward.396} parent=1 // pred_fallthru
      _
    %77 = vsyncpa [#allocation3], 1

// kernel: forward.397
$region0: #{forward.397}
  #allocation0 [shape = 'u32[]', space=smem, size = 0x4, offset = 0x4, fixed_abs, tag = 'smem constant byte address 0x4 - core index']
  #allocation1 [shape = 'u32[144,128]{1,0:T(1,128)}', space=vmem, size = 0x12000, scoped, tag = 'internal scratch']
  %s0 = inlined_call_operand.vmem [shape: f32[64,32], index: 0, kind: input, shape index: {}]
  %s1 = inlined_call_operand.vmem [shape: f32[32,2], index: 1, kind: input, shape index: {}]
  %s2 = inlined_call_operand.vmem [shape: f32[10,64], index: 2, kind: input, shape index: {}]
  %s3 = inlined_call_operand.vmem [shape: f32[10,1], index: 3, kind: input, shape index: {}]
  %s4 = inlined_call_operand.vmem [shape: f32[10,2], index: 4, kind: output, shape index: {}]
  %s5 = sld [smem:[#allocation0]]
  $region26: #{forward.397} parent=0
    _
  %s7 = ssub.s32 1, %s5
  %s8 = scalar_select 0, %s7, %s5
  // Predicated region
  $region2: #{forward.397} parent=0 // pred_check
    _
  $region3: #{forward.397} parent=0 // pred_check_branch
    %10 = sbr.rel (0) target = $region5
  $region4: #{forward.397} parent=0 // pred_region
    _
  $region5: #{forward.397} parent=0 // pred_fallthru
    _
  // Predicated region
  $region6: #{forward.397} parent=0 // pred_check
    _
  $region7: #{forward.397} parent=0 // pred_check_branch
    %12 = sbr.rel (0) target = $region9
  $region8: #{forward.397} parent=0 // pred_region
    _
  $region9: #{forward.397} parent=0 // pred_fallthru
    _
  // Predicated region
  $region10: #{forward.397} parent=0 // pred_check
    _
  $region11: #{forward.397} parent=0 // pred_check_branch
    %14 = sbr.rel (0) target = $region13
  $region12: #{forward.397} parent=0 // pred_region
    _
  $region13: #{forward.397} parent=0 // pred_fallthru
    _
  // Predicated region
  $region14: #{forward.397} parent=0 // pred_check
    _
  $region15: #{forward.397} parent=0 // pred_check_branch
    %16 = sbr.rel (0) target = $region17
  $region16: #{forward.397} parent=0 // pred_region
    _
  $region17: #{forward.397} parent=0 // pred_fallthru
    _
  %v17 = vld [vmem:[%s0] sm:$0xff]
  %v18 = vld [vmem:[%s0 + $0x8] sm:$0xff]
  %v19 = vld [vmem:[%s0 + $0x10] sm:$0xff]
  %v20 = vld [vmem:[%s0 + $0x18] sm:$0xff]
  %v21 = vld [vmem:[%s0 + $0x20] sm:$0xff]
  %v22 = vld [vmem:[%s0 + $0x28] sm:$0xff]
  %v23 = vld [vmem:[%s0 + $0x30] sm:$0xff]
  %v24 = vld [vmem:[%s0 + $0x38] sm:$0xff]
  %v25 = vld [vmem:[%s1] sm:$0xff]
  %v26 = vld [vmem:[%s1 + $0x8] sm:$0xff]
  %v27 = vld [vmem:[%s1 + $0x10] sm:$0xff]
  %v28 = vld [vmem:[%s1 + $0x18] sm:$0xff]
  %vm29 = vcmask 261120
  %v31 = vsel %vm29, %v17, 0
  %v34 = vsel %vm29, %v18, 0
  %v37 = vsel %vm29, %v19, 0
  %v40 = vsel %vm29, %v20, 0
  %v43 = vsel %vm29, %v21, 0
  %v46 = vsel %vm29, %v22, 0
  %v49 = vsel %vm29, %v23, 0
  %v52 = vsel %vm29, %v24, 0
  %54 = vmatprep.subr.mxu0 0.0
  %55 = vmatpush1.msra.mxu0 0.0
  %56 = vmatprep.subr.mxu0 0.0
  %57 = vmatpush1.msra.mxu0 0.0
  %58 = vmatprep.subr.mxu0 0.0
  %59 = vmatpush1.msra.mxu0 0.0
  %60 = vmatprep.subr.mxu0 0.0
  %61 = vmatpush1.msra.mxu0 0.0
  %62 = vmatprep.subr.mxu0 0.0
  %63 = vmatpush1.msra.mxu0 0.0
  %64 = vmatprep.subr.mxu0 0.0
  %65 = vmatpush1.msra.mxu0 0.0
  %66 = vmatprep.subr.mxu0 0.0
  %67 = vmatpush1.msra.mxu0 0.0
  %68 = vmatprep.subr.mxu0 0.0
  %69 = vmatpush1.msra.mxu0 0.0
  %70 = vmatprep.subr.mxu0 0.0
  %71 = vmatpush1.msra.mxu0 0.0
  %72 = vmatprep.subr.mxu0 0.0
  %73 = vmatpush1.msra.mxu0 0.0
  %74 = vmatprep.subr.mxu0 0.0
  %75 = vmatpush1.msra.mxu0 0.0
  %76 = vmatprep.subr.mxu0 0.0
  %77 = vmatpush1.msra.mxu0 0.0
  %78 = vmatprep.subr.mxu0 0.0
  %79 = vmatpush1.msra.mxu0 %v28
  %80 = vmatprep.subr.mxu0 0.0
  %81 = vmatpush1.msra.mxu0 %v27
  %82 = vmatprep.subr.mxu0 0.0
  %83 = vmatpush1.msra.mxu0 %v26
  %84 = vmatprep.subr.mxu0 0.0
  %85 = vmatpush1.msra.mxu0 %v25
  %86 = vmatprep.subr.mxu0 0.0
  %87 = vmatpush2.msra.mxu0 0.0
  %88 = vmatprep.subr.mxu0 0.0
  %89 = vmatpush2.msra.mxu0 0.0
  %90 = vmatprep.subr.mxu0 0.0
  %91 = vmatpush2.msra.mxu0 0.0
  %92 = vmatprep.subr.mxu0 0.0
  %93 = vmatpush2.msra.mxu0 0.0
  %94 = vmatprep.subr.mxu0 0.0
  %95 = vmatpush2.msra.mxu0 0.0
  %96 = vmatprep.subr.mxu0 0.0
  %97 = vmatpush2.msra.mxu0 0.0
  %98 = vmatprep.subr.mxu0 0.0
  %99 = vmatpush2.msra.mxu0 0.0
  %100 = vmatprep.subr.mxu0 0.0
  %101 = vmatpush2.msra.mxu0 0.0
  %102 = vmatprep.subr.mxu0 0.0
  %103 = vmatpush2.msra.mxu0 0.0
  %104 = vmatprep.subr.mxu0 0.0
  %105 = vmatpush2.msra.mxu0 0.0
  %106 = vmatprep.subr.mxu0 0.0
  %107 = vmatpush2.msra.mxu0 0.0
  %108 = vmatprep.subr.mxu0 0.0
  %109 = vmatpush2.msra.mxu0 0.0
  %110 = vmatprep.subr.mxu0 0.0
  %111 = vmatpush2.msra.mxu0 0.0
  %112 = vmatprep.subr.mxu0 0.0
  %113 = vmatpush2.msra.mxu0 0.0
  %114 = vmatprep.subr.mxu0 0.0
  %115 = vmatpush2.msra.mxu0 0.0
  %116 = vmatprep.subr.mxu0 0.0
  %117 = vmatpush2.msra.mxu0 0.0
  %118 = vmatprep.mubr.f32.mxu0 0.0
  %119 = vmatmul.mubr.f32.gmra.mxu0 %v31
  %v120 = vpop.f32.mrf.mxu0
  %v121 = vadd.f32 0.0, %v120
  %v122 = vpop.f32.mrf.mxu0
  %123 = vmatprep.mubr.f32.mxu0 0.0
  %124 = vmatmul.mubr.f32.gmra.mxu0 %v34
  %v125 = vpop.f32.mrf.mxu0
  %v126 = vadd.f32 0.0, %v125
  %v127 = vpop.f32.mrf.mxu0
  %128 = vmatprep.mubr.f32.mxu0 0.0
  %129 = vmatmul.mubr.f32.gmra.mxu0 %v37
  %v130 = vpop.f32.mrf.mxu0
  %v131 = vadd.f32 0.0, %v130
  %v132 = vpop.f32.mrf.mxu0
  %133 = vmatprep.mubr.f32.mxu0 0.0
  %134 = vmatmul.mubr.f32.gmra.mxu0 %v40
  %v135 = vpop.f32.mrf.mxu0
  %v136 = vadd.f32 0.0, %v135
  %v137 = vpop.f32.mrf.mxu0
  %138 = vmatprep.mubr.f32.mxu0 0.0
  %139 = vmatmul.mubr.f32.gmra.mxu0 %v43
  %v140 = vpop.f32.mrf.mxu0
  %v141 = vadd.f32 0.0, %v140
  %v142 = vpop.f32.mrf.mxu0
  %143 = vmatprep.mubr.f32.mxu0 0.0
  %144 = vmatmul.mubr.f32.gmra.mxu0 %v46
  %v145 = vpop.f32.mrf.mxu0
  %v146 = vadd.f32 0.0, %v145
  %v147 = vpop.f32.mrf.mxu0
  %148 = vmatprep.mubr.f32.mxu0 0.0
  %149 = vmatmul.mubr.f32.gmra.mxu0 %v49
  %v150 = vpop.f32.mrf.mxu0
  %v151 = vadd.f32 0.0, %v150
  %v152 = vpop.f32.mrf.mxu0
  %153 = vmatprep.mubr.f32.mxu0 0.0
  %154 = vmatmul.mubr.f32.gmra.mxu0 %v52
  %v155 = vpop.f32.mrf.mxu0
  %v156 = vadd.f32 0.0, %v155
  %v157 = vpop.f32.mrf.mxu0
  %158 = vdwg.mxu0
  %v159 = vld [vmem:[%s2] sm:$0xff]
  %v160 = vld [vmem:[%s2 + $0x8] sm:$0x3]
  %v161 = vld [vmem:[%s3] sm:$0xff]
  %v162 = vld [vmem:[%s3 + $0x8] sm:$0x3]
  %164 = vset.pattern.permute.xlu0 0
  %165 = vperm.xlu0 %164, %v161
  %v166 = vpop.permute.xlu0 %165
  %169 = vset.pattern.permute.xlu0 0
  %170 = vperm.xlu0 %169, %v162
  %v171 = vpop.permute.xlu0 %170
  %vm173 = vcmask 523264
  %v175 = vsel %vm173, %v159, 0
  %v178 = vsel %vm173, %v160, 0
  %180 = vmatprep.subr.mxu0 0.0
  %181 = vmatpush1.msra.mxu0 0.0
  %182 = vmatprep.subr.mxu0 0.0
  %183 = vmatpush1.msra.mxu0 0.0
  %184 = vmatprep.subr.mxu0 0.0
  %185 = vmatpush1.msra.mxu0 0.0
  %186 = vmatprep.subr.mxu0 0.0
  %187 = vmatpush1.msra.mxu0 0.0
  %188 = vmatprep.subr.mxu0 0.0
  %189 = vmatpush1.msra.mxu0 0.0
  %190 = vmatprep.subr.mxu0 0.0
  %191 = vmatpush1.msra.mxu0 0.0
  %192 = vmatprep.subr.mxu0 0.0
  %193 = vmatpush1.msra.mxu0 0.0
  %194 = vmatprep.subr.mxu0 0.0
  %195 = vmatpush1.msra.mxu0 0.0
  %196 = vmatprep.subr.mxu0 0.0
  %197 = vmatpush1.msra.mxu0 %v156
  %198 = vmatprep.subr.mxu0 0.0
  %199 = vmatpush1.msra.mxu0 %v151
  %200 = vmatprep.subr.mxu0 0.0
  %201 = vmatpush1.msra.mxu0 %v146
  %202 = vmatprep.subr.mxu0 0.0
  %203 = vmatpush1.msra.mxu0 %v141
  %204 = vmatprep.subr.mxu0 0.0
  %205 = vmatpush1.msra.mxu0 %v136
  %206 = vmatprep.subr.mxu0 0.0
  %207 = vmatpush1.msra.mxu0 %v131
  %208 = vmatprep.subr.mxu0 0.0
  %209 = vmatpush1.msra.mxu0 %v126
  %210 = vmatprep.subr.mxu0 0.0
  %211 = vmatpush1.msra.mxu0 %v121
  %212 = vmatprep.subr.mxu0 0.0
  %213 = vmatpush2.msra.mxu0 0.0
  %214 = vmatprep.subr.mxu0 0.0
  %215 = vmatpush2.msra.mxu0 0.0
  %216 = vmatprep.subr.mxu0 0.0
  %217 = vmatpush2.msra.mxu0 0.0
  %218 = vmatprep.subr.mxu0 0.0
  %219 = vmatpush2.msra.mxu0 0.0
  %220 = vmatprep.subr.mxu0 0.0
  %221 = vmatpush2.msra.mxu0 0.0
  %222 = vmatprep.subr.mxu0 0.0
  %223 = vmatpush2.msra.mxu0 0.0
  %224 = vmatprep.subr.mxu0 0.0
  %225 = vmatpush2.msra.mxu0 0.0
  %226 = vmatprep.subr.mxu0 0.0
  %227 = vmatpush2.msra.mxu0 0.0
  %228 = vmatprep.subr.mxu0 0.0
  %229 = vmatpush2.msra.mxu0 0.0
  %230 = vmatprep.subr.mxu0 0.0
  %231 = vmatpush2.msra.mxu0 0.0
  %232 = vmatprep.subr.mxu0 0.0
  %233 = vmatpush2.msra.mxu0 0.0
  %234 = vmatprep.subr.mxu0 0.0
  %235 = vmatpush2.msra.mxu0 0.0
  %236 = vmatprep.subr.mxu0 0.0
  %237 = vmatpush2.msra.mxu0 0.0
  %238 = vmatprep.subr.mxu0 0.0
  %239 = vmatpush2.msra.mxu0 0.0
  %240 = vmatprep.subr.mxu0 0.0
  %241 = vmatpush2.msra.mxu0 0.0
  %242 = vmatprep.subr.mxu0 0.0
  %243 = vmatpush2.msra.mxu0 0.0
  %244 = vmatprep.mubr.f32.mxu0 0.0
  %245 = vmatmul.mubr.f32.gmra.mxu0 %v175
  %v246 = vpop.f32.mrf.mxu0
  %v247 = vadd.f32 %v166, %v246
  %v248 = vpop.f32.mrf.mxu0
  %249 = vmatprep.mubr.f32.mxu0 0.0
  %250 = vmatmul.mubr.f32.gmra.mxu0 %v178
  %v251 = vpop.f32.mrf.mxu0
  %v252 = vadd.f32 %v171, %v251
  %v253 = vpop.f32.mrf.mxu0
  %254 = vdwg.mxu0
  %vm255 = vcmask 15360
  %256 = vst.msk [vmem:[%s4] sm:$0xff] %vm255, %v247
  %vm257 = vcmask 9216
  %258 = vst.msk [vmem:[%s4 + $0x8] sm:$0x3] %vm257, %v252
  // Predicated region
  $region18: #{forward.397} parent=0 // pred_check
    _
  $region19: #{forward.397} parent=0 // pred_check_branch
    %260 = sbr.rel (0) target = $region21
  $region20: #{forward.397} parent=0 // pred_region
    _
  $region21: #{forward.397} parent=0 // pred_fallthru
    _
  // Predicated region
  $region22: #{forward.397} parent=0 // pred_check
    _
  $region23: #{forward.397} parent=0 // pred_check_branch
    %262 = sbr.rel (0) target = $region25
  $region24: #{forward.397} parent=0 // pred_region
    _
  $region25: #{forward.397} parent=0 // pred_fallthru
    _

</llo_original>
